<compile_context>
chip_gen: v7x
topology: tpu7x:2x2x1
jax: 0.10.0
libtpu: 0.0.40
codegen_flags: <defaults>
</compile_context>

<pallas_src>
import functools

import jax
import jax.numpy as jnp
from jax.experimental import pallas as pl
from jax.experimental.pallas import tpu as pltpu


# ----------------------------------------------------------------------------
# Pallas kernel: out = relu?(x @ w + b), bf16 operands, f32 accumulate/epilogue
# ----------------------------------------------------------------------------
def _matmul_bias_kernel(x_ref, w_ref, b_ref, o_ref, *, apply_relu):
    acc = jnp.dot(x_ref[...], w_ref[...], preferred_element_type=jnp.float32)
    acc = acc + b_ref[...]                      # b is (1, N) f32, broadcasts over M
    if apply_relu:
        acc = jnp.maximum(acc, 0.0)
    o_ref[...] = acc.astype(o_ref.dtype)


_VMEM_BUDGET = 20 * 1024 * 1024   # tile budget (leaves headroom under the 32 MiB limit)
_TILE_CAP = 2048                  # rows per tile cap


def _pick_m_tile(M, K, N, out_bytes):
    """Largest sublane-aligned M-tile that divides M and fits the VMEM budget."""
    if M <= 8:
        return M                                 # single block (full dim: layout-legal)
    resident = K * N * 2 + N * 4                 # bf16 weights + f32 bias stay resident
    per_row = (K * 2 + N * out_bytes) * 2        # double-buffered x row + out row
    max_rows = max(8, (_VMEM_BUDGET - resident) // per_row)
    target = min(_TILE_CAP, (max_rows // 8) * 8)
    if target >= M:
        return M                                 # whole thing fits in one block
    for tm in range(target, 0, -8):
        if M % tm == 0:
            return tm
    return M                                     # fallback: single block (layout-legal)


def dense(x, w, b, *, relu, out_dtype):
    """x: (M, K) bf16, w: (K, N) bf16, b: (N,) f32 -> (M, N) out_dtype."""
    M, K = x.shape
    N = w.shape[1]
    out_bytes = jnp.dtype(out_dtype).itemsize
    tm = _pick_m_tile(M, K, N, out_bytes)
    grid = (M // tm,)
    cost = pl.CostEstimate(
        flops=2 * M * K * N + M * N,
        transcendentals=0,
        bytes_accessed=M * K * 2 + K * N * 2 + N * 4 + M * N * out_bytes,
    )
    return pl.pallas_call(
        functools.partial(_matmul_bias_kernel, apply_relu=relu),
        out_shape=jax.ShapeDtypeStruct((M, N), out_dtype),
        grid_spec=pltpu.PrefetchScalarGridSpec(
            num_scalar_prefetch=0,
            grid=grid,
            in_specs=[
                pl.BlockSpec((tm, K), lambda i: (i, 0)),  # row tile, pipelined
                pl.BlockSpec((K, N), lambda i: (0, 0)),   # weights: stay resident
                pl.BlockSpec((1, N), lambda i: (0, 0)),   # bias: stays resident
            ],
            out_specs=pl.BlockSpec((tm, N), lambda i: (i, 0)),
        ),
        compiler_params=pltpu.CompilerParams(
            dimension_semantics=("parallel",),            # megacore-shardable on v7x
            vmem_limit_bytes=32 * 1024 * 1024,            # bounded on all generations
        ),
        cost_estimate=cost,
    )(x, w, b.reshape(1, N))


# ----------------------------------------------------------------------------
# Conv2d(k=4, stride=2, pad=1) as im2col (XLA glue) + Pallas matmul (hot path)
# ----------------------------------------------------------------------------
def conv4x4_s2_p1(x_nhwc, w_mat, b, *, relu, out_dtype=jnp.bfloat16):
    """x_nhwc: (B,H,W,C) bf16; w_mat: (16*C, Cout) bf16 (kh,kw,c order); b: (Cout,) f32."""
    B, H, W, C = x_nhwc.shape
    Cout = w_mat.shape[1]
    k, stride, pad = 4, 2, 1
    Ho, Wo = (H + 2 * pad - k) // stride + 1, (W + 2 * pad - k) // stride + 1

    xp = jnp.pad(x_nhwc, ((0, 0), (pad, pad), (pad, pad), (0, 0)))
    # Column order (kh, kw, c) must match the weight-row order in prepare_params().
    # TODO(synk): pull patch extraction inside the Pallas kernel (manual DMA of
    # the shifted stride-2 windows) to avoid materializing this cols buffer.
    patches = [
        xp[:, kh:kh + stride * Ho:stride, kw:kw + stride * Wo:stride, :]
        for kh in range(k) for kw in range(k)
    ]
    cols = jnp.concatenate(patches, axis=-1).reshape(B * Ho * Wo, k * k * C)

    out = dense(cols, w_mat, b, relu=relu, out_dtype=out_dtype)
    return out.reshape(B, Ho, Wo, Cout)


# ----------------------------------------------------------------------------
# One-time weight re-layout (NOT in the per-forward path)
# ----------------------------------------------------------------------------
def prepare_params(params):
    def conv_w(w_oihw):
        cout, cin, k, _ = w_oihw.shape
        # (Cout, Cin, kh, kw) -> (kh, kw, Cin, Cout) -> (k*k*Cin, Cout), bf16
        return (jnp.transpose(w_oihw, (2, 3, 1, 0))
                .reshape(k * k * cin, cout).astype(jnp.bfloat16))

    # Fused fc weight (mu ++ logvar), rows permuted from PyTorch NCHW-flatten
    # (c,h,w) order to NHWC-flatten (h,w,c) order so that no activation
    # transpose is needed before the fc matmul.
    w_fc = jnp.concatenate([params["w_mu"], params["w_lv"]], axis=0)   # (512, 1024)
    w_fc = w_fc.reshape(512, 64, 4, 4)                                 # (out, C, H, W)
    w_fc = jnp.transpose(w_fc, (2, 3, 1, 0)).reshape(4 * 4 * 64, 512)  # (H*W*C, out)
    w_fc = w_fc.astype(jnp.bfloat16)
    b_fc = jnp.concatenate([params["b_mu"], params["b_lv"]]).astype(jnp.float32)

    return {
        "w1": conv_w(params["w1"]), "b1": params["b1"].astype(jnp.float32),
        "w2": conv_w(params["w2"]), "b2": params["b2"].astype(jnp.float32),
        "w3": conv_w(params["w3"]), "b3": params["b3"].astype(jnp.float32),
        "w4": conv_w(params["w4"]), "b4": params["b4"].astype(jnp.float32),
        "w_fc": w_fc, "b_fc": b_fc,
    }


# ----------------------------------------------------------------------------
# Encoder forward (matches the PyTorch module)
# ----------------------------------------------------------------------------
def encoder_forward(prep, x_nchw, label=False):
    x = jnp.transpose(x_nchw, (0, 2, 3, 1)).astype(jnp.bfloat16)   # NCHW -> NHWC, bf16
    x = conv4x4_s2_p1(x, prep["w1"], prep["b1"], relu=True)        # (B,32,32, 32)
    x = conv4x4_s2_p1(x, prep["w2"], prep["b2"], relu=True)        # (B,16,16,128)
    x = conv4x4_s2_p1(x, prep["w3"], prep["b3"], relu=True)        # (B, 8, 8,256)
    x = conv4x4_s2_p1(x, prep["w4"], prep["b4"], relu=True)        # (B, 4, 4, 64)
    B = x.shape[0]
    feat = x.reshape(B, 4 * 4 * 64)          # NHWC flatten; fc rows pre-permuted
    out = dense(feat, prep["w_fc"], prep["b_fc"], relu=False, out_dtype=jnp.float32)
    mu, logvar = out[:, :256], out[:, 256:]
    if label:
        # PyTorch returns the NCHW-flattened features; reproduce that ordering.
        feat_nchw = jnp.transpose(x, (0, 3, 1, 2)).reshape(B, -1).astype(jnp.float32)
        return feat_nchw, mu, logvar
    return mu, logvar


# ----------------------------------------------------------------------------
# Pure-JAX f32 reference (numeric validation of the Pallas path)
# ----------------------------------------------------------------------------
def encoder_reference(params, x_nchw):
    def conv(x, w, b):
        y = jax.lax.conv_general_dilated(
            x, w, window_strides=(2, 2), padding=((1, 1), (1, 1)),
            dimension_numbers=("NCHW", "OIHW", "NCHW"))
        return jax.nn.relu(y + b[None, :, None, None])

    x = conv(x_nchw, params["w1"], params["b1"])
    x = conv(x, params["w2"], params["b2"])
    x = conv(x, params["w3"], params["b3"])
    x = conv(x, params["w4"], params["b4"])
    feat = x.reshape(x.shape[0], -1)
    mu = feat @ params["w_mu"].T + params["b_mu"]
    logvar = feat @ params["w_lv"].T + params["b_lv"]
    return mu, logvar


def init_params(key):
    ks = jax.random.split(key, 12)
    s = 0.05
    return {
        "w1": s * jax.random.normal(ks[0], (32, 3, 4, 4), jnp.float32),
        "b1": s * jax.random.normal(ks[1], (32,), jnp.float32),
        "w2": s * jax.random.normal(ks[2], (128, 32, 4, 4), jnp.float32),
        "b2": s * jax.random.normal(ks[3], (128,), jnp.float32),
        "w3": s * jax.random.normal(ks[4], (256, 128, 4, 4), jnp.float32),
        "b3": s * jax.random.normal(ks[5], (256,), jnp.float32),
        "w4": s * jax.random.normal(ks[6], (64, 256, 4, 4), jnp.float32),
        "b4": s * jax.random.normal(ks[7], (64,), jnp.float32),
        "w_mu": s * jax.random.normal(ks[8], (256, 64 * 4 * 4), jnp.float32),
        "b_mu": s * jax.random.normal(ks[9], (256,), jnp.float32),
        "w_lv": s * jax.random.normal(ks[10], (256, 64 * 4 * 4), jnp.float32),
        "b_lv": s * jax.random.normal(ks[11], (256,), jnp.float32),
    }


if __name__ == "__main__":
    key = jax.random.PRNGKey(0)
    pkey, xkey = jax.random.split(key)
    params = init_params(pkey)
    prep = prepare_params(params)           # one-time weight re-layout

    # Input spatial size must be 64x64 so conv4 yields 4x4 (fc expects 64*4*4).
    x = jax.random.normal(xkey, (2, 3, 64, 64), jnp.float32)

    fwd = jax.jit(encoder_forward)
    mu, logvar = fwd(prep, x)
    jax.block_until_ready((mu, logvar))

    assert mu.shape == (2, 256) and logvar.shape == (2, 256)
    assert bool(jnp.all(jnp.isfinite(mu))) and bool(jnp.all(jnp.isfinite(logvar)))

    ref_mu, ref_lv = encoder_reference(params, x)
    # bf16 matmul operands with f32 accumulation: ~1% relative-error budget.
    assert jnp.allclose(mu, ref_mu, atol=5e-2, rtol=5e-2)
    assert jnp.allclose(logvar, ref_lv, atol=5e-2, rtol=5e-2)

    # Exercise the label=True path once as well (feature flatten + both heads).
    feat, mu2, lv2 = jax.jit(functools.partial(encoder_forward, label=True))(prep, x)
    jax.block_until_ready((feat, mu2, lv2))
    assert feat.shape == (2, 1024)

    print("KERNEL_OK")
</pallas_src>

<mosaic_0001>
module attributes {stable_mosaic.version = 11 : i64} {
  func.func @_matmul_bias_kernel(%arg0: i32, %arg1: memref<2048x48xbf16, #tpu.memory_space<vmem>>, %arg2: memref<48x32xbf16, #tpu.memory_space<vmem>>, %arg3: memref<1x32xf32, #tpu.memory_space<vmem>>, %arg4: memref<2048x32xbf16, #tpu.memory_space<vmem>>) attributes {dimension_semantics = [#tpu.dimension_semantics<parallel>], iteration_bounds = array<i64: 1>, scalar_prefetch = 0 : i64, scratch_operands = 0 : i64, tpu.core_type = #tpu.core_type<tc>, window_params = [{transform_indices = @transform_0, window_bounds = array<i64: 2048, 48>}, {pipeline_mode = #tpu.pipeline_mode<synchronous>, transform_indices = @transform_1, window_bounds = array<i64: 48, 32>}, {pipeline_mode = #tpu.pipeline_mode<synchronous>, transform_indices = @transform_2, window_bounds = array<i64: 1, 32>}, {transform_indices = @transform_3, window_bounds = array<i64: 2048, 32>}]} {
    %c0 = arith.constant 0 : index
    %c0_0 = arith.constant 0 : index
    %0 = vector.load %arg1[%c0, %c0_0] : memref<2048x48xbf16, #tpu.memory_space<vmem>>, vector<2048x48xbf16>
    %c0_1 = arith.constant 0 : index
    %c0_2 = arith.constant 0 : index
    %1 = vector.load %arg2[%c0_1, %c0_2] : memref<48x32xbf16, #tpu.memory_space<vmem>>, vector<48x32xbf16>
    %cst = arith.constant dense<0.000000e+00> : vector<2048x32xf32>
    %2 = tpu.matmul %0, %1, %cst {dimension_numbers = #tpu.dot_dimension_numbers<[1], [0], [0], [1], [0, 0, 1, 1], [], []>} : vector<2048x48xbf16>, vector<48x32xbf16>, vector<2048x32xf32> -> vector<2048x32xf32>
    %c0_3 = arith.constant 0 : index
    %c0_4 = arith.constant 0 : index
    %3 = vector.load %arg3[%c0_3, %c0_4] : memref<1x32xf32, #tpu.memory_space<vmem>>, vector<1x32xf32>
    %4 = vector.broadcast %3 : vector<1x32xf32> to vector<2048x32xf32>
    %5 = arith.addf %2, %4 : vector<2048x32xf32>
    %cst_5 = arith.constant 0.000000e+00 : f32
    %6 = vector.broadcast %cst_5 : f32 to vector<2048x32xf32>
    %7 = arith.maximumf %5, %6 : vector<2048x32xf32>
    %8 = arith.truncf %7 : vector<2048x32xf32> to vector<2048x32xbf16>
    %c0_6 = arith.constant 0 : index
    %c0_7 = arith.constant 0 : index
    %9 = vector.load %arg4[%c0_6, %c0_7] : memref<2048x32xbf16, #tpu.memory_space<vmem>>, vector<2048x32xbf16>
    tpu.vector_store %arg4[%c0_6, %c0_7], %8 {strides = array<i32>} : memref<2048x32xbf16, #tpu.memory_space<vmem>>, vector<2048x32xbf16>,
    return
  }
  func.func @transform_0(%arg0: i32) -> (i32, i32) {
    %c0_i32 = arith.constant 0 : i32
    %c0_i32_0 = arith.constant 0 : i32
    return %arg0, %c0_i32 : i32, i32
  }
  func.func @transform_1(%arg0: i32) -> (i32, i32) {
    %c0_i32 = arith.constant 0 : i32
    %c0_i32_0 = arith.constant 0 : i32
    %c0_i32_1 = arith.constant 0 : i32
    return %c0_i32, %c0_i32_0 : i32, i32
  }
  func.func @transform_2(%arg0: i32) -> (i32, i32) {
    %c0_i32 = arith.constant 0 : i32
    %c0_i32_0 = arith.constant 0 : i32
    %c0_i32_1 = arith.constant 0 : i32
    return %c0_i32, %c0_i32_0 : i32, i32
  }
  func.func @transform_3(%arg0: i32) -> (i32, i32) {
    %c0_i32 = arith.constant 0 : i32
    %c0_i32_0 = arith.constant 0 : i32
    return %arg0, %c0_i32 : i32, i32
  }
}

module attributes {stable_mosaic.version = 11 : i64} {
  func.func @_matmul_bias_kernel(%arg0: i32, %arg1: memref<512x512xbf16, #tpu.memory_space<vmem>>, %arg2: memref<512x128xbf16, #tpu.memory_space<vmem>>, %arg3: memref<1x128xf32, #tpu.memory_space<vmem>>, %arg4: memref<512x128xbf16, #tpu.memory_space<vmem>>) attributes {dimension_semantics = [#tpu.dimension_semantics<parallel>], iteration_bounds = array<i64: 1>, scalar_prefetch = 0 : i64, scratch_operands = 0 : i64, tpu.core_type = #tpu.core_type<tc>, window_params = [{transform_indices = @transform_0, window_bounds = array<i64: 512, 512>}, {pipeline_mode = #tpu.pipeline_mode<synchronous>, transform_indices = @transform_1, window_bounds = array<i64: 512, 128>}, {pipeline_mode = #tpu.pipeline_mode<synchronous>, transform_indices = @transform_2, window_bounds = array<i64: 1, 128>}, {transform_indices = @transform_3, window_bounds = array<i64: 512, 128>}]} {
    %c0 = arith.constant 0 : index
    %c0_0 = arith.constant 0 : index
    %0 = vector.load %arg1[%c0, %c0_0] : memref<512x512xbf16, #tpu.memory_space<vmem>>, vector<512x512xbf16>
    %c0_1 = arith.constant 0 : index
    %c0_2 = arith.constant 0 : index
    %1 = vector.load %arg2[%c0_1, %c0_2] : memref<512x128xbf16, #tpu.memory_space<vmem>>, vector<512x128xbf16>
    %cst = arith.constant dense<0.000000e+00> : vector<512x128xf32>
    %2 = tpu.matmul %0, %1, %cst {dimension_numbers = #tpu.dot_dimension_numbers<[1], [0], [0], [1], [0, 0, 1, 1], [], []>} : vector<512x512xbf16>, vector<512x128xbf16>, vector<512x128xf32> -> vector<512x128xf32>
    %c0_3 = arith.constant 0 : index
    %c0_4 = arith.constant 0 : index
    %3 = vector.load %arg3[%c0_3, %c0_4] : memref<1x128xf32, #tpu.memory_space<vmem>>, vector<1x128xf32>
    %4 = vector.broadcast %3 : vector<1x128xf32> to vector<512x128xf32>
    %5 = arith.addf %2, %4 : vector<512x128xf32>
    %cst_5 = arith.constant 0.000000e+00 : f32
    %6 = vector.broadcast %cst_5 : f32 to vector<512x128xf32>
    %7 = arith.maximumf %5, %6 : vector<512x128xf32>
    %8 = arith.truncf %7 : vector<512x128xf32> to vector<512x128xbf16>
    %c0_6 = arith.constant 0 : index
    %c0_7 = arith.constant 0 : index
    %9 = vector.load %arg4[%c0_6, %c0_7] : memref<512x128xbf16, #tpu.memory_space<vmem>>, vector<512x128xbf16>
    tpu.vector_store %arg4[%c0_6, %c0_7], %8 {strides = array<i32>} : memref<512x128xbf16, #tpu.memory_space<vmem>>, vector<512x128xbf16>,
    return
  }
  func.func @transform_0(%arg0: i32) -> (i32, i32) {
    %c0_i32 = arith.constant 0 : i32
    %c0_i32_0 = arith.constant 0 : i32
    return %arg0, %c0_i32 : i32, i32
  }
  func.func @transform_1(%arg0: i32) -> (i32, i32) {
    %c0_i32 = arith.constant 0 : i32
    %c0_i32_0 = arith.constant 0 : i32
    %c0_i32_1 = arith.constant 0 : i32
    return %c0_i32, %c0_i32_0 : i32, i32
  }
  func.func @transform_2(%arg0: i32) -> (i32, i32) {
    %c0_i32 = arith.constant 0 : i32
    %c0_i32_0 = arith.constant 0 : i32
    %c0_i32_1 = arith.constant 0 : i32
    return %c0_i32, %c0_i32_0 : i32, i32
  }
  func.func @transform_3(%arg0: i32) -> (i32, i32) {
    %c0_i32 = arith.constant 0 : i32
    %c0_i32_0 = arith.constant 0 : i32
    return %arg0, %c0_i32 : i32, i32
  }
}

module attributes {stable_mosaic.version = 11 : i64} {
  func.func @_matmul_bias_kernel(%arg0: i32, %arg1: memref<128x2048xbf16, #tpu.memory_space<vmem>>, %arg2: memref<2048x256xbf16, #tpu.memory_space<vmem>>, %arg3: memref<1x256xf32, #tpu.memory_space<vmem>>, %arg4: memref<128x256xbf16, #tpu.memory_space<vmem>>) attributes {dimension_semantics = [#tpu.dimension_semantics<parallel>], iteration_bounds = array<i64: 1>, scalar_prefetch = 0 : i64, scratch_operands = 0 : i64, tpu.core_type = #tpu.core_type<tc>, window_params = [{transform_indices = @transform_0, window_bounds = array<i64: 128, 2048>}, {pipeline_mode = #tpu.pipeline_mode<synchronous>, transform_indices = @transform_1, window_bounds = array<i64: 2048, 256>}, {pipeline_mode = #tpu.pipeline_mode<synchronous>, transform_indices = @transform_2, window_bounds = array<i64: 1, 256>}, {transform_indices = @transform_3, window_bounds = array<i64: 128, 256>}]} {
    %c0 = arith.constant 0 : index
    %c0_0 = arith.constant 0 : index
    %0 = vector.load %arg1[%c0, %c0_0] : memref<128x2048xbf16, #tpu.memory_space<vmem>>, vector<128x2048xbf16>
    %c0_1 = arith.constant 0 : index
    %c0_2 = arith.constant 0 : index
    %1 = vector.load %arg2[%c0_1, %c0_2] : memref<2048x256xbf16, #tpu.memory_space<vmem>>, vector<2048x256xbf16>
    %cst = arith.constant dense<0.000000e+00> : vector<128x256xf32>
    %2 = tpu.matmul %0, %1, %cst {dimension_numbers = #tpu.dot_dimension_numbers<[1], [0], [0], [1], [0, 0, 1, 1], [], []>} : vector<128x2048xbf16>, vector<2048x256xbf16>, vector<128x256xf32> -> vector<128x256xf32>
    %c0_3 = arith.constant 0 : index
    %c0_4 = arith.constant 0 : index
    %3 = vector.load %arg3[%c0_3, %c0_4] : memref<1x256xf32, #tpu.memory_space<vmem>>, vector<1x256xf32>
    %4 = vector.broadcast %3 : vector<1x256xf32> to vector<128x256xf32>
    %5 = arith.addf %2, %4 : vector<128x256xf32>
    %cst_5 = arith.constant 0.000000e+00 : f32
    %6 = vector.broadcast %cst_5 : f32 to vector<128x256xf32>
    %7 = arith.maximumf %5, %6 : vector<128x256xf32>
    %8 = arith.truncf %7 : vector<128x256xf32> to vector<128x256xbf16>
    %c0_6 = arith.constant 0 : index
    %c0_7 = arith.constant 0 : index
    %9 = vector.load %arg4[%c0_6, %c0_7] : memref<128x256xbf16, #tpu.memory_space<vmem>>, vector<128x256xbf16>
    tpu.vector_store %arg4[%c0_6, %c0_7], %8 {strides = array<i32>} : memref<128x256xbf16, #tpu.memory_space<vmem>>, vector<128x256xbf16>,
    return
  }
  func.func @transform_0(%arg0: i32) -> (i32, i32) {
    %c0_i32 = arith.constant 0 : i32
    %c0_i32_0 = arith.constant 0 : i32
    return %arg0, %c0_i32 : i32, i32
  }
  func.func @transform_1(%arg0: i32) -> (i32, i32) {
    %c0_i32 = arith.constant 0 : i32
    %c0_i32_0 = arith.constant 0 : i32
    %c0_i32_1 = arith.constant 0 : i32
    return %c0_i32, %c0_i32_0 : i32, i32
  }
  func.func @transform_2(%arg0: i32) -> (i32, i32) {
    %c0_i32 = arith.constant 0 : i32
    %c0_i32_0 = arith.constant 0 : i32
    %c0_i32_1 = arith.constant 0 : i32
    return %c0_i32, %c0_i32_0 : i32, i32
  }
  func.func @transform_3(%arg0: i32) -> (i32, i32) {
    %c0_i32 = arith.constant 0 : i32
    %c0_i32_0 = arith.constant 0 : i32
    return %arg0, %c0_i32 : i32, i32
  }
}

module attributes {stable_mosaic.version = 11 : i64} {
  func.func @_matmul_bias_kernel(%arg0: i32, %arg1: memref<32x4096xbf16, #tpu.memory_space<vmem>>, %arg2: memref<4096x64xbf16, #tpu.memory_space<vmem>>, %arg3: memref<1x64xf32, #tpu.memory_space<vmem>>, %arg4: memref<32x64xbf16, #tpu.memory_space<vmem>>) attributes {dimension_semantics = [#tpu.dimension_semantics<parallel>], iteration_bounds = array<i64: 1>, scalar_prefetch = 0 : i64, scratch_operands = 0 : i64, tpu.core_type = #tpu.core_type<tc>, window_params = [{transform_indices = @transform_0, window_bounds = array<i64: 32, 4096>}, {pipeline_mode = #tpu.pipeline_mode<synchronous>, transform_indices = @transform_1, window_bounds = array<i64: 4096, 64>}, {pipeline_mode = #tpu.pipeline_mode<synchronous>, transform_indices = @transform_2, window_bounds = array<i64: 1, 64>}, {transform_indices = @transform_3, window_bounds = array<i64: 32, 64>}]} {
    %c0 = arith.constant 0 : index
    %c0_0 = arith.constant 0 : index
    %0 = vector.load %arg1[%c0, %c0_0] : memref<32x4096xbf16, #tpu.memory_space<vmem>>, vector<32x4096xbf16>
    %c0_1 = arith.constant 0 : index
    %c0_2 = arith.constant 0 : index
    %1 = vector.load %arg2[%c0_1, %c0_2] : memref<4096x64xbf16, #tpu.memory_space<vmem>>, vector<4096x64xbf16>
    %cst = arith.constant dense<0.000000e+00> : vector<32x64xf32>
    %2 = tpu.matmul %0, %1, %cst {dimension_numbers = #tpu.dot_dimension_numbers<[1], [0], [0], [1], [0, 0, 1, 1], [], []>} : vector<32x4096xbf16>, vector<4096x64xbf16>, vector<32x64xf32> -> vector<32x64xf32>
    %c0_3 = arith.constant 0 : index
    %c0_4 = arith.constant 0 : index
    %3 = vector.load %arg3[%c0_3, %c0_4] : memref<1x64xf32, #tpu.memory_space<vmem>>, vector<1x64xf32>
    %4 = vector.broadcast %3 : vector<1x64xf32> to vector<32x64xf32>
    %5 = arith.addf %2, %4 : vector<32x64xf32>
    %cst_5 = arith.constant 0.000000e+00 : f32
    %6 = vector.broadcast %cst_5 : f32 to vector<32x64xf32>
    %7 = arith.maximumf %5, %6 : vector<32x64xf32>
    %8 = arith.truncf %7 : vector<32x64xf32> to vector<32x64xbf16>
    %c0_6 = arith.constant 0 : index
    %c0_7 = arith.constant 0 : index
    %9 = vector.load %arg4[%c0_6, %c0_7] : memref<32x64xbf16, #tpu.memory_space<vmem>>, vector<32x64xbf16>
    tpu.vector_store %arg4[%c0_6, %c0_7], %8 {strides = array<i32>} : memref<32x64xbf16, #tpu.memory_space<vmem>>, vector<32x64xbf16>,
    return
  }
  func.func @transform_0(%arg0: i32) -> (i32, i32) {
    %c0_i32 = arith.constant 0 : i32
    %c0_i32_0 = arith.constant 0 : i32
    return %arg0, %c0_i32 : i32, i32
  }
  func.func @transform_1(%arg0: i32) -> (i32, i32) {
    %c0_i32 = arith.constant 0 : i32
    %c0_i32_0 = arith.constant 0 : i32
    %c0_i32_1 = arith.constant 0 : i32
    return %c0_i32, %c0_i32_0 : i32, i32
  }
  func.func @transform_2(%arg0: i32) -> (i32, i32) {
    %c0_i32 = arith.constant 0 : i32
    %c0_i32_0 = arith.constant 0 : i32
    %c0_i32_1 = arith.constant 0 : i32
    return %c0_i32, %c0_i32_0 : i32, i32
  }
  func.func @transform_3(%arg0: i32) -> (i32, i32) {
    %c0_i32 = arith.constant 0 : i32
    %c0_i32_0 = arith.constant 0 : i32
    return %arg0, %c0_i32 : i32, i32
  }
}

module attributes {stable_mosaic.version = 11 : i64} {
  func.func @_matmul_bias_kernel(%arg0: i32, %arg1: memref<2x1024xbf16, #tpu.memory_space<vmem>>, %arg2: memref<1024x512xbf16, #tpu.memory_space<vmem>>, %arg3: memref<1x512xf32, #tpu.memory_space<vmem>>, %arg4: memref<2x512xf32, #tpu.memory_space<vmem>>) attributes {dimension_semantics = [#tpu.dimension_semantics<parallel>], iteration_bounds = array<i64: 1>, scalar_prefetch = 0 : i64, scratch_operands = 0 : i64, tpu.core_type = #tpu.core_type<tc>, window_params = [{transform_indices = @transform_0, window_bounds = array<i64: 2, 1024>}, {pipeline_mode = #tpu.pipeline_mode<synchronous>, transform_indices = @transform_1, window_bounds = array<i64: 1024, 512>}, {pipeline_mode = #tpu.pipeline_mode<synchronous>, transform_indices = @transform_2, window_bounds = array<i64: 1, 512>}, {transform_indices = @transform_3, window_bounds = array<i64: 2, 512>}]} {
    %c0 = arith.constant 0 : index
    %c0_0 = arith.constant 0 : index
    %0 = vector.load %arg1[%c0, %c0_0] : memref<2x1024xbf16, #tpu.memory_space<vmem>>, vector<2x1024xbf16>
    %c0_1 = arith.constant 0 : index
    %c0_2 = arith.constant 0 : index
    %1 = vector.load %arg2[%c0_1, %c0_2] : memref<1024x512xbf16, #tpu.memory_space<vmem>>, vector<1024x512xbf16>
    %cst = arith.constant dense<0.000000e+00> : vector<2x512xf32>
    %2 = tpu.matmul %0, %1, %cst {dimension_numbers = #tpu.dot_dimension_numbers<[1], [0], [0], [1], [0, 0, 1, 1], [], []>} : vector<2x1024xbf16>, vector<1024x512xbf16>, vector<2x512xf32> -> vector<2x512xf32>
    %c0_3 = arith.constant 0 : index
    %c0_4 = arith.constant 0 : index
    %3 = vector.load %arg3[%c0_3, %c0_4] : memref<1x512xf32, #tpu.memory_space<vmem>>, vector<1x512xf32>
    %4 = vector.broadcast %3 : vector<1x512xf32> to vector<2x512xf32>
    %5 = arith.addf %2, %4 : vector<2x512xf32>
    %c0_5 = arith.constant 0 : index
    %c0_6 = arith.constant 0 : index
    %6 = vector.load %arg4[%c0_5, %c0_6] : memref<2x512xf32, #tpu.memory_space<vmem>>, vector<2x512xf32>
    tpu.vector_store %arg4[%c0_5, %c0_6], %5 {strides = array<i32>} : memref<2x512xf32, #tpu.memory_space<vmem>>, vector<2x512xf32>,
    return
  }
  func.func @transform_0(%arg0: i32) -> (i32, i32) {
    %c0_i32 = arith.constant 0 : i32
    %c0_i32_0 = arith.constant 0 : i32
    return %arg0, %c0_i32 : i32, i32
  }
  func.func @transform_1(%arg0: i32) -> (i32, i32) {
    %c0_i32 = arith.constant 0 : i32
    %c0_i32_0 = arith.constant 0 : i32
    %c0_i32_1 = arith.constant 0 : i32
    return %c0_i32, %c0_i32_0 : i32, i32
  }
  func.func @transform_2(%arg0: i32) -> (i32, i32) {
    %c0_i32 = arith.constant 0 : i32
    %c0_i32_0 = arith.constant 0 : i32
    %c0_i32_1 = arith.constant 0 : i32
    return %c0_i32, %c0_i32_0 : i32, i32
  }
  func.func @transform_3(%arg0: i32) -> (i32, i32) {
    %c0_i32 = arith.constant 0 : i32
    %c0_i32_0 = arith.constant 0 : i32
    return %arg0, %c0_i32 : i32, i32
  }
}

</mosaic_0001>

<llo_original>
// kernel: encoder_forward.5
$region0: #{encoder_forward.5}
  #allocation0 [shape = 'u32[]', space=smem, size = 0x4, offset = 0x4, fixed_abs, tag = 'smem constant byte address 0x4 - core index']
  #allocation1 [shape = 'u32[144,128]{1,0:T(1,128)}', space=vmem, size = 0x12000, scoped, tag = 'internal scratch']
  %s0 = inlined_call_operand.vmem [shape: bf16[2048,48], index: 0, kind: input, shape index: {}]
  %s1 = inlined_call_operand.vmem [shape: bf16[48,32], index: 1, kind: input, shape index: {}]
  %s2 = inlined_call_operand.vmem [shape: f32[1,32], index: 2, kind: input, shape index: {}]
  %s3 = inlined_call_operand.vmem [shape: bf16[2048,32], index: 3, kind: output, shape index: {}]
  %s4 = sld [smem:[#allocation0]]
  $region22: #{encoder_forward.5} parent=0
    _
  %s6 = ssub.s32 1, %s4
  %s7 = scalar_select 0, %s6, %s4
  // Predicated region
  $region2: #{encoder_forward.5} parent=0 // pred_check
    _
  $region3: #{encoder_forward.5} parent=0 // pred_check_branch
    %9 = sbr.rel (0) target = $region5
  $region4: #{encoder_forward.5} parent=0 // pred_region
    _
  $region5: #{encoder_forward.5} parent=0 // pred_fallthru
    _
  // Predicated region
  $region6: #{encoder_forward.5} parent=0 // pred_check
    _
  $region7: #{encoder_forward.5} parent=0 // pred_check_branch
    %11 = sbr.rel (0) target = $region9
  $region8: #{encoder_forward.5} parent=0 // pred_region
    _
  $region9: #{encoder_forward.5} parent=0 // pred_fallthru
    _
  // Predicated region
  $region10: #{encoder_forward.5} parent=0 // pred_check
    _
  $region11: #{encoder_forward.5} parent=0 // pred_check_branch
    %13 = sbr.rel (0) target = $region13
  $region12: #{encoder_forward.5} parent=0 // pred_region
    _
  $region13: #{encoder_forward.5} parent=0 // pred_fallthru
    _
  %v15 = vld [vmem:[%s0] sm:$0xf]
  %v16 = vld [vmem:[%s0 + $0x4] sm:$0xf]
  %v17 = vld [vmem:[%s0 + $0x8] sm:$0xf]
  %v18 = vld [vmem:[%s0 + $0xc] sm:$0xf]
  %v19 = vld [vmem:[%s0 + $0x10] sm:$0xf]
  %v20 = vld [vmem:[%s0 + $0x14] sm:$0xf]
  %v21 = vld [vmem:[%s0 + $0x18] sm:$0xf]
  %v22 = vld [vmem:[%s0 + $0x1c] sm:$0xf]
  %v23 = vld [vmem:[%s0 + $0x20] sm:$0xf]
  %v24 = vld [vmem:[%s0 + $0x24] sm:$0xf]
  %v25 = vld [vmem:[%s0 + $0x28] sm:$0xf]
  %v26 = vld [vmem:[%s0 + $0x2c] sm:$0xf]
  %v27 = vld [vmem:[%s0 + $0x30] sm:$0xf]
  %v28 = vld [vmem:[%s0 + $0x34] sm:$0xf]
  %v29 = vld [vmem:[%s0 + $0x38] sm:$0xf]
  %v30 = vld [vmem:[%s0 + $0x3c] sm:$0xf]
  %v31 = vld [vmem:[%s0 + $0x40] sm:$0xf]
  %v32 = vld [vmem:[%s0 + $0x44] sm:$0xf]
  %v33 = vld [vmem:[%s0 + $0x48] sm:$0xf]
  %v34 = vld [vmem:[%s0 + $0x4c] sm:$0xf]
  %v35 = vld [vmem:[%s0 + $0x50] sm:$0xf]
  %v36 = vld [vmem:[%s0 + $0x54] sm:$0xf]
  %v37 = vld [vmem:[%s0 + $0x58] sm:$0xf]
  %v38 = vld [vmem:[%s0 + $0x5c] sm:$0xf]
  %v39 = vld [vmem:[%s0 + $0x60] sm:$0xf]
  %v40 = vld [vmem:[%s0 + $0x64] sm:$0xf]
  %v41 = vld [vmem:[%s0 + $0x68] sm:$0xf]
  %v42 = vld [vmem:[%s0 + $0x6c] sm:$0xf]
  %v43 = vld [vmem:[%s0 + $0x70] sm:$0xf]
  %v44 = vld [vmem:[%s0 + $0x74] sm:$0xf]
  %v45 = vld [vmem:[%s0 + $0x78] sm:$0xf]
  %v46 = vld [vmem:[%s0 + $0x7c] sm:$0xf]
  %v47 = vld [vmem:[%s0 + $0x80] sm:$0xf]
  %v48 = vld [vmem:[%s0 + $0x84] sm:$0xf]
  %v49 = vld [vmem:[%s0 + $0x88] sm:$0xf]
  %v50 = vld [vmem:[%s0 + $0x8c] sm:$0xf]
  %v51 = vld [vmem:[%s0 + $0x90] sm:$0xf]
  %v52 = vld [vmem:[%s0 + $0x94] sm:$0xf]
  %v53 = vld [vmem:[%s0 + $0x98] sm:$0xf]
  %v54 = vld [vmem:[%s0 + $0x9c] sm:$0xf]
  %v55 = vld [vmem:[%s0 + $0xa0] sm:$0xf]
  %v56 = vld [vmem:[%s0 + $0xa4] sm:$0xf]
  %v57 = vld [vmem:[%s0 + $0xa8] sm:$0xf]
  %v58 = vld [vmem:[%s0 + $0xac] sm:$0xf]
  %v59 = vld [vmem:[%s0 + $0xb0] sm:$0xf]
  %v60 = vld [vmem:[%s0 + $0xb4] sm:$0xf]
  %v61 = vld [vmem:[%s0 + $0xb8] sm:$0xf]
  %v62 = vld [vmem:[%s0 + $0xbc] sm:$0xf]
  %v63 = vld [vmem:[%s0 + $0xc0] sm:$0xf]
  %v64 = vld [vmem:[%s0 + $0xc4] sm:$0xf]
  %v65 = vld [vmem:[%s0 + $0xc8] sm:$0xf]
  %v66 = vld [vmem:[%s0 + $0xcc] sm:$0xf]
  %v67 = vld [vmem:[%s0 + $0xd0] sm:$0xf]
  %v68 = vld [vmem:[%s0 + $0xd4] sm:$0xf]
  %v69 = vld [vmem:[%s0 + $0xd8] sm:$0xf]
  %v70 = vld [vmem:[%s0 + $0xdc] sm:$0xf]
  %v71 = vld [vmem:[%s0 + $0xe0] sm:$0xf]
  %v72 = vld [vmem:[%s0 + $0xe4] sm:$0xf]
  %v73 = vld [vmem:[%s0 + $0xe8] sm:$0xf]
  %v74 = vld [vmem:[%s0 + $0xec] sm:$0xf]
  %v75 = vld [vmem:[%s0 + $0xf0] sm:$0xf]
  %v76 = vld [vmem:[%s0 + $0xf4] sm:$0xf]
  %v77 = vld [vmem:[%s0 + $0xf8] sm:$0xf]
  %v78 = vld [vmem:[%s0 + $0xfc] sm:$0xf]
  %v79 = vld [vmem:[%s0 + $0x100] sm:$0xf]
  %v80 = vld [vmem:[%s0 + $0x104] sm:$0xf]
  %v81 = vld [vmem:[%s0 + $0x108] sm:$0xf]
  %v82 = vld [vmem:[%s0 + $0x10c] sm:$0xf]
  %v83 = vld [vmem:[%s0 + $0x110] sm:$0xf]
  %v84 = vld [vmem:[%s0 + $0x114] sm:$0xf]
  %v85 = vld [vmem:[%s0 + $0x118] sm:$0xf]
  %v86 = vld [vmem:[%s0 + $0x11c] sm:$0xf]
  %v87 = vld [vmem:[%s0 + $0x120] sm:$0xf]
  %v88 = vld [vmem:[%s0 + $0x124] sm:$0xf]
  %v89 = vld [vmem:[%s0 + $0x128] sm:$0xf]
  %v90 = vld [vmem:[%s0 + $0x12c] sm:$0xf]
  %v91 = vld [vmem:[%s0 + $0x130] sm:$0xf]
  %v92 = vld [vmem:[%s0 + $0x134] sm:$0xf]
  %v93 = vld [vmem:[%s0 + $0x138] sm:$0xf]
  %v94 = vld [vmem:[%s0 + $0x13c] sm:$0xf]
  %v95 = vld [vmem:[%s0 + $0x140] sm:$0xf]
  %v96 = vld [vmem:[%s0 + $0x144] sm:$0xf]
  %v97 = vld [vmem:[%s0 + $0x148] sm:$0xf]
  %v98 = vld [vmem:[%s0 + $0x14c] sm:$0xf]
  %v99 = vld [vmem:[%s0 + $0x150] sm:$0xf]
  %v100 = vld [vmem:[%s0 + $0x154] sm:$0xf]
  %v101 = vld [vmem:[%s0 + $0x158] sm:$0xf]
  %v102 = vld [vmem:[%s0 + $0x15c] sm:$0xf]
  %v103 = vld [vmem:[%s0 + $0x160] sm:$0xf]
  %v104 = vld [vmem:[%s0 + $0x164] sm:$0xf]
  %v105 = vld [vmem:[%s0 + $0x168] sm:$0xf]
  %v106 = vld [vmem:[%s0 + $0x16c] sm:$0xf]
  %v107 = vld [vmem:[%s0 + $0x170] sm:$0xf]
  %v108 = vld [vmem:[%s0 + $0x174] sm:$0xf]
  %v109 = vld [vmem:[%s0 + $0x178] sm:$0xf]
  %v110 = vld [vmem:[%s0 + $0x17c] sm:$0xf]
  %v111 = vld [vmem:[%s0 + $0x180] sm:$0xf]
  %v112 = vld [vmem:[%s0 + $0x184] sm:$0xf]
  %v113 = vld [vmem:[%s0 + $0x188] sm:$0xf]
  %v114 = vld [vmem:[%s0 + $0x18c] sm:$0xf]
  %v115 = vld [vmem:[%s0 + $0x190] sm:$0xf]
  %v116 = vld [vmem:[%s0 + $0x194] sm:$0xf]
  %v117 = vld [vmem:[%s0 + $0x198] sm:$0xf]
  %v118 = vld [vmem:[%s0 + $0x19c] sm:$0xf]
  %v119 = vld [vmem:[%s0 + $0x1a0] sm:$0xf]
  %v120 = vld [vmem:[%s0 + $0x1a4] sm:$0xf]
  %v121 = vld [vmem:[%s0 + $0x1a8] sm:$0xf]
  %v122 = vld [vmem:[%s0 + $0x1ac] sm:$0xf]
  %v123 = vld [vmem:[%s0 + $0x1b0] sm:$0xf]
  %v124 = vld [vmem:[%s0 + $0x1b4] sm:$0xf]
  %v125 = vld [vmem:[%s0 + $0x1b8] sm:$0xf]
  %v126 = vld [vmem:[%s0 + $0x1bc] sm:$0xf]
  %v127 = vld [vmem:[%s0 + $0x1c0] sm:$0xf]
  %v128 = vld [vmem:[%s0 + $0x1c4] sm:$0xf]
  %v129 = vld [vmem:[%s0 + $0x1c8] sm:$0xf]
  %v130 = vld [vmem:[%s0 + $0x1cc] sm:$0xf]
  %v131 = vld [vmem:[%s0 + $0x1d0] sm:$0xf]
  %v132 = vld [vmem:[%s0 + $0x1d4] sm:$0xf]
  %v133 = vld [vmem:[%s0 + $0x1d8] sm:$0xf]
  %v134 = vld [vmem:[%s0 + $0x1dc] sm:$0xf]
  %v135 = vld [vmem:[%s0 + $0x1e0] sm:$0xf]
  %v136 = vld [vmem:[%s0 + $0x1e4] sm:$0xf]
  %v137 = vld [vmem:[%s0 + $0x1e8] sm:$0xf]
  %v138 = vld [vmem:[%s0 + $0x1ec] sm:$0xf]
  %v139 = vld [vmem:[%s0 + $0x1f0] sm:$0xf]
  %v140 = vld [vmem:[%s0 + $0x1f4] sm:$0xf]
  %v141 = vld [vmem:[%s0 + $0x1f8] sm:$0xf]
  %v142 = vld [vmem:[%s0 + $0x1fc] sm:$0xf]
  %v143 = vld [vmem:[%s0 + $0x200] sm:$0xf]
  %v144 = vld [vmem:[%s0 + $0x204] sm:$0xf]
  %v145 = vld [vmem:[%s0 + $0x208] sm:$0xf]
  %v146 = vld [vmem:[%s0 + $0x20c] sm:$0xf]
  %v147 = vld [vmem:[%s0 + $0x210] sm:$0xf]
  %v148 = vld [vmem:[%s0 + $0x214] sm:$0xf]
  %v149 = vld [vmem:[%s0 + $0x218] sm:$0xf]
  %v150 = vld [vmem:[%s0 + $0x21c] sm:$0xf]
  %v151 = vld [vmem:[%s0 + $0x220] sm:$0xf]
  %v152 = vld [vmem:[%s0 + $0x224] sm:$0xf]
  %v153 = vld [vmem:[%s0 + $0x228] sm:$0xf]
  %v154 = vld [vmem:[%s0 + $0x22c] sm:$0xf]
  %v155 = vld [vmem:[%s0 + $0x230] sm:$0xf]
  %v156 = vld [vmem:[%s0 + $0x234] sm:$0xf]
  %v157 = vld [vmem:[%s0 + $0x238] sm:$0xf]
  %v158 = vld [vmem:[%s0 + $0x23c] sm:$0xf]
  %v159 = vld [vmem:[%s0 + $0x240] sm:$0xf]
  %v160 = vld [vmem:[%s0 + $0x244] sm:$0xf]
  %v161 = vld [vmem:[%s0 + $0x248] sm:$0xf]
  %v162 = vld [vmem:[%s0 + $0x24c] sm:$0xf]
  %v163 = vld [vmem:[%s0 + $0x250] sm:$0xf]
  %v164 = vld [vmem:[%s0 + $0x254] sm:$0xf]
  %v165 = vld [vmem:[%s0 + $0x258] sm:$0xf]
  %v166 = vld [vmem:[%s0 + $0x25c] sm:$0xf]
  %v167 = vld [vmem:[%s0 + $0x260] sm:$0xf]
  %v168 = vld [vmem:[%s0 + $0x264] sm:$0xf]
  %v169 = vld [vmem:[%s0 + $0x268] sm:$0xf]
  %v170 = vld [vmem:[%s0 + $0x26c] sm:$0xf]
  %v171 = vld [vmem:[%s0 + $0x270] sm:$0xf]
  %v172 = vld [vmem:[%s0 + $0x274] sm:$0xf]
  %v173 = vld [vmem:[%s0 + $0x278] sm:$0xf]
  %v174 = vld [vmem:[%s0 + $0x27c] sm:$0xf]
  %v175 = vld [vmem:[%s0 + $0x280] sm:$0xf]
  %v176 = vld [vmem:[%s0 + $0x284] sm:$0xf]
  %v177 = vld [vmem:[%s0 + $0x288] sm:$0xf]
  %v178 = vld [vmem:[%s0 + $0x28c] sm:$0xf]
  %v179 = vld [vmem:[%s0 + $0x290] sm:$0xf]
  %v180 = vld [vmem:[%s0 + $0x294] sm:$0xf]
  %v181 = vld [vmem:[%s0 + $0x298] sm:$0xf]
  %v182 = vld [vmem:[%s0 + $0x29c] sm:$0xf]
  %v183 = vld [vmem:[%s0 + $0x2a0] sm:$0xf]
  %v184 = vld [vmem:[%s0 + $0x2a4] sm:$0xf]
  %v185 = vld [vmem:[%s0 + $0x2a8] sm:$0xf]
  %v186 = vld [vmem:[%s0 + $0x2ac] sm:$0xf]
  %v187 = vld [vmem:[%s0 + $0x2b0] sm:$0xf]
  %v188 = vld [vmem:[%s0 + $0x2b4] sm:$0xf]
  %v189 = vld [vmem:[%s0 + $0x2b8] sm:$0xf]
  %v190 = vld [vmem:[%s0 + $0x2bc] sm:$0xf]
  %v191 = vld [vmem:[%s0 + $0x2c0] sm:$0xf]
  %v192 = vld [vmem:[%s0 + $0x2c4] sm:$0xf]
  %v193 = vld [vmem:[%s0 + $0x2c8] sm:$0xf]
  %v194 = vld [vmem:[%s0 + $0x2cc] sm:$0xf]
  %v195 = vld [vmem:[%s0 + $0x2d0] sm:$0xf]
  %v196 = vld [vmem:[%s0 + $0x2d4] sm:$0xf]
  %v197 = vld [vmem:[%s0 + $0x2d8] sm:$0xf]
  %v198 = vld [vmem:[%s0 + $0x2dc] sm:$0xf]
  %v199 = vld [vmem:[%s0 + $0x2e0] sm:$0xf]
  %v200 = vld [vmem:[%s0 + $0x2e4] sm:$0xf]
  %v201 = vld [vmem:[%s0 + $0x2e8] sm:$0xf]
  %v202 = vld [vmem:[%s0 + $0x2ec] sm:$0xf]
  %v203 = vld [vmem:[%s0 + $0x2f0] sm:$0xf]
  %v204 = vld [vmem:[%s0 + $0x2f4] sm:$0xf]
  %v205 = vld [vmem:[%s0 + $0x2f8] sm:$0xf]
  %v206 = vld [vmem:[%s0 + $0x2fc] sm:$0xf]
  %v207 = vld [vmem:[%s0 + $0x300] sm:$0xf]
  %v208 = vld [vmem:[%s0 + $0x304] sm:$0xf]
  %v209 = vld [vmem:[%s0 + $0x308] sm:$0xf]
  %v210 = vld [vmem:[%s0 + $0x30c] sm:$0xf]
  %v211 = vld [vmem:[%s0 + $0x310] sm:$0xf]
  %v212 = vld [vmem:[%s0 + $0x314] sm:$0xf]
  %v213 = vld [vmem:[%s0 + $0x318] sm:$0xf]
  %v214 = vld [vmem:[%s0 + $0x31c] sm:$0xf]
  %v215 = vld [vmem:[%s0 + $0x320] sm:$0xf]
  %v216 = vld [vmem:[%s0 + $0x324] sm:$0xf]
  %v217 = vld [vmem:[%s0 + $0x328] sm:$0xf]
  %v218 = vld [vmem:[%s0 + $0x32c] sm:$0xf]
  %v219 = vld [vmem:[%s0 + $0x330] sm:$0xf]
  %v220 = vld [vmem:[%s0 + $0x334] sm:$0xf]
  %v221 = vld [vmem:[%s0 + $0x338] sm:$0xf]
  %v222 = vld [vmem:[%s0 + $0x33c] sm:$0xf]
  %v223 = vld [vmem:[%s0 + $0x340] sm:$0xf]
  %v224 = vld [vmem:[%s0 + $0x344] sm:$0xf]
  %v225 = vld [vmem:[%s0 + $0x348] sm:$0xf]
  %v226 = vld [vmem:[%s0 + $0x34c] sm:$0xf]
  %v227 = vld [vmem:[%s0 + $0x350] sm:$0xf]
  %v228 = vld [vmem:[%s0 + $0x354] sm:$0xf]
  %v229 = vld [vmem:[%s0 + $0x358] sm:$0xf]
  %v230 = vld [vmem:[%s0 + $0x35c] sm:$0xf]
  %v231 = vld [vmem:[%s0 + $0x360] sm:$0xf]
  %v232 = vld [vmem:[%s0 + $0x364] sm:$0xf]
  %v233 = vld [vmem:[%s0 + $0x368] sm:$0xf]
  %v234 = vld [vmem:[%s0 + $0x36c] sm:$0xf]
  %v235 = vld [vmem:[%s0 + $0x370] sm:$0xf]
  %v236 = vld [vmem:[%s0 + $0x374] sm:$0xf]
  %v237 = vld [vmem:[%s0 + $0x378] sm:$0xf]
  %v238 = vld [vmem:[%s0 + $0x37c] sm:$0xf]
  %v239 = vld [vmem:[%s0 + $0x380] sm:$0xf]
  %v240 = vld [vmem:[%s0 + $0x384] sm:$0xf]
  %v241 = vld [vmem:[%s0 + $0x388] sm:$0xf]
  %v242 = vld [vmem:[%s0 + $0x38c] sm:$0xf]
  %v243 = vld [vmem:[%s0 + $0x390] sm:$0xf]
  %v244 = vld [vmem:[%s0 + $0x394] sm:$0xf]
  %v245 = vld [vmem:[%s0 + $0x398] sm:$0xf]
  %v246 = vld [vmem:[%s0 + $0x39c] sm:$0xf]
  %v247 = vld [vmem:[%s0 + $0x3a0] sm:$0xf]
  %v248 = vld [vmem:[%s0 + $0x3a4] sm:$0xf]
  %v249 = vld [vmem:[%s0 + $0x3a8] sm:$0xf]
  %v250 = vld [vmem:[%s0 + $0x3ac] sm:$0xf]
  %v251 = vld [vmem:[%s0 + $0x3b0] sm:$0xf]
  %v252 = vld [vmem:[%s0 + $0x3b4] sm:$0xf]
  %v253 = vld [vmem:[%s0 + $0x3b8] sm:$0xf]
  %v254 = vld [vmem:[%s0 + $0x3bc] sm:$0xf]
  %v255 = vld [vmem:[%s0 + $0x3c0] sm:$0xf]
  %v256 = vld [vmem:[%s0 + $0x3c4] sm:$0xf]
  %v257 = vld [vmem:[%s0 + $0x3c8] sm:$0xf]
  %v258 = vld [vmem:[%s0 + $0x3cc] sm:$0xf]
  %v259 = vld [vmem:[%s0 + $0x3d0] sm:$0xf]
  %v260 = vld [vmem:[%s0 + $0x3d4] sm:$0xf]
  %v261 = vld [vmem:[%s0 + $0x3d8] sm:$0xf]
  %v262 = vld [vmem:[%s0 + $0x3dc] sm:$0xf]
  %v263 = vld [vmem:[%s0 + $0x3e0] sm:$0xf]
  %v264 = vld [vmem:[%s0 + $0x3e4] sm:$0xf]
  %v265 = vld [vmem:[%s0 + $0x3e8] sm:$0xf]
  %v266 = vld [vmem:[%s0 + $0x3ec] sm:$0xf]
  %v267 = vld [vmem:[%s0 + $0x3f0] sm:$0xf]
  %v268 = vld [vmem:[%s0 + $0x3f4] sm:$0xf]
  %v269 = vld [vmem:[%s0 + $0x3f8] sm:$0xf]
  %v270 = vld [vmem:[%s0 + $0x3fc] sm:$0xf]
  %v271 = vld [vmem:[%s1] sm:$0xf]
  %v272 = vld [vmem:[%s1 + $0x4] sm:$0xf]
  %v273 = vld [vmem:[%s1 + $0x8] sm:$0xf]
  %v274 = vld [vmem:[%s1 + $0xc] sm:$0xf]
  %v275 = vld [vmem:[%s1 + $0x10] sm:$0xf]
  %v276 = vld [vmem:[%s1 + $0x14] sm:$0xf]
  %v277 = vld [vmem:[%s2] sm:$0x1]
  %v279 = vlaneseq
  %v280 = vshrl.u32 %v279, 7
  %v281 = vsub.s32 0, %v280
  %v282 = vrot.slane %v277, %v281
  %v540 = vunpack.c.l.b16 %v15
  %v541 = vunpack.c.l.b16 %v16
  %v542 = vunpack.c.l.b16 %v17
  %v543 = vunpack.c.l.b16 %v18
  %v544 = vunpack.c.l.b16 %v19
  %v545 = vunpack.c.l.b16 %v20
  %v546 = vunpack.c.l.b16 %v21
  %v547 = vunpack.c.l.b16 %v22
  %v548 = vunpack.c.l.b16 %v23
  %v549 = vunpack.c.l.b16 %v24
  %v550 = vunpack.c.l.b16 %v25
  %v551 = vunpack.c.l.b16 %v26
  %v552 = vunpack.c.l.b16 %v27
  %v553 = vunpack.c.l.b16 %v28
  %v554 = vunpack.c.l.b16 %v29
  %v555 = vunpack.c.l.b16 %v30
  %v556 = vunpack.c.l.b16 %v31
  %v557 = vunpack.c.l.b16 %v32
  %v558 = vunpack.c.l.b16 %v33
  %v559 = vunpack.c.l.b16 %v34
  %v560 = vunpack.c.l.b16 %v35
  %v561 = vunpack.c.l.b16 %v36
  %v562 = vunpack.c.l.b16 %v37
  %v563 = vunpack.c.l.b16 %v38
  %v564 = vunpack.c.l.b16 %v39
  %v565 = vunpack.c.l.b16 %v40
  %v566 = vunpack.c.l.b16 %v41
  %v567 = vunpack.c.l.b16 %v42
  %v568 = vunpack.c.l.b16 %v43
  %v569 = vunpack.c.l.b16 %v44
  %v570 = vunpack.c.l.b16 %v45
  %v571 = vunpack.c.l.b16 %v46
  %v572 = vunpack.c.l.b16 %v47
  %v573 = vunpack.c.l.b16 %v48
  %v574 = vunpack.c.l.b16 %v49
  %v575 = vunpack.c.l.b16 %v50
  %v576 = vunpack.c.l.b16 %v51
  %v577 = vunpack.c.l.b16 %v52
  %v578 = vunpack.c.l.b16 %v53
  %v579 = vunpack.c.l.b16 %v54
  %v580 = vunpack.c.l.b16 %v55
  %v581 = vunpack.c.l.b16 %v56
  %v582 = vunpack.c.l.b16 %v57
  %v583 = vunpack.c.l.b16 %v58
  %v584 = vunpack.c.l.b16 %v59
  %v585 = vunpack.c.l.b16 %v60
  %v586 = vunpack.c.l.b16 %v61
  %v587 = vunpack.c.l.b16 %v62
  %v588 = vunpack.c.l.b16 %v63
  %v589 = vunpack.c.l.b16 %v64
  %v590 = vunpack.c.l.b16 %v65
  %v591 = vunpack.c.l.b16 %v66
  %v592 = vunpack.c.l.b16 %v67
  %v593 = vunpack.c.l.b16 %v68
  %v594 = vunpack.c.l.b16 %v69
  %v595 = vunpack.c.l.b16 %v70
  %v596 = vunpack.c.l.b16 %v71
  %v597 = vunpack.c.l.b16 %v72
  %v598 = vunpack.c.l.b16 %v73
  %v599 = vunpack.c.l.b16 %v74
  %v600 = vunpack.c.l.b16 %v75
  %v601 = vunpack.c.l.b16 %v76
  %v602 = vunpack.c.l.b16 %v77
  %v603 = vunpack.c.l.b16 %v78
  %v604 = vunpack.c.l.b16 %v79
  %v605 = vunpack.c.l.b16 %v80
  %v606 = vunpack.c.l.b16 %v81
  %v607 = vunpack.c.l.b16 %v82
  %v608 = vunpack.c.l.b16 %v83
  %v609 = vunpack.c.l.b16 %v84
  %v610 = vunpack.c.l.b16 %v85
  %v611 = vunpack.c.l.b16 %v86
  %v612 = vunpack.c.l.b16 %v87
  %v613 = vunpack.c.l.b16 %v88
  %v614 = vunpack.c.l.b16 %v89
  %v615 = vunpack.c.l.b16 %v90
  %v616 = vunpack.c.l.b16 %v91
  %v617 = vunpack.c.l.b16 %v92
  %v618 = vunpack.c.l.b16 %v93
  %v619 = vunpack.c.l.b16 %v94
  %v620 = vunpack.c.l.b16 %v95
  %v621 = vunpack.c.l.b16 %v96
  %v622 = vunpack.c.l.b16 %v97
  %v623 = vunpack.c.l.b16 %v98
  %v624 = vunpack.c.l.b16 %v99
  %v625 = vunpack.c.l.b16 %v100
  %v626 = vunpack.c.l.b16 %v101
  %v627 = vunpack.c.l.b16 %v102
  %v628 = vunpack.c.l.b16 %v103
  %v629 = vunpack.c.l.b16 %v104
  %v630 = vunpack.c.l.b16 %v105
  %v631 = vunpack.c.l.b16 %v106
  %v632 = vunpack.c.l.b16 %v107
  %v633 = vunpack.c.l.b16 %v108
  %v634 = vunpack.c.l.b16 %v109
  %v635 = vunpack.c.l.b16 %v110
  %v636 = vunpack.c.l.b16 %v111
  %v637 = vunpack.c.l.b16 %v112
  %v638 = vunpack.c.l.b16 %v113
  %v639 = vunpack.c.l.b16 %v114
  %v640 = vunpack.c.l.b16 %v115
  %v641 = vunpack.c.l.b16 %v116
  %v642 = vunpack.c.l.b16 %v117
  %v643 = vunpack.c.l.b16 %v118
  %v644 = vunpack.c.l.b16 %v119
  %v645 = vunpack.c.l.b16 %v120
  %v646 = vunpack.c.l.b16 %v121
  %v647 = vunpack.c.l.b16 %v122
  %v648 = vunpack.c.l.b16 %v123
  %v649 = vunpack.c.l.b16 %v124
  %v650 = vunpack.c.l.b16 %v125
  %v651 = vunpack.c.l.b16 %v126
  %v652 = vunpack.c.l.b16 %v127
  %v653 = vunpack.c.l.b16 %v128
  %v654 = vunpack.c.l.b16 %v129
  %v655 = vunpack.c.l.b16 %v130
  %v656 = vunpack.c.l.b16 %v131
  %v657 = vunpack.c.l.b16 %v132
  %v658 = vunpack.c.l.b16 %v133
  %v659 = vunpack.c.l.b16 %v134
  %v660 = vunpack.c.l.b16 %v135
  %v661 = vunpack.c.l.b16 %v136
  %v662 = vunpack.c.l.b16 %v137
  %v663 = vunpack.c.l.b16 %v138
  %v664 = vunpack.c.l.b16 %v139
  %v665 = vunpack.c.l.b16 %v140
  %v666 = vunpack.c.l.b16 %v141
  %v667 = vunpack.c.l.b16 %v142
  %v668 = vunpack.c.l.b16 %v143
  %v669 = vunpack.c.l.b16 %v144
  %v670 = vunpack.c.l.b16 %v145
  %v671 = vunpack.c.l.b16 %v146
  %v672 = vunpack.c.l.b16 %v147
  %v673 = vunpack.c.l.b16 %v148
  %v674 = vunpack.c.l.b16 %v149
  %v675 = vunpack.c.l.b16 %v150
  %v676 = vunpack.c.l.b16 %v151
  %v677 = vunpack.c.l.b16 %v152
  %v678 = vunpack.c.l.b16 %v153
  %v679 = vunpack.c.l.b16 %v154
  %v680 = vunpack.c.l.b16 %v155
  %v681 = vunpack.c.l.b16 %v156
  %v682 = vunpack.c.l.b16 %v157
  %v683 = vunpack.c.l.b16 %v158
  %v684 = vunpack.c.l.b16 %v159
  %v685 = vunpack.c.l.b16 %v160
  %v686 = vunpack.c.l.b16 %v161
  %v687 = vunpack.c.l.b16 %v162
  %v688 = vunpack.c.l.b16 %v163
  %v689 = vunpack.c.l.b16 %v164
  %v690 = vunpack.c.l.b16 %v165
  %v691 = vunpack.c.l.b16 %v166
  %v692 = vunpack.c.l.b16 %v167
  %v693 = vunpack.c.l.b16 %v168
  %v694 = vunpack.c.l.b16 %v169
  %v695 = vunpack.c.l.b16 %v170
  %v696 = vunpack.c.l.b16 %v171
  %v697 = vunpack.c.l.b16 %v172
  %v698 = vunpack.c.l.b16 %v173
  %v699 = vunpack.c.l.b16 %v174
  %v700 = vunpack.c.l.b16 %v175
  %v701 = vunpack.c.l.b16 %v176
  %v702 = vunpack.c.l.b16 %v177
  %v703 = vunpack.c.l.b16 %v178
  %v704 = vunpack.c.l.b16 %v179
  %v705 = vunpack.c.l.b16 %v180
  %v706 = vunpack.c.l.b16 %v181
  %v707 = vunpack.c.l.b16 %v182
  %v708 = vunpack.c.l.b16 %v183
  %v709 = vunpack.c.l.b16 %v184
  %v710 = vunpack.c.l.b16 %v185
  %v711 = vunpack.c.l.b16 %v186
  %v712 = vunpack.c.l.b16 %v187
  %v713 = vunpack.c.l.b16 %v188
  %v714 = vunpack.c.l.b16 %v189
  %v715 = vunpack.c.l.b16 %v190
  %v716 = vunpack.c.l.b16 %v191
  %v717 = vunpack.c.l.b16 %v192
  %v718 = vunpack.c.l.b16 %v193
  %v719 = vunpack.c.l.b16 %v194
  %v720 = vunpack.c.l.b16 %v195
  %v721 = vunpack.c.l.b16 %v196
  %v722 = vunpack.c.l.b16 %v197
  %v723 = vunpack.c.l.b16 %v198
  %v724 = vunpack.c.l.b16 %v199
  %v725 = vunpack.c.l.b16 %v200
  %v726 = vunpack.c.l.b16 %v201
  %v727 = vunpack.c.l.b16 %v202
  %v728 = vunpack.c.l.b16 %v203
  %v729 = vunpack.c.l.b16 %v204
  %v730 = vunpack.c.l.b16 %v205
  %v731 = vunpack.c.l.b16 %v206
  %v732 = vunpack.c.l.b16 %v207
  %v733 = vunpack.c.l.b16 %v208
  %v734 = vunpack.c.l.b16 %v209
  %v735 = vunpack.c.l.b16 %v210
  %v736 = vunpack.c.l.b16 %v211
  %v737 = vunpack.c.l.b16 %v212
  %v738 = vunpack.c.l.b16 %v213
  %v739 = vunpack.c.l.b16 %v214
  %v740 = vunpack.c.l.b16 %v215
  %v741 = vunpack.c.l.b16 %v216
  %v742 = vunpack.c.l.b16 %v217
  %v743 = vunpack.c.l.b16 %v218
  %v744 = vunpack.c.l.b16 %v219
  %v745 = vunpack.c.l.b16 %v220
  %v746 = vunpack.c.l.b16 %v221
  %v747 = vunpack.c.l.b16 %v222
  %v748 = vunpack.c.l.b16 %v223
  %v749 = vunpack.c.l.b16 %v224
  %v750 = vunpack.c.l.b16 %v225
  %v751 = vunpack.c.l.b16 %v226
  %v752 = vunpack.c.l.b16 %v227
  %v753 = vunpack.c.l.b16 %v228
  %v754 = vunpack.c.l.b16 %v229
  %v755 = vunpack.c.l.b16 %v230
  %v756 = vunpack.c.l.b16 %v231
  %v757 = vunpack.c.l.b16 %v232
  %v758 = vunpack.c.l.b16 %v233
  %v759 = vunpack.c.l.b16 %v234
  %v760 = vunpack.c.l.b16 %v235
  %v761 = vunpack.c.l.b16 %v236
  %v762 = vunpack.c.l.b16 %v237
  %v763 = vunpack.c.l.b16 %v238
  %v764 = vunpack.c.l.b16 %v239
  %v765 = vunpack.c.l.b16 %v240
  %v766 = vunpack.c.l.b16 %v241
  %v767 = vunpack.c.l.b16 %v242
  %v768 = vunpack.c.l.b16 %v243
  %v769 = vunpack.c.l.b16 %v244
  %v770 = vunpack.c.l.b16 %v245
  %v771 = vunpack.c.l.b16 %v246
  %v772 = vunpack.c.l.b16 %v247
  %v773 = vunpack.c.l.b16 %v248
  %v774 = vunpack.c.l.b16 %v249
  %v775 = vunpack.c.l.b16 %v250
  %v776 = vunpack.c.l.b16 %v251
  %v777 = vunpack.c.l.b16 %v252
  %v778 = vunpack.c.l.b16 %v253
  %v779 = vunpack.c.l.b16 %v254
  %v780 = vunpack.c.l.b16 %v255
  %v781 = vunpack.c.l.b16 %v256
  %v782 = vunpack.c.l.b16 %v257
  %v783 = vunpack.c.l.b16 %v258
  %v784 = vunpack.c.l.b16 %v259
  %v785 = vunpack.c.l.b16 %v260
  %v786 = vunpack.c.l.b16 %v261
  %v787 = vunpack.c.l.b16 %v262
  %v788 = vunpack.c.l.b16 %v263
  %v789 = vunpack.c.l.b16 %v264
  %v790 = vunpack.c.l.b16 %v265
  %v791 = vunpack.c.l.b16 %v266
  %v792 = vunpack.c.l.b16 %v267
  %v793 = vunpack.c.l.b16 %v268
  %v794 = vunpack.c.l.b16 %v269
  %v795 = vunpack.c.l.b16 %v270
  %v796 = vpack.c.b16 %v541, %v540
  %v797 = vpack.c.b16 %v543, %v542
  %v798 = vpack.c.b16 %v545, %v544
  %v799 = vpack.c.b16 %v547, %v546
  %v800 = vpack.c.b16 %v549, %v548
  %v801 = vpack.c.b16 %v551, %v550
  %v802 = vpack.c.b16 %v553, %v552
  %v803 = vpack.c.b16 %v555, %v554
  %v804 = vpack.c.b16 %v557, %v556
  %v805 = vpack.c.b16 %v559, %v558
  %v806 = vpack.c.b16 %v561, %v560
  %v807 = vpack.c.b16 %v563, %v562
  %v808 = vpack.c.b16 %v565, %v564
  %v809 = vpack.c.b16 %v567, %v566
  %v810 = vpack.c.b16 %v569, %v568
  %v811 = vpack.c.b16 %v571, %v570
  %v812 = vpack.c.b16 %v573, %v572
  %v813 = vpack.c.b16 %v575, %v574
  %v814 = vpack.c.b16 %v577, %v576
  %v815 = vpack.c.b16 %v579, %v578
  %v816 = vpack.c.b16 %v581, %v580
  %v817 = vpack.c.b16 %v583, %v582
  %v818 = vpack.c.b16 %v585, %v584
  %v819 = vpack.c.b16 %v587, %v586
  %v820 = vpack.c.b16 %v589, %v588
  %v821 = vpack.c.b16 %v591, %v590
  %v822 = vpack.c.b16 %v593, %v592
  %v823 = vpack.c.b16 %v595, %v594
  %v824 = vpack.c.b16 %v597, %v596
  %v825 = vpack.c.b16 %v599, %v598
  %v826 = vpack.c.b16 %v601, %v600
  %v827 = vpack.c.b16 %v603, %v602
  %v828 = vpack.c.b16 %v605, %v604
  %v829 = vpack.c.b16 %v607, %v606
  %v830 = vpack.c.b16 %v609, %v608
  %v831 = vpack.c.b16 %v611, %v610
  %v832 = vpack.c.b16 %v613, %v612
  %v833 = vpack.c.b16 %v615, %v614
  %v834 = vpack.c.b16 %v617, %v616
  %v835 = vpack.c.b16 %v619, %v618
  %v836 = vpack.c.b16 %v621, %v620
  %v837 = vpack.c.b16 %v623, %v622
  %v838 = vpack.c.b16 %v625, %v624
  %v839 = vpack.c.b16 %v627, %v626
  %v840 = vpack.c.b16 %v629, %v628
  %v841 = vpack.c.b16 %v631, %v630
  %v842 = vpack.c.b16 %v633, %v632
  %v843 = vpack.c.b16 %v635, %v634
  %v844 = vpack.c.b16 %v637, %v636
  %v845 = vpack.c.b16 %v639, %v638
  %v846 = vpack.c.b16 %v641, %v640
  %v847 = vpack.c.b16 %v643, %v642
  %v848 = vpack.c.b16 %v645, %v644
  %v849 = vpack.c.b16 %v647, %v646
  %v850 = vpack.c.b16 %v649, %v648
  %v851 = vpack.c.b16 %v651, %v650
  %v852 = vpack.c.b16 %v653, %v652
  %v853 = vpack.c.b16 %v655, %v654
  %v854 = vpack.c.b16 %v657, %v656
  %v855 = vpack.c.b16 %v659, %v658
  %v856 = vpack.c.b16 %v661, %v660
  %v857 = vpack.c.b16 %v663, %v662
  %v858 = vpack.c.b16 %v665, %v664
  %v859 = vpack.c.b16 %v667, %v666
  %v860 = vpack.c.b16 %v669, %v668
  %v861 = vpack.c.b16 %v671, %v670
  %v862 = vpack.c.b16 %v673, %v672
  %v863 = vpack.c.b16 %v675, %v674
  %v864 = vpack.c.b16 %v677, %v676
  %v865 = vpack.c.b16 %v679, %v678
  %v866 = vpack.c.b16 %v681, %v680
  %v867 = vpack.c.b16 %v683, %v682
  %v868 = vpack.c.b16 %v685, %v684
  %v869 = vpack.c.b16 %v687, %v686
  %v870 = vpack.c.b16 %v689, %v688
  %v871 = vpack.c.b16 %v691, %v690
  %v872 = vpack.c.b16 %v693, %v692
  %v873 = vpack.c.b16 %v695, %v694
  %v874 = vpack.c.b16 %v697, %v696
  %v875 = vpack.c.b16 %v699, %v698
  %v876 = vpack.c.b16 %v701, %v700
  %v877 = vpack.c.b16 %v703, %v702
  %v878 = vpack.c.b16 %v705, %v704
  %v879 = vpack.c.b16 %v707, %v706
  %v880 = vpack.c.b16 %v709, %v708
  %v881 = vpack.c.b16 %v711, %v710
  %v882 = vpack.c.b16 %v713, %v712
  %v883 = vpack.c.b16 %v715, %v714
  %v884 = vpack.c.b16 %v717, %v716
  %v885 = vpack.c.b16 %v719, %v718
  %v886 = vpack.c.b16 %v721, %v720
  %v887 = vpack.c.b16 %v723, %v722
  %v888 = vpack.c.b16 %v725, %v724
  %v889 = vpack.c.b16 %v727, %v726
  %v890 = vpack.c.b16 %v729, %v728
  %v891 = vpack.c.b16 %v731, %v730
  %v892 = vpack.c.b16 %v733, %v732
  %v893 = vpack.c.b16 %v735, %v734
  %v894 = vpack.c.b16 %v737, %v736
  %v895 = vpack.c.b16 %v739, %v738
  %v896 = vpack.c.b16 %v741, %v740
  %v897 = vpack.c.b16 %v743, %v742
  %v898 = vpack.c.b16 %v745, %v744
  %v899 = vpack.c.b16 %v747, %v746
  %v900 = vpack.c.b16 %v749, %v748
  %v901 = vpack.c.b16 %v751, %v750
  %v902 = vpack.c.b16 %v753, %v752
  %v903 = vpack.c.b16 %v755, %v754
  %v904 = vpack.c.b16 %v757, %v756
  %v905 = vpack.c.b16 %v759, %v758
  %v906 = vpack.c.b16 %v761, %v760
  %v907 = vpack.c.b16 %v763, %v762
  %v908 = vpack.c.b16 %v765, %v764
  %v909 = vpack.c.b16 %v767, %v766
  %v910 = vpack.c.b16 %v769, %v768
  %v911 = vpack.c.b16 %v771, %v770
  %v912 = vpack.c.b16 %v773, %v772
  %v913 = vpack.c.b16 %v775, %v774
  %v914 = vpack.c.b16 %v777, %v776
  %v915 = vpack.c.b16 %v779, %v778
  %v916 = vpack.c.b16 %v781, %v780
  %v917 = vpack.c.b16 %v783, %v782
  %v918 = vpack.c.b16 %v785, %v784
  %v919 = vpack.c.b16 %v787, %v786
  %v920 = vpack.c.b16 %v789, %v788
  %v921 = vpack.c.b16 %v791, %v790
  %v922 = vpack.c.b16 %v793, %v792
  %v923 = vpack.c.b16 %v795, %v794
  %v930 = vunpack.c.l.b16 %v271
  %v931 = vunpack.c.l.b16 %v272
  %v932 = vunpack.c.l.b16 %v273
  %v933 = vunpack.c.l.b16 %v274
  %v934 = vunpack.c.l.b16 %v275
  %v935 = vunpack.c.l.b16 %v276
  %v936 = vpack.c.b16 %v931, %v930
  %v937 = vpack.c.b16 %v933, %v932
  %v938 = vpack.c.b16 %v935, %v934
  %vm942 = vcmask 392192
  %v944 = vsel %vm942, %v796, 0
  %v947 = vsel %vm942, %v797, 0
  %v950 = vsel %vm942, %v798, 0
  %v953 = vsel %vm942, %v799, 0
  %v956 = vsel %vm942, %v800, 0
  %v959 = vsel %vm942, %v801, 0
  %v962 = vsel %vm942, %v802, 0
  %v965 = vsel %vm942, %v803, 0
  %v968 = vsel %vm942, %v804, 0
  %v971 = vsel %vm942, %v805, 0
  %v974 = vsel %vm942, %v806, 0
  %v977 = vsel %vm942, %v807, 0
  %v980 = vsel %vm942, %v808, 0
  %v983 = vsel %vm942, %v809, 0
  %v986 = vsel %vm942, %v810, 0
  %v989 = vsel %vm942, %v811, 0
  %v992 = vsel %vm942, %v812, 0
  %v995 = vsel %vm942, %v813, 0
  %v998 = vsel %vm942, %v814, 0
  %v1001 = vsel %vm942, %v815, 0
  %v1004 = vsel %vm942, %v816, 0
  %v1007 = vsel %vm942, %v817, 0
  %v1010 = vsel %vm942, %v818, 0
  %v1013 = vsel %vm942, %v819, 0
  %v1016 = vsel %vm942, %v820, 0
  %v1019 = vsel %vm942, %v821, 0
  %v1022 = vsel %vm942, %v822, 0
  %v1025 = vsel %vm942, %v823, 0
  %v1028 = vsel %vm942, %v824, 0
  %v1031 = vsel %vm942, %v825, 0
  %v1034 = vsel %vm942, %v826, 0
  %v1037 = vsel %vm942, %v827, 0
  %v1040 = vsel %vm942, %v828, 0
  %v1043 = vsel %vm942, %v829, 0
  %v1046 = vsel %vm942, %v830, 0
  %v1049 = vsel %vm942, %v831, 0
  %v1052 = vsel %vm942, %v832, 0
  %v1055 = vsel %vm942, %v833, 0
  %v1058 = vsel %vm942, %v834, 0
  %v1061 = vsel %vm942, %v835, 0
  %v1064 = vsel %vm942, %v836, 0
  %v1067 = vsel %vm942, %v837, 0
  %v1070 = vsel %vm942, %v838, 0
  %v1073 = vsel %vm942, %v839, 0
  %v1076 = vsel %vm942, %v840, 0
  %v1079 = vsel %vm942, %v841, 0
  %v1082 = vsel %vm942, %v842, 0
  %v1085 = vsel %vm942, %v843, 0
  %v1088 = vsel %vm942, %v844, 0
  %v1091 = vsel %vm942, %v845, 0
  %v1094 = vsel %vm942, %v846, 0
  %v1097 = vsel %vm942, %v847, 0
  %v1100 = vsel %vm942, %v848, 0
  %v1103 = vsel %vm942, %v849, 0
  %v1106 = vsel %vm942, %v850, 0
  %v1109 = vsel %vm942, %v851, 0
  %v1112 = vsel %vm942, %v852, 0
  %v1115 = vsel %vm942, %v853, 0
  %v1118 = vsel %vm942, %v854, 0
  %v1121 = vsel %vm942, %v855, 0
  %v1124 = vsel %vm942, %v856, 0
  %v1127 = vsel %vm942, %v857, 0
  %v1130 = vsel %vm942, %v858, 0
  %v1133 = vsel %vm942, %v859, 0
  %v1136 = vsel %vm942, %v860, 0
  %v1139 = vsel %vm942, %v861, 0
  %v1142 = vsel %vm942, %v862, 0
  %v1145 = vsel %vm942, %v863, 0
  %v1148 = vsel %vm942, %v864, 0
  %v1151 = vsel %vm942, %v865, 0
  %v1154 = vsel %vm942, %v866, 0
  %v1157 = vsel %vm942, %v867, 0
  %v1160 = vsel %vm942, %v868, 0
  %v1163 = vsel %vm942, %v869, 0
  %v1166 = vsel %vm942, %v870, 0
  %v1169 = vsel %vm942, %v871, 0
  %v1172 = vsel %vm942, %v872, 0
  %v1175 = vsel %vm942, %v873, 0
  %v1178 = vsel %vm942, %v874, 0
  %v1181 = vsel %vm942, %v875, 0
  %v1184 = vsel %vm942, %v876, 0
  %v1187 = vsel %vm942, %v877, 0
  %v1190 = vsel %vm942, %v878, 0
  %v1193 = vsel %vm942, %v879, 0
  %v1196 = vsel %vm942, %v880, 0
  %v1199 = vsel %vm942, %v881, 0
  %v1202 = vsel %vm942, %v882, 0
  %v1205 = vsel %vm942, %v883, 0
  %v1208 = vsel %vm942, %v884, 0
  %v1211 = vsel %vm942, %v885, 0
  %v1214 = vsel %vm942, %v886, 0
  %v1217 = vsel %vm942, %v887, 0
  %v1220 = vsel %vm942, %v888, 0
  %v1223 = vsel %vm942, %v889, 0
  %v1226 = vsel %vm942, %v890, 0
  %v1229 = vsel %vm942, %v891, 0
  %v1232 = vsel %vm942, %v892, 0
  %v1235 = vsel %vm942, %v893, 0
  %v1238 = vsel %vm942, %v894, 0
  %v1241 = vsel %vm942, %v895, 0
  %v1244 = vsel %vm942, %v896, 0
  %v1247 = vsel %vm942, %v897, 0
  %v1250 = vsel %vm942, %v898, 0
  %v1253 = vsel %vm942, %v899, 0
  %v1256 = vsel %vm942, %v900, 0
  %v1259 = vsel %vm942, %v901, 0
  %v1262 = vsel %vm942, %v902, 0
  %v1265 = vsel %vm942, %v903, 0
  %v1268 = vsel %vm942, %v904, 0
  %v1271 = vsel %vm942, %v905, 0
  %v1274 = vsel %vm942, %v906, 0
  %v1277 = vsel %vm942, %v907, 0
  %v1280 = vsel %vm942, %v908, 0
  %v1283 = vsel %vm942, %v909, 0
  %v1286 = vsel %vm942, %v910, 0
  %v1289 = vsel %vm942, %v911, 0
  %v1292 = vsel %vm942, %v912, 0
  %v1295 = vsel %vm942, %v913, 0
  %v1298 = vsel %vm942, %v914, 0
  %v1301 = vsel %vm942, %v915, 0
  %v1304 = vsel %vm942, %v916, 0
  %v1307 = vsel %vm942, %v917, 0
  %v1310 = vsel %vm942, %v918, 0
  %v1313 = vsel %vm942, %v919, 0
  %v1316 = vsel %vm942, %v920, 0
  %v1319 = vsel %vm942, %v921, 0
  %v1322 = vsel %vm942, %v922, 0
  %v1325 = vsel %vm942, %v923, 0
  %1327 = vmatprep.subr.bf16.mxu0 0
  %1328 = vmatpush1.bf16.msra.mxu0 %v936
  %1329 = vmatprep.subr.bf16.mxu0 0
  %1330 = vmatpush1.bf16.msra.mxu0 %v937
  %1331 = vmatprep.subr.bf16.mxu0 0
  %1332 = vmatpush1.bf16.msra.mxu0 %v938
  %1333 = vmatprep.subr.bf16.mxu0 0
  %1334 = vmatpush1.bf16.msra.mxu0 0
  %1335 = vmatprep.subr.bf16.mxu0 0
  %1336 = vmatpush1.bf16.msra.mxu0 0
  %1337 = vmatprep.subr.bf16.mxu0 0
  %1338 = vmatpush1.bf16.msra.mxu0 0
  %1339 = vmatprep.subr.bf16.mxu0 0
  %1340 = vmatpush1.bf16.msra.mxu0 0
  %1341 = vmatprep.subr.bf16.mxu0 0
  %1342 = vmatpush1.bf16.msra.mxu0 0
  %1343 = vmatprep.subr.bf16.mxu0 0
  %1344 = vmatpush1.bf16.msra.mxu0 0
  %1345 = vmatprep.subr.bf16.mxu0 0
  %1346 = vmatpush1.bf16.msra.mxu0 0
  %1347 = vmatprep.subr.bf16.mxu0 0
  %1348 = vmatpush1.bf16.msra.mxu0 0
  %1349 = vmatprep.subr.bf16.mxu0 0
  %1350 = vmatpush1.bf16.msra.mxu0 0
  %1351 = vmatprep.subr.bf16.mxu0 0
  %1352 = vmatpush1.bf16.msra.mxu0 0
  %1353 = vmatprep.subr.bf16.mxu0 0
  %1354 = vmatpush1.bf16.msra.mxu0 0
  %1355 = vmatprep.subr.bf16.mxu0 0
  %1356 = vmatpush1.bf16.msra.mxu0 0
  %1357 = vmatprep.subr.bf16.mxu0 0
  %1358 = vmatpush1.bf16.msra.mxu0 0
  %1359 = vmatprep.mubr.bf16.mxu0 0
  %1360 = vmatmul.mubr.bf16.gmra.mrb[0].mxu0 %v944
  %v1361 = vpop.f32.mrb[0].mxu0
  %v1362 = vadd.f32 %v282, %v1361
  %v1363 = vpop.f32.mrb[0].mxu0
  %v1364 = vpop.f32.mrb[0].mxu0
  %v1365 = vadd.f32 %v282, %v1364
  %v1366 = vpop.f32.mrb[0].mxu0
  %1367 = vmatprep.mubr.bf16.mxu0 0
  %1368 = vmatmul.mubr.bf16.gmra.mrb[0].mxu0 %v947
  %v1369 = vpop.f32.mrb[0].mxu0
  %v1370 = vadd.f32 %v282, %v1369
  %v1371 = vpop.f32.mrb[0].mxu0
  %v1372 = vpop.f32.mrb[0].mxu0
  %v1373 = vadd.f32 %v282, %v1372
  %v1374 = vpop.f32.mrb[0].mxu0
  %1375 = vmatprep.mubr.bf16.mxu0 0
  %1376 = vmatmul.mubr.bf16.gmra.mrb[0].mxu0 %v950
  %v1377 = vpop.f32.mrb[0].mxu0
  %v1378 = vadd.f32 %v282, %v1377
  %v1379 = vpop.f32.mrb[0].mxu0
  %v1380 = vpop.f32.mrb[0].mxu0
  %v1381 = vadd.f32 %v282, %v1380
  %v1382 = vpop.f32.mrb[0].mxu0
  %1383 = vmatprep.mubr.bf16.mxu0 0
  %1384 = vmatmul.mubr.bf16.gmra.mrb[0].mxu0 %v953
  %v1385 = vpop.f32.mrb[0].mxu0
  %v1386 = vadd.f32 %v282, %v1385
  %v1387 = vpop.f32.mrb[0].mxu0
  %v1388 = vpop.f32.mrb[0].mxu0
  %v1389 = vadd.f32 %v282, %v1388
  %v1390 = vpop.f32.mrb[0].mxu0
  %1391 = vmatprep.mubr.bf16.mxu0 0
  %1392 = vmatmul.mubr.bf16.gmra.mrb[0].mxu0 %v956
  %v1393 = vpop.f32.mrb[0].mxu0
  %v1394 = vadd.f32 %v282, %v1393
  %v1395 = vpop.f32.mrb[0].mxu0
  %v1396 = vpop.f32.mrb[0].mxu0
  %v1397 = vadd.f32 %v282, %v1396
  %v1398 = vpop.f32.mrb[0].mxu0
  %1399 = vmatprep.mubr.bf16.mxu0 0
  %1400 = vmatmul.mubr.bf16.gmra.mrb[0].mxu0 %v959
  %v1401 = vpop.f32.mrb[0].mxu0
  %v1402 = vadd.f32 %v282, %v1401
  %v1403 = vpop.f32.mrb[0].mxu0
  %v1404 = vpop.f32.mrb[0].mxu0
  %v1405 = vadd.f32 %v282, %v1404
  %v1406 = vpop.f32.mrb[0].mxu0
  %1407 = vmatprep.mubr.bf16.mxu0 0
  %1408 = vmatmul.mubr.bf16.gmra.mrb[0].mxu0 %v962
  %v1409 = vpop.f32.mrb[0].mxu0
  %v1410 = vadd.f32 %v282, %v1409
  %v1411 = vpop.f32.mrb[0].mxu0
  %v1412 = vpop.f32.mrb[0].mxu0
  %v1413 = vadd.f32 %v282, %v1412
  %v1414 = vpop.f32.mrb[0].mxu0
  %1415 = vmatprep.mubr.bf16.mxu0 0
  %1416 = vmatmul.mubr.bf16.gmra.mrb[0].mxu0 %v965
  %v1417 = vpop.f32.mrb[0].mxu0
  %v1418 = vadd.f32 %v282, %v1417
  %v1419 = vpop.f32.mrb[0].mxu0
  %v1420 = vpop.f32.mrb[0].mxu0
  %v1421 = vadd.f32 %v282, %v1420
  %v1422 = vpop.f32.mrb[0].mxu0
  %1423 = vmatprep.mubr.bf16.mxu0 0
  %1424 = vmatmul.mubr.bf16.gmra.mrb[0].mxu0 %v968
  %v1425 = vpop.f32.mrb[0].mxu0
  %v1426 = vadd.f32 %v282, %v1425
  %v1427 = vpop.f32.mrb[0].mxu0
  %v1428 = vpop.f32.mrb[0].mxu0
  %v1429 = vadd.f32 %v282, %v1428
  %v1430 = vpop.f32.mrb[0].mxu0
  %1431 = vmatprep.mubr.bf16.mxu0 0
  %1432 = vmatmul.mubr.bf16.gmra.mrb[0].mxu0 %v971
  %v1433 = vpop.f32.mrb[0].mxu0
  %v1434 = vadd.f32 %v282, %v1433
  %v1435 = vpop.f32.mrb[0].mxu0
  %v1436 = vpop.f32.mrb[0].mxu0
  %v1437 = vadd.f32 %v282, %v1436
  %v1438 = vpop.f32.mrb[0].mxu0
  %1439 = vmatprep.mubr.bf16.mxu0 0
  %1440 = vmatmul.mubr.bf16.gmra.mrb[0].mxu0 %v974
  %v1441 = vpop.f32.mrb[0].mxu0
  %v1442 = vadd.f32 %v282, %v1441
  %v1443 = vpop.f32.mrb[0].mxu0
  %v1444 = vpop.f32.mrb[0].mxu0
  %v1445 = vadd.f32 %v282, %v1444
  %v1446 = vpop.f32.mrb[0].mxu0
  %1447 = vmatprep.mubr.bf16.mxu0 0
  %1448 = vmatmul.mubr.bf16.gmra.mrb[0].mxu0 %v977
  %v1449 = vpop.f32.mrb[0].mxu0
  %v1450 = vadd.f32 %v282, %v1449
  %v1451 = vpop.f32.mrb[0].mxu0
  %v1452 = vpop.f32.mrb[0].mxu0
  %v1453 = vadd.f32 %v282, %v1452
  %v1454 = vpop.f32.mrb[0].mxu0
  %1455 = vmatprep.mubr.bf16.mxu0 0
  %1456 = vmatmul.mubr.bf16.gmra.mrb[0].mxu0 %v980
  %v1457 = vpop.f32.mrb[0].mxu0
  %v1458 = vadd.f32 %v282, %v1457
  %v1459 = vpop.f32.mrb[0].mxu0
  %v1460 = vpop.f32.mrb[0].mxu0
  %v1461 = vadd.f32 %v282, %v1460
  %v1462 = vpop.f32.mrb[0].mxu0
  %1463 = vmatprep.mubr.bf16.mxu0 0
  %1464 = vmatmul.mubr.bf16.gmra.mrb[0].mxu0 %v983
  %v1465 = vpop.f32.mrb[0].mxu0
  %v1466 = vadd.f32 %v282, %v1465
  %v1467 = vpop.f32.mrb[0].mxu0
  %v1468 = vpop.f32.mrb[0].mxu0
  %v1469 = vadd.f32 %v282, %v1468
  %v1470 = vpop.f32.mrb[0].mxu0
  %1471 = vmatprep.mubr.bf16.mxu0 0
  %1472 = vmatmul.mubr.bf16.gmra.mrb[0].mxu0 %v986
  %v1473 = vpop.f32.mrb[0].mxu0
  %v1474 = vadd.f32 %v282, %v1473
  %v1475 = vpop.f32.mrb[0].mxu0
  %v1476 = vpop.f32.mrb[0].mxu0
  %v1477 = vadd.f32 %v282, %v1476
  %v1478 = vpop.f32.mrb[0].mxu0
  %1479 = vmatprep.mubr.bf16.mxu0 0
  %1480 = vmatmul.mubr.bf16.gmra.mrb[0].mxu0 %v989
  %v1481 = vpop.f32.mrb[0].mxu0
  %v1482 = vadd.f32 %v282, %v1481
  %v1483 = vpop.f32.mrb[0].mxu0
  %v1484 = vpop.f32.mrb[0].mxu0
  %v1485 = vadd.f32 %v282, %v1484
  %v1486 = vpop.f32.mrb[0].mxu0
  %1487 = vmatprep.mubr.bf16.mxu0 0
  %1488 = vmatmul.mubr.bf16.gmra.mrb[0].mxu0 %v992
  %v1489 = vpop.f32.mrb[0].mxu0
  %v1490 = vadd.f32 %v282, %v1489
  %v1491 = vpop.f32.mrb[0].mxu0
  %v1492 = vpop.f32.mrb[0].mxu0
  %v1493 = vadd.f32 %v282, %v1492
  %v1494 = vpop.f32.mrb[0].mxu0
  %1495 = vmatprep.mubr.bf16.mxu0 0
  %1496 = vmatmul.mubr.bf16.gmra.mrb[0].mxu0 %v995
  %v1497 = vpop.f32.mrb[0].mxu0
  %v1498 = vadd.f32 %v282, %v1497
  %v1499 = vpop.f32.mrb[0].mxu0
  %v1500 = vpop.f32.mrb[0].mxu0
  %v1501 = vadd.f32 %v282, %v1500
  %v1502 = vpop.f32.mrb[0].mxu0
  %1503 = vmatprep.mubr.bf16.mxu0 0
  %1504 = vmatmul.mubr.bf16.gmra.mrb[0].mxu0 %v998
  %v1505 = vpop.f32.mrb[0].mxu0
  %v1506 = vadd.f32 %v282, %v1505
  %v1507 = vpop.f32.mrb[0].mxu0
  %v1508 = vpop.f32.mrb[0].mxu0
  %v1509 = vadd.f32 %v282, %v1508
  %v1510 = vpop.f32.mrb[0].mxu0
  %1511 = vmatprep.mubr.bf16.mxu0 0
  %1512 = vmatmul.mubr.bf16.gmra.mrb[0].mxu0 %v1001
  %v1513 = vpop.f32.mrb[0].mxu0
  %v1514 = vadd.f32 %v282, %v1513
  %v1515 = vpop.f32.mrb[0].mxu0
  %v1516 = vpop.f32.mrb[0].mxu0
  %v1517 = vadd.f32 %v282, %v1516
  %v1518 = vpop.f32.mrb[0].mxu0
  %1519 = vmatprep.mubr.bf16.mxu0 0
  %1520 = vmatmul.mubr.bf16.gmra.mrb[0].mxu0 %v1004
  %v1521 = vpop.f32.mrb[0].mxu0
  %v1522 = vadd.f32 %v282, %v1521
  %v1523 = vpop.f32.mrb[0].mxu0
  %v1524 = vpop.f32.mrb[0].mxu0
  %v1525 = vadd.f32 %v282, %v1524
  %v1526 = vpop.f32.mrb[0].mxu0
  %1527 = vmatprep.mubr.bf16.mxu0 0
  %1528 = vmatmul.mubr.bf16.gmra.mrb[0].mxu0 %v1007
  %v1529 = vpop.f32.mrb[0].mxu0
  %v1530 = vadd.f32 %v282, %v1529
  %v1531 = vpop.f32.mrb[0].mxu0
  %v1532 = vpop.f32.mrb[0].mxu0
  %v1533 = vadd.f32 %v282, %v1532
  %v1534 = vpop.f32.mrb[0].mxu0
  %1535 = vmatprep.mubr.bf16.mxu0 0
  %1536 = vmatmul.mubr.bf16.gmra.mrb[0].mxu0 %v1010
  %v1537 = vpop.f32.mrb[0].mxu0
  %v1538 = vadd.f32 %v282, %v1537
  %v1539 = vpop.f32.mrb[0].mxu0
  %v1540 = vpop.f32.mrb[0].mxu0
  %v1541 = vadd.f32 %v282, %v1540
  %v1542 = vpop.f32.mrb[0].mxu0
  %1543 = vmatprep.mubr.bf16.mxu0 0
  %1544 = vmatmul.mubr.bf16.gmra.mrb[0].mxu0 %v1013
  %v1545 = vpop.f32.mrb[0].mxu0
  %v1546 = vadd.f32 %v282, %v1545
  %v1547 = vpop.f32.mrb[0].mxu0
  %v1548 = vpop.f32.mrb[0].mxu0
  %v1549 = vadd.f32 %v282, %v1548
  %v1550 = vpop.f32.mrb[0].mxu0
  %1551 = vmatprep.mubr.bf16.mxu0 0
  %1552 = vmatmul.mubr.bf16.gmra.mrb[0].mxu0 %v1016
  %v1553 = vpop.f32.mrb[0].mxu0
  %v1554 = vadd.f32 %v282, %v1553
  %v1555 = vpop.f32.mrb[0].mxu0
  %v1556 = vpop.f32.mrb[0].mxu0
  %v1557 = vadd.f32 %v282, %v1556
  %v1558 = vpop.f32.mrb[0].mxu0
  %1559 = vmatprep.mubr.bf16.mxu0 0
  %1560 = vmatmul.mubr.bf16.gmra.mrb[0].mxu0 %v1019
  %v1561 = vpop.f32.mrb[0].mxu0
  %v1562 = vadd.f32 %v282, %v1561
  %v1563 = vpop.f32.mrb[0].mxu0
  %v1564 = vpop.f32.mrb[0].mxu0
  %v1565 = vadd.f32 %v282, %v1564
  %v1566 = vpop.f32.mrb[0].mxu0
  %1567 = vmatprep.mubr.bf16.mxu0 0
  %1568 = vmatmul.mubr.bf16.gmra.mrb[0].mxu0 %v1022
  %v1569 = vpop.f32.mrb[0].mxu0
  %v1570 = vadd.f32 %v282, %v1569
  %v1571 = vpop.f32.mrb[0].mxu0
  %v1572 = vpop.f32.mrb[0].mxu0
  %v1573 = vadd.f32 %v282, %v1572
  %v1574 = vpop.f32.mrb[0].mxu0
  %1575 = vmatprep.mubr.bf16.mxu0 0
  %1576 = vmatmul.mubr.bf16.gmra.mrb[0].mxu0 %v1025
  %v1577 = vpop.f32.mrb[0].mxu0
  %v1578 = vadd.f32 %v282, %v1577
  %v1579 = vpop.f32.mrb[0].mxu0
  %v1580 = vpop.f32.mrb[0].mxu0
  %v1581 = vadd.f32 %v282, %v1580
  %v1582 = vpop.f32.mrb[0].mxu0
  %1583 = vmatprep.mubr.bf16.mxu0 0
  %1584 = vmatmul.mubr.bf16.gmra.mrb[0].mxu0 %v1028
  %v1585 = vpop.f32.mrb[0].mxu0
  %v1586 = vadd.f32 %v282, %v1585
  %v1587 = vpop.f32.mrb[0].mxu0
  %v1588 = vpop.f32.mrb[0].mxu0
  %v1589 = vadd.f32 %v282, %v1588
  %v1590 = vpop.f32.mrb[0].mxu0
  %1591 = vmatprep.mubr.bf16.mxu0 0
  %1592 = vmatmul.mubr.bf16.gmra.mrb[0].mxu0 %v1031
  %v1593 = vpop.f32.mrb[0].mxu0
  %v1594 = vadd.f32 %v282, %v1593
  %v1595 = vpop.f32.mrb[0].mxu0
  %v1596 = vpop.f32.mrb[0].mxu0
  %v1597 = vadd.f32 %v282, %v1596
  %v1598 = vpop.f32.mrb[0].mxu0
  %1599 = vmatprep.mubr.bf16.mxu0 0
  %1600 = vmatmul.mubr.bf16.gmra.mrb[0].mxu0 %v1034
  %v1601 = vpop.f32.mrb[0].mxu0
  %v1602 = vadd.f32 %v282, %v1601
  %v1603 = vpop.f32.mrb[0].mxu0
  %v1604 = vpop.f32.mrb[0].mxu0
  %v1605 = vadd.f32 %v282, %v1604
  %v1606 = vpop.f32.mrb[0].mxu0
  %1607 = vmatprep.mubr.bf16.mxu0 0
  %1608 = vmatmul.mubr.bf16.gmra.mrb[0].mxu0 %v1037
  %v1609 = vpop.f32.mrb[0].mxu0
  %v1610 = vadd.f32 %v282, %v1609
  %v1611 = vpop.f32.mrb[0].mxu0
  %v1612 = vpop.f32.mrb[0].mxu0
  %v1613 = vadd.f32 %v282, %v1612
  %v1614 = vpop.f32.mrb[0].mxu0
  %1615 = vmatprep.mubr.bf16.mxu0 0
  %1616 = vmatmul.mubr.bf16.gmra.mrb[0].mxu0 %v1040
  %v1617 = vpop.f32.mrb[0].mxu0
  %v1618 = vadd.f32 %v282, %v1617
  %v1619 = vpop.f32.mrb[0].mxu0
  %v1620 = vpop.f32.mrb[0].mxu0
  %v1621 = vadd.f32 %v282, %v1620
  %v1622 = vpop.f32.mrb[0].mxu0
  %1623 = vmatprep.mubr.bf16.mxu0 0
  %1624 = vmatmul.mubr.bf16.gmra.mrb[0].mxu0 %v1043
  %v1625 = vpop.f32.mrb[0].mxu0
  %v1626 = vadd.f32 %v282, %v1625
  %v1627 = vpop.f32.mrb[0].mxu0
  %v1628 = vpop.f32.mrb[0].mxu0
  %v1629 = vadd.f32 %v282, %v1628
  %v1630 = vpop.f32.mrb[0].mxu0
  %1631 = vmatprep.mubr.bf16.mxu0 0
  %1632 = vmatmul.mubr.bf16.gmra.mrb[0].mxu0 %v1046
  %v1633 = vpop.f32.mrb[0].mxu0
  %v1634 = vadd.f32 %v282, %v1633
  %v1635 = vpop.f32.mrb[0].mxu0
  %v1636 = vpop.f32.mrb[0].mxu0
  %v1637 = vadd.f32 %v282, %v1636
  %v1638 = vpop.f32.mrb[0].mxu0
  %1639 = vmatprep.mubr.bf16.mxu0 0
  %1640 = vmatmul.mubr.bf16.gmra.mrb[0].mxu0 %v1049
  %v1641 = vpop.f32.mrb[0].mxu0
  %v1642 = vadd.f32 %v282, %v1641
  %v1643 = vpop.f32.mrb[0].mxu0
  %v1644 = vpop.f32.mrb[0].mxu0
  %v1645 = vadd.f32 %v282, %v1644
  %v1646 = vpop.f32.mrb[0].mxu0
  %1647 = vmatprep.mubr.bf16.mxu0 0
  %1648 = vmatmul.mubr.bf16.gmra.mrb[0].mxu0 %v1052
  %v1649 = vpop.f32.mrb[0].mxu0
  %v1650 = vadd.f32 %v282, %v1649
  %v1651 = vpop.f32.mrb[0].mxu0
  %v1652 = vpop.f32.mrb[0].mxu0
  %v1653 = vadd.f32 %v282, %v1652
  %v1654 = vpop.f32.mrb[0].mxu0
  %1655 = vmatprep.mubr.bf16.mxu0 0
  %1656 = vmatmul.mubr.bf16.gmra.mrb[0].mxu0 %v1055
  %v1657 = vpop.f32.mrb[0].mxu0
  %v1658 = vadd.f32 %v282, %v1657
  %v1659 = vpop.f32.mrb[0].mxu0
  %v1660 = vpop.f32.mrb[0].mxu0
  %v1661 = vadd.f32 %v282, %v1660
  %v1662 = vpop.f32.mrb[0].mxu0
  %1663 = vmatprep.mubr.bf16.mxu0 0
  %1664 = vmatmul.mubr.bf16.gmra.mrb[0].mxu0 %v1058
  %v1665 = vpop.f32.mrb[0].mxu0
  %v1666 = vadd.f32 %v282, %v1665
  %v1667 = vpop.f32.mrb[0].mxu0
  %v1668 = vpop.f32.mrb[0].mxu0
  %v1669 = vadd.f32 %v282, %v1668
  %v1670 = vpop.f32.mrb[0].mxu0
  %1671 = vmatprep.mubr.bf16.mxu0 0
  %1672 = vmatmul.mubr.bf16.gmra.mrb[0].mxu0 %v1061
  %v1673 = vpop.f32.mrb[0].mxu0
  %v1674 = vadd.f32 %v282, %v1673
  %v1675 = vpop.f32.mrb[0].mxu0
  %v1676 = vpop.f32.mrb[0].mxu0
  %v1677 = vadd.f32 %v282, %v1676
  %v1678 = vpop.f32.mrb[0].mxu0
  %1679 = vmatprep.mubr.bf16.mxu0 0
  %1680 = vmatmul.mubr.bf16.gmra.mrb[0].mxu0 %v1064
  %v1681 = vpop.f32.mrb[0].mxu0
  %v1682 = vadd.f32 %v282, %v1681
  %v1683 = vpop.f32.mrb[0].mxu0
  %v1684 = vpop.f32.mrb[0].mxu0
  %v1685 = vadd.f32 %v282, %v1684
  %v1686 = vpop.f32.mrb[0].mxu0
  %1687 = vmatprep.mubr.bf16.mxu0 0
  %1688 = vmatmul.mubr.bf16.gmra.mrb[0].mxu0 %v1067
  %v1689 = vpop.f32.mrb[0].mxu0
  %v1690 = vadd.f32 %v282, %v1689
  %v1691 = vpop.f32.mrb[0].mxu0
  %v1692 = vpop.f32.mrb[0].mxu0
  %v1693 = vadd.f32 %v282, %v1692
  %v1694 = vpop.f32.mrb[0].mxu0
  %1695 = vmatprep.mubr.bf16.mxu0 0
  %1696 = vmatmul.mubr.bf16.gmra.mrb[0].mxu0 %v1070
  %v1697 = vpop.f32.mrb[0].mxu0
  %v1698 = vadd.f32 %v282, %v1697
  %v1699 = vpop.f32.mrb[0].mxu0
  %v1700 = vpop.f32.mrb[0].mxu0
  %v1701 = vadd.f32 %v282, %v1700
  %v1702 = vpop.f32.mrb[0].mxu0
  %1703 = vmatprep.mubr.bf16.mxu0 0
  %1704 = vmatmul.mubr.bf16.gmra.mrb[0].mxu0 %v1073
  %v1705 = vpop.f32.mrb[0].mxu0
  %v1706 = vadd.f32 %v282, %v1705
  %v1707 = vpop.f32.mrb[0].mxu0
  %v1708 = vpop.f32.mrb[0].mxu0
  %v1709 = vadd.f32 %v282, %v1708
  %v1710 = vpop.f32.mrb[0].mxu0
  %1711 = vmatprep.mubr.bf16.mxu0 0
  %1712 = vmatmul.mubr.bf16.gmra.mrb[0].mxu0 %v1076
  %v1713 = vpop.f32.mrb[0].mxu0
  %v1714 = vadd.f32 %v282, %v1713
  %v1715 = vpop.f32.mrb[0].mxu0
  %v1716 = vpop.f32.mrb[0].mxu0
  %v1717 = vadd.f32 %v282, %v1716
  %v1718 = vpop.f32.mrb[0].mxu0
  %1719 = vmatprep.mubr.bf16.mxu0 0
  %1720 = vmatmul.mubr.bf16.gmra.mrb[0].mxu0 %v1079
  %v1721 = vpop.f32.mrb[0].mxu0
  %v1722 = vadd.f32 %v282, %v1721
  %v1723 = vpop.f32.mrb[0].mxu0
  %v1724 = vpop.f32.mrb[0].mxu0
  %v1725 = vadd.f32 %v282, %v1724
  %v1726 = vpop.f32.mrb[0].mxu0
  %1727 = vmatprep.mubr.bf16.mxu0 0
  %1728 = vmatmul.mubr.bf16.gmra.mrb[0].mxu0 %v1082
  %v1729 = vpop.f32.mrb[0].mxu0
  %v1730 = vadd.f32 %v282, %v1729
  %v1731 = vpop.f32.mrb[0].mxu0
  %v1732 = vpop.f32.mrb[0].mxu0
  %v1733 = vadd.f32 %v282, %v1732
  %v1734 = vpop.f32.mrb[0].mxu0
  %1735 = vmatprep.mubr.bf16.mxu0 0
  %1736 = vmatmul.mubr.bf16.gmra.mrb[0].mxu0 %v1085
  %v1737 = vpop.f32.mrb[0].mxu0
  %v1738 = vadd.f32 %v282, %v1737
  %v1739 = vpop.f32.mrb[0].mxu0
  %v1740 = vpop.f32.mrb[0].mxu0
  %v1741 = vadd.f32 %v282, %v1740
  %v1742 = vpop.f32.mrb[0].mxu0
  %1743 = vmatprep.mubr.bf16.mxu0 0
  %1744 = vmatmul.mubr.bf16.gmra.mrb[0].mxu0 %v1088
  %v1745 = vpop.f32.mrb[0].mxu0
  %v1746 = vadd.f32 %v282, %v1745
  %v1747 = vpop.f32.mrb[0].mxu0
  %v1748 = vpop.f32.mrb[0].mxu0
  %v1749 = vadd.f32 %v282, %v1748
  %v1750 = vpop.f32.mrb[0].mxu0
  %1751 = vmatprep.mubr.bf16.mxu0 0
  %1752 = vmatmul.mubr.bf16.gmra.mrb[0].mxu0 %v1091
  %v1753 = vpop.f32.mrb[0].mxu0
  %v1754 = vadd.f32 %v282, %v1753
  %v1755 = vpop.f32.mrb[0].mxu0
  %v1756 = vpop.f32.mrb[0].mxu0
  %v1757 = vadd.f32 %v282, %v1756
  %v1758 = vpop.f32.mrb[0].mxu0
  %1759 = vmatprep.mubr.bf16.mxu0 0
  %1760 = vmatmul.mubr.bf16.gmra.mrb[0].mxu0 %v1094
  %v1761 = vpop.f32.mrb[0].mxu0
  %v1762 = vadd.f32 %v282, %v1761
  %v1763 = vpop.f32.mrb[0].mxu0
  %v1764 = vpop.f32.mrb[0].mxu0
  %v1765 = vadd.f32 %v282, %v1764
  %v1766 = vpop.f32.mrb[0].mxu0
  %1767 = vmatprep.mubr.bf16.mxu0 0
  %1768 = vmatmul.mubr.bf16.gmra.mrb[0].mxu0 %v1097
  %v1769 = vpop.f32.mrb[0].mxu0
  %v1770 = vadd.f32 %v282, %v1769
  %v1771 = vpop.f32.mrb[0].mxu0
  %v1772 = vpop.f32.mrb[0].mxu0
  %v1773 = vadd.f32 %v282, %v1772
  %v1774 = vpop.f32.mrb[0].mxu0
  %1775 = vmatprep.mubr.bf16.mxu0 0
  %1776 = vmatmul.mubr.bf16.gmra.mrb[0].mxu0 %v1100
  %v1777 = vpop.f32.mrb[0].mxu0
  %v1778 = vadd.f32 %v282, %v1777
  %v1779 = vpop.f32.mrb[0].mxu0
  %v1780 = vpop.f32.mrb[0].mxu0
  %v1781 = vadd.f32 %v282, %v1780
  %v1782 = vpop.f32.mrb[0].mxu0
  %1783 = vmatprep.mubr.bf16.mxu0 0
  %1784 = vmatmul.mubr.bf16.gmra.mrb[0].mxu0 %v1103
  %v1785 = vpop.f32.mrb[0].mxu0
  %v1786 = vadd.f32 %v282, %v1785
  %v1787 = vpop.f32.mrb[0].mxu0
  %v1788 = vpop.f32.mrb[0].mxu0
  %v1789 = vadd.f32 %v282, %v1788
  %v1790 = vpop.f32.mrb[0].mxu0
  %1791 = vmatprep.mubr.bf16.mxu0 0
  %1792 = vmatmul.mubr.bf16.gmra.mrb[0].mxu0 %v1106
  %v1793 = vpop.f32.mrb[0].mxu0
  %v1794 = vadd.f32 %v282, %v1793
  %v1795 = vpop.f32.mrb[0].mxu0
  %v1796 = vpop.f32.mrb[0].mxu0
  %v1797 = vadd.f32 %v282, %v1796
  %v1798 = vpop.f32.mrb[0].mxu0
  %1799 = vmatprep.mubr.bf16.mxu0 0
  %1800 = vmatmul.mubr.bf16.gmra.mrb[0].mxu0 %v1109
  %v1801 = vpop.f32.mrb[0].mxu0
  %v1802 = vadd.f32 %v282, %v1801
  %v1803 = vpop.f32.mrb[0].mxu0
  %v1804 = vpop.f32.mrb[0].mxu0
  %v1805 = vadd.f32 %v282, %v1804
  %v1806 = vpop.f32.mrb[0].mxu0
  %1807 = vmatprep.mubr.bf16.mxu0 0
  %1808 = vmatmul.mubr.bf16.gmra.mrb[0].mxu0 %v1112
  %v1809 = vpop.f32.mrb[0].mxu0
  %v1810 = vadd.f32 %v282, %v1809
  %v1811 = vpop.f32.mrb[0].mxu0
  %v1812 = vpop.f32.mrb[0].mxu0
  %v1813 = vadd.f32 %v282, %v1812
  %v1814 = vpop.f32.mrb[0].mxu0
  %1815 = vmatprep.mubr.bf16.mxu0 0
  %1816 = vmatmul.mubr.bf16.gmra.mrb[0].mxu0 %v1115
  %v1817 = vpop.f32.mrb[0].mxu0
  %v1818 = vadd.f32 %v282, %v1817
  %v1819 = vpop.f32.mrb[0].mxu0
  %v1820 = vpop.f32.mrb[0].mxu0
  %v1821 = vadd.f32 %v282, %v1820
  %v1822 = vpop.f32.mrb[0].mxu0
  %1823 = vmatprep.mubr.bf16.mxu0 0
  %1824 = vmatmul.mubr.bf16.gmra.mrb[0].mxu0 %v1118
  %v1825 = vpop.f32.mrb[0].mxu0
  %v1826 = vadd.f32 %v282, %v1825
  %v1827 = vpop.f32.mrb[0].mxu0
  %v1828 = vpop.f32.mrb[0].mxu0
  %v1829 = vadd.f32 %v282, %v1828
  %v1830 = vpop.f32.mrb[0].mxu0
  %1831 = vmatprep.mubr.bf16.mxu0 0
  %1832 = vmatmul.mubr.bf16.gmra.mrb[0].mxu0 %v1121
  %v1833 = vpop.f32.mrb[0].mxu0
  %v1834 = vadd.f32 %v282, %v1833
  %v1835 = vpop.f32.mrb[0].mxu0
  %v1836 = vpop.f32.mrb[0].mxu0
  %v1837 = vadd.f32 %v282, %v1836
  %v1838 = vpop.f32.mrb[0].mxu0
  %1839 = vmatprep.mubr.bf16.mxu0 0
  %1840 = vmatmul.mubr.bf16.gmra.mrb[0].mxu0 %v1124
  %v1841 = vpop.f32.mrb[0].mxu0
  %v1842 = vadd.f32 %v282, %v1841
  %v1843 = vpop.f32.mrb[0].mxu0
  %v1844 = vpop.f32.mrb[0].mxu0
  %v1845 = vadd.f32 %v282, %v1844
  %v1846 = vpop.f32.mrb[0].mxu0
  %1847 = vmatprep.mubr.bf16.mxu0 0
  %1848 = vmatmul.mubr.bf16.gmra.mrb[0].mxu0 %v1127
  %v1849 = vpop.f32.mrb[0].mxu0
  %v1850 = vadd.f32 %v282, %v1849
  %v1851 = vpop.f32.mrb[0].mxu0
  %v1852 = vpop.f32.mrb[0].mxu0
  %v1853 = vadd.f32 %v282, %v1852
  %v1854 = vpop.f32.mrb[0].mxu0
  %1855 = vmatprep.mubr.bf16.mxu0 0
  %1856 = vmatmul.mubr.bf16.gmra.mrb[0].mxu0 %v1130
  %v1857 = vpop.f32.mrb[0].mxu0
  %v1858 = vadd.f32 %v282, %v1857
  %v1859 = vpop.f32.mrb[0].mxu0
  %v1860 = vpop.f32.mrb[0].mxu0
  %v1861 = vadd.f32 %v282, %v1860
  %v1862 = vpop.f32.mrb[0].mxu0
  %1863 = vmatprep.mubr.bf16.mxu0 0
  %1864 = vmatmul.mubr.bf16.gmra.mrb[0].mxu0 %v1133
  %v1865 = vpop.f32.mrb[0].mxu0
  %v1866 = vadd.f32 %v282, %v1865
  %v1867 = vpop.f32.mrb[0].mxu0
  %v1868 = vpop.f32.mrb[0].mxu0
  %v1869 = vadd.f32 %v282, %v1868
  %v1870 = vpop.f32.mrb[0].mxu0
  %1871 = vmatprep.mubr.bf16.mxu0 0
  %1872 = vmatmul.mubr.bf16.gmra.mrb[0].mxu0 %v1136
  %v1873 = vpop.f32.mrb[0].mxu0
  %v1874 = vadd.f32 %v282, %v1873
  %v1875 = vpop.f32.mrb[0].mxu0
  %v1876 = vpop.f32.mrb[0].mxu0
  %v1877 = vadd.f32 %v282, %v1876
  %v1878 = vpop.f32.mrb[0].mxu0
  %1879 = vmatprep.mubr.bf16.mxu0 0
  %1880 = vmatmul.mubr.bf16.gmra.mrb[0].mxu0 %v1139
  %v1881 = vpop.f32.mrb[0].mxu0
  %v1882 = vadd.f32 %v282, %v1881
  %v1883 = vpop.f32.mrb[0].mxu0
  %v1884 = vpop.f32.mrb[0].mxu0
  %v1885 = vadd.f32 %v282, %v1884
  %v1886 = vpop.f32.mrb[0].mxu0
  %1887 = vmatprep.mubr.bf16.mxu0 0
  %1888 = vmatmul.mubr.bf16.gmra.mrb[0].mxu0 %v1142
  %v1889 = vpop.f32.mrb[0].mxu0
  %v1890 = vadd.f32 %v282, %v1889
  %v1891 = vpop.f32.mrb[0].mxu0
  %v1892 = vpop.f32.mrb[0].mxu0
  %v1893 = vadd.f32 %v282, %v1892
  %v1894 = vpop.f32.mrb[0].mxu0
  %1895 = vmatprep.mubr.bf16.mxu0 0
  %1896 = vmatmul.mubr.bf16.gmra.mrb[0].mxu0 %v1145
  %v1897 = vpop.f32.mrb[0].mxu0
  %v1898 = vadd.f32 %v282, %v1897
  %v1899 = vpop.f32.mrb[0].mxu0
  %v1900 = vpop.f32.mrb[0].mxu0
  %v1901 = vadd.f32 %v282, %v1900
  %v1902 = vpop.f32.mrb[0].mxu0
  %1903 = vmatprep.mubr.bf16.mxu0 0
  %1904 = vmatmul.mubr.bf16.gmra.mrb[0].mxu0 %v1148
  %v1905 = vpop.f32.mrb[0].mxu0
  %v1906 = vadd.f32 %v282, %v1905
  %v1907 = vpop.f32.mrb[0].mxu0
  %v1908 = vpop.f32.mrb[0].mxu0
  %v1909 = vadd.f32 %v282, %v1908
  %v1910 = vpop.f32.mrb[0].mxu0
  %1911 = vmatprep.mubr.bf16.mxu0 0
  %1912 = vmatmul.mubr.bf16.gmra.mrb[0].mxu0 %v1151
  %v1913 = vpop.f32.mrb[0].mxu0
  %v1914 = vadd.f32 %v282, %v1913
  %v1915 = vpop.f32.mrb[0].mxu0
  %v1916 = vpop.f32.mrb[0].mxu0
  %v1917 = vadd.f32 %v282, %v1916
  %v1918 = vpop.f32.mrb[0].mxu0
  %1919 = vmatprep.mubr.bf16.mxu0 0
  %1920 = vmatmul.mubr.bf16.gmra.mrb[0].mxu0 %v1154
  %v1921 = vpop.f32.mrb[0].mxu0
  %v1922 = vadd.f32 %v282, %v1921
  %v1923 = vpop.f32.mrb[0].mxu0
  %v1924 = vpop.f32.mrb[0].mxu0
  %v1925 = vadd.f32 %v282, %v1924
  %v1926 = vpop.f32.mrb[0].mxu0
  %1927 = vmatprep.mubr.bf16.mxu0 0
  %1928 = vmatmul.mubr.bf16.gmra.mrb[0].mxu0 %v1157
  %v1929 = vpop.f32.mrb[0].mxu0
  %v1930 = vadd.f32 %v282, %v1929
  %v1931 = vpop.f32.mrb[0].mxu0
  %v1932 = vpop.f32.mrb[0].mxu0
  %v1933 = vadd.f32 %v282, %v1932
  %v1934 = vpop.f32.mrb[0].mxu0
  %1935 = vmatprep.mubr.bf16.mxu0 0
  %1936 = vmatmul.mubr.bf16.gmra.mrb[0].mxu0 %v1160
  %v1937 = vpop.f32.mrb[0].mxu0
  %v1938 = vadd.f32 %v282, %v1937
  %v1939 = vpop.f32.mrb[0].mxu0
  %v1940 = vpop.f32.mrb[0].mxu0
  %v1941 = vadd.f32 %v282, %v1940
  %v1942 = vpop.f32.mrb[0].mxu0
  %1943 = vmatprep.mubr.bf16.mxu0 0
  %1944 = vmatmul.mubr.bf16.gmra.mrb[0].mxu0 %v1163
  %v1945 = vpop.f32.mrb[0].mxu0
  %v1946 = vadd.f32 %v282, %v1945
  %v1947 = vpop.f32.mrb[0].mxu0
  %v1948 = vpop.f32.mrb[0].mxu0
  %v1949 = vadd.f32 %v282, %v1948
  %v1950 = vpop.f32.mrb[0].mxu0
  %1951 = vmatprep.mubr.bf16.mxu0 0
  %1952 = vmatmul.mubr.bf16.gmra.mrb[0].mxu0 %v1166
  %v1953 = vpop.f32.mrb[0].mxu0
  %v1954 = vadd.f32 %v282, %v1953
  %v1955 = vpop.f32.mrb[0].mxu0
  %v1956 = vpop.f32.mrb[0].mxu0
  %v1957 = vadd.f32 %v282, %v1956
  %v1958 = vpop.f32.mrb[0].mxu0
  %1959 = vmatprep.mubr.bf16.mxu0 0
  %1960 = vmatmul.mubr.bf16.gmra.mrb[0].mxu0 %v1169
  %v1961 = vpop.f32.mrb[0].mxu0
  %v1962 = vadd.f32 %v282, %v1961
  %v1963 = vpop.f32.mrb[0].mxu0
  %v1964 = vpop.f32.mrb[0].mxu0
  %v1965 = vadd.f32 %v282, %v1964
  %v1966 = vpop.f32.mrb[0].mxu0
  %1967 = vmatprep.mubr.bf16.mxu0 0
  %1968 = vmatmul.mubr.bf16.gmra.mrb[0].mxu0 %v1172
  %v1969 = vpop.f32.mrb[0].mxu0
  %v1970 = vadd.f32 %v282, %v1969
  %v1971 = vpop.f32.mrb[0].mxu0
  %v1972 = vpop.f32.mrb[0].mxu0
  %v1973 = vadd.f32 %v282, %v1972
  %v1974 = vpop.f32.mrb[0].mxu0
  %1975 = vmatprep.mubr.bf16.mxu0 0
  %1976 = vmatmul.mubr.bf16.gmra.mrb[0].mxu0 %v1175
  %v1977 = vpop.f32.mrb[0].mxu0
  %v1978 = vadd.f32 %v282, %v1977
  %v1979 = vpop.f32.mrb[0].mxu0
  %v1980 = vpop.f32.mrb[0].mxu0
  %v1981 = vadd.f32 %v282, %v1980
  %v1982 = vpop.f32.mrb[0].mxu0
  %1983 = vmatprep.mubr.bf16.mxu0 0
  %1984 = vmatmul.mubr.bf16.gmra.mrb[0].mxu0 %v1178
  %v1985 = vpop.f32.mrb[0].mxu0
  %v1986 = vadd.f32 %v282, %v1985
  %v1987 = vpop.f32.mrb[0].mxu0
  %v1988 = vpop.f32.mrb[0].mxu0
  %v1989 = vadd.f32 %v282, %v1988
  %v1990 = vpop.f32.mrb[0].mxu0
  %1991 = vmatprep.mubr.bf16.mxu0 0
  %1992 = vmatmul.mubr.bf16.gmra.mrb[0].mxu0 %v1181
  %v1993 = vpop.f32.mrb[0].mxu0
  %v1994 = vadd.f32 %v282, %v1993
  %v1995 = vpop.f32.mrb[0].mxu0
  %v1996 = vpop.f32.mrb[0].mxu0
  %v1997 = vadd.f32 %v282, %v1996
  %v1998 = vpop.f32.mrb[0].mxu0
  %1999 = vmatprep.mubr.bf16.mxu0 0
  %2000 = vmatmul.mubr.bf16.gmra.mrb[0].mxu0 %v1184
  %v2001 = vpop.f32.mrb[0].mxu0
  %v2002 = vadd.f32 %v282, %v2001
  %v2003 = vpop.f32.mrb[0].mxu0
  %v2004 = vpop.f32.mrb[0].mxu0
  %v2005 = vadd.f32 %v282, %v2004
  %v2006 = vpop.f32.mrb[0].mxu0
  %2007 = vmatprep.mubr.bf16.mxu0 0
  %2008 = vmatmul.mubr.bf16.gmra.mrb[0].mxu0 %v1187
  %v2009 = vpop.f32.mrb[0].mxu0
  %v2010 = vadd.f32 %v282, %v2009
  %v2011 = vpop.f32.mrb[0].mxu0
  %v2012 = vpop.f32.mrb[0].mxu0
  %v2013 = vadd.f32 %v282, %v2012
  %v2014 = vpop.f32.mrb[0].mxu0
  %2015 = vmatprep.mubr.bf16.mxu0 0
  %2016 = vmatmul.mubr.bf16.gmra.mrb[0].mxu0 %v1190
  %v2017 = vpop.f32.mrb[0].mxu0
  %v2018 = vadd.f32 %v282, %v2017
  %v2019 = vpop.f32.mrb[0].mxu0
  %v2020 = vpop.f32.mrb[0].mxu0
  %v2021 = vadd.f32 %v282, %v2020
  %v2022 = vpop.f32.mrb[0].mxu0
  %2023 = vmatprep.mubr.bf16.mxu0 0
  %2024 = vmatmul.mubr.bf16.gmra.mrb[0].mxu0 %v1193
  %v2025 = vpop.f32.mrb[0].mxu0
  %v2026 = vadd.f32 %v282, %v2025
  %v2027 = vpop.f32.mrb[0].mxu0
  %v2028 = vpop.f32.mrb[0].mxu0
  %v2029 = vadd.f32 %v282, %v2028
  %v2030 = vpop.f32.mrb[0].mxu0
  %2031 = vmatprep.mubr.bf16.mxu0 0
  %2032 = vmatmul.mubr.bf16.gmra.mrb[0].mxu0 %v1196
  %v2033 = vpop.f32.mrb[0].mxu0
  %v2034 = vadd.f32 %v282, %v2033
  %v2035 = vpop.f32.mrb[0].mxu0
  %v2036 = vpop.f32.mrb[0].mxu0
  %v2037 = vadd.f32 %v282, %v2036
  %v2038 = vpop.f32.mrb[0].mxu0
  %2039 = vmatprep.mubr.bf16.mxu0 0
  %2040 = vmatmul.mubr.bf16.gmra.mrb[0].mxu0 %v1199
  %v2041 = vpop.f32.mrb[0].mxu0
  %v2042 = vadd.f32 %v282, %v2041
  %v2043 = vpop.f32.mrb[0].mxu0
  %v2044 = vpop.f32.mrb[0].mxu0
  %v2045 = vadd.f32 %v282, %v2044
  %v2046 = vpop.f32.mrb[0].mxu0
  %2047 = vmatprep.mubr.bf16.mxu0 0
  %2048 = vmatmul.mubr.bf16.gmra.mrb[0].mxu0 %v1202
  %v2049 = vpop.f32.mrb[0].mxu0
  %v2050 = vadd.f32 %v282, %v2049
  %v2051 = vpop.f32.mrb[0].mxu0
  %v2052 = vpop.f32.mrb[0].mxu0
  %v2053 = vadd.f32 %v282, %v2052
  %v2054 = vpop.f32.mrb[0].mxu0
  %2055 = vmatprep.mubr.bf16.mxu0 0
  %2056 = vmatmul.mubr.bf16.gmra.mrb[0].mxu0 %v1205
  %v2057 = vpop.f32.mrb[0].mxu0
  %v2058 = vadd.f32 %v282, %v2057
  %v2059 = vpop.f32.mrb[0].mxu0
  %v2060 = vpop.f32.mrb[0].mxu0
  %v2061 = vadd.f32 %v282, %v2060
  %v2062 = vpop.f32.mrb[0].mxu0
  %2063 = vmatprep.mubr.bf16.mxu0 0
  %2064 = vmatmul.mubr.bf16.gmra.mrb[0].mxu0 %v1208
  %v2065 = vpop.f32.mrb[0].mxu0
  %v2066 = vadd.f32 %v282, %v2065
  %v2067 = vpop.f32.mrb[0].mxu0
  %v2068 = vpop.f32.mrb[0].mxu0
  %v2069 = vadd.f32 %v282, %v2068
  %v2070 = vpop.f32.mrb[0].mxu0
  %2071 = vmatprep.mubr.bf16.mxu0 0
  %2072 = vmatmul.mubr.bf16.gmra.mrb[0].mxu0 %v1211
  %v2073 = vpop.f32.mrb[0].mxu0
  %v2074 = vadd.f32 %v282, %v2073
  %v2075 = vpop.f32.mrb[0].mxu0
  %v2076 = vpop.f32.mrb[0].mxu0
  %v2077 = vadd.f32 %v282, %v2076
  %v2078 = vpop.f32.mrb[0].mxu0
  %2079 = vmatprep.mubr.bf16.mxu0 0
  %2080 = vmatmul.mubr.bf16.gmra.mrb[0].mxu0 %v1214
  %v2081 = vpop.f32.mrb[0].mxu0
  %v2082 = vadd.f32 %v282, %v2081
  %v2083 = vpop.f32.mrb[0].mxu0
  %v2084 = vpop.f32.mrb[0].mxu0
  %v2085 = vadd.f32 %v282, %v2084
  %v2086 = vpop.f32.mrb[0].mxu0
  %2087 = vmatprep.mubr.bf16.mxu0 0
  %2088 = vmatmul.mubr.bf16.gmra.mrb[0].mxu0 %v1217
  %v2089 = vpop.f32.mrb[0].mxu0
  %v2090 = vadd.f32 %v282, %v2089
  %v2091 = vpop.f32.mrb[0].mxu0
  %v2092 = vpop.f32.mrb[0].mxu0
  %v2093 = vadd.f32 %v282, %v2092
  %v2094 = vpop.f32.mrb[0].mxu0
  %2095 = vmatprep.mubr.bf16.mxu0 0
  %2096 = vmatmul.mubr.bf16.gmra.mrb[0].mxu0 %v1220
  %v2097 = vpop.f32.mrb[0].mxu0
  %v2098 = vadd.f32 %v282, %v2097
  %v2099 = vpop.f32.mrb[0].mxu0
  %v2100 = vpop.f32.mrb[0].mxu0
  %v2101 = vadd.f32 %v282, %v2100
  %v2102 = vpop.f32.mrb[0].mxu0
  %2103 = vmatprep.mubr.bf16.mxu0 0
  %2104 = vmatmul.mubr.bf16.gmra.mrb[0].mxu0 %v1223
  %v2105 = vpop.f32.mrb[0].mxu0
  %v2106 = vadd.f32 %v282, %v2105
  %v2107 = vpop.f32.mrb[0].mxu0
  %v2108 = vpop.f32.mrb[0].mxu0
  %v2109 = vadd.f32 %v282, %v2108
  %v2110 = vpop.f32.mrb[0].mxu0
  %2111 = vmatprep.mubr.bf16.mxu0 0
  %2112 = vmatmul.mubr.bf16.gmra.mrb[0].mxu0 %v1226
  %v2113 = vpop.f32.mrb[0].mxu0
  %v2114 = vadd.f32 %v282, %v2113
  %v2115 = vpop.f32.mrb[0].mxu0
  %v2116 = vpop.f32.mrb[0].mxu0
  %v2117 = vadd.f32 %v282, %v2116
  %v2118 = vpop.f32.mrb[0].mxu0
  %2119 = vmatprep.mubr.bf16.mxu0 0
  %2120 = vmatmul.mubr.bf16.gmra.mrb[0].mxu0 %v1229
  %v2121 = vpop.f32.mrb[0].mxu0
  %v2122 = vadd.f32 %v282, %v2121
  %v2123 = vpop.f32.mrb[0].mxu0
  %v2124 = vpop.f32.mrb[0].mxu0
  %v2125 = vadd.f32 %v282, %v2124
  %v2126 = vpop.f32.mrb[0].mxu0
  %2127 = vmatprep.mubr.bf16.mxu0 0
  %2128 = vmatmul.mubr.bf16.gmra.mrb[0].mxu0 %v1232
  %v2129 = vpop.f32.mrb[0].mxu0
  %v2130 = vadd.f32 %v282, %v2129
  %v2131 = vpop.f32.mrb[0].mxu0
  %v2132 = vpop.f32.mrb[0].mxu0
  %v2133 = vadd.f32 %v282, %v2132
  %v2134 = vpop.f32.mrb[0].mxu0
  %2135 = vmatprep.mubr.bf16.mxu0 0
  %2136 = vmatmul.mubr.bf16.gmra.mrb[0].mxu0 %v1235
  %v2137 = vpop.f32.mrb[0].mxu0
  %v2138 = vadd.f32 %v282, %v2137
  %v2139 = vpop.f32.mrb[0].mxu0
  %v2140 = vpop.f32.mrb[0].mxu0
  %v2141 = vadd.f32 %v282, %v2140
  %v2142 = vpop.f32.mrb[0].mxu0
  %2143 = vmatprep.mubr.bf16.mxu0 0
  %2144 = vmatmul.mubr.bf16.gmra.mrb[0].mxu0 %v1238
  %v2145 = vpop.f32.mrb[0].mxu0
  %v2146 = vadd.f32 %v282, %v2145
  %v2147 = vpop.f32.mrb[0].mxu0
  %v2148 = vpop.f32.mrb[0].mxu0
  %v2149 = vadd.f32 %v282, %v2148
  %v2150 = vpop.f32.mrb[0].mxu0
  %2151 = vmatprep.mubr.bf16.mxu0 0
  %2152 = vmatmul.mubr.bf16.gmra.mrb[0].mxu0 %v1241
  %v2153 = vpop.f32.mrb[0].mxu0
  %v2154 = vadd.f32 %v282, %v2153
  %v2155 = vpop.f32.mrb[0].mxu0
  %v2156 = vpop.f32.mrb[0].mxu0
  %v2157 = vadd.f32 %v282, %v2156
  %v2158 = vpop.f32.mrb[0].mxu0
  %2159 = vmatprep.mubr.bf16.mxu0 0
  %2160 = vmatmul.mubr.bf16.gmra.mrb[0].mxu0 %v1244
  %v2161 = vpop.f32.mrb[0].mxu0
  %v2162 = vadd.f32 %v282, %v2161
  %v2163 = vpop.f32.mrb[0].mxu0
  %v2164 = vpop.f32.mrb[0].mxu0
  %v2165 = vadd.f32 %v282, %v2164
  %v2166 = vpop.f32.mrb[0].mxu0
  %2167 = vmatprep.mubr.bf16.mxu0 0
  %2168 = vmatmul.mubr.bf16.gmra.mrb[0].mxu0 %v1247
  %v2169 = vpop.f32.mrb[0].mxu0
  %v2170 = vadd.f32 %v282, %v2169
  %v2171 = vpop.f32.mrb[0].mxu0
  %v2172 = vpop.f32.mrb[0].mxu0
  %v2173 = vadd.f32 %v282, %v2172
  %v2174 = vpop.f32.mrb[0].mxu0
  %2175 = vmatprep.mubr.bf16.mxu0 0
  %2176 = vmatmul.mubr.bf16.gmra.mrb[0].mxu0 %v1250
  %v2177 = vpop.f32.mrb[0].mxu0
  %v2178 = vadd.f32 %v282, %v2177
  %v2179 = vpop.f32.mrb[0].mxu0
  %v2180 = vpop.f32.mrb[0].mxu0
  %v2181 = vadd.f32 %v282, %v2180
  %v2182 = vpop.f32.mrb[0].mxu0
  %2183 = vmatprep.mubr.bf16.mxu0 0
  %2184 = vmatmul.mubr.bf16.gmra.mrb[0].mxu0 %v1253
  %v2185 = vpop.f32.mrb[0].mxu0
  %v2186 = vadd.f32 %v282, %v2185
  %v2187 = vpop.f32.mrb[0].mxu0
  %v2188 = vpop.f32.mrb[0].mxu0
  %v2189 = vadd.f32 %v282, %v2188
  %v2190 = vpop.f32.mrb[0].mxu0
  %2191 = vmatprep.mubr.bf16.mxu0 0
  %2192 = vmatmul.mubr.bf16.gmra.mrb[0].mxu0 %v1256
  %v2193 = vpop.f32.mrb[0].mxu0
  %v2194 = vadd.f32 %v282, %v2193
  %v2195 = vpop.f32.mrb[0].mxu0
  %v2196 = vpop.f32.mrb[0].mxu0
  %v2197 = vadd.f32 %v282, %v2196
  %v2198 = vpop.f32.mrb[0].mxu0
  %2199 = vmatprep.mubr.bf16.mxu0 0
  %2200 = vmatmul.mubr.bf16.gmra.mrb[0].mxu0 %v1259
  %v2201 = vpop.f32.mrb[0].mxu0
  %v2202 = vadd.f32 %v282, %v2201
  %v2203 = vpop.f32.mrb[0].mxu0
  %v2204 = vpop.f32.mrb[0].mxu0
  %v2205 = vadd.f32 %v282, %v2204
  %v2206 = vpop.f32.mrb[0].mxu0
  %2207 = vmatprep.mubr.bf16.mxu0 0
  %2208 = vmatmul.mubr.bf16.gmra.mrb[0].mxu0 %v1262
  %v2209 = vpop.f32.mrb[0].mxu0
  %v2210 = vadd.f32 %v282, %v2209
  %v2211 = vpop.f32.mrb[0].mxu0
  %v2212 = vpop.f32.mrb[0].mxu0
  %v2213 = vadd.f32 %v282, %v2212
  %v2214 = vpop.f32.mrb[0].mxu0
  %2215 = vmatprep.mubr.bf16.mxu0 0
  %2216 = vmatmul.mubr.bf16.gmra.mrb[0].mxu0 %v1265
  %v2217 = vpop.f32.mrb[0].mxu0
  %v2218 = vadd.f32 %v282, %v2217
  %v2219 = vpop.f32.mrb[0].mxu0
  %v2220 = vpop.f32.mrb[0].mxu0
  %v2221 = vadd.f32 %v282, %v2220
  %v2222 = vpop.f32.mrb[0].mxu0
  %2223 = vmatprep.mubr.bf16.mxu0 0
  %2224 = vmatmul.mubr.bf16.gmra.mrb[0].mxu0 %v1268
  %v2225 = vpop.f32.mrb[0].mxu0
  %v2226 = vadd.f32 %v282, %v2225
  %v2227 = vpop.f32.mrb[0].mxu0
  %v2228 = vpop.f32.mrb[0].mxu0
  %v2229 = vadd.f32 %v282, %v2228
  %v2230 = vpop.f32.mrb[0].mxu0
  %2231 = vmatprep.mubr.bf16.mxu0 0
  %2232 = vmatmul.mubr.bf16.gmra.mrb[0].mxu0 %v1271
  %v2233 = vpop.f32.mrb[0].mxu0
  %v2234 = vadd.f32 %v282, %v2233
  %v2235 = vpop.f32.mrb[0].mxu0
  %v2236 = vpop.f32.mrb[0].mxu0
  %v2237 = vadd.f32 %v282, %v2236
  %v2238 = vpop.f32.mrb[0].mxu0
  %2239 = vmatprep.mubr.bf16.mxu0 0
  %2240 = vmatmul.mubr.bf16.gmra.mrb[0].mxu0 %v1274
  %v2241 = vpop.f32.mrb[0].mxu0
  %v2242 = vadd.f32 %v282, %v2241
  %v2243 = vpop.f32.mrb[0].mxu0
  %v2244 = vpop.f32.mrb[0].mxu0
  %v2245 = vadd.f32 %v282, %v2244
  %v2246 = vpop.f32.mrb[0].mxu0
  %2247 = vmatprep.mubr.bf16.mxu0 0
  %2248 = vmatmul.mubr.bf16.gmra.mrb[0].mxu0 %v1277
  %v2249 = vpop.f32.mrb[0].mxu0
  %v2250 = vadd.f32 %v282, %v2249
  %v2251 = vpop.f32.mrb[0].mxu0
  %v2252 = vpop.f32.mrb[0].mxu0
  %v2253 = vadd.f32 %v282, %v2252
  %v2254 = vpop.f32.mrb[0].mxu0
  %2255 = vmatprep.mubr.bf16.mxu0 0
  %2256 = vmatmul.mubr.bf16.gmra.mrb[0].mxu0 %v1280
  %v2257 = vpop.f32.mrb[0].mxu0
  %v2258 = vadd.f32 %v282, %v2257
  %v2259 = vpop.f32.mrb[0].mxu0
  %v2260 = vpop.f32.mrb[0].mxu0
  %v2261 = vadd.f32 %v282, %v2260
  %v2262 = vpop.f32.mrb[0].mxu0
  %2263 = vmatprep.mubr.bf16.mxu0 0
  %2264 = vmatmul.mubr.bf16.gmra.mrb[0].mxu0 %v1283
  %v2265 = vpop.f32.mrb[0].mxu0
  %v2266 = vadd.f32 %v282, %v2265
  %v2267 = vpop.f32.mrb[0].mxu0
  %v2268 = vpop.f32.mrb[0].mxu0
  %v2269 = vadd.f32 %v282, %v2268
  %v2270 = vpop.f32.mrb[0].mxu0
  %2271 = vmatprep.mubr.bf16.mxu0 0
  %2272 = vmatmul.mubr.bf16.gmra.mrb[0].mxu0 %v1286
  %v2273 = vpop.f32.mrb[0].mxu0
  %v2274 = vadd.f32 %v282, %v2273
  %v2275 = vpop.f32.mrb[0].mxu0
  %v2276 = vpop.f32.mrb[0].mxu0
  %v2277 = vadd.f32 %v282, %v2276
  %v2278 = vpop.f32.mrb[0].mxu0
  %2279 = vmatprep.mubr.bf16.mxu0 0
  %2280 = vmatmul.mubr.bf16.gmra.mrb[0].mxu0 %v1289
  %v2281 = vpop.f32.mrb[0].mxu0
  %v2282 = vadd.f32 %v282, %v2281
  %v2283 = vpop.f32.mrb[0].mxu0
  %v2284 = vpop.f32.mrb[0].mxu0
  %v2285 = vadd.f32 %v282, %v2284
  %v2286 = vpop.f32.mrb[0].mxu0
  %2287 = vmatprep.mubr.bf16.mxu0 0
  %2288 = vmatmul.mubr.bf16.gmra.mrb[0].mxu0 %v1292
  %v2289 = vpop.f32.mrb[0].mxu0
  %v2290 = vadd.f32 %v282, %v2289
  %v2291 = vpop.f32.mrb[0].mxu0
  %v2292 = vpop.f32.mrb[0].mxu0
  %v2293 = vadd.f32 %v282, %v2292
  %v2294 = vpop.f32.mrb[0].mxu0
  %2295 = vmatprep.mubr.bf16.mxu0 0
  %2296 = vmatmul.mubr.bf16.gmra.mrb[0].mxu0 %v1295
  %v2297 = vpop.f32.mrb[0].mxu0
  %v2298 = vadd.f32 %v282, %v2297
  %v2299 = vpop.f32.mrb[0].mxu0
  %v2300 = vpop.f32.mrb[0].mxu0
  %v2301 = vadd.f32 %v282, %v2300
  %v2302 = vpop.f32.mrb[0].mxu0
  %2303 = vmatprep.mubr.bf16.mxu0 0
  %2304 = vmatmul.mubr.bf16.gmra.mrb[0].mxu0 %v1298
  %v2305 = vpop.f32.mrb[0].mxu0
  %v2306 = vadd.f32 %v282, %v2305
  %v2307 = vpop.f32.mrb[0].mxu0
  %v2308 = vpop.f32.mrb[0].mxu0
  %v2309 = vadd.f32 %v282, %v2308
  %v2310 = vpop.f32.mrb[0].mxu0
  %2311 = vmatprep.mubr.bf16.mxu0 0
  %2312 = vmatmul.mubr.bf16.gmra.mrb[0].mxu0 %v1301
  %v2313 = vpop.f32.mrb[0].mxu0
  %v2314 = vadd.f32 %v282, %v2313
  %v2315 = vpop.f32.mrb[0].mxu0
  %v2316 = vpop.f32.mrb[0].mxu0
  %v2317 = vadd.f32 %v282, %v2316
  %v2318 = vpop.f32.mrb[0].mxu0
  %2319 = vmatprep.mubr.bf16.mxu0 0
  %2320 = vmatmul.mubr.bf16.gmra.mrb[0].mxu0 %v1304
  %v2321 = vpop.f32.mrb[0].mxu0
  %v2322 = vadd.f32 %v282, %v2321
  %v2323 = vpop.f32.mrb[0].mxu0
  %v2324 = vpop.f32.mrb[0].mxu0
  %v2325 = vadd.f32 %v282, %v2324
  %v2326 = vpop.f32.mrb[0].mxu0
  %2327 = vmatprep.mubr.bf16.mxu0 0
  %2328 = vmatmul.mubr.bf16.gmra.mrb[0].mxu0 %v1307
  %v2329 = vpop.f32.mrb[0].mxu0
  %v2330 = vadd.f32 %v282, %v2329
  %v2331 = vpop.f32.mrb[0].mxu0
  %v2332 = vpop.f32.mrb[0].mxu0
  %v2333 = vadd.f32 %v282, %v2332
  %v2334 = vpop.f32.mrb[0].mxu0
  %2335 = vmatprep.mubr.bf16.mxu0 0
  %2336 = vmatmul.mubr.bf16.gmra.mrb[0].mxu0 %v1310
  %v2337 = vpop.f32.mrb[0].mxu0
  %v2338 = vadd.f32 %v282, %v2337
  %v2339 = vpop.f32.mrb[0].mxu0
  %v2340 = vpop.f32.mrb[0].mxu0
  %v2341 = vadd.f32 %v282, %v2340
  %v2342 = vpop.f32.mrb[0].mxu0
  %2343 = vmatprep.mubr.bf16.mxu0 0
  %2344 = vmatmul.mubr.bf16.gmra.mrb[0].mxu0 %v1313
  %v2345 = vpop.f32.mrb[0].mxu0
  %v2346 = vadd.f32 %v282, %v2345
  %v2347 = vpop.f32.mrb[0].mxu0
  %v2348 = vpop.f32.mrb[0].mxu0
  %v2349 = vadd.f32 %v282, %v2348
  %v2350 = vpop.f32.mrb[0].mxu0
  %2351 = vmatprep.mubr.bf16.mxu0 0
  %2352 = vmatmul.mubr.bf16.gmra.mrb[0].mxu0 %v1316
  %v2353 = vpop.f32.mrb[0].mxu0
  %v2354 = vadd.f32 %v282, %v2353
  %v2355 = vpop.f32.mrb[0].mxu0
  %v2356 = vpop.f32.mrb[0].mxu0
  %v2357 = vadd.f32 %v282, %v2356
  %v2358 = vpop.f32.mrb[0].mxu0
  %2359 = vmatprep.mubr.bf16.mxu0 0
  %2360 = vmatmul.mubr.bf16.gmra.mrb[0].mxu0 %v1319
  %v2361 = vpop.f32.mrb[0].mxu0
  %v2362 = vadd.f32 %v282, %v2361
  %v2363 = vpop.f32.mrb[0].mxu0
  %v2364 = vpop.f32.mrb[0].mxu0
  %v2365 = vadd.f32 %v282, %v2364
  %v2366 = vpop.f32.mrb[0].mxu0
  %2367 = vmatprep.mubr.bf16.mxu0 0
  %2368 = vmatmul.mubr.bf16.gmra.mrb[0].mxu0 %v1322
  %v2369 = vpop.f32.mrb[0].mxu0
  %v2370 = vadd.f32 %v282, %v2369
  %v2371 = vpop.f32.mrb[0].mxu0
  %v2372 = vpop.f32.mrb[0].mxu0
  %v2373 = vadd.f32 %v282, %v2372
  %v2374 = vpop.f32.mrb[0].mxu0
  %2375 = vmatprep.mubr.bf16.mxu0 0
  %2376 = vmatmul.mubr.bf16.gmra.mrb[0].mxu0 %v1325
  %v2377 = vpop.f32.mrb[0].mxu0
  %v2378 = vadd.f32 %v282, %v2377
  %v2379 = vpop.f32.mrb[0].mxu0
  %v2380 = vpop.f32.mrb[0].mxu0
  %v2381 = vadd.f32 %v282, %v2380
  %v2382 = vpop.f32.mrb[0].mxu0
  %2383 = vdwg.mxu0
  %v2384 = vmax.f32 %v1362, 0.0
  %v2385 = vmax.f32 %v1365, 0.0
  %v2386 = vmax.f32 %v1370, 0.0
  %v2387 = vmax.f32 %v1373, 0.0
  %v2388 = vmax.f32 %v1378, 0.0
  %v2389 = vmax.f32 %v1381, 0.0
  %v2390 = vmax.f32 %v1386, 0.0
  %v2391 = vmax.f32 %v1389, 0.0
  %v2392 = vmax.f32 %v1394, 0.0
  %v2393 = vmax.f32 %v1397, 0.0
  %v2394 = vmax.f32 %v1402, 0.0
  %v2395 = vmax.f32 %v1405, 0.0
  %v2396 = vmax.f32 %v1410, 0.0
  %v2397 = vmax.f32 %v1413, 0.0
  %v2398 = vmax.f32 %v1418, 0.0
  %v2399 = vmax.f32 %v1421, 0.0
  %v2400 = vmax.f32 %v1426, 0.0
  %v2401 = vmax.f32 %v1429, 0.0
  %v2402 = vmax.f32 %v1434, 0.0
  %v2403 = vmax.f32 %v1437, 0.0
  %v2404 = vmax.f32 %v1442, 0.0
  %v2405 = vmax.f32 %v1445, 0.0
  %v2406 = vmax.f32 %v1450, 0.0
  %v2407 = vmax.f32 %v1453, 0.0
  %v2408 = vmax.f32 %v1458, 0.0
  %v2409 = vmax.f32 %v1461, 0.0
  %v2410 = vmax.f32 %v1466, 0.0
  %v2411 = vmax.f32 %v1469, 0.0
  %v2412 = vmax.f32 %v1474, 0.0
  %v2413 = vmax.f32 %v1477, 0.0
  %v2414 = vmax.f32 %v1482, 0.0
  %v2415 = vmax.f32 %v1485, 0.0
  %v2416 = vmax.f32 %v1490, 0.0
  %v2417 = vmax.f32 %v1493, 0.0
  %v2418 = vmax.f32 %v1498, 0.0
  %v2419 = vmax.f32 %v1501, 0.0
  %v2420 = vmax.f32 %v1506, 0.0
  %v2421 = vmax.f32 %v1509, 0.0
  %v2422 = vmax.f32 %v1514, 0.0
  %v2423 = vmax.f32 %v1517, 0.0
  %v2424 = vmax.f32 %v1522, 0.0
  %v2425 = vmax.f32 %v1525, 0.0
  %v2426 = vmax.f32 %v1530, 0.0
  %v2427 = vmax.f32 %v1533, 0.0
  %v2428 = vmax.f32 %v1538, 0.0
  %v2429 = vmax.f32 %v1541, 0.0
  %v2430 = vmax.f32 %v1546, 0.0
  %v2431 = vmax.f32 %v1549, 0.0
  %v2432 = vmax.f32 %v1554, 0.0
  %v2433 = vmax.f32 %v1557, 0.0
  %v2434 = vmax.f32 %v1562, 0.0
  %v2435 = vmax.f32 %v1565, 0.0
  %v2436 = vmax.f32 %v1570, 0.0
  %v2437 = vmax.f32 %v1573, 0.0
  %v2438 = vmax.f32 %v1578, 0.0
  %v2439 = vmax.f32 %v1581, 0.0
  %v2440 = vmax.f32 %v1586, 0.0
  %v2441 = vmax.f32 %v1589, 0.0
  %v2442 = vmax.f32 %v1594, 0.0
  %v2443 = vmax.f32 %v1597, 0.0
  %v2444 = vmax.f32 %v1602, 0.0
  %v2445 = vmax.f32 %v1605, 0.0
  %v2446 = vmax.f32 %v1610, 0.0
  %v2447 = vmax.f32 %v1613, 0.0
  %v2448 = vmax.f32 %v1618, 0.0
  %v2449 = vmax.f32 %v1621, 0.0
  %v2450 = vmax.f32 %v1626, 0.0
  %v2451 = vmax.f32 %v1629, 0.0
  %v2452 = vmax.f32 %v1634, 0.0
  %v2453 = vmax.f32 %v1637, 0.0
  %v2454 = vmax.f32 %v1642, 0.0
  %v2455 = vmax.f32 %v1645, 0.0
  %v2456 = vmax.f32 %v1650, 0.0
  %v2457 = vmax.f32 %v1653, 0.0
  %v2458 = vmax.f32 %v1658, 0.0
  %v2459 = vmax.f32 %v1661, 0.0
  %v2460 = vmax.f32 %v1666, 0.0
  %v2461 = vmax.f32 %v1669, 0.0
  %v2462 = vmax.f32 %v1674, 0.0
  %v2463 = vmax.f32 %v1677, 0.0
  %v2464 = vmax.f32 %v1682, 0.0
  %v2465 = vmax.f32 %v1685, 0.0
  %v2466 = vmax.f32 %v1690, 0.0
  %v2467 = vmax.f32 %v1693, 0.0
  %v2468 = vmax.f32 %v1698, 0.0
  %v2469 = vmax.f32 %v1701, 0.0
  %v2470 = vmax.f32 %v1706, 0.0
  %v2471 = vmax.f32 %v1709, 0.0
  %v2472 = vmax.f32 %v1714, 0.0
  %v2473 = vmax.f32 %v1717, 0.0
  %v2474 = vmax.f32 %v1722, 0.0
  %v2475 = vmax.f32 %v1725, 0.0
  %v2476 = vmax.f32 %v1730, 0.0
  %v2477 = vmax.f32 %v1733, 0.0
  %v2478 = vmax.f32 %v1738, 0.0
  %v2479 = vmax.f32 %v1741, 0.0
  %v2480 = vmax.f32 %v1746, 0.0
  %v2481 = vmax.f32 %v1749, 0.0
  %v2482 = vmax.f32 %v1754, 0.0
  %v2483 = vmax.f32 %v1757, 0.0
  %v2484 = vmax.f32 %v1762, 0.0
  %v2485 = vmax.f32 %v1765, 0.0
  %v2486 = vmax.f32 %v1770, 0.0
  %v2487 = vmax.f32 %v1773, 0.0
  %v2488 = vmax.f32 %v1778, 0.0
  %v2489 = vmax.f32 %v1781, 0.0
  %v2490 = vmax.f32 %v1786, 0.0
  %v2491 = vmax.f32 %v1789, 0.0
  %v2492 = vmax.f32 %v1794, 0.0
  %v2493 = vmax.f32 %v1797, 0.0
  %v2494 = vmax.f32 %v1802, 0.0
  %v2495 = vmax.f32 %v1805, 0.0
  %v2496 = vmax.f32 %v1810, 0.0
  %v2497 = vmax.f32 %v1813, 0.0
  %v2498 = vmax.f32 %v1818, 0.0
  %v2499 = vmax.f32 %v1821, 0.0
  %v2500 = vmax.f32 %v1826, 0.0
  %v2501 = vmax.f32 %v1829, 0.0
  %v2502 = vmax.f32 %v1834, 0.0
  %v2503 = vmax.f32 %v1837, 0.0
  %v2504 = vmax.f32 %v1842, 0.0
  %v2505 = vmax.f32 %v1845, 0.0
  %v2506 = vmax.f32 %v1850, 0.0
  %v2507 = vmax.f32 %v1853, 0.0
  %v2508 = vmax.f32 %v1858, 0.0
  %v2509 = vmax.f32 %v1861, 0.0
  %v2510 = vmax.f32 %v1866, 0.0
  %v2511 = vmax.f32 %v1869, 0.0
  %v2512 = vmax.f32 %v1874, 0.0
  %v2513 = vmax.f32 %v1877, 0.0
  %v2514 = vmax.f32 %v1882, 0.0
  %v2515 = vmax.f32 %v1885, 0.0
  %v2516 = vmax.f32 %v1890, 0.0
  %v2517 = vmax.f32 %v1893, 0.0
  %v2518 = vmax.f32 %v1898, 0.0
  %v2519 = vmax.f32 %v1901, 0.0
  %v2520 = vmax.f32 %v1906, 0.0
  %v2521 = vmax.f32 %v1909, 0.0
  %v2522 = vmax.f32 %v1914, 0.0
  %v2523 = vmax.f32 %v1917, 0.0
  %v2524 = vmax.f32 %v1922, 0.0
  %v2525 = vmax.f32 %v1925, 0.0
  %v2526 = vmax.f32 %v1930, 0.0
  %v2527 = vmax.f32 %v1933, 0.0
  %v2528 = vmax.f32 %v1938, 0.0
  %v2529 = vmax.f32 %v1941, 0.0
  %v2530 = vmax.f32 %v1946, 0.0
  %v2531 = vmax.f32 %v1949, 0.0
  %v2532 = vmax.f32 %v1954, 0.0
  %v2533 = vmax.f32 %v1957, 0.0
  %v2534 = vmax.f32 %v1962, 0.0
  %v2535 = vmax.f32 %v1965, 0.0
  %v2536 = vmax.f32 %v1970, 0.0
  %v2537 = vmax.f32 %v1973, 0.0
  %v2538 = vmax.f32 %v1978, 0.0
  %v2539 = vmax.f32 %v1981, 0.0
  %v2540 = vmax.f32 %v1986, 0.0
  %v2541 = vmax.f32 %v1989, 0.0
  %v2542 = vmax.f32 %v1994, 0.0
  %v2543 = vmax.f32 %v1997, 0.0
  %v2544 = vmax.f32 %v2002, 0.0
  %v2545 = vmax.f32 %v2005, 0.0
  %v2546 = vmax.f32 %v2010, 0.0
  %v2547 = vmax.f32 %v2013, 0.0
  %v2548 = vmax.f32 %v2018, 0.0
  %v2549 = vmax.f32 %v2021, 0.0
  %v2550 = vmax.f32 %v2026, 0.0
  %v2551 = vmax.f32 %v2029, 0.0
  %v2552 = vmax.f32 %v2034, 0.0
  %v2553 = vmax.f32 %v2037, 0.0
  %v2554 = vmax.f32 %v2042, 0.0
  %v2555 = vmax.f32 %v2045, 0.0
  %v2556 = vmax.f32 %v2050, 0.0
  %v2557 = vmax.f32 %v2053, 0.0
  %v2558 = vmax.f32 %v2058, 0.0
  %v2559 = vmax.f32 %v2061, 0.0
  %v2560 = vmax.f32 %v2066, 0.0
  %v2561 = vmax.f32 %v2069, 0.0
  %v2562 = vmax.f32 %v2074, 0.0
  %v2563 = vmax.f32 %v2077, 0.0
  %v2564 = vmax.f32 %v2082, 0.0
  %v2565 = vmax.f32 %v2085, 0.0
  %v2566 = vmax.f32 %v2090, 0.0
  %v2567 = vmax.f32 %v2093, 0.0
  %v2568 = vmax.f32 %v2098, 0.0
  %v2569 = vmax.f32 %v2101, 0.0
  %v2570 = vmax.f32 %v2106, 0.0
  %v2571 = vmax.f32 %v2109, 0.0
  %v2572 = vmax.f32 %v2114, 0.0
  %v2573 = vmax.f32 %v2117, 0.0
  %v2574 = vmax.f32 %v2122, 0.0
  %v2575 = vmax.f32 %v2125, 0.0
  %v2576 = vmax.f32 %v2130, 0.0
  %v2577 = vmax.f32 %v2133, 0.0
  %v2578 = vmax.f32 %v2138, 0.0
  %v2579 = vmax.f32 %v2141, 0.0
  %v2580 = vmax.f32 %v2146, 0.0
  %v2581 = vmax.f32 %v2149, 0.0
  %v2582 = vmax.f32 %v2154, 0.0
  %v2583 = vmax.f32 %v2157, 0.0
  %v2584 = vmax.f32 %v2162, 0.0
  %v2585 = vmax.f32 %v2165, 0.0
  %v2586 = vmax.f32 %v2170, 0.0
  %v2587 = vmax.f32 %v2173, 0.0
  %v2588 = vmax.f32 %v2178, 0.0
  %v2589 = vmax.f32 %v2181, 0.0
  %v2590 = vmax.f32 %v2186, 0.0
  %v2591 = vmax.f32 %v2189, 0.0
  %v2592 = vmax.f32 %v2194, 0.0
  %v2593 = vmax.f32 %v2197, 0.0
  %v2594 = vmax.f32 %v2202, 0.0
  %v2595 = vmax.f32 %v2205, 0.0
  %v2596 = vmax.f32 %v2210, 0.0
  %v2597 = vmax.f32 %v2213, 0.0
  %v2598 = vmax.f32 %v2218, 0.0
  %v2599 = vmax.f32 %v2221, 0.0
  %v2600 = vmax.f32 %v2226, 0.0
  %v2601 = vmax.f32 %v2229, 0.0
  %v2602 = vmax.f32 %v2234, 0.0
  %v2603 = vmax.f32 %v2237, 0.0
  %v2604 = vmax.f32 %v2242, 0.0
  %v2605 = vmax.f32 %v2245, 0.0
  %v2606 = vmax.f32 %v2250, 0.0
  %v2607 = vmax.f32 %v2253, 0.0
  %v2608 = vmax.f32 %v2258, 0.0
  %v2609 = vmax.f32 %v2261, 0.0
  %v2610 = vmax.f32 %v2266, 0.0
  %v2611 = vmax.f32 %v2269, 0.0
  %v2612 = vmax.f32 %v2274, 0.0
  %v2613 = vmax.f32 %v2277, 0.0
  %v2614 = vmax.f32 %v2282, 0.0
  %v2615 = vmax.f32 %v2285, 0.0
  %v2616 = vmax.f32 %v2290, 0.0
  %v2617 = vmax.f32 %v2293, 0.0
  %v2618 = vmax.f32 %v2298, 0.0
  %v2619 = vmax.f32 %v2301, 0.0
  %v2620 = vmax.f32 %v2306, 0.0
  %v2621 = vmax.f32 %v2309, 0.0
  %v2622 = vmax.f32 %v2314, 0.0
  %v2623 = vmax.f32 %v2317, 0.0
  %v2624 = vmax.f32 %v2322, 0.0
  %v2625 = vmax.f32 %v2325, 0.0
  %v2626 = vmax.f32 %v2330, 0.0
  %v2627 = vmax.f32 %v2333, 0.0
  %v2628 = vmax.f32 %v2338, 0.0
  %v2629 = vmax.f32 %v2341, 0.0
  %v2630 = vmax.f32 %v2346, 0.0
  %v2631 = vmax.f32 %v2349, 0.0
  %v2632 = vmax.f32 %v2354, 0.0
  %v2633 = vmax.f32 %v2357, 0.0
  %v2634 = vmax.f32 %v2362, 0.0
  %v2635 = vmax.f32 %v2365, 0.0
  %v2636 = vmax.f32 %v2370, 0.0
  %v2637 = vmax.f32 %v2373, 0.0
  %v2638 = vmax.f32 %v2378, 0.0
  %v2639 = vmax.f32 %v2381, 0.0
  %v2640 = vpack.c.bf16 %v2385, %v2384
  %v2641 = vpack.c.bf16 %v2387, %v2386
  %v2642 = vpack.c.bf16 %v2389, %v2388
  %v2643 = vpack.c.bf16 %v2391, %v2390
  %v2644 = vpack.c.bf16 %v2393, %v2392
  %v2645 = vpack.c.bf16 %v2395, %v2394
  %v2646 = vpack.c.bf16 %v2397, %v2396
  %v2647 = vpack.c.bf16 %v2399, %v2398
  %v2648 = vpack.c.bf16 %v2401, %v2400
  %v2649 = vpack.c.bf16 %v2403, %v2402
  %v2650 = vpack.c.bf16 %v2405, %v2404
  %v2651 = vpack.c.bf16 %v2407, %v2406
  %v2652 = vpack.c.bf16 %v2409, %v2408
  %v2653 = vpack.c.bf16 %v2411, %v2410
  %v2654 = vpack.c.bf16 %v2413, %v2412
  %v2655 = vpack.c.bf16 %v2415, %v2414
  %v2656 = vpack.c.bf16 %v2417, %v2416
  %v2657 = vpack.c.bf16 %v2419, %v2418
  %v2658 = vpack.c.bf16 %v2421, %v2420
  %v2659 = vpack.c.bf16 %v2423, %v2422
  %v2660 = vpack.c.bf16 %v2425, %v2424
  %v2661 = vpack.c.bf16 %v2427, %v2426
  %v2662 = vpack.c.bf16 %v2429, %v2428
  %v2663 = vpack.c.bf16 %v2431, %v2430
  %v2664 = vpack.c.bf16 %v2433, %v2432
  %v2665 = vpack.c.bf16 %v2435, %v2434
  %v2666 = vpack.c.bf16 %v2437, %v2436
  %v2667 = vpack.c.bf16 %v2439, %v2438
  %v2668 = vpack.c.bf16 %v2441, %v2440
  %v2669 = vpack.c.bf16 %v2443, %v2442
  %v2670 = vpack.c.bf16 %v2445, %v2444
  %v2671 = vpack.c.bf16 %v2447, %v2446
  %v2672 = vpack.c.bf16 %v2449, %v2448
  %v2673 = vpack.c.bf16 %v2451, %v2450
  %v2674 = vpack.c.bf16 %v2453, %v2452
  %v2675 = vpack.c.bf16 %v2455, %v2454
  %v2676 = vpack.c.bf16 %v2457, %v2456
  %v2677 = vpack.c.bf16 %v2459, %v2458
  %v2678 = vpack.c.bf16 %v2461, %v2460
  %v2679 = vpack.c.bf16 %v2463, %v2462
  %v2680 = vpack.c.bf16 %v2465, %v2464
  %v2681 = vpack.c.bf16 %v2467, %v2466
  %v2682 = vpack.c.bf16 %v2469, %v2468
  %v2683 = vpack.c.bf16 %v2471, %v2470
  %v2684 = vpack.c.bf16 %v2473, %v2472
  %v2685 = vpack.c.bf16 %v2475, %v2474
  %v2686 = vpack.c.bf16 %v2477, %v2476
  %v2687 = vpack.c.bf16 %v2479, %v2478
  %v2688 = vpack.c.bf16 %v2481, %v2480
  %v2689 = vpack.c.bf16 %v2483, %v2482
  %v2690 = vpack.c.bf16 %v2485, %v2484
  %v2691 = vpack.c.bf16 %v2487, %v2486
  %v2692 = vpack.c.bf16 %v2489, %v2488
  %v2693 = vpack.c.bf16 %v2491, %v2490
  %v2694 = vpack.c.bf16 %v2493, %v2492
  %v2695 = vpack.c.bf16 %v2495, %v2494
  %v2696 = vpack.c.bf16 %v2497, %v2496
  %v2697 = vpack.c.bf16 %v2499, %v2498
  %v2698 = vpack.c.bf16 %v2501, %v2500
  %v2699 = vpack.c.bf16 %v2503, %v2502
  %v2700 = vpack.c.bf16 %v2505, %v2504
  %v2701 = vpack.c.bf16 %v2507, %v2506
  %v2702 = vpack.c.bf16 %v2509, %v2508
  %v2703 = vpack.c.bf16 %v2511, %v2510
  %v2704 = vpack.c.bf16 %v2513, %v2512
  %v2705 = vpack.c.bf16 %v2515, %v2514
  %v2706 = vpack.c.bf16 %v2517, %v2516
  %v2707 = vpack.c.bf16 %v2519, %v2518
  %v2708 = vpack.c.bf16 %v2521, %v2520
  %v2709 = vpack.c.bf16 %v2523, %v2522
  %v2710 = vpack.c.bf16 %v2525, %v2524
  %v2711 = vpack.c.bf16 %v2527, %v2526
  %v2712 = vpack.c.bf16 %v2529, %v2528
  %v2713 = vpack.c.bf16 %v2531, %v2530
  %v2714 = vpack.c.bf16 %v2533, %v2532
  %v2715 = vpack.c.bf16 %v2535, %v2534
  %v2716 = vpack.c.bf16 %v2537, %v2536
  %v2717 = vpack.c.bf16 %v2539, %v2538
  %v2718 = vpack.c.bf16 %v2541, %v2540
  %v2719 = vpack.c.bf16 %v2543, %v2542
  %v2720 = vpack.c.bf16 %v2545, %v2544
  %v2721 = vpack.c.bf16 %v2547, %v2546
  %v2722 = vpack.c.bf16 %v2549, %v2548
  %v2723 = vpack.c.bf16 %v2551, %v2550
  %v2724 = vpack.c.bf16 %v2553, %v2552
  %v2725 = vpack.c.bf16 %v2555, %v2554
  %v2726 = vpack.c.bf16 %v2557, %v2556
  %v2727 = vpack.c.bf16 %v2559, %v2558
  %v2728 = vpack.c.bf16 %v2561, %v2560
  %v2729 = vpack.c.bf16 %v2563, %v2562
  %v2730 = vpack.c.bf16 %v2565, %v2564
  %v2731 = vpack.c.bf16 %v2567, %v2566
  %v2732 = vpack.c.bf16 %v2569, %v2568
  %v2733 = vpack.c.bf16 %v2571, %v2570
  %v2734 = vpack.c.bf16 %v2573, %v2572
  %v2735 = vpack.c.bf16 %v2575, %v2574
  %v2736 = vpack.c.bf16 %v2577, %v2576
  %v2737 = vpack.c.bf16 %v2579, %v2578
  %v2738 = vpack.c.bf16 %v2581, %v2580
  %v2739 = vpack.c.bf16 %v2583, %v2582
  %v2740 = vpack.c.bf16 %v2585, %v2584
  %v2741 = vpack.c.bf16 %v2587, %v2586
  %v2742 = vpack.c.bf16 %v2589, %v2588
  %v2743 = vpack.c.bf16 %v2591, %v2590
  %v2744 = vpack.c.bf16 %v2593, %v2592
  %v2745 = vpack.c.bf16 %v2595, %v2594
  %v2746 = vpack.c.bf16 %v2597, %v2596
  %v2747 = vpack.c.bf16 %v2599, %v2598
  %v2748 = vpack.c.bf16 %v2601, %v2600
  %v2749 = vpack.c.bf16 %v2603, %v2602
  %v2750 = vpack.c.bf16 %v2605, %v2604
  %v2751 = vpack.c.bf16 %v2607, %v2606
  %v2752 = vpack.c.bf16 %v2609, %v2608
  %v2753 = vpack.c.bf16 %v2611, %v2610
  %v2754 = vpack.c.bf16 %v2613, %v2612
  %v2755 = vpack.c.bf16 %v2615, %v2614
  %v2756 = vpack.c.bf16 %v2617, %v2616
  %v2757 = vpack.c.bf16 %v2619, %v2618
  %v2758 = vpack.c.bf16 %v2621, %v2620
  %v2759 = vpack.c.bf16 %v2623, %v2622
  %v2760 = vpack.c.bf16 %v2625, %v2624
  %v2761 = vpack.c.bf16 %v2627, %v2626
  %v2762 = vpack.c.bf16 %v2629, %v2628
  %v2763 = vpack.c.bf16 %v2631, %v2630
  %v2764 = vpack.c.bf16 %v2633, %v2632
  %v2765 = vpack.c.bf16 %v2635, %v2634
  %v2766 = vpack.c.bf16 %v2637, %v2636
  %v2767 = vpack.c.bf16 %v2639, %v2638
  %v2896 = vunpack.c.l.b16 %v2640
  %v2897 = vunpack.c.h.b16 %v2640
  %v2898 = vunpack.c.l.b16 %v2641
  %v2899 = vunpack.c.h.b16 %v2641
  %v2900 = vunpack.c.l.b16 %v2642
  %v2901 = vunpack.c.h.b16 %v2642
  %v2902 = vunpack.c.l.b16 %v2643
  %v2903 = vunpack.c.h.b16 %v2643
  %v2904 = vunpack.c.l.b16 %v2644
  %v2905 = vunpack.c.h.b16 %v2644
  %v2906 = vunpack.c.l.b16 %v2645
  %v2907 = vunpack.c.h.b16 %v2645
  %v2908 = vunpack.c.l.b16 %v2646
  %v2909 = vunpack.c.h.b16 %v2646
  %v2910 = vunpack.c.l.b16 %v2647
  %v2911 = vunpack.c.h.b16 %v2647
  %v2912 = vunpack.c.l.b16 %v2648
  %v2913 = vunpack.c.h.b16 %v2648
  %v2914 = vunpack.c.l.b16 %v2649
  %v2915 = vunpack.c.h.b16 %v2649
  %v2916 = vunpack.c.l.b16 %v2650
  %v2917 = vunpack.c.h.b16 %v2650
  %v2918 = vunpack.c.l.b16 %v2651
  %v2919 = vunpack.c.h.b16 %v2651
  %v2920 = vunpack.c.l.b16 %v2652
  %v2921 = vunpack.c.h.b16 %v2652
  %v2922 = vunpack.c.l.b16 %v2653
  %v2923 = vunpack.c.h.b16 %v2653
  %v2924 = vunpack.c.l.b16 %v2654
  %v2925 = vunpack.c.h.b16 %v2654
  %v2926 = vunpack.c.l.b16 %v2655
  %v2927 = vunpack.c.h.b16 %v2655
  %v2928 = vunpack.c.l.b16 %v2656
  %v2929 = vunpack.c.h.b16 %v2656
  %v2930 = vunpack.c.l.b16 %v2657
  %v2931 = vunpack.c.h.b16 %v2657
  %v2932 = vunpack.c.l.b16 %v2658
  %v2933 = vunpack.c.h.b16 %v2658
  %v2934 = vunpack.c.l.b16 %v2659
  %v2935 = vunpack.c.h.b16 %v2659
  %v2936 = vunpack.c.l.b16 %v2660
  %v2937 = vunpack.c.h.b16 %v2660
  %v2938 = vunpack.c.l.b16 %v2661
  %v2939 = vunpack.c.h.b16 %v2661
  %v2940 = vunpack.c.l.b16 %v2662
  %v2941 = vunpack.c.h.b16 %v2662
  %v2942 = vunpack.c.l.b16 %v2663
  %v2943 = vunpack.c.h.b16 %v2663
  %v2944 = vunpack.c.l.b16 %v2664
  %v2945 = vunpack.c.h.b16 %v2664
  %v2946 = vunpack.c.l.b16 %v2665
  %v2947 = vunpack.c.h.b16 %v2665
  %v2948 = vunpack.c.l.b16 %v2666
  %v2949 = vunpack.c.h.b16 %v2666
  %v2950 = vunpack.c.l.b16 %v2667
  %v2951 = vunpack.c.h.b16 %v2667
  %v2952 = vunpack.c.l.b16 %v2668
  %v2953 = vunpack.c.h.b16 %v2668
  %v2954 = vunpack.c.l.b16 %v2669
  %v2955 = vunpack.c.h.b16 %v2669
  %v2956 = vunpack.c.l.b16 %v2670
  %v2957 = vunpack.c.h.b16 %v2670
  %v2958 = vunpack.c.l.b16 %v2671
  %v2959 = vunpack.c.h.b16 %v2671
  %v2960 = vunpack.c.l.b16 %v2672
  %v2961 = vunpack.c.h.b16 %v2672
  %v2962 = vunpack.c.l.b16 %v2673
  %v2963 = vunpack.c.h.b16 %v2673
  %v2964 = vunpack.c.l.b16 %v2674
  %v2965 = vunpack.c.h.b16 %v2674
  %v2966 = vunpack.c.l.b16 %v2675
  %v2967 = vunpack.c.h.b16 %v2675
  %v2968 = vunpack.c.l.b16 %v2676
  %v2969 = vunpack.c.h.b16 %v2676
  %v2970 = vunpack.c.l.b16 %v2677
  %v2971 = vunpack.c.h.b16 %v2677
  %v2972 = vunpack.c.l.b16 %v2678
  %v2973 = vunpack.c.h.b16 %v2678
  %v2974 = vunpack.c.l.b16 %v2679
  %v2975 = vunpack.c.h.b16 %v2679
  %v2976 = vunpack.c.l.b16 %v2680
  %v2977 = vunpack.c.h.b16 %v2680
  %v2978 = vunpack.c.l.b16 %v2681
  %v2979 = vunpack.c.h.b16 %v2681
  %v2980 = vunpack.c.l.b16 %v2682
  %v2981 = vunpack.c.h.b16 %v2682
  %v2982 = vunpack.c.l.b16 %v2683
  %v2983 = vunpack.c.h.b16 %v2683
  %v2984 = vunpack.c.l.b16 %v2684
  %v2985 = vunpack.c.h.b16 %v2684
  %v2986 = vunpack.c.l.b16 %v2685
  %v2987 = vunpack.c.h.b16 %v2685
  %v2988 = vunpack.c.l.b16 %v2686
  %v2989 = vunpack.c.h.b16 %v2686
  %v2990 = vunpack.c.l.b16 %v2687
  %v2991 = vunpack.c.h.b16 %v2687
  %v2992 = vunpack.c.l.b16 %v2688
  %v2993 = vunpack.c.h.b16 %v2688
  %v2994 = vunpack.c.l.b16 %v2689
  %v2995 = vunpack.c.h.b16 %v2689
  %v2996 = vunpack.c.l.b16 %v2690
  %v2997 = vunpack.c.h.b16 %v2690
  %v2998 = vunpack.c.l.b16 %v2691
  %v2999 = vunpack.c.h.b16 %v2691
  %v3000 = vunpack.c.l.b16 %v2692
  %v3001 = vunpack.c.h.b16 %v2692
  %v3002 = vunpack.c.l.b16 %v2693
  %v3003 = vunpack.c.h.b16 %v2693
  %v3004 = vunpack.c.l.b16 %v2694
  %v3005 = vunpack.c.h.b16 %v2694
  %v3006 = vunpack.c.l.b16 %v2695
  %v3007 = vunpack.c.h.b16 %v2695
  %v3008 = vunpack.c.l.b16 %v2696
  %v3009 = vunpack.c.h.b16 %v2696
  %v3010 = vunpack.c.l.b16 %v2697
  %v3011 = vunpack.c.h.b16 %v2697
  %v3012 = vunpack.c.l.b16 %v2698
  %v3013 = vunpack.c.h.b16 %v2698
  %v3014 = vunpack.c.l.b16 %v2699
  %v3015 = vunpack.c.h.b16 %v2699
  %v3016 = vunpack.c.l.b16 %v2700
  %v3017 = vunpack.c.h.b16 %v2700
  %v3018 = vunpack.c.l.b16 %v2701
  %v3019 = vunpack.c.h.b16 %v2701
  %v3020 = vunpack.c.l.b16 %v2702
  %v3021 = vunpack.c.h.b16 %v2702
  %v3022 = vunpack.c.l.b16 %v2703
  %v3023 = vunpack.c.h.b16 %v2703
  %v3024 = vunpack.c.l.b16 %v2704
  %v3025 = vunpack.c.h.b16 %v2704
  %v3026 = vunpack.c.l.b16 %v2705
  %v3027 = vunpack.c.h.b16 %v2705
  %v3028 = vunpack.c.l.b16 %v2706
  %v3029 = vunpack.c.h.b16 %v2706
  %v3030 = vunpack.c.l.b16 %v2707
  %v3031 = vunpack.c.h.b16 %v2707
  %v3032 = vunpack.c.l.b16 %v2708
  %v3033 = vunpack.c.h.b16 %v2708
  %v3034 = vunpack.c.l.b16 %v2709
  %v3035 = vunpack.c.h.b16 %v2709
  %v3036 = vunpack.c.l.b16 %v2710
  %v3037 = vunpack.c.h.b16 %v2710
  %v3038 = vunpack.c.l.b16 %v2711
  %v3039 = vunpack.c.h.b16 %v2711
  %v3040 = vunpack.c.l.b16 %v2712
  %v3041 = vunpack.c.h.b16 %v2712
  %v3042 = vunpack.c.l.b16 %v2713
  %v3043 = vunpack.c.h.b16 %v2713
  %v3044 = vunpack.c.l.b16 %v2714
  %v3045 = vunpack.c.h.b16 %v2714
  %v3046 = vunpack.c.l.b16 %v2715
  %v3047 = vunpack.c.h.b16 %v2715
  %v3048 = vunpack.c.l.b16 %v2716
  %v3049 = vunpack.c.h.b16 %v2716
  %v3050 = vunpack.c.l.b16 %v2717
  %v3051 = vunpack.c.h.b16 %v2717
  %v3052 = vunpack.c.l.b16 %v2718
  %v3053 = vunpack.c.h.b16 %v2718
  %v3054 = vunpack.c.l.b16 %v2719
  %v3055 = vunpack.c.h.b16 %v2719
  %v3056 = vunpack.c.l.b16 %v2720
  %v3057 = vunpack.c.h.b16 %v2720
  %v3058 = vunpack.c.l.b16 %v2721
  %v3059 = vunpack.c.h.b16 %v2721
  %v3060 = vunpack.c.l.b16 %v2722
  %v3061 = vunpack.c.h.b16 %v2722
  %v3062 = vunpack.c.l.b16 %v2723
  %v3063 = vunpack.c.h.b16 %v2723
  %v3064 = vunpack.c.l.b16 %v2724
  %v3065 = vunpack.c.h.b16 %v2724
  %v3066 = vunpack.c.l.b16 %v2725
  %v3067 = vunpack.c.h.b16 %v2725
  %v3068 = vunpack.c.l.b16 %v2726
  %v3069 = vunpack.c.h.b16 %v2726
  %v3070 = vunpack.c.l.b16 %v2727
  %v3071 = vunpack.c.h.b16 %v2727
  %v3072 = vunpack.c.l.b16 %v2728
  %v3073 = vunpack.c.h.b16 %v2728
  %v3074 = vunpack.c.l.b16 %v2729
  %v3075 = vunpack.c.h.b16 %v2729
  %v3076 = vunpack.c.l.b16 %v2730
  %v3077 = vunpack.c.h.b16 %v2730
  %v3078 = vunpack.c.l.b16 %v2731
  %v3079 = vunpack.c.h.b16 %v2731
  %v3080 = vunpack.c.l.b16 %v2732
  %v3081 = vunpack.c.h.b16 %v2732
  %v3082 = vunpack.c.l.b16 %v2733
  %v3083 = vunpack.c.h.b16 %v2733
  %v3084 = vunpack.c.l.b16 %v2734
  %v3085 = vunpack.c.h.b16 %v2734
  %v3086 = vunpack.c.l.b16 %v2735
  %v3087 = vunpack.c.h.b16 %v2735
  %v3088 = vunpack.c.l.b16 %v2736
  %v3089 = vunpack.c.h.b16 %v2736
  %v3090 = vunpack.c.l.b16 %v2737
  %v3091 = vunpack.c.h.b16 %v2737
  %v3092 = vunpack.c.l.b16 %v2738
  %v3093 = vunpack.c.h.b16 %v2738
  %v3094 = vunpack.c.l.b16 %v2739
  %v3095 = vunpack.c.h.b16 %v2739
  %v3096 = vunpack.c.l.b16 %v2740
  %v3097 = vunpack.c.h.b16 %v2740
  %v3098 = vunpack.c.l.b16 %v2741
  %v3099 = vunpack.c.h.b16 %v2741
  %v3100 = vunpack.c.l.b16 %v2742
  %v3101 = vunpack.c.h.b16 %v2742
  %v3102 = vunpack.c.l.b16 %v2743
  %v3103 = vunpack.c.h.b16 %v2743
  %v3104 = vunpack.c.l.b16 %v2744
  %v3105 = vunpack.c.h.b16 %v2744
  %v3106 = vunpack.c.l.b16 %v2745
  %v3107 = vunpack.c.h.b16 %v2745
  %v3108 = vunpack.c.l.b16 %v2746
  %v3109 = vunpack.c.h.b16 %v2746
  %v3110 = vunpack.c.l.b16 %v2747
  %v3111 = vunpack.c.h.b16 %v2747
  %v3112 = vunpack.c.l.b16 %v2748
  %v3113 = vunpack.c.h.b16 %v2748
  %v3114 = vunpack.c.l.b16 %v2749
  %v3115 = vunpack.c.h.b16 %v2749
  %v3116 = vunpack.c.l.b16 %v2750
  %v3117 = vunpack.c.h.b16 %v2750
  %v3118 = vunpack.c.l.b16 %v2751
  %v3119 = vunpack.c.h.b16 %v2751
  %v3120 = vunpack.c.l.b16 %v2752
  %v3121 = vunpack.c.h.b16 %v2752
  %v3122 = vunpack.c.l.b16 %v2753
  %v3123 = vunpack.c.h.b16 %v2753
  %v3124 = vunpack.c.l.b16 %v2754
  %v3125 = vunpack.c.h.b16 %v2754
  %v3126 = vunpack.c.l.b16 %v2755
  %v3127 = vunpack.c.h.b16 %v2755
  %v3128 = vunpack.c.l.b16 %v2756
  %v3129 = vunpack.c.h.b16 %v2756
  %v3130 = vunpack.c.l.b16 %v2757
  %v3131 = vunpack.c.h.b16 %v2757
  %v3132 = vunpack.c.l.b16 %v2758
  %v3133 = vunpack.c.h.b16 %v2758
  %v3134 = vunpack.c.l.b16 %v2759
  %v3135 = vunpack.c.h.b16 %v2759
  %v3136 = vunpack.c.l.b16 %v2760
  %v3137 = vunpack.c.h.b16 %v2760
  %v3138 = vunpack.c.l.b16 %v2761
  %v3139 = vunpack.c.h.b16 %v2761
  %v3140 = vunpack.c.l.b16 %v2762
  %v3141 = vunpack.c.h.b16 %v2762
  %v3142 = vunpack.c.l.b16 %v2763
  %v3143 = vunpack.c.h.b16 %v2763
  %v3144 = vunpack.c.l.b16 %v2764
  %v3145 = vunpack.c.h.b16 %v2764
  %v3146 = vunpack.c.l.b16 %v2765
  %v3147 = vunpack.c.h.b16 %v2765
  %v3148 = vunpack.c.l.b16 %v2766
  %v3149 = vunpack.c.h.b16 %v2766
  %v3150 = vunpack.c.l.b16 %v2767
  %v3151 = vunpack.c.h.b16 %v2767
  %v3152 = vpack.c.b16 %v2896, %v2896
  %v3153 = vpack.c.b16 %v2897, %v2897
  %v3154 = vpack.c.b16 %v2898, %v2898
  %v3155 = vpack.c.b16 %v2899, %v2899
  %v3156 = vpack.c.b16 %v2900, %v2900
  %v3157 = vpack.c.b16 %v2901, %v2901
  %v3158 = vpack.c.b16 %v2902, %v2902
  %v3159 = vpack.c.b16 %v2903, %v2903
  %v3160 = vpack.c.b16 %v2904, %v2904
  %v3161 = vpack.c.b16 %v2905, %v2905
  %v3162 = vpack.c.b16 %v2906, %v2906
  %v3163 = vpack.c.b16 %v2907, %v2907
  %v3164 = vpack.c.b16 %v2908, %v2908
  %v3165 = vpack.c.b16 %v2909, %v2909
  %v3166 = vpack.c.b16 %v2910, %v2910
  %v3167 = vpack.c.b16 %v2911, %v2911
  %v3168 = vpack.c.b16 %v2912, %v2912
  %v3169 = vpack.c.b16 %v2913, %v2913
  %v3170 = vpack.c.b16 %v2914, %v2914
  %v3171 = vpack.c.b16 %v2915, %v2915
  %v3172 = vpack.c.b16 %v2916, %v2916
  %v3173 = vpack.c.b16 %v2917, %v2917
  %v3174 = vpack.c.b16 %v2918, %v2918
  %v3175 = vpack.c.b16 %v2919, %v2919
  %v3176 = vpack.c.b16 %v2920, %v2920
  %v3177 = vpack.c.b16 %v2921, %v2921
  %v3178 = vpack.c.b16 %v2922, %v2922
  %v3179 = vpack.c.b16 %v2923, %v2923
  %v3180 = vpack.c.b16 %v2924, %v2924
  %v3181 = vpack.c.b16 %v2925, %v2925
  %v3182 = vpack.c.b16 %v2926, %v2926
  %v3183 = vpack.c.b16 %v2927, %v2927
  %v3184 = vpack.c.b16 %v2928, %v2928
  %v3185 = vpack.c.b16 %v2929, %v2929
  %v3186 = vpack.c.b16 %v2930, %v2930
  %v3187 = vpack.c.b16 %v2931, %v2931
  %v3188 = vpack.c.b16 %v2932, %v2932
  %v3189 = vpack.c.b16 %v2933, %v2933
  %v3190 = vpack.c.b16 %v2934, %v2934
  %v3191 = vpack.c.b16 %v2935, %v2935
  %v3192 = vpack.c.b16 %v2936, %v2936
  %v3193 = vpack.c.b16 %v2937, %v2937
  %v3194 = vpack.c.b16 %v2938, %v2938
  %v3195 = vpack.c.b16 %v2939, %v2939
  %v3196 = vpack.c.b16 %v2940, %v2940
  %v3197 = vpack.c.b16 %v2941, %v2941
  %v3198 = vpack.c.b16 %v2942, %v2942
  %v3199 = vpack.c.b16 %v2943, %v2943
  %v3200 = vpack.c.b16 %v2944, %v2944
  %v3201 = vpack.c.b16 %v2945, %v2945
  %v3202 = vpack.c.b16 %v2946, %v2946
  %v3203 = vpack.c.b16 %v2947, %v2947
  %v3204 = vpack.c.b16 %v2948, %v2948
  %v3205 = vpack.c.b16 %v2949, %v2949
  %v3206 = vpack.c.b16 %v2950, %v2950
  %v3207 = vpack.c.b16 %v2951, %v2951
  %v3208 = vpack.c.b16 %v2952, %v2952
  %v3209 = vpack.c.b16 %v2953, %v2953
  %v3210 = vpack.c.b16 %v2954, %v2954
  %v3211 = vpack.c.b16 %v2955, %v2955
  %v3212 = vpack.c.b16 %v2956, %v2956
  %v3213 = vpack.c.b16 %v2957, %v2957
  %v3214 = vpack.c.b16 %v2958, %v2958
  %v3215 = vpack.c.b16 %v2959, %v2959
  %v3216 = vpack.c.b16 %v2960, %v2960
  %v3217 = vpack.c.b16 %v2961, %v2961
  %v3218 = vpack.c.b16 %v2962, %v2962
  %v3219 = vpack.c.b16 %v2963, %v2963
  %v3220 = vpack.c.b16 %v2964, %v2964
  %v3221 = vpack.c.b16 %v2965, %v2965
  %v3222 = vpack.c.b16 %v2966, %v2966
  %v3223 = vpack.c.b16 %v2967, %v2967
  %v3224 = vpack.c.b16 %v2968, %v2968
  %v3225 = vpack.c.b16 %v2969, %v2969
  %v3226 = vpack.c.b16 %v2970, %v2970
  %v3227 = vpack.c.b16 %v2971, %v2971
  %v3228 = vpack.c.b16 %v2972, %v2972
  %v3229 = vpack.c.b16 %v2973, %v2973
  %v3230 = vpack.c.b16 %v2974, %v2974
  %v3231 = vpack.c.b16 %v2975, %v2975
  %v3232 = vpack.c.b16 %v2976, %v2976
  %v3233 = vpack.c.b16 %v2977, %v2977
  %v3234 = vpack.c.b16 %v2978, %v2978
  %v3235 = vpack.c.b16 %v2979, %v2979
  %v3236 = vpack.c.b16 %v2980, %v2980
  %v3237 = vpack.c.b16 %v2981, %v2981
  %v3238 = vpack.c.b16 %v2982, %v2982
  %v3239 = vpack.c.b16 %v2983, %v2983
  %v3240 = vpack.c.b16 %v2984, %v2984
  %v3241 = vpack.c.b16 %v2985, %v2985
  %v3242 = vpack.c.b16 %v2986, %v2986
  %v3243 = vpack.c.b16 %v2987, %v2987
  %v3244 = vpack.c.b16 %v2988, %v2988
  %v3245 = vpack.c.b16 %v2989, %v2989
  %v3246 = vpack.c.b16 %v2990, %v2990
  %v3247 = vpack.c.b16 %v2991, %v2991
  %v3248 = vpack.c.b16 %v2992, %v2992
  %v3249 = vpack.c.b16 %v2993, %v2993
  %v3250 = vpack.c.b16 %v2994, %v2994
  %v3251 = vpack.c.b16 %v2995, %v2995
  %v3252 = vpack.c.b16 %v2996, %v2996
  %v3253 = vpack.c.b16 %v2997, %v2997
  %v3254 = vpack.c.b16 %v2998, %v2998
  %v3255 = vpack.c.b16 %v2999, %v2999
  %v3256 = vpack.c.b16 %v3000, %v3000
  %v3257 = vpack.c.b16 %v3001, %v3001
  %v3258 = vpack.c.b16 %v3002, %v3002
  %v3259 = vpack.c.b16 %v3003, %v3003
  %v3260 = vpack.c.b16 %v3004, %v3004
  %v3261 = vpack.c.b16 %v3005, %v3005
  %v3262 = vpack.c.b16 %v3006, %v3006
  %v3263 = vpack.c.b16 %v3007, %v3007
  %v3264 = vpack.c.b16 %v3008, %v3008
  %v3265 = vpack.c.b16 %v3009, %v3009
  %v3266 = vpack.c.b16 %v3010, %v3010
  %v3267 = vpack.c.b16 %v3011, %v3011
  %v3268 = vpack.c.b16 %v3012, %v3012
  %v3269 = vpack.c.b16 %v3013, %v3013
  %v3270 = vpack.c.b16 %v3014, %v3014
  %v3271 = vpack.c.b16 %v3015, %v3015
  %v3272 = vpack.c.b16 %v3016, %v3016
  %v3273 = vpack.c.b16 %v3017, %v3017
  %v3274 = vpack.c.b16 %v3018, %v3018
  %v3275 = vpack.c.b16 %v3019, %v3019
  %v3276 = vpack.c.b16 %v3020, %v3020
  %v3277 = vpack.c.b16 %v3021, %v3021
  %v3278 = vpack.c.b16 %v3022, %v3022
  %v3279 = vpack.c.b16 %v3023, %v3023
  %v3280 = vpack.c.b16 %v3024, %v3024
  %v3281 = vpack.c.b16 %v3025, %v3025
  %v3282 = vpack.c.b16 %v3026, %v3026
  %v3283 = vpack.c.b16 %v3027, %v3027
  %v3284 = vpack.c.b16 %v3028, %v3028
  %v3285 = vpack.c.b16 %v3029, %v3029
  %v3286 = vpack.c.b16 %v3030, %v3030
  %v3287 = vpack.c.b16 %v3031, %v3031
  %v3288 = vpack.c.b16 %v3032, %v3032
  %v3289 = vpack.c.b16 %v3033, %v3033
  %v3290 = vpack.c.b16 %v3034, %v3034
  %v3291 = vpack.c.b16 %v3035, %v3035
  %v3292 = vpack.c.b16 %v3036, %v3036
  %v3293 = vpack.c.b16 %v3037, %v3037
  %v3294 = vpack.c.b16 %v3038, %v3038
  %v3295 = vpack.c.b16 %v3039, %v3039
  %v3296 = vpack.c.b16 %v3040, %v3040
  %v3297 = vpack.c.b16 %v3041, %v3041
  %v3298 = vpack.c.b16 %v3042, %v3042
  %v3299 = vpack.c.b16 %v3043, %v3043
  %v3300 = vpack.c.b16 %v3044, %v3044
  %v3301 = vpack.c.b16 %v3045, %v3045
  %v3302 = vpack.c.b16 %v3046, %v3046
  %v3303 = vpack.c.b16 %v3047, %v3047
  %v3304 = vpack.c.b16 %v3048, %v3048
  %v3305 = vpack.c.b16 %v3049, %v3049
  %v3306 = vpack.c.b16 %v3050, %v3050
  %v3307 = vpack.c.b16 %v3051, %v3051
  %v3308 = vpack.c.b16 %v3052, %v3052
  %v3309 = vpack.c.b16 %v3053, %v3053
  %v3310 = vpack.c.b16 %v3054, %v3054
  %v3311 = vpack.c.b16 %v3055, %v3055
  %v3312 = vpack.c.b16 %v3056, %v3056
  %v3313 = vpack.c.b16 %v3057, %v3057
  %v3314 = vpack.c.b16 %v3058, %v3058
  %v3315 = vpack.c.b16 %v3059, %v3059
  %v3316 = vpack.c.b16 %v3060, %v3060
  %v3317 = vpack.c.b16 %v3061, %v3061
  %v3318 = vpack.c.b16 %v3062, %v3062
  %v3319 = vpack.c.b16 %v3063, %v3063
  %v3320 = vpack.c.b16 %v3064, %v3064
  %v3321 = vpack.c.b16 %v3065, %v3065
  %v3322 = vpack.c.b16 %v3066, %v3066
  %v3323 = vpack.c.b16 %v3067, %v3067
  %v3324 = vpack.c.b16 %v3068, %v3068
  %v3325 = vpack.c.b16 %v3069, %v3069
  %v3326 = vpack.c.b16 %v3070, %v3070
  %v3327 = vpack.c.b16 %v3071, %v3071
  %v3328 = vpack.c.b16 %v3072, %v3072
  %v3329 = vpack.c.b16 %v3073, %v3073
  %v3330 = vpack.c.b16 %v3074, %v3074
  %v3331 = vpack.c.b16 %v3075, %v3075
  %v3332 = vpack.c.b16 %v3076, %v3076
  %v3333 = vpack.c.b16 %v3077, %v3077
  %v3334 = vpack.c.b16 %v3078, %v3078
  %v3335 = vpack.c.b16 %v3079, %v3079
  %v3336 = vpack.c.b16 %v3080, %v3080
  %v3337 = vpack.c.b16 %v3081, %v3081
  %v3338 = vpack.c.b16 %v3082, %v3082
  %v3339 = vpack.c.b16 %v3083, %v3083
  %v3340 = vpack.c.b16 %v3084, %v3084
  %v3341 = vpack.c.b16 %v3085, %v3085
  %v3342 = vpack.c.b16 %v3086, %v3086
  %v3343 = vpack.c.b16 %v3087, %v3087
  %v3344 = vpack.c.b16 %v3088, %v3088
  %v3345 = vpack.c.b16 %v3089, %v3089
  %v3346 = vpack.c.b16 %v3090, %v3090
  %v3347 = vpack.c.b16 %v3091, %v3091
  %v3348 = vpack.c.b16 %v3092, %v3092
  %v3349 = vpack.c.b16 %v3093, %v3093
  %v3350 = vpack.c.b16 %v3094, %v3094
  %v3351 = vpack.c.b16 %v3095, %v3095
  %v3352 = vpack.c.b16 %v3096, %v3096
  %v3353 = vpack.c.b16 %v3097, %v3097
  %v3354 = vpack.c.b16 %v3098, %v3098
  %v3355 = vpack.c.b16 %v3099, %v3099
  %v3356 = vpack.c.b16 %v3100, %v3100
  %v3357 = vpack.c.b16 %v3101, %v3101
  %v3358 = vpack.c.b16 %v3102, %v3102
  %v3359 = vpack.c.b16 %v3103, %v3103
  %v3360 = vpack.c.b16 %v3104, %v3104
  %v3361 = vpack.c.b16 %v3105, %v3105
  %v3362 = vpack.c.b16 %v3106, %v3106
  %v3363 = vpack.c.b16 %v3107, %v3107
  %v3364 = vpack.c.b16 %v3108, %v3108
  %v3365 = vpack.c.b16 %v3109, %v3109
  %v3366 = vpack.c.b16 %v3110, %v3110
  %v3367 = vpack.c.b16 %v3111, %v3111
  %v3368 = vpack.c.b16 %v3112, %v3112
  %v3369 = vpack.c.b16 %v3113, %v3113
  %v3370 = vpack.c.b16 %v3114, %v3114
  %v3371 = vpack.c.b16 %v3115, %v3115
  %v3372 = vpack.c.b16 %v3116, %v3116
  %v3373 = vpack.c.b16 %v3117, %v3117
  %v3374 = vpack.c.b16 %v3118, %v3118
  %v3375 = vpack.c.b16 %v3119, %v3119
  %v3376 = vpack.c.b16 %v3120, %v3120
  %v3377 = vpack.c.b16 %v3121, %v3121
  %v3378 = vpack.c.b16 %v3122, %v3122
  %v3379 = vpack.c.b16 %v3123, %v3123
  %v3380 = vpack.c.b16 %v3124, %v3124
  %v3381 = vpack.c.b16 %v3125, %v3125
  %v3382 = vpack.c.b16 %v3126, %v3126
  %v3383 = vpack.c.b16 %v3127, %v3127
  %v3384 = vpack.c.b16 %v3128, %v3128
  %v3385 = vpack.c.b16 %v3129, %v3129
  %v3386 = vpack.c.b16 %v3130, %v3130
  %v3387 = vpack.c.b16 %v3131, %v3131
  %v3388 = vpack.c.b16 %v3132, %v3132
  %v3389 = vpack.c.b16 %v3133, %v3133
  %v3390 = vpack.c.b16 %v3134, %v3134
  %v3391 = vpack.c.b16 %v3135, %v3135
  %v3392 = vpack.c.b16 %v3136, %v3136
  %v3393 = vpack.c.b16 %v3137, %v3137
  %v3394 = vpack.c.b16 %v3138, %v3138
  %v3395 = vpack.c.b16 %v3139, %v3139
  %v3396 = vpack.c.b16 %v3140, %v3140
  %v3397 = vpack.c.b16 %v3141, %v3141
  %v3398 = vpack.c.b16 %v3142, %v3142
  %v3399 = vpack.c.b16 %v3143, %v3143
  %v3400 = vpack.c.b16 %v3144, %v3144
  %v3401 = vpack.c.b16 %v3145, %v3145
  %v3402 = vpack.c.b16 %v3146, %v3146
  %v3403 = vpack.c.b16 %v3147, %v3147
  %v3404 = vpack.c.b16 %v3148, %v3148
  %v3405 = vpack.c.b16 %v3149, %v3149
  %v3406 = vpack.c.b16 %v3150, %v3150
  %v3407 = vpack.c.b16 %v3151, %v3151
  %vm3664 = vcmask 257024
  %3665 = vst.msk [vmem:[%s3] sm:$0xf] %vm3664, %v3152
  %3666 = vst.msk [vmem:[%s3 + $0x4] sm:$0xf] %vm3664, %v3153
  %3667 = vst.msk [vmem:[%s3 + $0x8] sm:$0xf] %vm3664, %v3154
  %3668 = vst.msk [vmem:[%s3 + $0xc] sm:$0xf] %vm3664, %v3155
  %3669 = vst.msk [vmem:[%s3 + $0x10] sm:$0xf] %vm3664, %v3156
  %3670 = vst.msk [vmem:[%s3 + $0x14] sm:$0xf] %vm3664, %v3157
  %3671 = vst.msk [vmem:[%s3 + $0x18] sm:$0xf] %vm3664, %v3158
  %3672 = vst.msk [vmem:[%s3 + $0x1c] sm:$0xf] %vm3664, %v3159
  %3673 = vst.msk [vmem:[%s3 + $0x20] sm:$0xf] %vm3664, %v3160
  %3674 = vst.msk [vmem:[%s3 + $0x24] sm:$0xf] %vm3664, %v3161
  %3675 = vst.msk [vmem:[%s3 + $0x28] sm:$0xf] %vm3664, %v3162
  %3676 = vst.msk [vmem:[%s3 + $0x2c] sm:$0xf] %vm3664, %v3163
  %3677 = vst.msk [vmem:[%s3 + $0x30] sm:$0xf] %vm3664, %v3164
  %3678 = vst.msk [vmem:[%s3 + $0x34] sm:$0xf] %vm3664, %v3165
  %3679 = vst.msk [vmem:[%s3 + $0x38] sm:$0xf] %vm3664, %v3166
  %3680 = vst.msk [vmem:[%s3 + $0x3c] sm:$0xf] %vm3664, %v3167
  %3681 = vst.msk [vmem:[%s3 + $0x40] sm:$0xf] %vm3664, %v3168
  %3682 = vst.msk [vmem:[%s3 + $0x44] sm:$0xf] %vm3664, %v3169
  %3683 = vst.msk [vmem:[%s3 + $0x48] sm:$0xf] %vm3664, %v3170
  %3684 = vst.msk [vmem:[%s3 + $0x4c] sm:$0xf] %vm3664, %v3171
  %3685 = vst.msk [vmem:[%s3 + $0x50] sm:$0xf] %vm3664, %v3172
  %3686 = vst.msk [vmem:[%s3 + $0x54] sm:$0xf] %vm3664, %v3173
  %3687 = vst.msk [vmem:[%s3 + $0x58] sm:$0xf] %vm3664, %v3174
  %3688 = vst.msk [vmem:[%s3 + $0x5c] sm:$0xf] %vm3664, %v3175
  %3689 = vst.msk [vmem:[%s3 + $0x60] sm:$0xf] %vm3664, %v3176
  %3690 = vst.msk [vmem:[%s3 + $0x64] sm:$0xf] %vm3664, %v3177
  %3691 = vst.msk [vmem:[%s3 + $0x68] sm:$0xf] %vm3664, %v3178
  %3692 = vst.msk [vmem:[%s3 + $0x6c] sm:$0xf] %vm3664, %v3179
  %3693 = vst.msk [vmem:[%s3 + $0x70] sm:$0xf] %vm3664, %v3180
  %3694 = vst.msk [vmem:[%s3 + $0x74] sm:$0xf] %vm3664, %v3181
  %3695 = vst.msk [vmem:[%s3 + $0x78] sm:$0xf] %vm3664, %v3182
  %3696 = vst.msk [vmem:[%s3 + $0x7c] sm:$0xf] %vm3664, %v3183
  %3697 = vst.msk [vmem:[%s3 + $0x80] sm:$0xf] %vm3664, %v3184
  %3698 = vst.msk [vmem:[%s3 + $0x84] sm:$0xf] %vm3664, %v3185
  %3699 = vst.msk [vmem:[%s3 + $0x88] sm:$0xf] %vm3664, %v3186
  %3700 = vst.msk [vmem:[%s3 + $0x8c] sm:$0xf] %vm3664, %v3187
  %3701 = vst.msk [vmem:[%s3 + $0x90] sm:$0xf] %vm3664, %v3188
  %3702 = vst.msk [vmem:[%s3 + $0x94] sm:$0xf] %vm3664, %v3189
  %3703 = vst.msk [vmem:[%s3 + $0x98] sm:$0xf] %vm3664, %v3190
  %3704 = vst.msk [vmem:[%s3 + $0x9c] sm:$0xf] %vm3664, %v3191
  %3705 = vst.msk [vmem:[%s3 + $0xa0] sm:$0xf] %vm3664, %v3192
  %3706 = vst.msk [vmem:[%s3 + $0xa4] sm:$0xf] %vm3664, %v3193
  %3707 = vst.msk [vmem:[%s3 + $0xa8] sm:$0xf] %vm3664, %v3194
  %3708 = vst.msk [vmem:[%s3 + $0xac] sm:$0xf] %vm3664, %v3195
  %3709 = vst.msk [vmem:[%s3 + $0xb0] sm:$0xf] %vm3664, %v3196
  %3710 = vst.msk [vmem:[%s3 + $0xb4] sm:$0xf] %vm3664, %v3197
  %3711 = vst.msk [vmem:[%s3 + $0xb8] sm:$0xf] %vm3664, %v3198
  %3712 = vst.msk [vmem:[%s3 + $0xbc] sm:$0xf] %vm3664, %v3199
  %3713 = vst.msk [vmem:[%s3 + $0xc0] sm:$0xf] %vm3664, %v3200
  %3714 = vst.msk [vmem:[%s3 + $0xc4] sm:$0xf] %vm3664, %v3201
  %3715 = vst.msk [vmem:[%s3 + $0xc8] sm:$0xf] %vm3664, %v3202
  %3716 = vst.msk [vmem:[%s3 + $0xcc] sm:$0xf] %vm3664, %v3203
  %3717 = vst.msk [vmem:[%s3 + $0xd0] sm:$0xf] %vm3664, %v3204
  %3718 = vst.msk [vmem:[%s3 + $0xd4] sm:$0xf] %vm3664, %v3205
  %3719 = vst.msk [vmem:[%s3 + $0xd8] sm:$0xf] %vm3664, %v3206
  %3720 = vst.msk [vmem:[%s3 + $0xdc] sm:$0xf] %vm3664, %v3207
  %3721 = vst.msk [vmem:[%s3 + $0xe0] sm:$0xf] %vm3664, %v3208
  %3722 = vst.msk [vmem:[%s3 + $0xe4] sm:$0xf] %vm3664, %v3209
  %3723 = vst.msk [vmem:[%s3 + $0xe8] sm:$0xf] %vm3664, %v3210
  %3724 = vst.msk [vmem:[%s3 + $0xec] sm:$0xf] %vm3664, %v3211
  %3725 = vst.msk [vmem:[%s3 + $0xf0] sm:$0xf] %vm3664, %v3212
  %3726 = vst.msk [vmem:[%s3 + $0xf4] sm:$0xf] %vm3664, %v3213
  %3727 = vst.msk [vmem:[%s3 + $0xf8] sm:$0xf] %vm3664, %v3214
  %3728 = vst.msk [vmem:[%s3 + $0xfc] sm:$0xf] %vm3664, %v3215
  %3729 = vst.msk [vmem:[%s3 + $0x100] sm:$0xf] %vm3664, %v3216
  %3730 = vst.msk [vmem:[%s3 + $0x104] sm:$0xf] %vm3664, %v3217
  %3731 = vst.msk [vmem:[%s3 + $0x108] sm:$0xf] %vm3664, %v3218
  %3732 = vst.msk [vmem:[%s3 + $0x10c] sm:$0xf] %vm3664, %v3219
  %3733 = vst.msk [vmem:[%s3 + $0x110] sm:$0xf] %vm3664, %v3220
  %3734 = vst.msk [vmem:[%s3 + $0x114] sm:$0xf] %vm3664, %v3221
  %3735 = vst.msk [vmem:[%s3 + $0x118] sm:$0xf] %vm3664, %v3222
  %3736 = vst.msk [vmem:[%s3 + $0x11c] sm:$0xf] %vm3664, %v3223
  %3737 = vst.msk [vmem:[%s3 + $0x120] sm:$0xf] %vm3664, %v3224
  %3738 = vst.msk [vmem:[%s3 + $0x124] sm:$0xf] %vm3664, %v3225
  %3739 = vst.msk [vmem:[%s3 + $0x128] sm:$0xf] %vm3664, %v3226
  %3740 = vst.msk [vmem:[%s3 + $0x12c] sm:$0xf] %vm3664, %v3227
  %3741 = vst.msk [vmem:[%s3 + $0x130] sm:$0xf] %vm3664, %v3228
  %3742 = vst.msk [vmem:[%s3 + $0x134] sm:$0xf] %vm3664, %v3229
  %3743 = vst.msk [vmem:[%s3 + $0x138] sm:$0xf] %vm3664, %v3230
  %3744 = vst.msk [vmem:[%s3 + $0x13c] sm:$0xf] %vm3664, %v3231
  %3745 = vst.msk [vmem:[%s3 + $0x140] sm:$0xf] %vm3664, %v3232
  %3746 = vst.msk [vmem:[%s3 + $0x144] sm:$0xf] %vm3664, %v3233
  %3747 = vst.msk [vmem:[%s3 + $0x148] sm:$0xf] %vm3664, %v3234
  %3748 = vst.msk [vmem:[%s3 + $0x14c] sm:$0xf] %vm3664, %v3235
  %3749 = vst.msk [vmem:[%s3 + $0x150] sm:$0xf] %vm3664, %v3236
  %3750 = vst.msk [vmem:[%s3 + $0x154] sm:$0xf] %vm3664, %v3237
  %3751 = vst.msk [vmem:[%s3 + $0x158] sm:$0xf] %vm3664, %v3238
  %3752 = vst.msk [vmem:[%s3 + $0x15c] sm:$0xf] %vm3664, %v3239
  %3753 = vst.msk [vmem:[%s3 + $0x160] sm:$0xf] %vm3664, %v3240
  %3754 = vst.msk [vmem:[%s3 + $0x164] sm:$0xf] %vm3664, %v3241
  %3755 = vst.msk [vmem:[%s3 + $0x168] sm:$0xf] %vm3664, %v3242
  %3756 = vst.msk [vmem:[%s3 + $0x16c] sm:$0xf] %vm3664, %v3243
  %3757 = vst.msk [vmem:[%s3 + $0x170] sm:$0xf] %vm3664, %v3244
  %3758 = vst.msk [vmem:[%s3 + $0x174] sm:$0xf] %vm3664, %v3245
  %3759 = vst.msk [vmem:[%s3 + $0x178] sm:$0xf] %vm3664, %v3246
  %3760 = vst.msk [vmem:[%s3 + $0x17c] sm:$0xf] %vm3664, %v3247
  %3761 = vst.msk [vmem:[%s3 + $0x180] sm:$0xf] %vm3664, %v3248
  %3762 = vst.msk [vmem:[%s3 + $0x184] sm:$0xf] %vm3664, %v3249
  %3763 = vst.msk [vmem:[%s3 + $0x188] sm:$0xf] %vm3664, %v3250
  %3764 = vst.msk [vmem:[%s3 + $0x18c] sm:$0xf] %vm3664, %v3251
  %3765 = vst.msk [vmem:[%s3 + $0x190] sm:$0xf] %vm3664, %v3252
  %3766 = vst.msk [vmem:[%s3 + $0x194] sm:$0xf] %vm3664, %v3253
  %3767 = vst.msk [vmem:[%s3 + $0x198] sm:$0xf] %vm3664, %v3254
  %3768 = vst.msk [vmem:[%s3 + $0x19c] sm:$0xf] %vm3664, %v3255
  %3769 = vst.msk [vmem:[%s3 + $0x1a0] sm:$0xf] %vm3664, %v3256
  %3770 = vst.msk [vmem:[%s3 + $0x1a4] sm:$0xf] %vm3664, %v3257
  %3771 = vst.msk [vmem:[%s3 + $0x1a8] sm:$0xf] %vm3664, %v3258
  %3772 = vst.msk [vmem:[%s3 + $0x1ac] sm:$0xf] %vm3664, %v3259
  %3773 = vst.msk [vmem:[%s3 + $0x1b0] sm:$0xf] %vm3664, %v3260
  %3774 = vst.msk [vmem:[%s3 + $0x1b4] sm:$0xf] %vm3664, %v3261
  %3775 = vst.msk [vmem:[%s3 + $0x1b8] sm:$0xf] %vm3664, %v3262
  %3776 = vst.msk [vmem:[%s3 + $0x1bc] sm:$0xf] %vm3664, %v3263
  %3777 = vst.msk [vmem:[%s3 + $0x1c0] sm:$0xf] %vm3664, %v3264
  %3778 = vst.msk [vmem:[%s3 + $0x1c4] sm:$0xf] %vm3664, %v3265
  %3779 = vst.msk [vmem:[%s3 + $0x1c8] sm:$0xf] %vm3664, %v3266
  %3780 = vst.msk [vmem:[%s3 + $0x1cc] sm:$0xf] %vm3664, %v3267
  %3781 = vst.msk [vmem:[%s3 + $0x1d0] sm:$0xf] %vm3664, %v3268
  %3782 = vst.msk [vmem:[%s3 + $0x1d4] sm:$0xf] %vm3664, %v3269
  %3783 = vst.msk [vmem:[%s3 + $0x1d8] sm:$0xf] %vm3664, %v3270
  %3784 = vst.msk [vmem:[%s3 + $0x1dc] sm:$0xf] %vm3664, %v3271
  %3785 = vst.msk [vmem:[%s3 + $0x1e0] sm:$0xf] %vm3664, %v3272
  %3786 = vst.msk [vmem:[%s3 + $0x1e4] sm:$0xf] %vm3664, %v3273
  %3787 = vst.msk [vmem:[%s3 + $0x1e8] sm:$0xf] %vm3664, %v3274
  %3788 = vst.msk [vmem:[%s3 + $0x1ec] sm:$0xf] %vm3664, %v3275
  %3789 = vst.msk [vmem:[%s3 + $0x1f0] sm:$0xf] %vm3664, %v3276
  %3790 = vst.msk [vmem:[%s3 + $0x1f4] sm:$0xf] %vm3664, %v3277
  %3791 = vst.msk [vmem:[%s3 + $0x1f8] sm:$0xf] %vm3664, %v3278
  %3792 = vst.msk [vmem:[%s3 + $0x1fc] sm:$0xf] %vm3664, %v3279
  %3793 = vst.msk [vmem:[%s3 + $0x200] sm:$0xf] %vm3664, %v3280
  %3794 = vst.msk [vmem:[%s3 + $0x204] sm:$0xf] %vm3664, %v3281
  %3795 = vst.msk [vmem:[%s3 + $0x208] sm:$0xf] %vm3664, %v3282
  %3796 = vst.msk [vmem:[%s3 + $0x20c] sm:$0xf] %vm3664, %v3283
  %3797 = vst.msk [vmem:[%s3 + $0x210] sm:$0xf] %vm3664, %v3284
  %3798 = vst.msk [vmem:[%s3 + $0x214] sm:$0xf] %vm3664, %v3285
  %3799 = vst.msk [vmem:[%s3 + $0x218] sm:$0xf] %vm3664, %v3286
  %3800 = vst.msk [vmem:[%s3 + $0x21c] sm:$0xf] %vm3664, %v3287
  %3801 = vst.msk [vmem:[%s3 + $0x220] sm:$0xf] %vm3664, %v3288
  %3802 = vst.msk [vmem:[%s3 + $0x224] sm:$0xf] %vm3664, %v3289
  %3803 = vst.msk [vmem:[%s3 + $0x228] sm:$0xf] %vm3664, %v3290
  %3804 = vst.msk [vmem:[%s3 + $0x22c] sm:$0xf] %vm3664, %v3291
  %3805 = vst.msk [vmem:[%s3 + $0x230] sm:$0xf] %vm3664, %v3292
  %3806 = vst.msk [vmem:[%s3 + $0x234] sm:$0xf] %vm3664, %v3293
  %3807 = vst.msk [vmem:[%s3 + $0x238] sm:$0xf] %vm3664, %v3294
  %3808 = vst.msk [vmem:[%s3 + $0x23c] sm:$0xf] %vm3664, %v3295
  %3809 = vst.msk [vmem:[%s3 + $0x240] sm:$0xf] %vm3664, %v3296
  %3810 = vst.msk [vmem:[%s3 + $0x244] sm:$0xf] %vm3664, %v3297
  %3811 = vst.msk [vmem:[%s3 + $0x248] sm:$0xf] %vm3664, %v3298
  %3812 = vst.msk [vmem:[%s3 + $0x24c] sm:$0xf] %vm3664, %v3299
  %3813 = vst.msk [vmem:[%s3 + $0x250] sm:$0xf] %vm3664, %v3300
  %3814 = vst.msk [vmem:[%s3 + $0x254] sm:$0xf] %vm3664, %v3301
  %3815 = vst.msk [vmem:[%s3 + $0x258] sm:$0xf] %vm3664, %v3302
  %3816 = vst.msk [vmem:[%s3 + $0x25c] sm:$0xf] %vm3664, %v3303
  %3817 = vst.msk [vmem:[%s3 + $0x260] sm:$0xf] %vm3664, %v3304
  %3818 = vst.msk [vmem:[%s3 + $0x264] sm:$0xf] %vm3664, %v3305
  %3819 = vst.msk [vmem:[%s3 + $0x268] sm:$0xf] %vm3664, %v3306
  %3820 = vst.msk [vmem:[%s3 + $0x26c] sm:$0xf] %vm3664, %v3307
  %3821 = vst.msk [vmem:[%s3 + $0x270] sm:$0xf] %vm3664, %v3308
  %3822 = vst.msk [vmem:[%s3 + $0x274] sm:$0xf] %vm3664, %v3309
  %3823 = vst.msk [vmem:[%s3 + $0x278] sm:$0xf] %vm3664, %v3310
  %3824 = vst.msk [vmem:[%s3 + $0x27c] sm:$0xf] %vm3664, %v3311
  %3825 = vst.msk [vmem:[%s3 + $0x280] sm:$0xf] %vm3664, %v3312
  %3826 = vst.msk [vmem:[%s3 + $0x284] sm:$0xf] %vm3664, %v3313
  %3827 = vst.msk [vmem:[%s3 + $0x288] sm:$0xf] %vm3664, %v3314
  %3828 = vst.msk [vmem:[%s3 + $0x28c] sm:$0xf] %vm3664, %v3315
  %3829 = vst.msk [vmem:[%s3 + $0x290] sm:$0xf] %vm3664, %v3316
  %3830 = vst.msk [vmem:[%s3 + $0x294] sm:$0xf] %vm3664, %v3317
  %3831 = vst.msk [vmem:[%s3 + $0x298] sm:$0xf] %vm3664, %v3318
  %3832 = vst.msk [vmem:[%s3 + $0x29c] sm:$0xf] %vm3664, %v3319
  %3833 = vst.msk [vmem:[%s3 + $0x2a0] sm:$0xf] %vm3664, %v3320
  %3834 = vst.msk [vmem:[%s3 + $0x2a4] sm:$0xf] %vm3664, %v3321
  %3835 = vst.msk [vmem:[%s3 + $0x2a8] sm:$0xf] %vm3664, %v3322
  %3836 = vst.msk [vmem:[%s3 + $0x2ac] sm:$0xf] %vm3664, %v3323
  %3837 = vst.msk [vmem:[%s3 + $0x2b0] sm:$0xf] %vm3664, %v3324
  %3838 = vst.msk [vmem:[%s3 + $0x2b4] sm:$0xf] %vm3664, %v3325
  %3839 = vst.msk [vmem:[%s3 + $0x2b8] sm:$0xf] %vm3664, %v3326
  %3840 = vst.msk [vmem:[%s3 + $0x2bc] sm:$0xf] %vm3664, %v3327
  %3841 = vst.msk [vmem:[%s3 + $0x2c0] sm:$0xf] %vm3664, %v3328
  %3842 = vst.msk [vmem:[%s3 + $0x2c4] sm:$0xf] %vm3664, %v3329
  %3843 = vst.msk [vmem:[%s3 + $0x2c8] sm:$0xf] %vm3664, %v3330
  %3844 = vst.msk [vmem:[%s3 + $0x2cc] sm:$0xf] %vm3664, %v3331
  %3845 = vst.msk [vmem:[%s3 + $0x2d0] sm:$0xf] %vm3664, %v3332
  %3846 = vst.msk [vmem:[%s3 + $0x2d4] sm:$0xf] %vm3664, %v3333
  %3847 = vst.msk [vmem:[%s3 + $0x2d8] sm:$0xf] %vm3664, %v3334
  %3848 = vst.msk [vmem:[%s3 + $0x2dc] sm:$0xf] %vm3664, %v3335
  %3849 = vst.msk [vmem:[%s3 + $0x2e0] sm:$0xf] %vm3664, %v3336
  %3850 = vst.msk [vmem:[%s3 + $0x2e4] sm:$0xf] %vm3664, %v3337
  %3851 = vst.msk [vmem:[%s3 + $0x2e8] sm:$0xf] %vm3664, %v3338
  %3852 = vst.msk [vmem:[%s3 + $0x2ec] sm:$0xf] %vm3664, %v3339
  %3853 = vst.msk [vmem:[%s3 + $0x2f0] sm:$0xf] %vm3664, %v3340
  %3854 = vst.msk [vmem:[%s3 + $0x2f4] sm:$0xf] %vm3664, %v3341
  %3855 = vst.msk [vmem:[%s3 + $0x2f8] sm:$0xf] %vm3664, %v3342
  %3856 = vst.msk [vmem:[%s3 + $0x2fc] sm:$0xf] %vm3664, %v3343
  %3857 = vst.msk [vmem:[%s3 + $0x300] sm:$0xf] %vm3664, %v3344
  %3858 = vst.msk [vmem:[%s3 + $0x304] sm:$0xf] %vm3664, %v3345
  %3859 = vst.msk [vmem:[%s3 + $0x308] sm:$0xf] %vm3664, %v3346
  %3860 = vst.msk [vmem:[%s3 + $0x30c] sm:$0xf] %vm3664, %v3347
  %3861 = vst.msk [vmem:[%s3 + $0x310] sm:$0xf] %vm3664, %v3348
  %3862 = vst.msk [vmem:[%s3 + $0x314] sm:$0xf] %vm3664, %v3349
  %3863 = vst.msk [vmem:[%s3 + $0x318] sm:$0xf] %vm3664, %v3350
  %3864 = vst.msk [vmem:[%s3 + $0x31c] sm:$0xf] %vm3664, %v3351
  %3865 = vst.msk [vmem:[%s3 + $0x320] sm:$0xf] %vm3664, %v3352
  %3866 = vst.msk [vmem:[%s3 + $0x324] sm:$0xf] %vm3664, %v3353
  %3867 = vst.msk [vmem:[%s3 + $0x328] sm:$0xf] %vm3664, %v3354
  %3868 = vst.msk [vmem:[%s3 + $0x32c] sm:$0xf] %vm3664, %v3355
  %3869 = vst.msk [vmem:[%s3 + $0x330] sm:$0xf] %vm3664, %v3356
  %3870 = vst.msk [vmem:[%s3 + $0x334] sm:$0xf] %vm3664, %v3357
  %3871 = vst.msk [vmem:[%s3 + $0x338] sm:$0xf] %vm3664, %v3358
  %3872 = vst.msk [vmem:[%s3 + $0x33c] sm:$0xf] %vm3664, %v3359
  %3873 = vst.msk [vmem:[%s3 + $0x340] sm:$0xf] %vm3664, %v3360
  %3874 = vst.msk [vmem:[%s3 + $0x344] sm:$0xf] %vm3664, %v3361
  %3875 = vst.msk [vmem:[%s3 + $0x348] sm:$0xf] %vm3664, %v3362
  %3876 = vst.msk [vmem:[%s3 + $0x34c] sm:$0xf] %vm3664, %v3363
  %3877 = vst.msk [vmem:[%s3 + $0x350] sm:$0xf] %vm3664, %v3364
  %3878 = vst.msk [vmem:[%s3 + $0x354] sm:$0xf] %vm3664, %v3365
  %3879 = vst.msk [vmem:[%s3 + $0x358] sm:$0xf] %vm3664, %v3366
  %3880 = vst.msk [vmem:[%s3 + $0x35c] sm:$0xf] %vm3664, %v3367
  %3881 = vst.msk [vmem:[%s3 + $0x360] sm:$0xf] %vm3664, %v3368
  %3882 = vst.msk [vmem:[%s3 + $0x364] sm:$0xf] %vm3664, %v3369
  %3883 = vst.msk [vmem:[%s3 + $0x368] sm:$0xf] %vm3664, %v3370
  %3884 = vst.msk [vmem:[%s3 + $0x36c] sm:$0xf] %vm3664, %v3371
  %3885 = vst.msk [vmem:[%s3 + $0x370] sm:$0xf] %vm3664, %v3372
  %3886 = vst.msk [vmem:[%s3 + $0x374] sm:$0xf] %vm3664, %v3373
  %3887 = vst.msk [vmem:[%s3 + $0x378] sm:$0xf] %vm3664, %v3374
  %3888 = vst.msk [vmem:[%s3 + $0x37c] sm:$0xf] %vm3664, %v3375
  %3889 = vst.msk [vmem:[%s3 + $0x380] sm:$0xf] %vm3664, %v3376
  %3890 = vst.msk [vmem:[%s3 + $0x384] sm:$0xf] %vm3664, %v3377
  %3891 = vst.msk [vmem:[%s3 + $0x388] sm:$0xf] %vm3664, %v3378
  %3892 = vst.msk [vmem:[%s3 + $0x38c] sm:$0xf] %vm3664, %v3379
  %3893 = vst.msk [vmem:[%s3 + $0x390] sm:$0xf] %vm3664, %v3380
  %3894 = vst.msk [vmem:[%s3 + $0x394] sm:$0xf] %vm3664, %v3381
  %3895 = vst.msk [vmem:[%s3 + $0x398] sm:$0xf] %vm3664, %v3382
  %3896 = vst.msk [vmem:[%s3 + $0x39c] sm:$0xf] %vm3664, %v3383
  %3897 = vst.msk [vmem:[%s3 + $0x3a0] sm:$0xf] %vm3664, %v3384
  %3898 = vst.msk [vmem:[%s3 + $0x3a4] sm:$0xf] %vm3664, %v3385
  %3899 = vst.msk [vmem:[%s3 + $0x3a8] sm:$0xf] %vm3664, %v3386
  %3900 = vst.msk [vmem:[%s3 + $0x3ac] sm:$0xf] %vm3664, %v3387
  %3901 = vst.msk [vmem:[%s3 + $0x3b0] sm:$0xf] %vm3664, %v3388
  %3902 = vst.msk [vmem:[%s3 + $0x3b4] sm:$0xf] %vm3664, %v3389
  %3903 = vst.msk [vmem:[%s3 + $0x3b8] sm:$0xf] %vm3664, %v3390
  %3904 = vst.msk [vmem:[%s3 + $0x3bc] sm:$0xf] %vm3664, %v3391
  %3905 = vst.msk [vmem:[%s3 + $0x3c0] sm:$0xf] %vm3664, %v3392
  %3906 = vst.msk [vmem:[%s3 + $0x3c4] sm:$0xf] %vm3664, %v3393
  %3907 = vst.msk [vmem:[%s3 + $0x3c8] sm:$0xf] %vm3664, %v3394
  %3908 = vst.msk [vmem:[%s3 + $0x3cc] sm:$0xf] %vm3664, %v3395
  %3909 = vst.msk [vmem:[%s3 + $0x3d0] sm:$0xf] %vm3664, %v3396
  %3910 = vst.msk [vmem:[%s3 + $0x3d4] sm:$0xf] %vm3664, %v3397
  %3911 = vst.msk [vmem:[%s3 + $0x3d8] sm:$0xf] %vm3664, %v3398
  %3912 = vst.msk [vmem:[%s3 + $0x3dc] sm:$0xf] %vm3664, %v3399
  %3913 = vst.msk [vmem:[%s3 + $0x3e0] sm:$0xf] %vm3664, %v3400
  %3914 = vst.msk [vmem:[%s3 + $0x3e4] sm:$0xf] %vm3664, %v3401
  %3915 = vst.msk [vmem:[%s3 + $0x3e8] sm:$0xf] %vm3664, %v3402
  %3916 = vst.msk [vmem:[%s3 + $0x3ec] sm:$0xf] %vm3664, %v3403
  %3917 = vst.msk [vmem:[%s3 + $0x3f0] sm:$0xf] %vm3664, %v3404
  %3918 = vst.msk [vmem:[%s3 + $0x3f4] sm:$0xf] %vm3664, %v3405
  %3919 = vst.msk [vmem:[%s3 + $0x3f8] sm:$0xf] %vm3664, %v3406
  %3920 = vst.msk [vmem:[%s3 + $0x3fc] sm:$0xf] %vm3664, %v3407
  // Predicated region
  $region14: #{encoder_forward.5} parent=0 // pred_check
    _
  $region15: #{encoder_forward.5} parent=0 // pred_check_branch
    %3922 = sbr.rel (0) target = $region17
  $region16: #{encoder_forward.5} parent=0 // pred_region
    _
  $region17: #{encoder_forward.5} parent=0 // pred_fallthru
    _
  // Predicated region
  $region18: #{encoder_forward.5} parent=0 // pred_check
    _
  $region19: #{encoder_forward.5} parent=0 // pred_check_branch
    %3924 = sbr.rel (0) target = $region21
  $region20: #{encoder_forward.5} parent=0 // pred_region
    _
  $region21: #{encoder_forward.5} parent=0 // pred_fallthru
    _

// kernel: encoder_forward.6
$region0: #{encoder_forward.6}
  #allocation0 [shape = 'u32[]', space=smem, size = 0x4, offset = 0x4, fixed_abs, tag = 'smem constant byte address 0x4 - core index']
  #allocation1 [shape = 'u32[144,128]{1,0:T(1,128)}', space=vmem, size = 0x12000, scoped, tag = 'internal scratch']
  %s0 = inlined_call_operand.vmem [shape: bf16[512,512], index: 0, kind: input, shape index: {}]
  %s1 = inlined_call_operand.vmem [shape: bf16[512,128], index: 1, kind: input, shape index: {}]
  %s2 = inlined_call_operand.vmem [shape: f32[1,128], index: 2, kind: input, shape index: {}]
  %s3 = inlined_call_operand.vmem [shape: bf16[512,128], index: 3, kind: output, shape index: {}]
  %s4 = sld [smem:[#allocation0]]
  $region22: #{encoder_forward.6} parent=0
    _
  %s6 = ssub.s32 1, %s4
  %s7 = scalar_select 0, %s6, %s4
  // Predicated region
  $region2: #{encoder_forward.6} parent=0 // pred_check
    _
  $region3: #{encoder_forward.6} parent=0 // pred_check_branch
    %9 = sbr.rel (0) target = $region5
  $region4: #{encoder_forward.6} parent=0 // pred_region
    _
  $region5: #{encoder_forward.6} parent=0 // pred_fallthru
    _
  // Predicated region
  $region6: #{encoder_forward.6} parent=0 // pred_check
    _
  $region7: #{encoder_forward.6} parent=0 // pred_check_branch
    %11 = sbr.rel (0) target = $region9
  $region8: #{encoder_forward.6} parent=0 // pred_region
    _
  $region9: #{encoder_forward.6} parent=0 // pred_fallthru
    _
  // Predicated region
  $region10: #{encoder_forward.6} parent=0 // pred_check
    _
  $region11: #{encoder_forward.6} parent=0 // pred_check_branch
    %13 = sbr.rel (0) target = $region13
  $region12: #{encoder_forward.6} parent=0 // pred_region
    _
  $region13: #{encoder_forward.6} parent=0 // pred_fallthru
    _
  %v15 = vld [vmem:[%s0] sm:$0xff]
  %v16 = vld [vmem:[%s0 + $0x8] sm:$0xff]
  %v17 = vld [vmem:[%s0 + $0x10] sm:$0xff]
  %v18 = vld [vmem:[%s0 + $0x18] sm:$0xff]
  %v19 = vld [vmem:[%s0 + $0x20] sm:$0xff]
  %v20 = vld [vmem:[%s0 + $0x28] sm:$0xff]
  %v21 = vld [vmem:[%s0 + $0x30] sm:$0xff]
  %v22 = vld [vmem:[%s0 + $0x38] sm:$0xff]
  %v23 = vld [vmem:[%s0 + $0x40] sm:$0xff]
  %v24 = vld [vmem:[%s0 + $0x48] sm:$0xff]
  %v25 = vld [vmem:[%s0 + $0x50] sm:$0xff]
  %v26 = vld [vmem:[%s0 + $0x58] sm:$0xff]
  %v27 = vld [vmem:[%s0 + $0x60] sm:$0xff]
  %v28 = vld [vmem:[%s0 + $0x68] sm:$0xff]
  %v29 = vld [vmem:[%s0 + $0x70] sm:$0xff]
  %v30 = vld [vmem:[%s0 + $0x78] sm:$0xff]
  %v31 = vld [vmem:[%s0 + $0x80] sm:$0xff]
  %v32 = vld [vmem:[%s0 + $0x88] sm:$0xff]
  %v33 = vld [vmem:[%s0 + $0x90] sm:$0xff]
  %v34 = vld [vmem:[%s0 + $0x98] sm:$0xff]
  %v35 = vld [vmem:[%s0 + $0xa0] sm:$0xff]
  %v36 = vld [vmem:[%s0 + $0xa8] sm:$0xff]
  %v37 = vld [vmem:[%s0 + $0xb0] sm:$0xff]
  %v38 = vld [vmem:[%s0 + $0xb8] sm:$0xff]
  %v39 = vld [vmem:[%s0 + $0xc0] sm:$0xff]
  %v40 = vld [vmem:[%s0 + $0xc8] sm:$0xff]
  %v41 = vld [vmem:[%s0 + $0xd0] sm:$0xff]
  %v42 = vld [vmem:[%s0 + $0xd8] sm:$0xff]
  %v43 = vld [vmem:[%s0 + $0xe0] sm:$0xff]
  %v44 = vld [vmem:[%s0 + $0xe8] sm:$0xff]
  %v45 = vld [vmem:[%s0 + $0xf0] sm:$0xff]
  %v46 = vld [vmem:[%s0 + $0xf8] sm:$0xff]
  %v47 = vld [vmem:[%s0 + $0x100] sm:$0xff]
  %v48 = vld [vmem:[%s0 + $0x108] sm:$0xff]
  %v49 = vld [vmem:[%s0 + $0x110] sm:$0xff]
  %v50 = vld [vmem:[%s0 + $0x118] sm:$0xff]
  %v51 = vld [vmem:[%s0 + $0x120] sm:$0xff]
  %v52 = vld [vmem:[%s0 + $0x128] sm:$0xff]
  %v53 = vld [vmem:[%s0 + $0x130] sm:$0xff]
  %v54 = vld [vmem:[%s0 + $0x138] sm:$0xff]
  %v55 = vld [vmem:[%s0 + $0x140] sm:$0xff]
  %v56 = vld [vmem:[%s0 + $0x148] sm:$0xff]
  %v57 = vld [vmem:[%s0 + $0x150] sm:$0xff]
  %v58 = vld [vmem:[%s0 + $0x158] sm:$0xff]
  %v59 = vld [vmem:[%s0 + $0x160] sm:$0xff]
  %v60 = vld [vmem:[%s0 + $0x168] sm:$0xff]
  %v61 = vld [vmem:[%s0 + $0x170] sm:$0xff]
  %v62 = vld [vmem:[%s0 + $0x178] sm:$0xff]
  %v63 = vld [vmem:[%s0 + $0x180] sm:$0xff]
  %v64 = vld [vmem:[%s0 + $0x188] sm:$0xff]
  %v65 = vld [vmem:[%s0 + $0x190] sm:$0xff]
  %v66 = vld [vmem:[%s0 + $0x198] sm:$0xff]
  %v67 = vld [vmem:[%s0 + $0x1a0] sm:$0xff]
  %v68 = vld [vmem:[%s0 + $0x1a8] sm:$0xff]
  %v69 = vld [vmem:[%s0 + $0x1b0] sm:$0xff]
  %v70 = vld [vmem:[%s0 + $0x1b8] sm:$0xff]
  %v71 = vld [vmem:[%s0 + $0x1c0] sm:$0xff]
  %v72 = vld [vmem:[%s0 + $0x1c8] sm:$0xff]
  %v73 = vld [vmem:[%s0 + $0x1d0] sm:$0xff]
  %v74 = vld [vmem:[%s0 + $0x1d8] sm:$0xff]
  %v75 = vld [vmem:[%s0 + $0x1e0] sm:$0xff]
  %v76 = vld [vmem:[%s0 + $0x1e8] sm:$0xff]
  %v77 = vld [vmem:[%s0 + $0x1f0] sm:$0xff]
  %v78 = vld [vmem:[%s0 + $0x1f8] sm:$0xff]
  %v79 = vld [vmem:[%s0 + $0x200] sm:$0xff]
  %v80 = vld [vmem:[%s0 + $0x208] sm:$0xff]
  %v81 = vld [vmem:[%s0 + $0x210] sm:$0xff]
  %v82 = vld [vmem:[%s0 + $0x218] sm:$0xff]
  %v83 = vld [vmem:[%s0 + $0x220] sm:$0xff]
  %v84 = vld [vmem:[%s0 + $0x228] sm:$0xff]
  %v85 = vld [vmem:[%s0 + $0x230] sm:$0xff]
  %v86 = vld [vmem:[%s0 + $0x238] sm:$0xff]
  %v87 = vld [vmem:[%s0 + $0x240] sm:$0xff]
  %v88 = vld [vmem:[%s0 + $0x248] sm:$0xff]
  %v89 = vld [vmem:[%s0 + $0x250] sm:$0xff]
  %v90 = vld [vmem:[%s0 + $0x258] sm:$0xff]
  %v91 = vld [vmem:[%s0 + $0x260] sm:$0xff]
  %v92 = vld [vmem:[%s0 + $0x268] sm:$0xff]
  %v93 = vld [vmem:[%s0 + $0x270] sm:$0xff]
  %v94 = vld [vmem:[%s0 + $0x278] sm:$0xff]
  %v95 = vld [vmem:[%s0 + $0x280] sm:$0xff]
  %v96 = vld [vmem:[%s0 + $0x288] sm:$0xff]
  %v97 = vld [vmem:[%s0 + $0x290] sm:$0xff]
  %v98 = vld [vmem:[%s0 + $0x298] sm:$0xff]
  %v99 = vld [vmem:[%s0 + $0x2a0] sm:$0xff]
  %v100 = vld [vmem:[%s0 + $0x2a8] sm:$0xff]
  %v101 = vld [vmem:[%s0 + $0x2b0] sm:$0xff]
  %v102 = vld [vmem:[%s0 + $0x2b8] sm:$0xff]
  %v103 = vld [vmem:[%s0 + $0x2c0] sm:$0xff]
  %v104 = vld [vmem:[%s0 + $0x2c8] sm:$0xff]
  %v105 = vld [vmem:[%s0 + $0x2d0] sm:$0xff]
  %v106 = vld [vmem:[%s0 + $0x2d8] sm:$0xff]
  %v107 = vld [vmem:[%s0 + $0x2e0] sm:$0xff]
  %v108 = vld [vmem:[%s0 + $0x2e8] sm:$0xff]
  %v109 = vld [vmem:[%s0 + $0x2f0] sm:$0xff]
  %v110 = vld [vmem:[%s0 + $0x2f8] sm:$0xff]
  %v111 = vld [vmem:[%s0 + $0x300] sm:$0xff]
  %v112 = vld [vmem:[%s0 + $0x308] sm:$0xff]
  %v113 = vld [vmem:[%s0 + $0x310] sm:$0xff]
  %v114 = vld [vmem:[%s0 + $0x318] sm:$0xff]
  %v115 = vld [vmem:[%s0 + $0x320] sm:$0xff]
  %v116 = vld [vmem:[%s0 + $0x328] sm:$0xff]
  %v117 = vld [vmem:[%s0 + $0x330] sm:$0xff]
  %v118 = vld [vmem:[%s0 + $0x338] sm:$0xff]
  %v119 = vld [vmem:[%s0 + $0x340] sm:$0xff]
  %v120 = vld [vmem:[%s0 + $0x348] sm:$0xff]
  %v121 = vld [vmem:[%s0 + $0x350] sm:$0xff]
  %v122 = vld [vmem:[%s0 + $0x358] sm:$0xff]
  %v123 = vld [vmem:[%s0 + $0x360] sm:$0xff]
  %v124 = vld [vmem:[%s0 + $0x368] sm:$0xff]
  %v125 = vld [vmem:[%s0 + $0x370] sm:$0xff]
  %v126 = vld [vmem:[%s0 + $0x378] sm:$0xff]
  %v127 = vld [vmem:[%s0 + $0x380] sm:$0xff]
  %v128 = vld [vmem:[%s0 + $0x388] sm:$0xff]
  %v129 = vld [vmem:[%s0 + $0x390] sm:$0xff]
  %v130 = vld [vmem:[%s0 + $0x398] sm:$0xff]
  %v131 = vld [vmem:[%s0 + $0x3a0] sm:$0xff]
  %v132 = vld [vmem:[%s0 + $0x3a8] sm:$0xff]
  %v133 = vld [vmem:[%s0 + $0x3b0] sm:$0xff]
  %v134 = vld [vmem:[%s0 + $0x3b8] sm:$0xff]
  %v135 = vld [vmem:[%s0 + $0x3c0] sm:$0xff]
  %v136 = vld [vmem:[%s0 + $0x3c8] sm:$0xff]
  %v137 = vld [vmem:[%s0 + $0x3d0] sm:$0xff]
  %v138 = vld [vmem:[%s0 + $0x3d8] sm:$0xff]
  %v139 = vld [vmem:[%s0 + $0x3e0] sm:$0xff]
  %v140 = vld [vmem:[%s0 + $0x3e8] sm:$0xff]
  %v141 = vld [vmem:[%s0 + $0x3f0] sm:$0xff]
  %v142 = vld [vmem:[%s0 + $0x3f8] sm:$0xff]
  %v143 = vld [vmem:[%s1] sm:$0xf]
  %v144 = vld [vmem:[%s1 + $0x4] sm:$0xf]
  %v145 = vld [vmem:[%s1 + $0x8] sm:$0xf]
  %v146 = vld [vmem:[%s1 + $0xc] sm:$0xf]
  %v147 = vld [vmem:[%s1 + $0x10] sm:$0xf]
  %v148 = vld [vmem:[%s1 + $0x14] sm:$0xf]
  %v149 = vld [vmem:[%s1 + $0x18] sm:$0xf]
  %v150 = vld [vmem:[%s1 + $0x1c] sm:$0xf]
  %v151 = vld [vmem:[%s1 + $0x20] sm:$0xf]
  %v152 = vld [vmem:[%s1 + $0x24] sm:$0xf]
  %v153 = vld [vmem:[%s1 + $0x28] sm:$0xf]
  %v154 = vld [vmem:[%s1 + $0x2c] sm:$0xf]
  %v155 = vld [vmem:[%s1 + $0x30] sm:$0xf]
  %v156 = vld [vmem:[%s1 + $0x34] sm:$0xf]
  %v157 = vld [vmem:[%s1 + $0x38] sm:$0xf]
  %v158 = vld [vmem:[%s1 + $0x3c] sm:$0xf]
  %v159 = vld [vmem:[%s1 + $0x40] sm:$0xf]
  %v160 = vld [vmem:[%s1 + $0x44] sm:$0xf]
  %v161 = vld [vmem:[%s1 + $0x48] sm:$0xf]
  %v162 = vld [vmem:[%s1 + $0x4c] sm:$0xf]
  %v163 = vld [vmem:[%s1 + $0x50] sm:$0xf]
  %v164 = vld [vmem:[%s1 + $0x54] sm:$0xf]
  %v165 = vld [vmem:[%s1 + $0x58] sm:$0xf]
  %v166 = vld [vmem:[%s1 + $0x5c] sm:$0xf]
  %v167 = vld [vmem:[%s1 + $0x60] sm:$0xf]
  %v168 = vld [vmem:[%s1 + $0x64] sm:$0xf]
  %v169 = vld [vmem:[%s1 + $0x68] sm:$0xf]
  %v170 = vld [vmem:[%s1 + $0x6c] sm:$0xf]
  %v171 = vld [vmem:[%s1 + $0x70] sm:$0xf]
  %v172 = vld [vmem:[%s1 + $0x74] sm:$0xf]
  %v173 = vld [vmem:[%s1 + $0x78] sm:$0xf]
  %v174 = vld [vmem:[%s1 + $0x7c] sm:$0xf]
  %v175 = vld [vmem:[%s1 + $0x80] sm:$0xf]
  %v176 = vld [vmem:[%s1 + $0x84] sm:$0xf]
  %v177 = vld [vmem:[%s1 + $0x88] sm:$0xf]
  %v178 = vld [vmem:[%s1 + $0x8c] sm:$0xf]
  %v179 = vld [vmem:[%s1 + $0x90] sm:$0xf]
  %v180 = vld [vmem:[%s1 + $0x94] sm:$0xf]
  %v181 = vld [vmem:[%s1 + $0x98] sm:$0xf]
  %v182 = vld [vmem:[%s1 + $0x9c] sm:$0xf]
  %v183 = vld [vmem:[%s1 + $0xa0] sm:$0xf]
  %v184 = vld [vmem:[%s1 + $0xa4] sm:$0xf]
  %v185 = vld [vmem:[%s1 + $0xa8] sm:$0xf]
  %v186 = vld [vmem:[%s1 + $0xac] sm:$0xf]
  %v187 = vld [vmem:[%s1 + $0xb0] sm:$0xf]
  %v188 = vld [vmem:[%s1 + $0xb4] sm:$0xf]
  %v189 = vld [vmem:[%s1 + $0xb8] sm:$0xf]
  %v190 = vld [vmem:[%s1 + $0xbc] sm:$0xf]
  %v191 = vld [vmem:[%s1 + $0xc0] sm:$0xf]
  %v192 = vld [vmem:[%s1 + $0xc4] sm:$0xf]
  %v193 = vld [vmem:[%s1 + $0xc8] sm:$0xf]
  %v194 = vld [vmem:[%s1 + $0xcc] sm:$0xf]
  %v195 = vld [vmem:[%s1 + $0xd0] sm:$0xf]
  %v196 = vld [vmem:[%s1 + $0xd4] sm:$0xf]
  %v197 = vld [vmem:[%s1 + $0xd8] sm:$0xf]
  %v198 = vld [vmem:[%s1 + $0xdc] sm:$0xf]
  %v199 = vld [vmem:[%s1 + $0xe0] sm:$0xf]
  %v200 = vld [vmem:[%s1 + $0xe4] sm:$0xf]
  %v201 = vld [vmem:[%s1 + $0xe8] sm:$0xf]
  %v202 = vld [vmem:[%s1 + $0xec] sm:$0xf]
  %v203 = vld [vmem:[%s1 + $0xf0] sm:$0xf]
  %v204 = vld [vmem:[%s1 + $0xf4] sm:$0xf]
  %v205 = vld [vmem:[%s1 + $0xf8] sm:$0xf]
  %v206 = vld [vmem:[%s1 + $0xfc] sm:$0xf]
  %v207 = vld [vmem:[%s2] sm:$0x1]
  %v209 = vlaneseq
  %v210 = vshrl.u32 %v209, 7
  %v211 = vsub.s32 0, %v210
  %v212 = vrot.slane %v207, %v211
  %v342 = vunpack.c.l.b16 %v15
  %v343 = vunpack.c.h.b16 %v15
  %v344 = vunpack.c.l.b16 %v16
  %v345 = vunpack.c.h.b16 %v16
  %v346 = vunpack.c.l.b16 %v17
  %v347 = vunpack.c.h.b16 %v17
  %v348 = vunpack.c.l.b16 %v18
  %v349 = vunpack.c.h.b16 %v18
  %v350 = vunpack.c.l.b16 %v19
  %v351 = vunpack.c.h.b16 %v19
  %v352 = vunpack.c.l.b16 %v20
  %v353 = vunpack.c.h.b16 %v20
  %v354 = vunpack.c.l.b16 %v21
  %v355 = vunpack.c.h.b16 %v21
  %v356 = vunpack.c.l.b16 %v22
  %v357 = vunpack.c.h.b16 %v22
  %v358 = vunpack.c.l.b16 %v23
  %v359 = vunpack.c.h.b16 %v23
  %v360 = vunpack.c.l.b16 %v24
  %v361 = vunpack.c.h.b16 %v24
  %v362 = vunpack.c.l.b16 %v25
  %v363 = vunpack.c.h.b16 %v25
  %v364 = vunpack.c.l.b16 %v26
  %v365 = vunpack.c.h.b16 %v26
  %v366 = vunpack.c.l.b16 %v27
  %v367 = vunpack.c.h.b16 %v27
  %v368 = vunpack.c.l.b16 %v28
  %v369 = vunpack.c.h.b16 %v28
  %v370 = vunpack.c.l.b16 %v29
  %v371 = vunpack.c.h.b16 %v29
  %v372 = vunpack.c.l.b16 %v30
  %v373 = vunpack.c.h.b16 %v30
  %v374 = vunpack.c.l.b16 %v31
  %v375 = vunpack.c.h.b16 %v31
  %v376 = vunpack.c.l.b16 %v32
  %v377 = vunpack.c.h.b16 %v32
  %v378 = vunpack.c.l.b16 %v33
  %v379 = vunpack.c.h.b16 %v33
  %v380 = vunpack.c.l.b16 %v34
  %v381 = vunpack.c.h.b16 %v34
  %v382 = vunpack.c.l.b16 %v35
  %v383 = vunpack.c.h.b16 %v35
  %v384 = vunpack.c.l.b16 %v36
  %v385 = vunpack.c.h.b16 %v36
  %v386 = vunpack.c.l.b16 %v37
  %v387 = vunpack.c.h.b16 %v37
  %v388 = vunpack.c.l.b16 %v38
  %v389 = vunpack.c.h.b16 %v38
  %v390 = vunpack.c.l.b16 %v39
  %v391 = vunpack.c.h.b16 %v39
  %v392 = vunpack.c.l.b16 %v40
  %v393 = vunpack.c.h.b16 %v40
  %v394 = vunpack.c.l.b16 %v41
  %v395 = vunpack.c.h.b16 %v41
  %v396 = vunpack.c.l.b16 %v42
  %v397 = vunpack.c.h.b16 %v42
  %v398 = vunpack.c.l.b16 %v43
  %v399 = vunpack.c.h.b16 %v43
  %v400 = vunpack.c.l.b16 %v44
  %v401 = vunpack.c.h.b16 %v44
  %v402 = vunpack.c.l.b16 %v45
  %v403 = vunpack.c.h.b16 %v45
  %v404 = vunpack.c.l.b16 %v46
  %v405 = vunpack.c.h.b16 %v46
  %v406 = vunpack.c.l.b16 %v47
  %v407 = vunpack.c.h.b16 %v47
  %v408 = vunpack.c.l.b16 %v48
  %v409 = vunpack.c.h.b16 %v48
  %v410 = vunpack.c.l.b16 %v49
  %v411 = vunpack.c.h.b16 %v49
  %v412 = vunpack.c.l.b16 %v50
  %v413 = vunpack.c.h.b16 %v50
  %v414 = vunpack.c.l.b16 %v51
  %v415 = vunpack.c.h.b16 %v51
  %v416 = vunpack.c.l.b16 %v52
  %v417 = vunpack.c.h.b16 %v52
  %v418 = vunpack.c.l.b16 %v53
  %v419 = vunpack.c.h.b16 %v53
  %v420 = vunpack.c.l.b16 %v54
  %v421 = vunpack.c.h.b16 %v54
  %v422 = vunpack.c.l.b16 %v55
  %v423 = vunpack.c.h.b16 %v55
  %v424 = vunpack.c.l.b16 %v56
  %v425 = vunpack.c.h.b16 %v56
  %v426 = vunpack.c.l.b16 %v57
  %v427 = vunpack.c.h.b16 %v57
  %v428 = vunpack.c.l.b16 %v58
  %v429 = vunpack.c.h.b16 %v58
  %v430 = vunpack.c.l.b16 %v59
  %v431 = vunpack.c.h.b16 %v59
  %v432 = vunpack.c.l.b16 %v60
  %v433 = vunpack.c.h.b16 %v60
  %v434 = vunpack.c.l.b16 %v61
  %v435 = vunpack.c.h.b16 %v61
  %v436 = vunpack.c.l.b16 %v62
  %v437 = vunpack.c.h.b16 %v62
  %v438 = vunpack.c.l.b16 %v63
  %v439 = vunpack.c.h.b16 %v63
  %v440 = vunpack.c.l.b16 %v64
  %v441 = vunpack.c.h.b16 %v64
  %v442 = vunpack.c.l.b16 %v65
  %v443 = vunpack.c.h.b16 %v65
  %v444 = vunpack.c.l.b16 %v66
  %v445 = vunpack.c.h.b16 %v66
  %v446 = vunpack.c.l.b16 %v67
  %v447 = vunpack.c.h.b16 %v67
  %v448 = vunpack.c.l.b16 %v68
  %v449 = vunpack.c.h.b16 %v68
  %v450 = vunpack.c.l.b16 %v69
  %v451 = vunpack.c.h.b16 %v69
  %v452 = vunpack.c.l.b16 %v70
  %v453 = vunpack.c.h.b16 %v70
  %v454 = vunpack.c.l.b16 %v71
  %v455 = vunpack.c.h.b16 %v71
  %v456 = vunpack.c.l.b16 %v72
  %v457 = vunpack.c.h.b16 %v72
  %v458 = vunpack.c.l.b16 %v73
  %v459 = vunpack.c.h.b16 %v73
  %v460 = vunpack.c.l.b16 %v74
  %v461 = vunpack.c.h.b16 %v74
  %v462 = vunpack.c.l.b16 %v75
  %v463 = vunpack.c.h.b16 %v75
  %v464 = vunpack.c.l.b16 %v76
  %v465 = vunpack.c.h.b16 %v76
  %v466 = vunpack.c.l.b16 %v77
  %v467 = vunpack.c.h.b16 %v77
  %v468 = vunpack.c.l.b16 %v78
  %v469 = vunpack.c.h.b16 %v78
  %v470 = vunpack.c.l.b16 %v79
  %v471 = vunpack.c.h.b16 %v79
  %v472 = vunpack.c.l.b16 %v80
  %v473 = vunpack.c.h.b16 %v80
  %v474 = vunpack.c.l.b16 %v81
  %v475 = vunpack.c.h.b16 %v81
  %v476 = vunpack.c.l.b16 %v82
  %v477 = vunpack.c.h.b16 %v82
  %v478 = vunpack.c.l.b16 %v83
  %v479 = vunpack.c.h.b16 %v83
  %v480 = vunpack.c.l.b16 %v84
  %v481 = vunpack.c.h.b16 %v84
  %v482 = vunpack.c.l.b16 %v85
  %v483 = vunpack.c.h.b16 %v85
  %v484 = vunpack.c.l.b16 %v86
  %v485 = vunpack.c.h.b16 %v86
  %v486 = vunpack.c.l.b16 %v87
  %v487 = vunpack.c.h.b16 %v87
  %v488 = vunpack.c.l.b16 %v88
  %v489 = vunpack.c.h.b16 %v88
  %v490 = vunpack.c.l.b16 %v89
  %v491 = vunpack.c.h.b16 %v89
  %v492 = vunpack.c.l.b16 %v90
  %v493 = vunpack.c.h.b16 %v90
  %v494 = vunpack.c.l.b16 %v91
  %v495 = vunpack.c.h.b16 %v91
  %v496 = vunpack.c.l.b16 %v92
  %v497 = vunpack.c.h.b16 %v92
  %v498 = vunpack.c.l.b16 %v93
  %v499 = vunpack.c.h.b16 %v93
  %v500 = vunpack.c.l.b16 %v94
  %v501 = vunpack.c.h.b16 %v94
  %v502 = vunpack.c.l.b16 %v95
  %v503 = vunpack.c.h.b16 %v95
  %v504 = vunpack.c.l.b16 %v96
  %v505 = vunpack.c.h.b16 %v96
  %v506 = vunpack.c.l.b16 %v97
  %v507 = vunpack.c.h.b16 %v97
  %v508 = vunpack.c.l.b16 %v98
  %v509 = vunpack.c.h.b16 %v98
  %v510 = vunpack.c.l.b16 %v99
  %v511 = vunpack.c.h.b16 %v99
  %v512 = vunpack.c.l.b16 %v100
  %v513 = vunpack.c.h.b16 %v100
  %v514 = vunpack.c.l.b16 %v101
  %v515 = vunpack.c.h.b16 %v101
  %v516 = vunpack.c.l.b16 %v102
  %v517 = vunpack.c.h.b16 %v102
  %v518 = vunpack.c.l.b16 %v103
  %v519 = vunpack.c.h.b16 %v103
  %v520 = vunpack.c.l.b16 %v104
  %v521 = vunpack.c.h.b16 %v104
  %v522 = vunpack.c.l.b16 %v105
  %v523 = vunpack.c.h.b16 %v105
  %v524 = vunpack.c.l.b16 %v106
  %v525 = vunpack.c.h.b16 %v106
  %v526 = vunpack.c.l.b16 %v107
  %v527 = vunpack.c.h.b16 %v107
  %v528 = vunpack.c.l.b16 %v108
  %v529 = vunpack.c.h.b16 %v108
  %v530 = vunpack.c.l.b16 %v109
  %v531 = vunpack.c.h.b16 %v109
  %v532 = vunpack.c.l.b16 %v110
  %v533 = vunpack.c.h.b16 %v110
  %v534 = vunpack.c.l.b16 %v111
  %v535 = vunpack.c.h.b16 %v111
  %v536 = vunpack.c.l.b16 %v112
  %v537 = vunpack.c.h.b16 %v112
  %v538 = vunpack.c.l.b16 %v113
  %v539 = vunpack.c.h.b16 %v113
  %v540 = vunpack.c.l.b16 %v114
  %v541 = vunpack.c.h.b16 %v114
  %v542 = vunpack.c.l.b16 %v115
  %v543 = vunpack.c.h.b16 %v115
  %v544 = vunpack.c.l.b16 %v116
  %v545 = vunpack.c.h.b16 %v116
  %v546 = vunpack.c.l.b16 %v117
  %v547 = vunpack.c.h.b16 %v117
  %v548 = vunpack.c.l.b16 %v118
  %v549 = vunpack.c.h.b16 %v118
  %v550 = vunpack.c.l.b16 %v119
  %v551 = vunpack.c.h.b16 %v119
  %v552 = vunpack.c.l.b16 %v120
  %v553 = vunpack.c.h.b16 %v120
  %v554 = vunpack.c.l.b16 %v121
  %v555 = vunpack.c.h.b16 %v121
  %v556 = vunpack.c.l.b16 %v122
  %v557 = vunpack.c.h.b16 %v122
  %v558 = vunpack.c.l.b16 %v123
  %v559 = vunpack.c.h.b16 %v123
  %v560 = vunpack.c.l.b16 %v124
  %v561 = vunpack.c.h.b16 %v124
  %v562 = vunpack.c.l.b16 %v125
  %v563 = vunpack.c.h.b16 %v125
  %v564 = vunpack.c.l.b16 %v126
  %v565 = vunpack.c.h.b16 %v126
  %v566 = vunpack.c.l.b16 %v127
  %v567 = vunpack.c.h.b16 %v127
  %v568 = vunpack.c.l.b16 %v128
  %v569 = vunpack.c.h.b16 %v128
  %v570 = vunpack.c.l.b16 %v129
  %v571 = vunpack.c.h.b16 %v129
  %v572 = vunpack.c.l.b16 %v130
  %v573 = vunpack.c.h.b16 %v130
  %v574 = vunpack.c.l.b16 %v131
  %v575 = vunpack.c.h.b16 %v131
  %v576 = vunpack.c.l.b16 %v132
  %v577 = vunpack.c.h.b16 %v132
  %v578 = vunpack.c.l.b16 %v133
  %v579 = vunpack.c.h.b16 %v133
  %v580 = vunpack.c.l.b16 %v134
  %v581 = vunpack.c.h.b16 %v134
  %v582 = vunpack.c.l.b16 %v135
  %v583 = vunpack.c.h.b16 %v135
  %v584 = vunpack.c.l.b16 %v136
  %v585 = vunpack.c.h.b16 %v136
  %v586 = vunpack.c.l.b16 %v137
  %v587 = vunpack.c.h.b16 %v137
  %v588 = vunpack.c.l.b16 %v138
  %v589 = vunpack.c.h.b16 %v138
  %v590 = vunpack.c.l.b16 %v139
  %v591 = vunpack.c.h.b16 %v139
  %v592 = vunpack.c.l.b16 %v140
  %v593 = vunpack.c.h.b16 %v140
  %v594 = vunpack.c.l.b16 %v141
  %v595 = vunpack.c.h.b16 %v141
  %v596 = vunpack.c.l.b16 %v142
  %v597 = vunpack.c.h.b16 %v142
  %v598 = vpack.c.b16 %v346, %v342
  %v599 = vpack.c.b16 %v347, %v343
  %v600 = vpack.c.b16 %v348, %v344
  %v601 = vpack.c.b16 %v349, %v345
  %v602 = vpack.c.b16 %v354, %v350
  %v603 = vpack.c.b16 %v355, %v351
  %v604 = vpack.c.b16 %v356, %v352
  %v605 = vpack.c.b16 %v357, %v353
  %v606 = vpack.c.b16 %v362, %v358
  %v607 = vpack.c.b16 %v363, %v359
  %v608 = vpack.c.b16 %v364, %v360
  %v609 = vpack.c.b16 %v365, %v361
  %v610 = vpack.c.b16 %v370, %v366
  %v611 = vpack.c.b16 %v371, %v367
  %v612 = vpack.c.b16 %v372, %v368
  %v613 = vpack.c.b16 %v373, %v369
  %v614 = vpack.c.b16 %v378, %v374
  %v615 = vpack.c.b16 %v379, %v375
  %v616 = vpack.c.b16 %v380, %v376
  %v617 = vpack.c.b16 %v381, %v377
  %v618 = vpack.c.b16 %v386, %v382
  %v619 = vpack.c.b16 %v387, %v383
  %v620 = vpack.c.b16 %v388, %v384
  %v621 = vpack.c.b16 %v389, %v385
  %v622 = vpack.c.b16 %v394, %v390
  %v623 = vpack.c.b16 %v395, %v391
  %v624 = vpack.c.b16 %v396, %v392
  %v625 = vpack.c.b16 %v397, %v393
  %v626 = vpack.c.b16 %v402, %v398
  %v627 = vpack.c.b16 %v403, %v399
  %v628 = vpack.c.b16 %v404, %v400
  %v629 = vpack.c.b16 %v405, %v401
  %v630 = vpack.c.b16 %v410, %v406
  %v631 = vpack.c.b16 %v411, %v407
  %v632 = vpack.c.b16 %v412, %v408
  %v633 = vpack.c.b16 %v413, %v409
  %v634 = vpack.c.b16 %v418, %v414
  %v635 = vpack.c.b16 %v419, %v415
  %v636 = vpack.c.b16 %v420, %v416
  %v637 = vpack.c.b16 %v421, %v417
  %v638 = vpack.c.b16 %v426, %v422
  %v639 = vpack.c.b16 %v427, %v423
  %v640 = vpack.c.b16 %v428, %v424
  %v641 = vpack.c.b16 %v429, %v425
  %v642 = vpack.c.b16 %v434, %v430
  %v643 = vpack.c.b16 %v435, %v431
  %v644 = vpack.c.b16 %v436, %v432
  %v645 = vpack.c.b16 %v437, %v433
  %v646 = vpack.c.b16 %v442, %v438
  %v647 = vpack.c.b16 %v443, %v439
  %v648 = vpack.c.b16 %v444, %v440
  %v649 = vpack.c.b16 %v445, %v441
  %v650 = vpack.c.b16 %v450, %v446
  %v651 = vpack.c.b16 %v451, %v447
  %v652 = vpack.c.b16 %v452, %v448
  %v653 = vpack.c.b16 %v453, %v449
  %v654 = vpack.c.b16 %v458, %v454
  %v655 = vpack.c.b16 %v459, %v455
  %v656 = vpack.c.b16 %v460, %v456
  %v657 = vpack.c.b16 %v461, %v457
  %v658 = vpack.c.b16 %v466, %v462
  %v659 = vpack.c.b16 %v467, %v463
  %v660 = vpack.c.b16 %v468, %v464
  %v661 = vpack.c.b16 %v469, %v465
  %v662 = vpack.c.b16 %v474, %v470
  %v663 = vpack.c.b16 %v475, %v471
  %v664 = vpack.c.b16 %v476, %v472
  %v665 = vpack.c.b16 %v477, %v473
  %v666 = vpack.c.b16 %v482, %v478
  %v667 = vpack.c.b16 %v483, %v479
  %v668 = vpack.c.b16 %v484, %v480
  %v669 = vpack.c.b16 %v485, %v481
  %v670 = vpack.c.b16 %v490, %v486
  %v671 = vpack.c.b16 %v491, %v487
  %v672 = vpack.c.b16 %v492, %v488
  %v673 = vpack.c.b16 %v493, %v489
  %v674 = vpack.c.b16 %v498, %v494
  %v675 = vpack.c.b16 %v499, %v495
  %v676 = vpack.c.b16 %v500, %v496
  %v677 = vpack.c.b16 %v501, %v497
  %v678 = vpack.c.b16 %v506, %v502
  %v679 = vpack.c.b16 %v507, %v503
  %v680 = vpack.c.b16 %v508, %v504
  %v681 = vpack.c.b16 %v509, %v505
  %v682 = vpack.c.b16 %v514, %v510
  %v683 = vpack.c.b16 %v515, %v511
  %v684 = vpack.c.b16 %v516, %v512
  %v685 = vpack.c.b16 %v517, %v513
  %v686 = vpack.c.b16 %v522, %v518
  %v687 = vpack.c.b16 %v523, %v519
  %v688 = vpack.c.b16 %v524, %v520
  %v689 = vpack.c.b16 %v525, %v521
  %v690 = vpack.c.b16 %v530, %v526
  %v691 = vpack.c.b16 %v531, %v527
  %v692 = vpack.c.b16 %v532, %v528
  %v693 = vpack.c.b16 %v533, %v529
  %v694 = vpack.c.b16 %v538, %v534
  %v695 = vpack.c.b16 %v539, %v535
  %v696 = vpack.c.b16 %v540, %v536
  %v697 = vpack.c.b16 %v541, %v537
  %v698 = vpack.c.b16 %v546, %v542
  %v699 = vpack.c.b16 %v547, %v543
  %v700 = vpack.c.b16 %v548, %v544
  %v701 = vpack.c.b16 %v549, %v545
  %v702 = vpack.c.b16 %v554, %v550
  %v703 = vpack.c.b16 %v555, %v551
  %v704 = vpack.c.b16 %v556, %v552
  %v705 = vpack.c.b16 %v557, %v553
  %v706 = vpack.c.b16 %v562, %v558
  %v707 = vpack.c.b16 %v563, %v559
  %v708 = vpack.c.b16 %v564, %v560
  %v709 = vpack.c.b16 %v565, %v561
  %v710 = vpack.c.b16 %v570, %v566
  %v711 = vpack.c.b16 %v571, %v567
  %v712 = vpack.c.b16 %v572, %v568
  %v713 = vpack.c.b16 %v573, %v569
  %v714 = vpack.c.b16 %v578, %v574
  %v715 = vpack.c.b16 %v579, %v575
  %v716 = vpack.c.b16 %v580, %v576
  %v717 = vpack.c.b16 %v581, %v577
  %v718 = vpack.c.b16 %v586, %v582
  %v719 = vpack.c.b16 %v587, %v583
  %v720 = vpack.c.b16 %v588, %v584
  %v721 = vpack.c.b16 %v589, %v585
  %v722 = vpack.c.b16 %v594, %v590
  %v723 = vpack.c.b16 %v595, %v591
  %v724 = vpack.c.b16 %v596, %v592
  %v725 = vpack.c.b16 %v597, %v593
  %v918 = vunpack.c.l.b16 %v143
  %v919 = vunpack.c.l.b16 %v144
  %v920 = vunpack.c.l.b16 %v145
  %v921 = vunpack.c.l.b16 %v146
  %v922 = vunpack.c.l.b16 %v147
  %v923 = vunpack.c.l.b16 %v148
  %v924 = vunpack.c.l.b16 %v149
  %v925 = vunpack.c.l.b16 %v150
  %v926 = vunpack.c.l.b16 %v151
  %v927 = vunpack.c.l.b16 %v152
  %v928 = vunpack.c.l.b16 %v153
  %v929 = vunpack.c.l.b16 %v154
  %v930 = vunpack.c.l.b16 %v155
  %v931 = vunpack.c.l.b16 %v156
  %v932 = vunpack.c.l.b16 %v157
  %v933 = vunpack.c.l.b16 %v158
  %v934 = vunpack.c.l.b16 %v159
  %v935 = vunpack.c.l.b16 %v160
  %v936 = vunpack.c.l.b16 %v161
  %v937 = vunpack.c.l.b16 %v162
  %v938 = vunpack.c.l.b16 %v163
  %v939 = vunpack.c.l.b16 %v164
  %v940 = vunpack.c.l.b16 %v165
  %v941 = vunpack.c.l.b16 %v166
  %v942 = vunpack.c.l.b16 %v167
  %v943 = vunpack.c.l.b16 %v168
  %v944 = vunpack.c.l.b16 %v169
  %v945 = vunpack.c.l.b16 %v170
  %v946 = vunpack.c.l.b16 %v171
  %v947 = vunpack.c.l.b16 %v172
  %v948 = vunpack.c.l.b16 %v173
  %v949 = vunpack.c.l.b16 %v174
  %v950 = vunpack.c.l.b16 %v175
  %v951 = vunpack.c.l.b16 %v176
  %v952 = vunpack.c.l.b16 %v177
  %v953 = vunpack.c.l.b16 %v178
  %v954 = vunpack.c.l.b16 %v179
  %v955 = vunpack.c.l.b16 %v180
  %v956 = vunpack.c.l.b16 %v181
  %v957 = vunpack.c.l.b16 %v182
  %v958 = vunpack.c.l.b16 %v183
  %v959 = vunpack.c.l.b16 %v184
  %v960 = vunpack.c.l.b16 %v185
  %v961 = vunpack.c.l.b16 %v186
  %v962 = vunpack.c.l.b16 %v187
  %v963 = vunpack.c.l.b16 %v188
  %v964 = vunpack.c.l.b16 %v189
  %v965 = vunpack.c.l.b16 %v190
  %v966 = vunpack.c.l.b16 %v191
  %v967 = vunpack.c.l.b16 %v192
  %v968 = vunpack.c.l.b16 %v193
  %v969 = vunpack.c.l.b16 %v194
  %v970 = vunpack.c.l.b16 %v195
  %v971 = vunpack.c.l.b16 %v196
  %v972 = vunpack.c.l.b16 %v197
  %v973 = vunpack.c.l.b16 %v198
  %v974 = vunpack.c.l.b16 %v199
  %v975 = vunpack.c.l.b16 %v200
  %v976 = vunpack.c.l.b16 %v201
  %v977 = vunpack.c.l.b16 %v202
  %v978 = vunpack.c.l.b16 %v203
  %v979 = vunpack.c.l.b16 %v204
  %v980 = vunpack.c.l.b16 %v205
  %v981 = vunpack.c.l.b16 %v206
  %v982 = vpack.c.b16 %v919, %v918
  %v983 = vpack.c.b16 %v921, %v920
  %v984 = vpack.c.b16 %v923, %v922
  %v985 = vpack.c.b16 %v925, %v924
  %v986 = vpack.c.b16 %v927, %v926
  %v987 = vpack.c.b16 %v929, %v928
  %v988 = vpack.c.b16 %v931, %v930
  %v989 = vpack.c.b16 %v933, %v932
  %v990 = vpack.c.b16 %v935, %v934
  %v991 = vpack.c.b16 %v937, %v936
  %v992 = vpack.c.b16 %v939, %v938
  %v993 = vpack.c.b16 %v941, %v940
  %v994 = vpack.c.b16 %v943, %v942
  %v995 = vpack.c.b16 %v945, %v944
  %v996 = vpack.c.b16 %v947, %v946
  %v997 = vpack.c.b16 %v949, %v948
  %v998 = vpack.c.b16 %v951, %v950
  %v999 = vpack.c.b16 %v953, %v952
  %v1000 = vpack.c.b16 %v955, %v954
  %v1001 = vpack.c.b16 %v957, %v956
  %v1002 = vpack.c.b16 %v959, %v958
  %v1003 = vpack.c.b16 %v961, %v960
  %v1004 = vpack.c.b16 %v963, %v962
  %v1005 = vpack.c.b16 %v965, %v964
  %v1006 = vpack.c.b16 %v967, %v966
  %v1007 = vpack.c.b16 %v969, %v968
  %v1008 = vpack.c.b16 %v971, %v970
  %v1009 = vpack.c.b16 %v973, %v972
  %v1010 = vpack.c.b16 %v975, %v974
  %v1011 = vpack.c.b16 %v977, %v976
  %v1012 = vpack.c.b16 %v979, %v978
  %v1013 = vpack.c.b16 %v981, %v980
  %1046 = vmatprep.subr.bf16.mxu0 0
  %1047 = vmatpush1.bf16.msra.mxu0 %v982
  %1048 = vmatprep.subr.bf16.mxu0 0
  %1049 = vmatpush1.bf16.msra.mxu0 %v983
  %1050 = vmatprep.subr.bf16.mxu0 0
  %1051 = vmatpush1.bf16.msra.mxu0 %v984
  %1052 = vmatprep.subr.bf16.mxu0 0
  %1053 = vmatpush1.bf16.msra.mxu0 %v985
  %1054 = vmatprep.subr.bf16.mxu0 0
  %1055 = vmatpush1.bf16.msra.mxu0 %v986
  %1056 = vmatprep.subr.bf16.mxu0 0
  %1057 = vmatpush1.bf16.msra.mxu0 %v987
  %1058 = vmatprep.subr.bf16.mxu0 0
  %1059 = vmatpush1.bf16.msra.mxu0 %v988
  %1060 = vmatprep.subr.bf16.mxu0 0
  %1061 = vmatpush1.bf16.msra.mxu0 %v989
  %1062 = vmatprep.subr.bf16.mxu0 0
  %1063 = vmatpush1.bf16.msra.mxu0 %v990
  %1064 = vmatprep.subr.bf16.mxu0 0
  %1065 = vmatpush1.bf16.msra.mxu0 %v991
  %1066 = vmatprep.subr.bf16.mxu0 0
  %1067 = vmatpush1.bf16.msra.mxu0 %v992
  %1068 = vmatprep.subr.bf16.mxu0 0
  %1069 = vmatpush1.bf16.msra.mxu0 %v993
  %1070 = vmatprep.subr.bf16.mxu0 0
  %1071 = vmatpush1.bf16.msra.mxu0 %v994
  %1072 = vmatprep.subr.bf16.mxu0 0
  %1073 = vmatpush1.bf16.msra.mxu0 %v995
  %1074 = vmatprep.subr.bf16.mxu0 0
  %1075 = vmatpush1.bf16.msra.mxu0 %v996
  %1076 = vmatprep.subr.bf16.mxu0 0
  %1077 = vmatpush1.bf16.msra.mxu0 %v997
  %1078 = vmatprep.mubr.bf16.mxu0 %v599
  %1079 = vmatmul.mubr.bf16.gmra.mrb[0].mxu0 %v598
  %v1080 = vpop.f32.mrb[0].mxu0
  %v1081 = vadd.f32 %v212, %v1080
  %v1082 = vpop.f32.mrb[0].mxu0
  %v1083 = vpop.f32.mrb[0].mxu0
  %v1084 = vadd.f32 %v212, %v1083
  %v1085 = vpop.f32.mrb[0].mxu0
  %1086 = vmatprep.mubr.bf16.mxu0 %v603
  %1087 = vmatmul.mubr.bf16.gmra.mrb[0].mxu0 %v602
  %v1088 = vpop.f32.mrb[0].mxu0
  %v1089 = vadd.f32 %v212, %v1088
  %v1090 = vpop.f32.mrb[0].mxu0
  %v1091 = vpop.f32.mrb[0].mxu0
  %v1092 = vadd.f32 %v212, %v1091
  %v1093 = vpop.f32.mrb[0].mxu0
  %1094 = vmatprep.mubr.bf16.mxu0 %v607
  %1095 = vmatmul.mubr.bf16.gmra.mrb[0].mxu0 %v606
  %v1096 = vpop.f32.mrb[0].mxu0
  %v1097 = vadd.f32 %v212, %v1096
  %v1098 = vpop.f32.mrb[0].mxu0
  %v1099 = vpop.f32.mrb[0].mxu0
  %v1100 = vadd.f32 %v212, %v1099
  %v1101 = vpop.f32.mrb[0].mxu0
  %1102 = vmatprep.mubr.bf16.mxu0 %v611
  %1103 = vmatmul.mubr.bf16.gmra.mrb[0].mxu0 %v610
  %v1104 = vpop.f32.mrb[0].mxu0
  %v1105 = vadd.f32 %v212, %v1104
  %v1106 = vpop.f32.mrb[0].mxu0
  %v1107 = vpop.f32.mrb[0].mxu0
  %v1108 = vadd.f32 %v212, %v1107
  %v1109 = vpop.f32.mrb[0].mxu0
  %1110 = vmatprep.mubr.bf16.mxu0 %v615
  %1111 = vmatmul.mubr.bf16.gmra.mrb[0].mxu0 %v614
  %v1112 = vpop.f32.mrb[0].mxu0
  %v1113 = vadd.f32 %v212, %v1112
  %v1114 = vpop.f32.mrb[0].mxu0
  %v1115 = vpop.f32.mrb[0].mxu0
  %v1116 = vadd.f32 %v212, %v1115
  %v1117 = vpop.f32.mrb[0].mxu0
  %1118 = vmatprep.mubr.bf16.mxu0 %v619
  %1119 = vmatmul.mubr.bf16.gmra.mrb[0].mxu0 %v618
  %v1120 = vpop.f32.mrb[0].mxu0
  %v1121 = vadd.f32 %v212, %v1120
  %v1122 = vpop.f32.mrb[0].mxu0
  %v1123 = vpop.f32.mrb[0].mxu0
  %v1124 = vadd.f32 %v212, %v1123
  %v1125 = vpop.f32.mrb[0].mxu0
  %1126 = vmatprep.mubr.bf16.mxu0 %v623
  %1127 = vmatmul.mubr.bf16.gmra.mrb[0].mxu0 %v622
  %v1128 = vpop.f32.mrb[0].mxu0
  %v1129 = vadd.f32 %v212, %v1128
  %v1130 = vpop.f32.mrb[0].mxu0
  %v1131 = vpop.f32.mrb[0].mxu0
  %v1132 = vadd.f32 %v212, %v1131
  %v1133 = vpop.f32.mrb[0].mxu0
  %1134 = vmatprep.mubr.bf16.mxu0 %v627
  %1135 = vmatmul.mubr.bf16.gmra.mrb[0].mxu0 %v626
  %v1136 = vpop.f32.mrb[0].mxu0
  %v1137 = vadd.f32 %v212, %v1136
  %v1138 = vpop.f32.mrb[0].mxu0
  %v1139 = vpop.f32.mrb[0].mxu0
  %v1140 = vadd.f32 %v212, %v1139
  %v1141 = vpop.f32.mrb[0].mxu0
  %1142 = vmatprep.mubr.bf16.mxu0 %v631
  %1143 = vmatmul.mubr.bf16.gmra.mrb[0].mxu0 %v630
  %v1144 = vpop.f32.mrb[0].mxu0
  %v1145 = vadd.f32 %v212, %v1144
  %v1146 = vpop.f32.mrb[0].mxu0
  %v1147 = vpop.f32.mrb[0].mxu0
  %v1148 = vadd.f32 %v212, %v1147
  %v1149 = vpop.f32.mrb[0].mxu0
  %1150 = vmatprep.mubr.bf16.mxu0 %v635
  %1151 = vmatmul.mubr.bf16.gmra.mrb[0].mxu0 %v634
  %v1152 = vpop.f32.mrb[0].mxu0
  %v1153 = vadd.f32 %v212, %v1152
  %v1154 = vpop.f32.mrb[0].mxu0
  %v1155 = vpop.f32.mrb[0].mxu0
  %v1156 = vadd.f32 %v212, %v1155
  %v1157 = vpop.f32.mrb[0].mxu0
  %1158 = vmatprep.mubr.bf16.mxu0 %v639
  %1159 = vmatmul.mubr.bf16.gmra.mrb[0].mxu0 %v638
  %v1160 = vpop.f32.mrb[0].mxu0
  %v1161 = vadd.f32 %v212, %v1160
  %v1162 = vpop.f32.mrb[0].mxu0
  %v1163 = vpop.f32.mrb[0].mxu0
  %v1164 = vadd.f32 %v212, %v1163
  %v1165 = vpop.f32.mrb[0].mxu0
  %1166 = vmatprep.mubr.bf16.mxu0 %v643
  %1167 = vmatmul.mubr.bf16.gmra.mrb[0].mxu0 %v642
  %v1168 = vpop.f32.mrb[0].mxu0
  %v1169 = vadd.f32 %v212, %v1168
  %v1170 = vpop.f32.mrb[0].mxu0
  %v1171 = vpop.f32.mrb[0].mxu0
  %v1172 = vadd.f32 %v212, %v1171
  %v1173 = vpop.f32.mrb[0].mxu0
  %1174 = vmatprep.mubr.bf16.mxu0 %v647
  %1175 = vmatmul.mubr.bf16.gmra.mrb[0].mxu0 %v646
  %v1176 = vpop.f32.mrb[0].mxu0
  %v1177 = vadd.f32 %v212, %v1176
  %v1178 = vpop.f32.mrb[0].mxu0
  %v1179 = vpop.f32.mrb[0].mxu0
  %v1180 = vadd.f32 %v212, %v1179
  %v1181 = vpop.f32.mrb[0].mxu0
  %1182 = vmatprep.mubr.bf16.mxu0 %v651
  %1183 = vmatmul.mubr.bf16.gmra.mrb[0].mxu0 %v650
  %v1184 = vpop.f32.mrb[0].mxu0
  %v1185 = vadd.f32 %v212, %v1184
  %v1186 = vpop.f32.mrb[0].mxu0
  %v1187 = vpop.f32.mrb[0].mxu0
  %v1188 = vadd.f32 %v212, %v1187
  %v1189 = vpop.f32.mrb[0].mxu0
  %1190 = vmatprep.mubr.bf16.mxu0 %v655
  %1191 = vmatmul.mubr.bf16.gmra.mrb[0].mxu0 %v654
  %v1192 = vpop.f32.mrb[0].mxu0
  %v1193 = vadd.f32 %v212, %v1192
  %v1194 = vpop.f32.mrb[0].mxu0
  %v1195 = vpop.f32.mrb[0].mxu0
  %v1196 = vadd.f32 %v212, %v1195
  %v1197 = vpop.f32.mrb[0].mxu0
  %1198 = vmatprep.mubr.bf16.mxu0 %v659
  %1199 = vmatmul.mubr.bf16.gmra.mrb[0].mxu0 %v658
  %v1200 = vpop.f32.mrb[0].mxu0
  %v1201 = vadd.f32 %v212, %v1200
  %v1202 = vpop.f32.mrb[0].mxu0
  %v1203 = vpop.f32.mrb[0].mxu0
  %v1204 = vadd.f32 %v212, %v1203
  %v1205 = vpop.f32.mrb[0].mxu0
  %1206 = vmatprep.mubr.bf16.mxu0 %v663
  %1207 = vmatmul.mubr.bf16.gmra.mrb[0].mxu0 %v662
  %v1208 = vpop.f32.mrb[0].mxu0
  %v1209 = vadd.f32 %v212, %v1208
  %v1210 = vpop.f32.mrb[0].mxu0
  %v1211 = vpop.f32.mrb[0].mxu0
  %v1212 = vadd.f32 %v212, %v1211
  %v1213 = vpop.f32.mrb[0].mxu0
  %1214 = vmatprep.mubr.bf16.mxu0 %v667
  %1215 = vmatmul.mubr.bf16.gmra.mrb[0].mxu0 %v666
  %v1216 = vpop.f32.mrb[0].mxu0
  %v1217 = vadd.f32 %v212, %v1216
  %v1218 = vpop.f32.mrb[0].mxu0
  %v1219 = vpop.f32.mrb[0].mxu0
  %v1220 = vadd.f32 %v212, %v1219
  %v1221 = vpop.f32.mrb[0].mxu0
  %1222 = vmatprep.mubr.bf16.mxu0 %v671
  %1223 = vmatmul.mubr.bf16.gmra.mrb[0].mxu0 %v670
  %v1224 = vpop.f32.mrb[0].mxu0
  %v1225 = vadd.f32 %v212, %v1224
  %v1226 = vpop.f32.mrb[0].mxu0
  %v1227 = vpop.f32.mrb[0].mxu0
  %v1228 = vadd.f32 %v212, %v1227
  %v1229 = vpop.f32.mrb[0].mxu0
  %1230 = vmatprep.mubr.bf16.mxu0 %v675
  %1231 = vmatmul.mubr.bf16.gmra.mrb[0].mxu0 %v674
  %v1232 = vpop.f32.mrb[0].mxu0
  %v1233 = vadd.f32 %v212, %v1232
  %v1234 = vpop.f32.mrb[0].mxu0
  %v1235 = vpop.f32.mrb[0].mxu0
  %v1236 = vadd.f32 %v212, %v1235
  %v1237 = vpop.f32.mrb[0].mxu0
  %1238 = vmatprep.mubr.bf16.mxu0 %v679
  %1239 = vmatmul.mubr.bf16.gmra.mrb[0].mxu0 %v678
  %v1240 = vpop.f32.mrb[0].mxu0
  %v1241 = vadd.f32 %v212, %v1240
  %v1242 = vpop.f32.mrb[0].mxu0
  %v1243 = vpop.f32.mrb[0].mxu0
  %v1244 = vadd.f32 %v212, %v1243
  %v1245 = vpop.f32.mrb[0].mxu0
  %1246 = vmatprep.mubr.bf16.mxu0 %v683
  %1247 = vmatmul.mubr.bf16.gmra.mrb[0].mxu0 %v682
  %v1248 = vpop.f32.mrb[0].mxu0
  %v1249 = vadd.f32 %v212, %v1248
  %v1250 = vpop.f32.mrb[0].mxu0
  %v1251 = vpop.f32.mrb[0].mxu0
  %v1252 = vadd.f32 %v212, %v1251
  %v1253 = vpop.f32.mrb[0].mxu0
  %1254 = vmatprep.mubr.bf16.mxu0 %v687
  %1255 = vmatmul.mubr.bf16.gmra.mrb[0].mxu0 %v686
  %v1256 = vpop.f32.mrb[0].mxu0
  %v1257 = vadd.f32 %v212, %v1256
  %v1258 = vpop.f32.mrb[0].mxu0
  %v1259 = vpop.f32.mrb[0].mxu0
  %v1260 = vadd.f32 %v212, %v1259
  %v1261 = vpop.f32.mrb[0].mxu0
  %1262 = vmatprep.mubr.bf16.mxu0 %v691
  %1263 = vmatmul.mubr.bf16.gmra.mrb[0].mxu0 %v690
  %v1264 = vpop.f32.mrb[0].mxu0
  %v1265 = vadd.f32 %v212, %v1264
  %v1266 = vpop.f32.mrb[0].mxu0
  %v1267 = vpop.f32.mrb[0].mxu0
  %v1268 = vadd.f32 %v212, %v1267
  %v1269 = vpop.f32.mrb[0].mxu0
  %1270 = vmatprep.mubr.bf16.mxu0 %v695
  %1271 = vmatmul.mubr.bf16.gmra.mrb[0].mxu0 %v694
  %v1272 = vpop.f32.mrb[0].mxu0
  %v1273 = vadd.f32 %v212, %v1272
  %v1274 = vpop.f32.mrb[0].mxu0
  %v1275 = vpop.f32.mrb[0].mxu0
  %v1276 = vadd.f32 %v212, %v1275
  %v1277 = vpop.f32.mrb[0].mxu0
  %1278 = vmatprep.mubr.bf16.mxu0 %v699
  %1279 = vmatmul.mubr.bf16.gmra.mrb[0].mxu0 %v698
  %v1280 = vpop.f32.mrb[0].mxu0
  %v1281 = vadd.f32 %v212, %v1280
  %v1282 = vpop.f32.mrb[0].mxu0
  %v1283 = vpop.f32.mrb[0].mxu0
  %v1284 = vadd.f32 %v212, %v1283
  %v1285 = vpop.f32.mrb[0].mxu0
  %1286 = vmatprep.mubr.bf16.mxu0 %v703
  %1287 = vmatmul.mubr.bf16.gmra.mrb[0].mxu0 %v702
  %v1288 = vpop.f32.mrb[0].mxu0
  %v1289 = vadd.f32 %v212, %v1288
  %v1290 = vpop.f32.mrb[0].mxu0
  %v1291 = vpop.f32.mrb[0].mxu0
  %v1292 = vadd.f32 %v212, %v1291
  %v1293 = vpop.f32.mrb[0].mxu0
  %1294 = vmatprep.mubr.bf16.mxu0 %v707
  %1295 = vmatmul.mubr.bf16.gmra.mrb[0].mxu0 %v706
  %v1296 = vpop.f32.mrb[0].mxu0
  %v1297 = vadd.f32 %v212, %v1296
  %v1298 = vpop.f32.mrb[0].mxu0
  %v1299 = vpop.f32.mrb[0].mxu0
  %v1300 = vadd.f32 %v212, %v1299
  %v1301 = vpop.f32.mrb[0].mxu0
  %1302 = vmatprep.mubr.bf16.mxu0 %v711
  %1303 = vmatmul.mubr.bf16.gmra.mrb[0].mxu0 %v710
  %v1304 = vpop.f32.mrb[0].mxu0
  %v1305 = vadd.f32 %v212, %v1304
  %v1306 = vpop.f32.mrb[0].mxu0
  %v1307 = vpop.f32.mrb[0].mxu0
  %v1308 = vadd.f32 %v212, %v1307
  %v1309 = vpop.f32.mrb[0].mxu0
  %1310 = vmatprep.mubr.bf16.mxu0 %v715
  %1311 = vmatmul.mubr.bf16.gmra.mrb[0].mxu0 %v714
  %v1312 = vpop.f32.mrb[0].mxu0
  %v1313 = vadd.f32 %v212, %v1312
  %v1314 = vpop.f32.mrb[0].mxu0
  %v1315 = vpop.f32.mrb[0].mxu0
  %v1316 = vadd.f32 %v212, %v1315
  %v1317 = vpop.f32.mrb[0].mxu0
  %1318 = vmatprep.mubr.bf16.mxu0 %v719
  %1319 = vmatmul.mubr.bf16.gmra.mrb[0].mxu0 %v718
  %v1320 = vpop.f32.mrb[0].mxu0
  %v1321 = vadd.f32 %v212, %v1320
  %v1322 = vpop.f32.mrb[0].mxu0
  %v1323 = vpop.f32.mrb[0].mxu0
  %v1324 = vadd.f32 %v212, %v1323
  %v1325 = vpop.f32.mrb[0].mxu0
  %1326 = vmatprep.mubr.bf16.mxu0 %v723
  %1327 = vmatmul.mubr.bf16.gmra.mrb[0].mxu0 %v722
  %v1328 = vpop.f32.mrb[0].mxu0
  %v1329 = vadd.f32 %v212, %v1328
  %v1330 = vpop.f32.mrb[0].mxu0
  %v1331 = vpop.f32.mrb[0].mxu0
  %v1332 = vadd.f32 %v212, %v1331
  %v1333 = vpop.f32.mrb[0].mxu0
  %1334 = vdwg.mxu0
  %1335 = vmatprep.subr.bf16.mxu0 0
  %1336 = vmatpush1.bf16.msra.mxu0 %v998
  %1337 = vmatprep.subr.bf16.mxu0 0
  %1338 = vmatpush1.bf16.msra.mxu0 %v999
  %1339 = vmatprep.subr.bf16.mxu0 0
  %1340 = vmatpush1.bf16.msra.mxu0 %v1000
  %1341 = vmatprep.subr.bf16.mxu0 0
  %1342 = vmatpush1.bf16.msra.mxu0 %v1001
  %1343 = vmatprep.subr.bf16.mxu0 0
  %1344 = vmatpush1.bf16.msra.mxu0 %v1002
  %1345 = vmatprep.subr.bf16.mxu0 0
  %1346 = vmatpush1.bf16.msra.mxu0 %v1003
  %1347 = vmatprep.subr.bf16.mxu0 0
  %1348 = vmatpush1.bf16.msra.mxu0 %v1004
  %1349 = vmatprep.subr.bf16.mxu0 0
  %1350 = vmatpush1.bf16.msra.mxu0 %v1005
  %1351 = vmatprep.subr.bf16.mxu0 0
  %1352 = vmatpush1.bf16.msra.mxu0 %v1006
  %1353 = vmatprep.subr.bf16.mxu0 0
  %1354 = vmatpush1.bf16.msra.mxu0 %v1007
  %1355 = vmatprep.subr.bf16.mxu0 0
  %1356 = vmatpush1.bf16.msra.mxu0 %v1008
  %1357 = vmatprep.subr.bf16.mxu0 0
  %1358 = vmatpush1.bf16.msra.mxu0 %v1009
  %1359 = vmatprep.subr.bf16.mxu0 0
  %1360 = vmatpush1.bf16.msra.mxu0 %v1010
  %1361 = vmatprep.subr.bf16.mxu0 0
  %1362 = vmatpush1.bf16.msra.mxu0 %v1011
  %1363 = vmatprep.subr.bf16.mxu0 0
  %1364 = vmatpush1.bf16.msra.mxu0 %v1012
  %1365 = vmatprep.subr.bf16.mxu0 0
  %1366 = vmatpush1.bf16.msra.mxu0 %v1013
  %1367 = vmatprep.mubr.bf16.mxu0 %v601
  %1368 = vmatmul.mubr.bf16.gmra.mrb[0].mxu0 %v600
  %v1369 = vpop.f32.mrb[0].mxu0
  %v1370 = vadd.f32 %v1081, %v1369
  %v1371 = vpop.f32.mrb[0].mxu0
  %v1372 = vpop.f32.mrb[0].mxu0
  %v1373 = vadd.f32 %v1084, %v1372
  %v1374 = vpop.f32.mrb[0].mxu0
  %1375 = vmatprep.mubr.bf16.mxu0 %v605
  %1376 = vmatmul.mubr.bf16.gmra.mrb[0].mxu0 %v604
  %v1377 = vpop.f32.mrb[0].mxu0
  %v1378 = vadd.f32 %v1089, %v1377
  %v1379 = vpop.f32.mrb[0].mxu0
  %v1380 = vpop.f32.mrb[0].mxu0
  %v1381 = vadd.f32 %v1092, %v1380
  %v1382 = vpop.f32.mrb[0].mxu0
  %1383 = vmatprep.mubr.bf16.mxu0 %v609
  %1384 = vmatmul.mubr.bf16.gmra.mrb[0].mxu0 %v608
  %v1385 = vpop.f32.mrb[0].mxu0
  %v1386 = vadd.f32 %v1097, %v1385
  %v1387 = vpop.f32.mrb[0].mxu0
  %v1388 = vpop.f32.mrb[0].mxu0
  %v1389 = vadd.f32 %v1100, %v1388
  %v1390 = vpop.f32.mrb[0].mxu0
  %1391 = vmatprep.mubr.bf16.mxu0 %v613
  %1392 = vmatmul.mubr.bf16.gmra.mrb[0].mxu0 %v612
  %v1393 = vpop.f32.mrb[0].mxu0
  %v1394 = vadd.f32 %v1105, %v1393
  %v1395 = vpop.f32.mrb[0].mxu0
  %v1396 = vpop.f32.mrb[0].mxu0
  %v1397 = vadd.f32 %v1108, %v1396
  %v1398 = vpop.f32.mrb[0].mxu0
  %1399 = vmatprep.mubr.bf16.mxu0 %v617
  %1400 = vmatmul.mubr.bf16.gmra.mrb[0].mxu0 %v616
  %v1401 = vpop.f32.mrb[0].mxu0
  %v1402 = vadd.f32 %v1113, %v1401
  %v1403 = vpop.f32.mrb[0].mxu0
  %v1404 = vpop.f32.mrb[0].mxu0
  %v1405 = vadd.f32 %v1116, %v1404
  %v1406 = vpop.f32.mrb[0].mxu0
  %1407 = vmatprep.mubr.bf16.mxu0 %v621
  %1408 = vmatmul.mubr.bf16.gmra.mrb[0].mxu0 %v620
  %v1409 = vpop.f32.mrb[0].mxu0
  %v1410 = vadd.f32 %v1121, %v1409
  %v1411 = vpop.f32.mrb[0].mxu0
  %v1412 = vpop.f32.mrb[0].mxu0
  %v1413 = vadd.f32 %v1124, %v1412
  %v1414 = vpop.f32.mrb[0].mxu0
  %1415 = vmatprep.mubr.bf16.mxu0 %v625
  %1416 = vmatmul.mubr.bf16.gmra.mrb[0].mxu0 %v624
  %v1417 = vpop.f32.mrb[0].mxu0
  %v1418 = vadd.f32 %v1129, %v1417
  %v1419 = vpop.f32.mrb[0].mxu0
  %v1420 = vpop.f32.mrb[0].mxu0
  %v1421 = vadd.f32 %v1132, %v1420
  %v1422 = vpop.f32.mrb[0].mxu0
  %1423 = vmatprep.mubr.bf16.mxu0 %v629
  %1424 = vmatmul.mubr.bf16.gmra.mrb[0].mxu0 %v628
  %v1425 = vpop.f32.mrb[0].mxu0
  %v1426 = vadd.f32 %v1137, %v1425
  %v1427 = vpop.f32.mrb[0].mxu0
  %v1428 = vpop.f32.mrb[0].mxu0
  %v1429 = vadd.f32 %v1140, %v1428
  %v1430 = vpop.f32.mrb[0].mxu0
  %1431 = vmatprep.mubr.bf16.mxu0 %v633
  %1432 = vmatmul.mubr.bf16.gmra.mrb[0].mxu0 %v632
  %v1433 = vpop.f32.mrb[0].mxu0
  %v1434 = vadd.f32 %v1145, %v1433
  %v1435 = vpop.f32.mrb[0].mxu0
  %v1436 = vpop.f32.mrb[0].mxu0
  %v1437 = vadd.f32 %v1148, %v1436
  %v1438 = vpop.f32.mrb[0].mxu0
  %1439 = vmatprep.mubr.bf16.mxu0 %v637
  %1440 = vmatmul.mubr.bf16.gmra.mrb[0].mxu0 %v636
  %v1441 = vpop.f32.mrb[0].mxu0
  %v1442 = vadd.f32 %v1153, %v1441
  %v1443 = vpop.f32.mrb[0].mxu0
  %v1444 = vpop.f32.mrb[0].mxu0
  %v1445 = vadd.f32 %v1156, %v1444
  %v1446 = vpop.f32.mrb[0].mxu0
  %1447 = vmatprep.mubr.bf16.mxu0 %v641
  %1448 = vmatmul.mubr.bf16.gmra.mrb[0].mxu0 %v640
  %v1449 = vpop.f32.mrb[0].mxu0
  %v1450 = vadd.f32 %v1161, %v1449
  %v1451 = vpop.f32.mrb[0].mxu0
  %v1452 = vpop.f32.mrb[0].mxu0
  %v1453 = vadd.f32 %v1164, %v1452
  %v1454 = vpop.f32.mrb[0].mxu0
  %1455 = vmatprep.mubr.bf16.mxu0 %v645
  %1456 = vmatmul.mubr.bf16.gmra.mrb[0].mxu0 %v644
  %v1457 = vpop.f32.mrb[0].mxu0
  %v1458 = vadd.f32 %v1169, %v1457
  %v1459 = vpop.f32.mrb[0].mxu0
  %v1460 = vpop.f32.mrb[0].mxu0
  %v1461 = vadd.f32 %v1172, %v1460
  %v1462 = vpop.f32.mrb[0].mxu0
  %1463 = vmatprep.mubr.bf16.mxu0 %v649
  %1464 = vmatmul.mubr.bf16.gmra.mrb[0].mxu0 %v648
  %v1465 = vpop.f32.mrb[0].mxu0
  %v1466 = vadd.f32 %v1177, %v1465
  %v1467 = vpop.f32.mrb[0].mxu0
  %v1468 = vpop.f32.mrb[0].mxu0
  %v1469 = vadd.f32 %v1180, %v1468
  %v1470 = vpop.f32.mrb[0].mxu0
  %1471 = vmatprep.mubr.bf16.mxu0 %v653
  %1472 = vmatmul.mubr.bf16.gmra.mrb[0].mxu0 %v652
  %v1473 = vpop.f32.mrb[0].mxu0
  %v1474 = vadd.f32 %v1185, %v1473
  %v1475 = vpop.f32.mrb[0].mxu0
  %v1476 = vpop.f32.mrb[0].mxu0
  %v1477 = vadd.f32 %v1188, %v1476
  %v1478 = vpop.f32.mrb[0].mxu0
  %1479 = vmatprep.mubr.bf16.mxu0 %v657
  %1480 = vmatmul.mubr.bf16.gmra.mrb[0].mxu0 %v656
  %v1481 = vpop.f32.mrb[0].mxu0
  %v1482 = vadd.f32 %v1193, %v1481
  %v1483 = vpop.f32.mrb[0].mxu0
  %v1484 = vpop.f32.mrb[0].mxu0
  %v1485 = vadd.f32 %v1196, %v1484
  %v1486 = vpop.f32.mrb[0].mxu0
  %1487 = vmatprep.mubr.bf16.mxu0 %v661
  %1488 = vmatmul.mubr.bf16.gmra.mrb[0].mxu0 %v660
  %v1489 = vpop.f32.mrb[0].mxu0
  %v1490 = vadd.f32 %v1201, %v1489
  %v1491 = vpop.f32.mrb[0].mxu0
  %v1492 = vpop.f32.mrb[0].mxu0
  %v1493 = vadd.f32 %v1204, %v1492
  %v1494 = vpop.f32.mrb[0].mxu0
  %1495 = vmatprep.mubr.bf16.mxu0 %v665
  %1496 = vmatmul.mubr.bf16.gmra.mrb[0].mxu0 %v664
  %v1497 = vpop.f32.mrb[0].mxu0
  %v1498 = vadd.f32 %v1209, %v1497
  %v1499 = vpop.f32.mrb[0].mxu0
  %v1500 = vpop.f32.mrb[0].mxu0
  %v1501 = vadd.f32 %v1212, %v1500
  %v1502 = vpop.f32.mrb[0].mxu0
  %1503 = vmatprep.mubr.bf16.mxu0 %v669
  %1504 = vmatmul.mubr.bf16.gmra.mrb[0].mxu0 %v668
  %v1505 = vpop.f32.mrb[0].mxu0
  %v1506 = vadd.f32 %v1217, %v1505
  %v1507 = vpop.f32.mrb[0].mxu0
  %v1508 = vpop.f32.mrb[0].mxu0
  %v1509 = vadd.f32 %v1220, %v1508
  %v1510 = vpop.f32.mrb[0].mxu0
  %1511 = vmatprep.mubr.bf16.mxu0 %v673
  %1512 = vmatmul.mubr.bf16.gmra.mrb[0].mxu0 %v672
  %v1513 = vpop.f32.mrb[0].mxu0
  %v1514 = vadd.f32 %v1225, %v1513
  %v1515 = vpop.f32.mrb[0].mxu0
  %v1516 = vpop.f32.mrb[0].mxu0
  %v1517 = vadd.f32 %v1228, %v1516
  %v1518 = vpop.f32.mrb[0].mxu0
  %1519 = vmatprep.mubr.bf16.mxu0 %v677
  %1520 = vmatmul.mubr.bf16.gmra.mrb[0].mxu0 %v676
  %v1521 = vpop.f32.mrb[0].mxu0
  %v1522 = vadd.f32 %v1233, %v1521
  %v1523 = vpop.f32.mrb[0].mxu0
  %v1524 = vpop.f32.mrb[0].mxu0
  %v1525 = vadd.f32 %v1236, %v1524
  %v1526 = vpop.f32.mrb[0].mxu0
  %1527 = vmatprep.mubr.bf16.mxu0 %v681
  %1528 = vmatmul.mubr.bf16.gmra.mrb[0].mxu0 %v680
  %v1529 = vpop.f32.mrb[0].mxu0
  %v1530 = vadd.f32 %v1241, %v1529
  %v1531 = vpop.f32.mrb[0].mxu0
  %v1532 = vpop.f32.mrb[0].mxu0
  %v1533 = vadd.f32 %v1244, %v1532
  %v1534 = vpop.f32.mrb[0].mxu0
  %1535 = vmatprep.mubr.bf16.mxu0 %v685
  %1536 = vmatmul.mubr.bf16.gmra.mrb[0].mxu0 %v684
  %v1537 = vpop.f32.mrb[0].mxu0
  %v1538 = vadd.f32 %v1249, %v1537
  %v1539 = vpop.f32.mrb[0].mxu0
  %v1540 = vpop.f32.mrb[0].mxu0
  %v1541 = vadd.f32 %v1252, %v1540
  %v1542 = vpop.f32.mrb[0].mxu0
  %1543 = vmatprep.mubr.bf16.mxu0 %v689
  %1544 = vmatmul.mubr.bf16.gmra.mrb[0].mxu0 %v688
  %v1545 = vpop.f32.mrb[0].mxu0
  %v1546 = vadd.f32 %v1257, %v1545
  %v1547 = vpop.f32.mrb[0].mxu0
  %v1548 = vpop.f32.mrb[0].mxu0
  %v1549 = vadd.f32 %v1260, %v1548
  %v1550 = vpop.f32.mrb[0].mxu0
  %1551 = vmatprep.mubr.bf16.mxu0 %v693
  %1552 = vmatmul.mubr.bf16.gmra.mrb[0].mxu0 %v692
  %v1553 = vpop.f32.mrb[0].mxu0
  %v1554 = vadd.f32 %v1265, %v1553
  %v1555 = vpop.f32.mrb[0].mxu0
  %v1556 = vpop.f32.mrb[0].mxu0
  %v1557 = vadd.f32 %v1268, %v1556
  %v1558 = vpop.f32.mrb[0].mxu0
  %1559 = vmatprep.mubr.bf16.mxu0 %v697
  %1560 = vmatmul.mubr.bf16.gmra.mrb[0].mxu0 %v696
  %v1561 = vpop.f32.mrb[0].mxu0
  %v1562 = vadd.f32 %v1273, %v1561
  %v1563 = vpop.f32.mrb[0].mxu0
  %v1564 = vpop.f32.mrb[0].mxu0
  %v1565 = vadd.f32 %v1276, %v1564
  %v1566 = vpop.f32.mrb[0].mxu0
  %1567 = vmatprep.mubr.bf16.mxu0 %v701
  %1568 = vmatmul.mubr.bf16.gmra.mrb[0].mxu0 %v700
  %v1569 = vpop.f32.mrb[0].mxu0
  %v1570 = vadd.f32 %v1281, %v1569
  %v1571 = vpop.f32.mrb[0].mxu0
  %v1572 = vpop.f32.mrb[0].mxu0
  %v1573 = vadd.f32 %v1284, %v1572
  %v1574 = vpop.f32.mrb[0].mxu0
  %1575 = vmatprep.mubr.bf16.mxu0 %v705
  %1576 = vmatmul.mubr.bf16.gmra.mrb[0].mxu0 %v704
  %v1577 = vpop.f32.mrb[0].mxu0
  %v1578 = vadd.f32 %v1289, %v1577
  %v1579 = vpop.f32.mrb[0].mxu0
  %v1580 = vpop.f32.mrb[0].mxu0
  %v1581 = vadd.f32 %v1292, %v1580
  %v1582 = vpop.f32.mrb[0].mxu0
  %1583 = vmatprep.mubr.bf16.mxu0 %v709
  %1584 = vmatmul.mubr.bf16.gmra.mrb[0].mxu0 %v708
  %v1585 = vpop.f32.mrb[0].mxu0
  %v1586 = vadd.f32 %v1297, %v1585
  %v1587 = vpop.f32.mrb[0].mxu0
  %v1588 = vpop.f32.mrb[0].mxu0
  %v1589 = vadd.f32 %v1300, %v1588
  %v1590 = vpop.f32.mrb[0].mxu0
  %1591 = vmatprep.mubr.bf16.mxu0 %v713
  %1592 = vmatmul.mubr.bf16.gmra.mrb[0].mxu0 %v712
  %v1593 = vpop.f32.mrb[0].mxu0
  %v1594 = vadd.f32 %v1305, %v1593
  %v1595 = vpop.f32.mrb[0].mxu0
  %v1596 = vpop.f32.mrb[0].mxu0
  %v1597 = vadd.f32 %v1308, %v1596
  %v1598 = vpop.f32.mrb[0].mxu0
  %1599 = vmatprep.mubr.bf16.mxu0 %v717
  %1600 = vmatmul.mubr.bf16.gmra.mrb[0].mxu0 %v716
  %v1601 = vpop.f32.mrb[0].mxu0
  %v1602 = vadd.f32 %v1313, %v1601
  %v1603 = vpop.f32.mrb[0].mxu0
  %v1604 = vpop.f32.mrb[0].mxu0
  %v1605 = vadd.f32 %v1316, %v1604
  %v1606 = vpop.f32.mrb[0].mxu0
  %1607 = vmatprep.mubr.bf16.mxu0 %v721
  %1608 = vmatmul.mubr.bf16.gmra.mrb[0].mxu0 %v720
  %v1609 = vpop.f32.mrb[0].mxu0
  %v1610 = vadd.f32 %v1321, %v1609
  %v1611 = vpop.f32.mrb[0].mxu0
  %v1612 = vpop.f32.mrb[0].mxu0
  %v1613 = vadd.f32 %v1324, %v1612
  %v1614 = vpop.f32.mrb[0].mxu0
  %1615 = vmatprep.mubr.bf16.mxu0 %v725
  %1616 = vmatmul.mubr.bf16.gmra.mrb[0].mxu0 %v724
  %v1617 = vpop.f32.mrb[0].mxu0
  %v1618 = vadd.f32 %v1329, %v1617
  %v1619 = vpop.f32.mrb[0].mxu0
  %v1620 = vpop.f32.mrb[0].mxu0
  %v1621 = vadd.f32 %v1332, %v1620
  %v1622 = vpop.f32.mrb[0].mxu0
  %1623 = vdwg.mxu0
  %v1624 = vmax.f32 %v1370, 0.0
  %v1625 = vmax.f32 %v1373, 0.0
  %v1626 = vmax.f32 %v1378, 0.0
  %v1627 = vmax.f32 %v1381, 0.0
  %v1628 = vmax.f32 %v1386, 0.0
  %v1629 = vmax.f32 %v1389, 0.0
  %v1630 = vmax.f32 %v1394, 0.0
  %v1631 = vmax.f32 %v1397, 0.0
  %v1632 = vmax.f32 %v1402, 0.0
  %v1633 = vmax.f32 %v1405, 0.0
  %v1634 = vmax.f32 %v1410, 0.0
  %v1635 = vmax.f32 %v1413, 0.0
  %v1636 = vmax.f32 %v1418, 0.0
  %v1637 = vmax.f32 %v1421, 0.0
  %v1638 = vmax.f32 %v1426, 0.0
  %v1639 = vmax.f32 %v1429, 0.0
  %v1640 = vmax.f32 %v1434, 0.0
  %v1641 = vmax.f32 %v1437, 0.0
  %v1642 = vmax.f32 %v1442, 0.0
  %v1643 = vmax.f32 %v1445, 0.0
  %v1644 = vmax.f32 %v1450, 0.0
  %v1645 = vmax.f32 %v1453, 0.0
  %v1646 = vmax.f32 %v1458, 0.0
  %v1647 = vmax.f32 %v1461, 0.0
  %v1648 = vmax.f32 %v1466, 0.0
  %v1649 = vmax.f32 %v1469, 0.0
  %v1650 = vmax.f32 %v1474, 0.0
  %v1651 = vmax.f32 %v1477, 0.0
  %v1652 = vmax.f32 %v1482, 0.0
  %v1653 = vmax.f32 %v1485, 0.0
  %v1654 = vmax.f32 %v1490, 0.0
  %v1655 = vmax.f32 %v1493, 0.0
  %v1656 = vmax.f32 %v1498, 0.0
  %v1657 = vmax.f32 %v1501, 0.0
  %v1658 = vmax.f32 %v1506, 0.0
  %v1659 = vmax.f32 %v1509, 0.0
  %v1660 = vmax.f32 %v1514, 0.0
  %v1661 = vmax.f32 %v1517, 0.0
  %v1662 = vmax.f32 %v1522, 0.0
  %v1663 = vmax.f32 %v1525, 0.0
  %v1664 = vmax.f32 %v1530, 0.0
  %v1665 = vmax.f32 %v1533, 0.0
  %v1666 = vmax.f32 %v1538, 0.0
  %v1667 = vmax.f32 %v1541, 0.0
  %v1668 = vmax.f32 %v1546, 0.0
  %v1669 = vmax.f32 %v1549, 0.0
  %v1670 = vmax.f32 %v1554, 0.0
  %v1671 = vmax.f32 %v1557, 0.0
  %v1672 = vmax.f32 %v1562, 0.0
  %v1673 = vmax.f32 %v1565, 0.0
  %v1674 = vmax.f32 %v1570, 0.0
  %v1675 = vmax.f32 %v1573, 0.0
  %v1676 = vmax.f32 %v1578, 0.0
  %v1677 = vmax.f32 %v1581, 0.0
  %v1678 = vmax.f32 %v1586, 0.0
  %v1679 = vmax.f32 %v1589, 0.0
  %v1680 = vmax.f32 %v1594, 0.0
  %v1681 = vmax.f32 %v1597, 0.0
  %v1682 = vmax.f32 %v1602, 0.0
  %v1683 = vmax.f32 %v1605, 0.0
  %v1684 = vmax.f32 %v1610, 0.0
  %v1685 = vmax.f32 %v1613, 0.0
  %v1686 = vmax.f32 %v1618, 0.0
  %v1687 = vmax.f32 %v1621, 0.0
  %v1688 = vpack.c.bf16 %v1625, %v1624
  %v1689 = vpack.c.bf16 %v1627, %v1626
  %v1690 = vpack.c.bf16 %v1629, %v1628
  %v1691 = vpack.c.bf16 %v1631, %v1630
  %v1692 = vpack.c.bf16 %v1633, %v1632
  %v1693 = vpack.c.bf16 %v1635, %v1634
  %v1694 = vpack.c.bf16 %v1637, %v1636
  %v1695 = vpack.c.bf16 %v1639, %v1638
  %v1696 = vpack.c.bf16 %v1641, %v1640
  %v1697 = vpack.c.bf16 %v1643, %v1642
  %v1698 = vpack.c.bf16 %v1645, %v1644
  %v1699 = vpack.c.bf16 %v1647, %v1646
  %v1700 = vpack.c.bf16 %v1649, %v1648
  %v1701 = vpack.c.bf16 %v1651, %v1650
  %v1702 = vpack.c.bf16 %v1653, %v1652
  %v1703 = vpack.c.bf16 %v1655, %v1654
  %v1704 = vpack.c.bf16 %v1657, %v1656
  %v1705 = vpack.c.bf16 %v1659, %v1658
  %v1706 = vpack.c.bf16 %v1661, %v1660
  %v1707 = vpack.c.bf16 %v1663, %v1662
  %v1708 = vpack.c.bf16 %v1665, %v1664
  %v1709 = vpack.c.bf16 %v1667, %v1666
  %v1710 = vpack.c.bf16 %v1669, %v1668
  %v1711 = vpack.c.bf16 %v1671, %v1670
  %v1712 = vpack.c.bf16 %v1673, %v1672
  %v1713 = vpack.c.bf16 %v1675, %v1674
  %v1714 = vpack.c.bf16 %v1677, %v1676
  %v1715 = vpack.c.bf16 %v1679, %v1678
  %v1716 = vpack.c.bf16 %v1681, %v1680
  %v1717 = vpack.c.bf16 %v1683, %v1682
  %v1718 = vpack.c.bf16 %v1685, %v1684
  %v1719 = vpack.c.bf16 %v1687, %v1686
  %v1752 = vunpack.c.l.b16 %v1688
  %v1753 = vunpack.c.h.b16 %v1688
  %v1754 = vunpack.c.l.b16 %v1689
  %v1755 = vunpack.c.h.b16 %v1689
  %v1756 = vunpack.c.l.b16 %v1690
  %v1757 = vunpack.c.h.b16 %v1690
  %v1758 = vunpack.c.l.b16 %v1691
  %v1759 = vunpack.c.h.b16 %v1691
  %v1760 = vunpack.c.l.b16 %v1692
  %v1761 = vunpack.c.h.b16 %v1692
  %v1762 = vunpack.c.l.b16 %v1693
  %v1763 = vunpack.c.h.b16 %v1693
  %v1764 = vunpack.c.l.b16 %v1694
  %v1765 = vunpack.c.h.b16 %v1694
  %v1766 = vunpack.c.l.b16 %v1695
  %v1767 = vunpack.c.h.b16 %v1695
  %v1768 = vunpack.c.l.b16 %v1696
  %v1769 = vunpack.c.h.b16 %v1696
  %v1770 = vunpack.c.l.b16 %v1697
  %v1771 = vunpack.c.h.b16 %v1697
  %v1772 = vunpack.c.l.b16 %v1698
  %v1773 = vunpack.c.h.b16 %v1698
  %v1774 = vunpack.c.l.b16 %v1699
  %v1775 = vunpack.c.h.b16 %v1699
  %v1776 = vunpack.c.l.b16 %v1700
  %v1777 = vunpack.c.h.b16 %v1700
  %v1778 = vunpack.c.l.b16 %v1701
  %v1779 = vunpack.c.h.b16 %v1701
  %v1780 = vunpack.c.l.b16 %v1702
  %v1781 = vunpack.c.h.b16 %v1702
  %v1782 = vunpack.c.l.b16 %v1703
  %v1783 = vunpack.c.h.b16 %v1703
  %v1784 = vunpack.c.l.b16 %v1704
  %v1785 = vunpack.c.h.b16 %v1704
  %v1786 = vunpack.c.l.b16 %v1705
  %v1787 = vunpack.c.h.b16 %v1705
  %v1788 = vunpack.c.l.b16 %v1706
  %v1789 = vunpack.c.h.b16 %v1706
  %v1790 = vunpack.c.l.b16 %v1707
  %v1791 = vunpack.c.h.b16 %v1707
  %v1792 = vunpack.c.l.b16 %v1708
  %v1793 = vunpack.c.h.b16 %v1708
  %v1794 = vunpack.c.l.b16 %v1709
  %v1795 = vunpack.c.h.b16 %v1709
  %v1796 = vunpack.c.l.b16 %v1710
  %v1797 = vunpack.c.h.b16 %v1710
  %v1798 = vunpack.c.l.b16 %v1711
  %v1799 = vunpack.c.h.b16 %v1711
  %v1800 = vunpack.c.l.b16 %v1712
  %v1801 = vunpack.c.h.b16 %v1712
  %v1802 = vunpack.c.l.b16 %v1713
  %v1803 = vunpack.c.h.b16 %v1713
  %v1804 = vunpack.c.l.b16 %v1714
  %v1805 = vunpack.c.h.b16 %v1714
  %v1806 = vunpack.c.l.b16 %v1715
  %v1807 = vunpack.c.h.b16 %v1715
  %v1808 = vunpack.c.l.b16 %v1716
  %v1809 = vunpack.c.h.b16 %v1716
  %v1810 = vunpack.c.l.b16 %v1717
  %v1811 = vunpack.c.h.b16 %v1717
  %v1812 = vunpack.c.l.b16 %v1718
  %v1813 = vunpack.c.h.b16 %v1718
  %v1814 = vunpack.c.l.b16 %v1719
  %v1815 = vunpack.c.h.b16 %v1719
  %v1816 = vpack.c.b16 %v1752, %v1752
  %v1817 = vpack.c.b16 %v1753, %v1753
  %v1818 = vpack.c.b16 %v1754, %v1754
  %v1819 = vpack.c.b16 %v1755, %v1755
  %v1820 = vpack.c.b16 %v1756, %v1756
  %v1821 = vpack.c.b16 %v1757, %v1757
  %v1822 = vpack.c.b16 %v1758, %v1758
  %v1823 = vpack.c.b16 %v1759, %v1759
  %v1824 = vpack.c.b16 %v1760, %v1760
  %v1825 = vpack.c.b16 %v1761, %v1761
  %v1826 = vpack.c.b16 %v1762, %v1762
  %v1827 = vpack.c.b16 %v1763, %v1763
  %v1828 = vpack.c.b16 %v1764, %v1764
  %v1829 = vpack.c.b16 %v1765, %v1765
  %v1830 = vpack.c.b16 %v1766, %v1766
  %v1831 = vpack.c.b16 %v1767, %v1767
  %v1832 = vpack.c.b16 %v1768, %v1768
  %v1833 = vpack.c.b16 %v1769, %v1769
  %v1834 = vpack.c.b16 %v1770, %v1770
  %v1835 = vpack.c.b16 %v1771, %v1771
  %v1836 = vpack.c.b16 %v1772, %v1772
  %v1837 = vpack.c.b16 %v1773, %v1773
  %v1838 = vpack.c.b16 %v1774, %v1774
  %v1839 = vpack.c.b16 %v1775, %v1775
  %v1840 = vpack.c.b16 %v1776, %v1776
  %v1841 = vpack.c.b16 %v1777, %v1777
  %v1842 = vpack.c.b16 %v1778, %v1778
  %v1843 = vpack.c.b16 %v1779, %v1779
  %v1844 = vpack.c.b16 %v1780, %v1780
  %v1845 = vpack.c.b16 %v1781, %v1781
  %v1846 = vpack.c.b16 %v1782, %v1782
  %v1847 = vpack.c.b16 %v1783, %v1783
  %v1848 = vpack.c.b16 %v1784, %v1784
  %v1849 = vpack.c.b16 %v1785, %v1785
  %v1850 = vpack.c.b16 %v1786, %v1786
  %v1851 = vpack.c.b16 %v1787, %v1787
  %v1852 = vpack.c.b16 %v1788, %v1788
  %v1853 = vpack.c.b16 %v1789, %v1789
  %v1854 = vpack.c.b16 %v1790, %v1790
  %v1855 = vpack.c.b16 %v1791, %v1791
  %v1856 = vpack.c.b16 %v1792, %v1792
  %v1857 = vpack.c.b16 %v1793, %v1793
  %v1858 = vpack.c.b16 %v1794, %v1794
  %v1859 = vpack.c.b16 %v1795, %v1795
  %v1860 = vpack.c.b16 %v1796, %v1796
  %v1861 = vpack.c.b16 %v1797, %v1797
  %v1862 = vpack.c.b16 %v1798, %v1798
  %v1863 = vpack.c.b16 %v1799, %v1799
  %v1864 = vpack.c.b16 %v1800, %v1800
  %v1865 = vpack.c.b16 %v1801, %v1801
  %v1866 = vpack.c.b16 %v1802, %v1802
  %v1867 = vpack.c.b16 %v1803, %v1803
  %v1868 = vpack.c.b16 %v1804, %v1804
  %v1869 = vpack.c.b16 %v1805, %v1805
  %v1870 = vpack.c.b16 %v1806, %v1806
  %v1871 = vpack.c.b16 %v1807, %v1807
  %v1872 = vpack.c.b16 %v1808, %v1808
  %v1873 = vpack.c.b16 %v1809, %v1809
  %v1874 = vpack.c.b16 %v1810, %v1810
  %v1875 = vpack.c.b16 %v1811, %v1811
  %v1876 = vpack.c.b16 %v1812, %v1812
  %v1877 = vpack.c.b16 %v1813, %v1813
  %v1878 = vpack.c.b16 %v1814, %v1814
  %v1879 = vpack.c.b16 %v1815, %v1815
  %1944 = vst [vmem:[%s3] sm:$0xf] %v1816
  %1945 = vst [vmem:[%s3 + $0x4] sm:$0xf] %v1817
  %1946 = vst [vmem:[%s3 + $0x8] sm:$0xf] %v1818
  %1947 = vst [vmem:[%s3 + $0xc] sm:$0xf] %v1819
  %1948 = vst [vmem:[%s3 + $0x10] sm:$0xf] %v1820
  %1949 = vst [vmem:[%s3 + $0x14] sm:$0xf] %v1821
  %1950 = vst [vmem:[%s3 + $0x18] sm:$0xf] %v1822
  %1951 = vst [vmem:[%s3 + $0x1c] sm:$0xf] %v1823
  %1952 = vst [vmem:[%s3 + $0x20] sm:$0xf] %v1824
  %1953 = vst [vmem:[%s3 + $0x24] sm:$0xf] %v1825
  %1954 = vst [vmem:[%s3 + $0x28] sm:$0xf] %v1826
  %1955 = vst [vmem:[%s3 + $0x2c] sm:$0xf] %v1827
  %1956 = vst [vmem:[%s3 + $0x30] sm:$0xf] %v1828
  %1957 = vst [vmem:[%s3 + $0x34] sm:$0xf] %v1829
  %1958 = vst [vmem:[%s3 + $0x38] sm:$0xf] %v1830
  %1959 = vst [vmem:[%s3 + $0x3c] sm:$0xf] %v1831
  %1960 = vst [vmem:[%s3 + $0x40] sm:$0xf] %v1832
  %1961 = vst [vmem:[%s3 + $0x44] sm:$0xf] %v1833
  %1962 = vst [vmem:[%s3 + $0x48] sm:$0xf] %v1834
  %1963 = vst [vmem:[%s3 + $0x4c] sm:$0xf] %v1835
  %1964 = vst [vmem:[%s3 + $0x50] sm:$0xf] %v1836
  %1965 = vst [vmem:[%s3 + $0x54] sm:$0xf] %v1837
  %1966 = vst [vmem:[%s3 + $0x58] sm:$0xf] %v1838
  %1967 = vst [vmem:[%s3 + $0x5c] sm:$0xf] %v1839
  %1968 = vst [vmem:[%s3 + $0x60] sm:$0xf] %v1840
  %1969 = vst [vmem:[%s3 + $0x64] sm:$0xf] %v1841
  %1970 = vst [vmem:[%s3 + $0x68] sm:$0xf] %v1842
  %1971 = vst [vmem:[%s3 + $0x6c] sm:$0xf] %v1843
  %1972 = vst [vmem:[%s3 + $0x70] sm:$0xf] %v1844
  %1973 = vst [vmem:[%s3 + $0x74] sm:$0xf] %v1845
  %1974 = vst [vmem:[%s3 + $0x78] sm:$0xf] %v1846
  %1975 = vst [vmem:[%s3 + $0x7c] sm:$0xf] %v1847
  %1976 = vst [vmem:[%s3 + $0x80] sm:$0xf] %v1848
  %1977 = vst [vmem:[%s3 + $0x84] sm:$0xf] %v1849
  %1978 = vst [vmem:[%s3 + $0x88] sm:$0xf] %v1850
  %1979 = vst [vmem:[%s3 + $0x8c] sm:$0xf] %v1851
  %1980 = vst [vmem:[%s3 + $0x90] sm:$0xf] %v1852
  %1981 = vst [vmem:[%s3 + $0x94] sm:$0xf] %v1853
  %1982 = vst [vmem:[%s3 + $0x98] sm:$0xf] %v1854
  %1983 = vst [vmem:[%s3 + $0x9c] sm:$0xf] %v1855
  %1984 = vst [vmem:[%s3 + $0xa0] sm:$0xf] %v1856
  %1985 = vst [vmem:[%s3 + $0xa4] sm:$0xf] %v1857
  %1986 = vst [vmem:[%s3 + $0xa8] sm:$0xf] %v1858
  %1987 = vst [vmem:[%s3 + $0xac] sm:$0xf] %v1859
  %1988 = vst [vmem:[%s3 + $0xb0] sm:$0xf] %v1860
  %1989 = vst [vmem:[%s3 + $0xb4] sm:$0xf] %v1861
  %1990 = vst [vmem:[%s3 + $0xb8] sm:$0xf] %v1862
  %1991 = vst [vmem:[%s3 + $0xbc] sm:$0xf] %v1863
  %1992 = vst [vmem:[%s3 + $0xc0] sm:$0xf] %v1864
  %1993 = vst [vmem:[%s3 + $0xc4] sm:$0xf] %v1865
  %1994 = vst [vmem:[%s3 + $0xc8] sm:$0xf] %v1866
  %1995 = vst [vmem:[%s3 + $0xcc] sm:$0xf] %v1867
  %1996 = vst [vmem:[%s3 + $0xd0] sm:$0xf] %v1868
  %1997 = vst [vmem:[%s3 + $0xd4] sm:$0xf] %v1869
  %1998 = vst [vmem:[%s3 + $0xd8] sm:$0xf] %v1870
  %1999 = vst [vmem:[%s3 + $0xdc] sm:$0xf] %v1871
  %2000 = vst [vmem:[%s3 + $0xe0] sm:$0xf] %v1872
  %2001 = vst [vmem:[%s3 + $0xe4] sm:$0xf] %v1873
  %2002 = vst [vmem:[%s3 + $0xe8] sm:$0xf] %v1874
  %2003 = vst [vmem:[%s3 + $0xec] sm:$0xf] %v1875
  %2004 = vst [vmem:[%s3 + $0xf0] sm:$0xf] %v1876
  %2005 = vst [vmem:[%s3 + $0xf4] sm:$0xf] %v1877
  %2006 = vst [vmem:[%s3 + $0xf8] sm:$0xf] %v1878
  %2007 = vst [vmem:[%s3 + $0xfc] sm:$0xf] %v1879
  // Predicated region
  $region14: #{encoder_forward.6} parent=0 // pred_check
    _
  $region15: #{encoder_forward.6} parent=0 // pred_check_branch
    %2009 = sbr.rel (0) target = $region17
  $region16: #{encoder_forward.6} parent=0 // pred_region
    _
  $region17: #{encoder_forward.6} parent=0 // pred_fallthru
    _
  // Predicated region
  $region18: #{encoder_forward.6} parent=0 // pred_check
    _
  $region19: #{encoder_forward.6} parent=0 // pred_check_branch
    %2011 = sbr.rel (0) target = $region21
  $region20: #{encoder_forward.6} parent=0 // pred_region
    _
  $region21: #{encoder_forward.6} parent=0 // pred_fallthru
    _

// kernel: encoder_forward.7
$region0: #{encoder_forward.7}
  #allocation0 [shape = 'u32[]', space=smem, size = 0x4, offset = 0x4, fixed_abs, tag = 'smem constant byte address 0x4 - core index']
  #allocation1 [shape = 'u32[144,128]{1,0:T(1,128)}', space=vmem, size = 0x12000, scoped, tag = 'internal scratch']
  %s0 = inlined_call_operand.vmem [shape: bf16[128,2048], index: 0, kind: input, shape index: {}]
  %s1 = inlined_call_operand.vmem [shape: bf16[2048,256], index: 1, kind: input, shape index: {}]
  %s2 = inlined_call_operand.vmem [shape: f32[1,256], index: 2, kind: input, shape index: {}]
  %s3 = inlined_call_operand.vmem [shape: bf16[128,256], index: 3, kind: output, shape index: {}]
  %s4 = sld [smem:[#allocation0]]
  $region22: #{encoder_forward.7} parent=0
    _
  %s6 = ssub.s32 1, %s4
  %s7 = scalar_select 0, %s6, %s4
  // Predicated region
  $region2: #{encoder_forward.7} parent=0 // pred_check
    _
  $region3: #{encoder_forward.7} parent=0 // pred_check_branch
    %9 = sbr.rel (0) target = $region5
  $region4: #{encoder_forward.7} parent=0 // pred_region
    _
  $region5: #{encoder_forward.7} parent=0 // pred_fallthru
    _
  // Predicated region
  $region6: #{encoder_forward.7} parent=0 // pred_check
    _
  $region7: #{encoder_forward.7} parent=0 // pred_check_branch
    %11 = sbr.rel (0) target = $region9
  $region8: #{encoder_forward.7} parent=0 // pred_region
    _
  $region9: #{encoder_forward.7} parent=0 // pred_fallthru
    _
  // Predicated region
  $region10: #{encoder_forward.7} parent=0 // pred_check
    _
  $region11: #{encoder_forward.7} parent=0 // pred_check_branch
    %13 = sbr.rel (0) target = $region13
  $region12: #{encoder_forward.7} parent=0 // pred_region
    _
  $region13: #{encoder_forward.7} parent=0 // pred_fallthru
    _
  %v14 = vld [vmem:[%s0] sm:$0xff]
  %v15 = vld [vmem:[%s0 + $0x8] sm:$0xff]
  %v16 = vld [vmem:[%s0 + $0x10] sm:$0xff]
  %v17 = vld [vmem:[%s0 + $0x18] sm:$0xff]
  %v18 = vld [vmem:[%s0 + $0x20] sm:$0xff]
  %v19 = vld [vmem:[%s0 + $0x28] sm:$0xff]
  %v20 = vld [vmem:[%s0 + $0x30] sm:$0xff]
  %v21 = vld [vmem:[%s0 + $0x38] sm:$0xff]
  %v22 = vld [vmem:[%s0 + $0x40] sm:$0xff]
  %v23 = vld [vmem:[%s0 + $0x48] sm:$0xff]
  %v24 = vld [vmem:[%s0 + $0x50] sm:$0xff]
  %v25 = vld [vmem:[%s0 + $0x58] sm:$0xff]
  %v26 = vld [vmem:[%s0 + $0x60] sm:$0xff]
  %v27 = vld [vmem:[%s0 + $0x68] sm:$0xff]
  %v28 = vld [vmem:[%s0 + $0x70] sm:$0xff]
  %v29 = vld [vmem:[%s0 + $0x78] sm:$0xff]
  %v30 = vld [vmem:[%s0 + $0x80] sm:$0xff]
  %v31 = vld [vmem:[%s0 + $0x88] sm:$0xff]
  %v32 = vld [vmem:[%s0 + $0x90] sm:$0xff]
  %v33 = vld [vmem:[%s0 + $0x98] sm:$0xff]
  %v34 = vld [vmem:[%s0 + $0xa0] sm:$0xff]
  %v35 = vld [vmem:[%s0 + $0xa8] sm:$0xff]
  %v36 = vld [vmem:[%s0 + $0xb0] sm:$0xff]
  %v37 = vld [vmem:[%s0 + $0xb8] sm:$0xff]
  %v38 = vld [vmem:[%s0 + $0xc0] sm:$0xff]
  %v39 = vld [vmem:[%s0 + $0xc8] sm:$0xff]
  %v40 = vld [vmem:[%s0 + $0xd0] sm:$0xff]
  %v41 = vld [vmem:[%s0 + $0xd8] sm:$0xff]
  %v42 = vld [vmem:[%s0 + $0xe0] sm:$0xff]
  %v43 = vld [vmem:[%s0 + $0xe8] sm:$0xff]
  %v44 = vld [vmem:[%s0 + $0xf0] sm:$0xff]
  %v45 = vld [vmem:[%s0 + $0xf8] sm:$0xff]
  %v46 = vld [vmem:[%s0 + $0x100] sm:$0xff]
  %v47 = vld [vmem:[%s0 + $0x108] sm:$0xff]
  %v48 = vld [vmem:[%s0 + $0x110] sm:$0xff]
  %v49 = vld [vmem:[%s0 + $0x118] sm:$0xff]
  %v50 = vld [vmem:[%s0 + $0x120] sm:$0xff]
  %v51 = vld [vmem:[%s0 + $0x128] sm:$0xff]
  %v52 = vld [vmem:[%s0 + $0x130] sm:$0xff]
  %v53 = vld [vmem:[%s0 + $0x138] sm:$0xff]
  %v54 = vld [vmem:[%s0 + $0x140] sm:$0xff]
  %v55 = vld [vmem:[%s0 + $0x148] sm:$0xff]
  %v56 = vld [vmem:[%s0 + $0x150] sm:$0xff]
  %v57 = vld [vmem:[%s0 + $0x158] sm:$0xff]
  %v58 = vld [vmem:[%s0 + $0x160] sm:$0xff]
  %v59 = vld [vmem:[%s0 + $0x168] sm:$0xff]
  %v60 = vld [vmem:[%s0 + $0x170] sm:$0xff]
  %v61 = vld [vmem:[%s0 + $0x178] sm:$0xff]
  %v62 = vld [vmem:[%s0 + $0x180] sm:$0xff]
  %v63 = vld [vmem:[%s0 + $0x188] sm:$0xff]
  %v64 = vld [vmem:[%s0 + $0x190] sm:$0xff]
  %v65 = vld [vmem:[%s0 + $0x198] sm:$0xff]
  %v66 = vld [vmem:[%s0 + $0x1a0] sm:$0xff]
  %v67 = vld [vmem:[%s0 + $0x1a8] sm:$0xff]
  %v68 = vld [vmem:[%s0 + $0x1b0] sm:$0xff]
  %v69 = vld [vmem:[%s0 + $0x1b8] sm:$0xff]
  %v70 = vld [vmem:[%s0 + $0x1c0] sm:$0xff]
  %v71 = vld [vmem:[%s0 + $0x1c8] sm:$0xff]
  %v72 = vld [vmem:[%s0 + $0x1d0] sm:$0xff]
  %v73 = vld [vmem:[%s0 + $0x1d8] sm:$0xff]
  %v74 = vld [vmem:[%s0 + $0x1e0] sm:$0xff]
  %v75 = vld [vmem:[%s0 + $0x1e8] sm:$0xff]
  %v76 = vld [vmem:[%s0 + $0x1f0] sm:$0xff]
  %v77 = vld [vmem:[%s0 + $0x1f8] sm:$0xff]
  %v78 = vld [vmem:[%s0 + $0x200] sm:$0xff]
  %v79 = vld [vmem:[%s0 + $0x208] sm:$0xff]
  %v80 = vld [vmem:[%s0 + $0x210] sm:$0xff]
  %v81 = vld [vmem:[%s0 + $0x218] sm:$0xff]
  %v82 = vld [vmem:[%s0 + $0x220] sm:$0xff]
  %v83 = vld [vmem:[%s0 + $0x228] sm:$0xff]
  %v84 = vld [vmem:[%s0 + $0x230] sm:$0xff]
  %v85 = vld [vmem:[%s0 + $0x238] sm:$0xff]
  %v86 = vld [vmem:[%s0 + $0x240] sm:$0xff]
  %v87 = vld [vmem:[%s0 + $0x248] sm:$0xff]
  %v88 = vld [vmem:[%s0 + $0x250] sm:$0xff]
  %v89 = vld [vmem:[%s0 + $0x258] sm:$0xff]
  %v90 = vld [vmem:[%s0 + $0x260] sm:$0xff]
  %v91 = vld [vmem:[%s0 + $0x268] sm:$0xff]
  %v92 = vld [vmem:[%s0 + $0x270] sm:$0xff]
  %v93 = vld [vmem:[%s0 + $0x278] sm:$0xff]
  %v94 = vld [vmem:[%s0 + $0x280] sm:$0xff]
  %v95 = vld [vmem:[%s0 + $0x288] sm:$0xff]
  %v96 = vld [vmem:[%s0 + $0x290] sm:$0xff]
  %v97 = vld [vmem:[%s0 + $0x298] sm:$0xff]
  %v98 = vld [vmem:[%s0 + $0x2a0] sm:$0xff]
  %v99 = vld [vmem:[%s0 + $0x2a8] sm:$0xff]
  %v100 = vld [vmem:[%s0 + $0x2b0] sm:$0xff]
  %v101 = vld [vmem:[%s0 + $0x2b8] sm:$0xff]
  %v102 = vld [vmem:[%s0 + $0x2c0] sm:$0xff]
  %v103 = vld [vmem:[%s0 + $0x2c8] sm:$0xff]
  %v104 = vld [vmem:[%s0 + $0x2d0] sm:$0xff]
  %v105 = vld [vmem:[%s0 + $0x2d8] sm:$0xff]
  %v106 = vld [vmem:[%s0 + $0x2e0] sm:$0xff]
  %v107 = vld [vmem:[%s0 + $0x2e8] sm:$0xff]
  %v108 = vld [vmem:[%s0 + $0x2f0] sm:$0xff]
  %v109 = vld [vmem:[%s0 + $0x2f8] sm:$0xff]
  %v110 = vld [vmem:[%s0 + $0x300] sm:$0xff]
  %v111 = vld [vmem:[%s0 + $0x308] sm:$0xff]
  %v112 = vld [vmem:[%s0 + $0x310] sm:$0xff]
  %v113 = vld [vmem:[%s0 + $0x318] sm:$0xff]
  %v114 = vld [vmem:[%s0 + $0x320] sm:$0xff]
  %v115 = vld [vmem:[%s0 + $0x328] sm:$0xff]
  %v116 = vld [vmem:[%s0 + $0x330] sm:$0xff]
  %v117 = vld [vmem:[%s0 + $0x338] sm:$0xff]
  %v118 = vld [vmem:[%s0 + $0x340] sm:$0xff]
  %v119 = vld [vmem:[%s0 + $0x348] sm:$0xff]
  %v120 = vld [vmem:[%s0 + $0x350] sm:$0xff]
  %v121 = vld [vmem:[%s0 + $0x358] sm:$0xff]
  %v122 = vld [vmem:[%s0 + $0x360] sm:$0xff]
  %v123 = vld [vmem:[%s0 + $0x368] sm:$0xff]
  %v124 = vld [vmem:[%s0 + $0x370] sm:$0xff]
  %v125 = vld [vmem:[%s0 + $0x378] sm:$0xff]
  %v126 = vld [vmem:[%s0 + $0x380] sm:$0xff]
  %v127 = vld [vmem:[%s0 + $0x388] sm:$0xff]
  %v128 = vld [vmem:[%s0 + $0x390] sm:$0xff]
  %v129 = vld [vmem:[%s0 + $0x398] sm:$0xff]
  %v130 = vld [vmem:[%s0 + $0x3a0] sm:$0xff]
  %v131 = vld [vmem:[%s0 + $0x3a8] sm:$0xff]
  %v132 = vld [vmem:[%s0 + $0x3b0] sm:$0xff]
  %v133 = vld [vmem:[%s0 + $0x3b8] sm:$0xff]
  %v134 = vld [vmem:[%s0 + $0x3c0] sm:$0xff]
  %v135 = vld [vmem:[%s0 + $0x3c8] sm:$0xff]
  %v136 = vld [vmem:[%s0 + $0x3d0] sm:$0xff]
  %v137 = vld [vmem:[%s0 + $0x3d8] sm:$0xff]
  %v138 = vld [vmem:[%s0 + $0x3e0] sm:$0xff]
  %v139 = vld [vmem:[%s0 + $0x3e8] sm:$0xff]
  %v140 = vld [vmem:[%s0 + $0x3f0] sm:$0xff]
  %v141 = vld [vmem:[%s0 + $0x3f8] sm:$0xff]
  %v142 = vld [vmem:[%s1] sm:$0xff]
  %v143 = vld [vmem:[%s1 + $0x8] sm:$0xff]
  %v144 = vld [vmem:[%s1 + $0x10] sm:$0xff]
  %v145 = vld [vmem:[%s1 + $0x18] sm:$0xff]
  %v146 = vld [vmem:[%s1 + $0x20] sm:$0xff]
  %v147 = vld [vmem:[%s1 + $0x28] sm:$0xff]
  %v148 = vld [vmem:[%s1 + $0x30] sm:$0xff]
  %v149 = vld [vmem:[%s1 + $0x38] sm:$0xff]
  %v150 = vld [vmem:[%s1 + $0x40] sm:$0xff]
  %v151 = vld [vmem:[%s1 + $0x48] sm:$0xff]
  %v152 = vld [vmem:[%s1 + $0x50] sm:$0xff]
  %v153 = vld [vmem:[%s1 + $0x58] sm:$0xff]
  %v154 = vld [vmem:[%s1 + $0x60] sm:$0xff]
  %v155 = vld [vmem:[%s1 + $0x68] sm:$0xff]
  %v156 = vld [vmem:[%s1 + $0x70] sm:$0xff]
  %v157 = vld [vmem:[%s1 + $0x78] sm:$0xff]
  %v158 = vld [vmem:[%s1 + $0x80] sm:$0xff]
  %v159 = vld [vmem:[%s1 + $0x88] sm:$0xff]
  %v160 = vld [vmem:[%s1 + $0x90] sm:$0xff]
  %v161 = vld [vmem:[%s1 + $0x98] sm:$0xff]
  %v162 = vld [vmem:[%s1 + $0xa0] sm:$0xff]
  %v163 = vld [vmem:[%s1 + $0xa8] sm:$0xff]
  %v164 = vld [vmem:[%s1 + $0xb0] sm:$0xff]
  %v165 = vld [vmem:[%s1 + $0xb8] sm:$0xff]
  %v166 = vld [vmem:[%s1 + $0xc0] sm:$0xff]
  %v167 = vld [vmem:[%s1 + $0xc8] sm:$0xff]
  %v168 = vld [vmem:[%s1 + $0xd0] sm:$0xff]
  %v169 = vld [vmem:[%s1 + $0xd8] sm:$0xff]
  %v170 = vld [vmem:[%s1 + $0xe0] sm:$0xff]
  %v171 = vld [vmem:[%s1 + $0xe8] sm:$0xff]
  %v172 = vld [vmem:[%s1 + $0xf0] sm:$0xff]
  %v173 = vld [vmem:[%s1 + $0xf8] sm:$0xff]
  %v174 = vld [vmem:[%s1 + $0x100] sm:$0xff]
  %v175 = vld [vmem:[%s1 + $0x108] sm:$0xff]
  %v176 = vld [vmem:[%s1 + $0x110] sm:$0xff]
  %v177 = vld [vmem:[%s1 + $0x118] sm:$0xff]
  %v178 = vld [vmem:[%s1 + $0x120] sm:$0xff]
  %v179 = vld [vmem:[%s1 + $0x128] sm:$0xff]
  %v180 = vld [vmem:[%s1 + $0x130] sm:$0xff]
  %v181 = vld [vmem:[%s1 + $0x138] sm:$0xff]
  %v182 = vld [vmem:[%s1 + $0x140] sm:$0xff]
  %v183 = vld [vmem:[%s1 + $0x148] sm:$0xff]
  %v184 = vld [vmem:[%s1 + $0x150] sm:$0xff]
  %v185 = vld [vmem:[%s1 + $0x158] sm:$0xff]
  %v186 = vld [vmem:[%s1 + $0x160] sm:$0xff]
  %v187 = vld [vmem:[%s1 + $0x168] sm:$0xff]
  %v188 = vld [vmem:[%s1 + $0x170] sm:$0xff]
  %v189 = vld [vmem:[%s1 + $0x178] sm:$0xff]
  %v190 = vld [vmem:[%s1 + $0x180] sm:$0xff]
  %v191 = vld [vmem:[%s1 + $0x188] sm:$0xff]
  %v192 = vld [vmem:[%s1 + $0x190] sm:$0xff]
  %v193 = vld [vmem:[%s1 + $0x198] sm:$0xff]
  %v194 = vld [vmem:[%s1 + $0x1a0] sm:$0xff]
  %v195 = vld [vmem:[%s1 + $0x1a8] sm:$0xff]
  %v196 = vld [vmem:[%s1 + $0x1b0] sm:$0xff]
  %v197 = vld [vmem:[%s1 + $0x1b8] sm:$0xff]
  %v198 = vld [vmem:[%s1 + $0x1c0] sm:$0xff]
  %v199 = vld [vmem:[%s1 + $0x1c8] sm:$0xff]
  %v200 = vld [vmem:[%s1 + $0x1d0] sm:$0xff]
  %v201 = vld [vmem:[%s1 + $0x1d8] sm:$0xff]
  %v202 = vld [vmem:[%s1 + $0x1e0] sm:$0xff]
  %v203 = vld [vmem:[%s1 + $0x1e8] sm:$0xff]
  %v204 = vld [vmem:[%s1 + $0x1f0] sm:$0xff]
  %v205 = vld [vmem:[%s1 + $0x1f8] sm:$0xff]
  %v206 = vld [vmem:[%s1 + $0x200] sm:$0xff]
  %v207 = vld [vmem:[%s1 + $0x208] sm:$0xff]
  %v208 = vld [vmem:[%s1 + $0x210] sm:$0xff]
  %v209 = vld [vmem:[%s1 + $0x218] sm:$0xff]
  %v210 = vld [vmem:[%s1 + $0x220] sm:$0xff]
  %v211 = vld [vmem:[%s1 + $0x228] sm:$0xff]
  %v212 = vld [vmem:[%s1 + $0x230] sm:$0xff]
  %v213 = vld [vmem:[%s1 + $0x238] sm:$0xff]
  %v214 = vld [vmem:[%s1 + $0x240] sm:$0xff]
  %v215 = vld [vmem:[%s1 + $0x248] sm:$0xff]
  %v216 = vld [vmem:[%s1 + $0x250] sm:$0xff]
  %v217 = vld [vmem:[%s1 + $0x258] sm:$0xff]
  %v218 = vld [vmem:[%s1 + $0x260] sm:$0xff]
  %v219 = vld [vmem:[%s1 + $0x268] sm:$0xff]
  %v220 = vld [vmem:[%s1 + $0x270] sm:$0xff]
  %v221 = vld [vmem:[%s1 + $0x278] sm:$0xff]
  %v222 = vld [vmem:[%s1 + $0x280] sm:$0xff]
  %v223 = vld [vmem:[%s1 + $0x288] sm:$0xff]
  %v224 = vld [vmem:[%s1 + $0x290] sm:$0xff]
  %v225 = vld [vmem:[%s1 + $0x298] sm:$0xff]
  %v226 = vld [vmem:[%s1 + $0x2a0] sm:$0xff]
  %v227 = vld [vmem:[%s1 + $0x2a8] sm:$0xff]
  %v228 = vld [vmem:[%s1 + $0x2b0] sm:$0xff]
  %v229 = vld [vmem:[%s1 + $0x2b8] sm:$0xff]
  %v230 = vld [vmem:[%s1 + $0x2c0] sm:$0xff]
  %v231 = vld [vmem:[%s1 + $0x2c8] sm:$0xff]
  %v232 = vld [vmem:[%s1 + $0x2d0] sm:$0xff]
  %v233 = vld [vmem:[%s1 + $0x2d8] sm:$0xff]
  %v234 = vld [vmem:[%s1 + $0x2e0] sm:$0xff]
  %v235 = vld [vmem:[%s1 + $0x2e8] sm:$0xff]
  %v236 = vld [vmem:[%s1 + $0x2f0] sm:$0xff]
  %v237 = vld [vmem:[%s1 + $0x2f8] sm:$0xff]
  %v238 = vld [vmem:[%s1 + $0x300] sm:$0xff]
  %v239 = vld [vmem:[%s1 + $0x308] sm:$0xff]
  %v240 = vld [vmem:[%s1 + $0x310] sm:$0xff]
  %v241 = vld [vmem:[%s1 + $0x318] sm:$0xff]
  %v242 = vld [vmem:[%s1 + $0x320] sm:$0xff]
  %v243 = vld [vmem:[%s1 + $0x328] sm:$0xff]
  %v244 = vld [vmem:[%s1 + $0x330] sm:$0xff]
  %v245 = vld [vmem:[%s1 + $0x338] sm:$0xff]
  %v246 = vld [vmem:[%s1 + $0x340] sm:$0xff]
  %v247 = vld [vmem:[%s1 + $0x348] sm:$0xff]
  %v248 = vld [vmem:[%s1 + $0x350] sm:$0xff]
  %v249 = vld [vmem:[%s1 + $0x358] sm:$0xff]
  %v250 = vld [vmem:[%s1 + $0x360] sm:$0xff]
  %v251 = vld [vmem:[%s1 + $0x368] sm:$0xff]
  %v252 = vld [vmem:[%s1 + $0x370] sm:$0xff]
  %v253 = vld [vmem:[%s1 + $0x378] sm:$0xff]
  %v254 = vld [vmem:[%s1 + $0x380] sm:$0xff]
  %v255 = vld [vmem:[%s1 + $0x388] sm:$0xff]
  %v256 = vld [vmem:[%s1 + $0x390] sm:$0xff]
  %v257 = vld [vmem:[%s1 + $0x398] sm:$0xff]
  %v258 = vld [vmem:[%s1 + $0x3a0] sm:$0xff]
  %v259 = vld [vmem:[%s1 + $0x3a8] sm:$0xff]
  %v260 = vld [vmem:[%s1 + $0x3b0] sm:$0xff]
  %v261 = vld [vmem:[%s1 + $0x3b8] sm:$0xff]
  %v262 = vld [vmem:[%s1 + $0x3c0] sm:$0xff]
  %v263 = vld [vmem:[%s1 + $0x3c8] sm:$0xff]
  %v264 = vld [vmem:[%s1 + $0x3d0] sm:$0xff]
  %v265 = vld [vmem:[%s1 + $0x3d8] sm:$0xff]
  %v266 = vld [vmem:[%s1 + $0x3e0] sm:$0xff]
  %v267 = vld [vmem:[%s1 + $0x3e8] sm:$0xff]
  %v268 = vld [vmem:[%s1 + $0x3f0] sm:$0xff]
  %v269 = vld [vmem:[%s1 + $0x3f8] sm:$0xff]
  %v270 = vld [vmem:[%s1 + $0x400] sm:$0xff]
  %v271 = vld [vmem:[%s1 + $0x408] sm:$0xff]
  %v272 = vld [vmem:[%s1 + $0x410] sm:$0xff]
  %v273 = vld [vmem:[%s1 + $0x418] sm:$0xff]
  %v274 = vld [vmem:[%s1 + $0x420] sm:$0xff]
  %v275 = vld [vmem:[%s1 + $0x428] sm:$0xff]
  %v276 = vld [vmem:[%s1 + $0x430] sm:$0xff]
  %v277 = vld [vmem:[%s1 + $0x438] sm:$0xff]
  %v278 = vld [vmem:[%s1 + $0x440] sm:$0xff]
  %v279 = vld [vmem:[%s1 + $0x448] sm:$0xff]
  %v280 = vld [vmem:[%s1 + $0x450] sm:$0xff]
  %v281 = vld [vmem:[%s1 + $0x458] sm:$0xff]
  %v282 = vld [vmem:[%s1 + $0x460] sm:$0xff]
  %v283 = vld [vmem:[%s1 + $0x468] sm:$0xff]
  %v284 = vld [vmem:[%s1 + $0x470] sm:$0xff]
  %v285 = vld [vmem:[%s1 + $0x478] sm:$0xff]
  %v286 = vld [vmem:[%s1 + $0x480] sm:$0xff]
  %v287 = vld [vmem:[%s1 + $0x488] sm:$0xff]
  %v288 = vld [vmem:[%s1 + $0x490] sm:$0xff]
  %v289 = vld [vmem:[%s1 + $0x498] sm:$0xff]
  %v290 = vld [vmem:[%s1 + $0x4a0] sm:$0xff]
  %v291 = vld [vmem:[%s1 + $0x4a8] sm:$0xff]
  %v292 = vld [vmem:[%s1 + $0x4b0] sm:$0xff]
  %v293 = vld [vmem:[%s1 + $0x4b8] sm:$0xff]
  %v294 = vld [vmem:[%s1 + $0x4c0] sm:$0xff]
  %v295 = vld [vmem:[%s1 + $0x4c8] sm:$0xff]
  %v296 = vld [vmem:[%s1 + $0x4d0] sm:$0xff]
  %v297 = vld [vmem:[%s1 + $0x4d8] sm:$0xff]
  %v298 = vld [vmem:[%s1 + $0x4e0] sm:$0xff]
  %v299 = vld [vmem:[%s1 + $0x4e8] sm:$0xff]
  %v300 = vld [vmem:[%s1 + $0x4f0] sm:$0xff]
  %v301 = vld [vmem:[%s1 + $0x4f8] sm:$0xff]
  %v302 = vld [vmem:[%s1 + $0x500] sm:$0xff]
  %v303 = vld [vmem:[%s1 + $0x508] sm:$0xff]
  %v304 = vld [vmem:[%s1 + $0x510] sm:$0xff]
  %v305 = vld [vmem:[%s1 + $0x518] sm:$0xff]
  %v306 = vld [vmem:[%s1 + $0x520] sm:$0xff]
  %v307 = vld [vmem:[%s1 + $0x528] sm:$0xff]
  %v308 = vld [vmem:[%s1 + $0x530] sm:$0xff]
  %v309 = vld [vmem:[%s1 + $0x538] sm:$0xff]
  %v310 = vld [vmem:[%s1 + $0x540] sm:$0xff]
  %v311 = vld [vmem:[%s1 + $0x548] sm:$0xff]
  %v312 = vld [vmem:[%s1 + $0x550] sm:$0xff]
  %v313 = vld [vmem:[%s1 + $0x558] sm:$0xff]
  %v314 = vld [vmem:[%s1 + $0x560] sm:$0xff]
  %v315 = vld [vmem:[%s1 + $0x568] sm:$0xff]
  %v316 = vld [vmem:[%s1 + $0x570] sm:$0xff]
  %v317 = vld [vmem:[%s1 + $0x578] sm:$0xff]
  %v318 = vld [vmem:[%s1 + $0x580] sm:$0xff]
  %v319 = vld [vmem:[%s1 + $0x588] sm:$0xff]
  %v320 = vld [vmem:[%s1 + $0x590] sm:$0xff]
  %v321 = vld [vmem:[%s1 + $0x598] sm:$0xff]
  %v322 = vld [vmem:[%s1 + $0x5a0] sm:$0xff]
  %v323 = vld [vmem:[%s1 + $0x5a8] sm:$0xff]
  %v324 = vld [vmem:[%s1 + $0x5b0] sm:$0xff]
  %v325 = vld [vmem:[%s1 + $0x5b8] sm:$0xff]
  %v326 = vld [vmem:[%s1 + $0x5c0] sm:$0xff]
  %v327 = vld [vmem:[%s1 + $0x5c8] sm:$0xff]
  %v328 = vld [vmem:[%s1 + $0x5d0] sm:$0xff]
  %v329 = vld [vmem:[%s1 + $0x5d8] sm:$0xff]
  %v330 = vld [vmem:[%s1 + $0x5e0] sm:$0xff]
  %v331 = vld [vmem:[%s1 + $0x5e8] sm:$0xff]
  %v332 = vld [vmem:[%s1 + $0x5f0] sm:$0xff]
  %v333 = vld [vmem:[%s1 + $0x5f8] sm:$0xff]
  %v334 = vld [vmem:[%s1 + $0x600] sm:$0xff]
  %v335 = vld [vmem:[%s1 + $0x608] sm:$0xff]
  %v336 = vld [vmem:[%s1 + $0x610] sm:$0xff]
  %v337 = vld [vmem:[%s1 + $0x618] sm:$0xff]
  %v338 = vld [vmem:[%s1 + $0x620] sm:$0xff]
  %v339 = vld [vmem:[%s1 + $0x628] sm:$0xff]
  %v340 = vld [vmem:[%s1 + $0x630] sm:$0xff]
  %v341 = vld [vmem:[%s1 + $0x638] sm:$0xff]
  %v342 = vld [vmem:[%s1 + $0x640] sm:$0xff]
  %v343 = vld [vmem:[%s1 + $0x648] sm:$0xff]
  %v344 = vld [vmem:[%s1 + $0x650] sm:$0xff]
  %v345 = vld [vmem:[%s1 + $0x658] sm:$0xff]
  %v346 = vld [vmem:[%s1 + $0x660] sm:$0xff]
  %v347 = vld [vmem:[%s1 + $0x668] sm:$0xff]
  %v348 = vld [vmem:[%s1 + $0x670] sm:$0xff]
  %v349 = vld [vmem:[%s1 + $0x678] sm:$0xff]
  %v350 = vld [vmem:[%s1 + $0x680] sm:$0xff]
  %v351 = vld [vmem:[%s1 + $0x688] sm:$0xff]
  %v352 = vld [vmem:[%s1 + $0x690] sm:$0xff]
  %v353 = vld [vmem:[%s1 + $0x698] sm:$0xff]
  %v354 = vld [vmem:[%s1 + $0x6a0] sm:$0xff]
  %v355 = vld [vmem:[%s1 + $0x6a8] sm:$0xff]
  %v356 = vld [vmem:[%s1 + $0x6b0] sm:$0xff]
  %v357 = vld [vmem:[%s1 + $0x6b8] sm:$0xff]
  %v358 = vld [vmem:[%s1 + $0x6c0] sm:$0xff]
  %v359 = vld [vmem:[%s1 + $0x6c8] sm:$0xff]
  %v360 = vld [vmem:[%s1 + $0x6d0] sm:$0xff]
  %v361 = vld [vmem:[%s1 + $0x6d8] sm:$0xff]
  %v362 = vld [vmem:[%s1 + $0x6e0] sm:$0xff]
  %v363 = vld [vmem:[%s1 + $0x6e8] sm:$0xff]
  %v364 = vld [vmem:[%s1 + $0x6f0] sm:$0xff]
  %v365 = vld [vmem:[%s1 + $0x6f8] sm:$0xff]
  %v366 = vld [vmem:[%s1 + $0x700] sm:$0xff]
  %v367 = vld [vmem:[%s1 + $0x708] sm:$0xff]
  %v368 = vld [vmem:[%s1 + $0x710] sm:$0xff]
  %v369 = vld [vmem:[%s1 + $0x718] sm:$0xff]
  %v370 = vld [vmem:[%s1 + $0x720] sm:$0xff]
  %v371 = vld [vmem:[%s1 + $0x728] sm:$0xff]
  %v372 = vld [vmem:[%s1 + $0x730] sm:$0xff]
  %v373 = vld [vmem:[%s1 + $0x738] sm:$0xff]
  %v374 = vld [vmem:[%s1 + $0x740] sm:$0xff]
  %v375 = vld [vmem:[%s1 + $0x748] sm:$0xff]
  %v376 = vld [vmem:[%s1 + $0x750] sm:$0xff]
  %v377 = vld [vmem:[%s1 + $0x758] sm:$0xff]
  %v378 = vld [vmem:[%s1 + $0x760] sm:$0xff]
  %v379 = vld [vmem:[%s1 + $0x768] sm:$0xff]
  %v380 = vld [vmem:[%s1 + $0x770] sm:$0xff]
  %v381 = vld [vmem:[%s1 + $0x778] sm:$0xff]
  %v382 = vld [vmem:[%s1 + $0x780] sm:$0xff]
  %v383 = vld [vmem:[%s1 + $0x788] sm:$0xff]
  %v384 = vld [vmem:[%s1 + $0x790] sm:$0xff]
  %v385 = vld [vmem:[%s1 + $0x798] sm:$0xff]
  %v386 = vld [vmem:[%s1 + $0x7a0] sm:$0xff]
  %v387 = vld [vmem:[%s1 + $0x7a8] sm:$0xff]
  %v388 = vld [vmem:[%s1 + $0x7b0] sm:$0xff]
  %v389 = vld [vmem:[%s1 + $0x7b8] sm:$0xff]
  %v390 = vld [vmem:[%s1 + $0x7c0] sm:$0xff]
  %v391 = vld [vmem:[%s1 + $0x7c8] sm:$0xff]
  %v392 = vld [vmem:[%s1 + $0x7d0] sm:$0xff]
  %v393 = vld [vmem:[%s1 + $0x7d8] sm:$0xff]
  %v394 = vld [vmem:[%s1 + $0x7e0] sm:$0xff]
  %v395 = vld [vmem:[%s1 + $0x7e8] sm:$0xff]
  %v396 = vld [vmem:[%s1 + $0x7f0] sm:$0xff]
  %v397 = vld [vmem:[%s1 + $0x7f8] sm:$0xff]
  %v398 = vld [vmem:[%s2] sm:$0x3]
  %v400 = vlaneseq
  %v401 = vshrl.u32 %v400, 7
  %v402 = vsub.s32 0, %v401
  %v403 = vrot.slane %v398, %v402
  %v404 = vlaneseq
  %v405 = vshrl.u32 %v404, 7
  %v406 = vsub.s32 1, %v405
  %v407 = vrot.slane %v398, %v406
  %v538 = vunpack.c.l.b16 %v14
  %v539 = vunpack.c.h.b16 %v14
  %v540 = vunpack.c.l.b16 %v15
  %v541 = vunpack.c.h.b16 %v15
  %v542 = vunpack.c.l.b16 %v16
  %v543 = vunpack.c.h.b16 %v16
  %v544 = vunpack.c.l.b16 %v17
  %v545 = vunpack.c.h.b16 %v17
  %v546 = vunpack.c.l.b16 %v18
  %v547 = vunpack.c.h.b16 %v18
  %v548 = vunpack.c.l.b16 %v19
  %v549 = vunpack.c.h.b16 %v19
  %v550 = vunpack.c.l.b16 %v20
  %v551 = vunpack.c.h.b16 %v20
  %v552 = vunpack.c.l.b16 %v21
  %v553 = vunpack.c.h.b16 %v21
  %v554 = vunpack.c.l.b16 %v22
  %v555 = vunpack.c.h.b16 %v22
  %v556 = vunpack.c.l.b16 %v23
  %v557 = vunpack.c.h.b16 %v23
  %v558 = vunpack.c.l.b16 %v24
  %v559 = vunpack.c.h.b16 %v24
  %v560 = vunpack.c.l.b16 %v25
  %v561 = vunpack.c.h.b16 %v25
  %v562 = vunpack.c.l.b16 %v26
  %v563 = vunpack.c.h.b16 %v26
  %v564 = vunpack.c.l.b16 %v27
  %v565 = vunpack.c.h.b16 %v27
  %v566 = vunpack.c.l.b16 %v28
  %v567 = vunpack.c.h.b16 %v28
  %v568 = vunpack.c.l.b16 %v29
  %v569 = vunpack.c.h.b16 %v29
  %v570 = vunpack.c.l.b16 %v30
  %v571 = vunpack.c.h.b16 %v30
  %v572 = vunpack.c.l.b16 %v31
  %v573 = vunpack.c.h.b16 %v31
  %v574 = vunpack.c.l.b16 %v32
  %v575 = vunpack.c.h.b16 %v32
  %v576 = vunpack.c.l.b16 %v33
  %v577 = vunpack.c.h.b16 %v33
  %v578 = vunpack.c.l.b16 %v34
  %v579 = vunpack.c.h.b16 %v34
  %v580 = vunpack.c.l.b16 %v35
  %v581 = vunpack.c.h.b16 %v35
  %v582 = vunpack.c.l.b16 %v36
  %v583 = vunpack.c.h.b16 %v36
  %v584 = vunpack.c.l.b16 %v37
  %v585 = vunpack.c.h.b16 %v37
  %v586 = vunpack.c.l.b16 %v38
  %v587 = vunpack.c.h.b16 %v38
  %v588 = vunpack.c.l.b16 %v39
  %v589 = vunpack.c.h.b16 %v39
  %v590 = vunpack.c.l.b16 %v40
  %v591 = vunpack.c.h.b16 %v40
  %v592 = vunpack.c.l.b16 %v41
  %v593 = vunpack.c.h.b16 %v41
  %v594 = vunpack.c.l.b16 %v42
  %v595 = vunpack.c.h.b16 %v42
  %v596 = vunpack.c.l.b16 %v43
  %v597 = vunpack.c.h.b16 %v43
  %v598 = vunpack.c.l.b16 %v44
  %v599 = vunpack.c.h.b16 %v44
  %v600 = vunpack.c.l.b16 %v45
  %v601 = vunpack.c.h.b16 %v45
  %v602 = vunpack.c.l.b16 %v46
  %v603 = vunpack.c.h.b16 %v46
  %v604 = vunpack.c.l.b16 %v47
  %v605 = vunpack.c.h.b16 %v47
  %v606 = vunpack.c.l.b16 %v48
  %v607 = vunpack.c.h.b16 %v48
  %v608 = vunpack.c.l.b16 %v49
  %v609 = vunpack.c.h.b16 %v49
  %v610 = vunpack.c.l.b16 %v50
  %v611 = vunpack.c.h.b16 %v50
  %v612 = vunpack.c.l.b16 %v51
  %v613 = vunpack.c.h.b16 %v51
  %v614 = vunpack.c.l.b16 %v52
  %v615 = vunpack.c.h.b16 %v52
  %v616 = vunpack.c.l.b16 %v53
  %v617 = vunpack.c.h.b16 %v53
  %v618 = vunpack.c.l.b16 %v54
  %v619 = vunpack.c.h.b16 %v54
  %v620 = vunpack.c.l.b16 %v55
  %v621 = vunpack.c.h.b16 %v55
  %v622 = vunpack.c.l.b16 %v56
  %v623 = vunpack.c.h.b16 %v56
  %v624 = vunpack.c.l.b16 %v57
  %v625 = vunpack.c.h.b16 %v57
  %v626 = vunpack.c.l.b16 %v58
  %v627 = vunpack.c.h.b16 %v58
  %v628 = vunpack.c.l.b16 %v59
  %v629 = vunpack.c.h.b16 %v59
  %v630 = vunpack.c.l.b16 %v60
  %v631 = vunpack.c.h.b16 %v60
  %v632 = vunpack.c.l.b16 %v61
  %v633 = vunpack.c.h.b16 %v61
  %v634 = vunpack.c.l.b16 %v62
  %v635 = vunpack.c.h.b16 %v62
  %v636 = vunpack.c.l.b16 %v63
  %v637 = vunpack.c.h.b16 %v63
  %v638 = vunpack.c.l.b16 %v64
  %v639 = vunpack.c.h.b16 %v64
  %v640 = vunpack.c.l.b16 %v65
  %v641 = vunpack.c.h.b16 %v65
  %v642 = vunpack.c.l.b16 %v66
  %v643 = vunpack.c.h.b16 %v66
  %v644 = vunpack.c.l.b16 %v67
  %v645 = vunpack.c.h.b16 %v67
  %v646 = vunpack.c.l.b16 %v68
  %v647 = vunpack.c.h.b16 %v68
  %v648 = vunpack.c.l.b16 %v69
  %v649 = vunpack.c.h.b16 %v69
  %v650 = vunpack.c.l.b16 %v70
  %v651 = vunpack.c.h.b16 %v70
  %v652 = vunpack.c.l.b16 %v71
  %v653 = vunpack.c.h.b16 %v71
  %v654 = vunpack.c.l.b16 %v72
  %v655 = vunpack.c.h.b16 %v72
  %v656 = vunpack.c.l.b16 %v73
  %v657 = vunpack.c.h.b16 %v73
  %v658 = vunpack.c.l.b16 %v74
  %v659 = vunpack.c.h.b16 %v74
  %v660 = vunpack.c.l.b16 %v75
  %v661 = vunpack.c.h.b16 %v75
  %v662 = vunpack.c.l.b16 %v76
  %v663 = vunpack.c.h.b16 %v76
  %v664 = vunpack.c.l.b16 %v77
  %v665 = vunpack.c.h.b16 %v77
  %v666 = vunpack.c.l.b16 %v78
  %v667 = vunpack.c.h.b16 %v78
  %v668 = vunpack.c.l.b16 %v79
  %v669 = vunpack.c.h.b16 %v79
  %v670 = vunpack.c.l.b16 %v80
  %v671 = vunpack.c.h.b16 %v80
  %v672 = vunpack.c.l.b16 %v81
  %v673 = vunpack.c.h.b16 %v81
  %v674 = vunpack.c.l.b16 %v82
  %v675 = vunpack.c.h.b16 %v82
  %v676 = vunpack.c.l.b16 %v83
  %v677 = vunpack.c.h.b16 %v83
  %v678 = vunpack.c.l.b16 %v84
  %v679 = vunpack.c.h.b16 %v84
  %v680 = vunpack.c.l.b16 %v85
  %v681 = vunpack.c.h.b16 %v85
  %v682 = vunpack.c.l.b16 %v86
  %v683 = vunpack.c.h.b16 %v86
  %v684 = vunpack.c.l.b16 %v87
  %v685 = vunpack.c.h.b16 %v87
  %v686 = vunpack.c.l.b16 %v88
  %v687 = vunpack.c.h.b16 %v88
  %v688 = vunpack.c.l.b16 %v89
  %v689 = vunpack.c.h.b16 %v89
  %v690 = vunpack.c.l.b16 %v90
  %v691 = vunpack.c.h.b16 %v90
  %v692 = vunpack.c.l.b16 %v91
  %v693 = vunpack.c.h.b16 %v91
  %v694 = vunpack.c.l.b16 %v92
  %v695 = vunpack.c.h.b16 %v92
  %v696 = vunpack.c.l.b16 %v93
  %v697 = vunpack.c.h.b16 %v93
  %v698 = vunpack.c.l.b16 %v94
  %v699 = vunpack.c.h.b16 %v94
  %v700 = vunpack.c.l.b16 %v95
  %v701 = vunpack.c.h.b16 %v95
  %v702 = vunpack.c.l.b16 %v96
  %v703 = vunpack.c.h.b16 %v96
  %v704 = vunpack.c.l.b16 %v97
  %v705 = vunpack.c.h.b16 %v97
  %v706 = vunpack.c.l.b16 %v98
  %v707 = vunpack.c.h.b16 %v98
  %v708 = vunpack.c.l.b16 %v99
  %v709 = vunpack.c.h.b16 %v99
  %v710 = vunpack.c.l.b16 %v100
  %v711 = vunpack.c.h.b16 %v100
  %v712 = vunpack.c.l.b16 %v101
  %v713 = vunpack.c.h.b16 %v101
  %v714 = vunpack.c.l.b16 %v102
  %v715 = vunpack.c.h.b16 %v102
  %v716 = vunpack.c.l.b16 %v103
  %v717 = vunpack.c.h.b16 %v103
  %v718 = vunpack.c.l.b16 %v104
  %v719 = vunpack.c.h.b16 %v104
  %v720 = vunpack.c.l.b16 %v105
  %v721 = vunpack.c.h.b16 %v105
  %v722 = vunpack.c.l.b16 %v106
  %v723 = vunpack.c.h.b16 %v106
  %v724 = vunpack.c.l.b16 %v107
  %v725 = vunpack.c.h.b16 %v107
  %v726 = vunpack.c.l.b16 %v108
  %v727 = vunpack.c.h.b16 %v108
  %v728 = vunpack.c.l.b16 %v109
  %v729 = vunpack.c.h.b16 %v109
  %v730 = vunpack.c.l.b16 %v110
  %v731 = vunpack.c.h.b16 %v110
  %v732 = vunpack.c.l.b16 %v111
  %v733 = vunpack.c.h.b16 %v111
  %v734 = vunpack.c.l.b16 %v112
  %v735 = vunpack.c.h.b16 %v112
  %v736 = vunpack.c.l.b16 %v113
  %v737 = vunpack.c.h.b16 %v113
  %v738 = vunpack.c.l.b16 %v114
  %v739 = vunpack.c.h.b16 %v114
  %v740 = vunpack.c.l.b16 %v115
  %v741 = vunpack.c.h.b16 %v115
  %v742 = vunpack.c.l.b16 %v116
  %v743 = vunpack.c.h.b16 %v116
  %v744 = vunpack.c.l.b16 %v117
  %v745 = vunpack.c.h.b16 %v117
  %v746 = vunpack.c.l.b16 %v118
  %v747 = vunpack.c.h.b16 %v118
  %v748 = vunpack.c.l.b16 %v119
  %v749 = vunpack.c.h.b16 %v119
  %v750 = vunpack.c.l.b16 %v120
  %v751 = vunpack.c.h.b16 %v120
  %v752 = vunpack.c.l.b16 %v121
  %v753 = vunpack.c.h.b16 %v121
  %v754 = vunpack.c.l.b16 %v122
  %v755 = vunpack.c.h.b16 %v122
  %v756 = vunpack.c.l.b16 %v123
  %v757 = vunpack.c.h.b16 %v123
  %v758 = vunpack.c.l.b16 %v124
  %v759 = vunpack.c.h.b16 %v124
  %v760 = vunpack.c.l.b16 %v125
  %v761 = vunpack.c.h.b16 %v125
  %v762 = vunpack.c.l.b16 %v126
  %v763 = vunpack.c.h.b16 %v126
  %v764 = vunpack.c.l.b16 %v127
  %v765 = vunpack.c.h.b16 %v127
  %v766 = vunpack.c.l.b16 %v128
  %v767 = vunpack.c.h.b16 %v128
  %v768 = vunpack.c.l.b16 %v129
  %v769 = vunpack.c.h.b16 %v129
  %v770 = vunpack.c.l.b16 %v130
  %v771 = vunpack.c.h.b16 %v130
  %v772 = vunpack.c.l.b16 %v131
  %v773 = vunpack.c.h.b16 %v131
  %v774 = vunpack.c.l.b16 %v132
  %v775 = vunpack.c.h.b16 %v132
  %v776 = vunpack.c.l.b16 %v133
  %v777 = vunpack.c.h.b16 %v133
  %v778 = vunpack.c.l.b16 %v134
  %v779 = vunpack.c.h.b16 %v134
  %v780 = vunpack.c.l.b16 %v135
  %v781 = vunpack.c.h.b16 %v135
  %v782 = vunpack.c.l.b16 %v136
  %v783 = vunpack.c.h.b16 %v136
  %v784 = vunpack.c.l.b16 %v137
  %v785 = vunpack.c.h.b16 %v137
  %v786 = vunpack.c.l.b16 %v138
  %v787 = vunpack.c.h.b16 %v138
  %v788 = vunpack.c.l.b16 %v139
  %v789 = vunpack.c.h.b16 %v139
  %v790 = vunpack.c.l.b16 %v140
  %v791 = vunpack.c.h.b16 %v140
  %v792 = vunpack.c.l.b16 %v141
  %v793 = vunpack.c.h.b16 %v141
  %v794 = vpack.c.b16 %v554, %v538
  %v795 = vpack.c.b16 %v555, %v539
  %v796 = vpack.c.b16 %v556, %v540
  %v797 = vpack.c.b16 %v557, %v541
  %v798 = vpack.c.b16 %v558, %v542
  %v799 = vpack.c.b16 %v559, %v543
  %v800 = vpack.c.b16 %v560, %v544
  %v801 = vpack.c.b16 %v561, %v545
  %v802 = vpack.c.b16 %v562, %v546
  %v803 = vpack.c.b16 %v563, %v547
  %v804 = vpack.c.b16 %v564, %v548
  %v805 = vpack.c.b16 %v565, %v549
  %v806 = vpack.c.b16 %v566, %v550
  %v807 = vpack.c.b16 %v567, %v551
  %v808 = vpack.c.b16 %v568, %v552
  %v809 = vpack.c.b16 %v569, %v553
  %v810 = vpack.c.b16 %v586, %v570
  %v811 = vpack.c.b16 %v587, %v571
  %v812 = vpack.c.b16 %v588, %v572
  %v813 = vpack.c.b16 %v589, %v573
  %v814 = vpack.c.b16 %v590, %v574
  %v815 = vpack.c.b16 %v591, %v575
  %v816 = vpack.c.b16 %v592, %v576
  %v817 = vpack.c.b16 %v593, %v577
  %v818 = vpack.c.b16 %v594, %v578
  %v819 = vpack.c.b16 %v595, %v579
  %v820 = vpack.c.b16 %v596, %v580
  %v821 = vpack.c.b16 %v597, %v581
  %v822 = vpack.c.b16 %v598, %v582
  %v823 = vpack.c.b16 %v599, %v583
  %v824 = vpack.c.b16 %v600, %v584
  %v825 = vpack.c.b16 %v601, %v585
  %v826 = vpack.c.b16 %v618, %v602
  %v827 = vpack.c.b16 %v619, %v603
  %v828 = vpack.c.b16 %v620, %v604
  %v829 = vpack.c.b16 %v621, %v605
  %v830 = vpack.c.b16 %v622, %v606
  %v831 = vpack.c.b16 %v623, %v607
  %v832 = vpack.c.b16 %v624, %v608
  %v833 = vpack.c.b16 %v625, %v609
  %v834 = vpack.c.b16 %v626, %v610
  %v835 = vpack.c.b16 %v627, %v611
  %v836 = vpack.c.b16 %v628, %v612
  %v837 = vpack.c.b16 %v629, %v613
  %v838 = vpack.c.b16 %v630, %v614
  %v839 = vpack.c.b16 %v631, %v615
  %v840 = vpack.c.b16 %v632, %v616
  %v841 = vpack.c.b16 %v633, %v617
  %v842 = vpack.c.b16 %v650, %v634
  %v843 = vpack.c.b16 %v651, %v635
  %v844 = vpack.c.b16 %v652, %v636
  %v845 = vpack.c.b16 %v653, %v637
  %v846 = vpack.c.b16 %v654, %v638
  %v847 = vpack.c.b16 %v655, %v639
  %v848 = vpack.c.b16 %v656, %v640
  %v849 = vpack.c.b16 %v657, %v641
  %v850 = vpack.c.b16 %v658, %v642
  %v851 = vpack.c.b16 %v659, %v643
  %v852 = vpack.c.b16 %v660, %v644
  %v853 = vpack.c.b16 %v661, %v645
  %v854 = vpack.c.b16 %v662, %v646
  %v855 = vpack.c.b16 %v663, %v647
  %v856 = vpack.c.b16 %v664, %v648
  %v857 = vpack.c.b16 %v665, %v649
  %v858 = vpack.c.b16 %v682, %v666
  %v859 = vpack.c.b16 %v683, %v667
  %v860 = vpack.c.b16 %v684, %v668
  %v861 = vpack.c.b16 %v685, %v669
  %v862 = vpack.c.b16 %v686, %v670
  %v863 = vpack.c.b16 %v687, %v671
  %v864 = vpack.c.b16 %v688, %v672
  %v865 = vpack.c.b16 %v689, %v673
  %v866 = vpack.c.b16 %v690, %v674
  %v867 = vpack.c.b16 %v691, %v675
  %v868 = vpack.c.b16 %v692, %v676
  %v869 = vpack.c.b16 %v693, %v677
  %v870 = vpack.c.b16 %v694, %v678
  %v871 = vpack.c.b16 %v695, %v679
  %v872 = vpack.c.b16 %v696, %v680
  %v873 = vpack.c.b16 %v697, %v681
  %v874 = vpack.c.b16 %v714, %v698
  %v875 = vpack.c.b16 %v715, %v699
  %v876 = vpack.c.b16 %v716, %v700
  %v877 = vpack.c.b16 %v717, %v701
  %v878 = vpack.c.b16 %v718, %v702
  %v879 = vpack.c.b16 %v719, %v703
  %v880 = vpack.c.b16 %v720, %v704
  %v881 = vpack.c.b16 %v721, %v705
  %v882 = vpack.c.b16 %v722, %v706
  %v883 = vpack.c.b16 %v723, %v707
  %v884 = vpack.c.b16 %v724, %v708
  %v885 = vpack.c.b16 %v725, %v709
  %v886 = vpack.c.b16 %v726, %v710
  %v887 = vpack.c.b16 %v727, %v711
  %v888 = vpack.c.b16 %v728, %v712
  %v889 = vpack.c.b16 %v729, %v713
  %v890 = vpack.c.b16 %v746, %v730
  %v891 = vpack.c.b16 %v747, %v731
  %v892 = vpack.c.b16 %v748, %v732
  %v893 = vpack.c.b16 %v749, %v733
  %v894 = vpack.c.b16 %v750, %v734
  %v895 = vpack.c.b16 %v751, %v735
  %v896 = vpack.c.b16 %v752, %v736
  %v897 = vpack.c.b16 %v753, %v737
  %v898 = vpack.c.b16 %v754, %v738
  %v899 = vpack.c.b16 %v755, %v739
  %v900 = vpack.c.b16 %v756, %v740
  %v901 = vpack.c.b16 %v757, %v741
  %v902 = vpack.c.b16 %v758, %v742
  %v903 = vpack.c.b16 %v759, %v743
  %v904 = vpack.c.b16 %v760, %v744
  %v905 = vpack.c.b16 %v761, %v745
  %v906 = vpack.c.b16 %v778, %v762
  %v907 = vpack.c.b16 %v779, %v763
  %v908 = vpack.c.b16 %v780, %v764
  %v909 = vpack.c.b16 %v781, %v765
  %v910 = vpack.c.b16 %v782, %v766
  %v911 = vpack.c.b16 %v783, %v767
  %v912 = vpack.c.b16 %v784, %v768
  %v913 = vpack.c.b16 %v785, %v769
  %v914 = vpack.c.b16 %v786, %v770
  %v915 = vpack.c.b16 %v787, %v771
  %v916 = vpack.c.b16 %v788, %v772
  %v917 = vpack.c.b16 %v789, %v773
  %v918 = vpack.c.b16 %v790, %v774
  %v919 = vpack.c.b16 %v791, %v775
  %v920 = vpack.c.b16 %v792, %v776
  %v921 = vpack.c.b16 %v793, %v777
  %v1306 = vunpack.c.l.b16 %v142
  %v1307 = vunpack.c.h.b16 %v142
  %v1308 = vunpack.c.l.b16 %v143
  %v1309 = vunpack.c.h.b16 %v143
  %v1310 = vunpack.c.l.b16 %v144
  %v1311 = vunpack.c.h.b16 %v144
  %v1312 = vunpack.c.l.b16 %v145
  %v1313 = vunpack.c.h.b16 %v145
  %v1314 = vunpack.c.l.b16 %v146
  %v1315 = vunpack.c.h.b16 %v146
  %v1316 = vunpack.c.l.b16 %v147
  %v1317 = vunpack.c.h.b16 %v147
  %v1318 = vunpack.c.l.b16 %v148
  %v1319 = vunpack.c.h.b16 %v148
  %v1320 = vunpack.c.l.b16 %v149
  %v1321 = vunpack.c.h.b16 %v149
  %v1322 = vunpack.c.l.b16 %v150
  %v1323 = vunpack.c.h.b16 %v150
  %v1324 = vunpack.c.l.b16 %v151
  %v1325 = vunpack.c.h.b16 %v151
  %v1326 = vunpack.c.l.b16 %v152
  %v1327 = vunpack.c.h.b16 %v152
  %v1328 = vunpack.c.l.b16 %v153
  %v1329 = vunpack.c.h.b16 %v153
  %v1330 = vunpack.c.l.b16 %v154
  %v1331 = vunpack.c.h.b16 %v154
  %v1332 = vunpack.c.l.b16 %v155
  %v1333 = vunpack.c.h.b16 %v155
  %v1334 = vunpack.c.l.b16 %v156
  %v1335 = vunpack.c.h.b16 %v156
  %v1336 = vunpack.c.l.b16 %v157
  %v1337 = vunpack.c.h.b16 %v157
  %v1338 = vunpack.c.l.b16 %v158
  %v1339 = vunpack.c.h.b16 %v158
  %v1340 = vunpack.c.l.b16 %v159
  %v1341 = vunpack.c.h.b16 %v159
  %v1342 = vunpack.c.l.b16 %v160
  %v1343 = vunpack.c.h.b16 %v160
  %v1344 = vunpack.c.l.b16 %v161
  %v1345 = vunpack.c.h.b16 %v161
  %v1346 = vunpack.c.l.b16 %v162
  %v1347 = vunpack.c.h.b16 %v162
  %v1348 = vunpack.c.l.b16 %v163
  %v1349 = vunpack.c.h.b16 %v163
  %v1350 = vunpack.c.l.b16 %v164
  %v1351 = vunpack.c.h.b16 %v164
  %v1352 = vunpack.c.l.b16 %v165
  %v1353 = vunpack.c.h.b16 %v165
  %v1354 = vunpack.c.l.b16 %v166
  %v1355 = vunpack.c.h.b16 %v166
  %v1356 = vunpack.c.l.b16 %v167
  %v1357 = vunpack.c.h.b16 %v167
  %v1358 = vunpack.c.l.b16 %v168
  %v1359 = vunpack.c.h.b16 %v168
  %v1360 = vunpack.c.l.b16 %v169
  %v1361 = vunpack.c.h.b16 %v169
  %v1362 = vunpack.c.l.b16 %v170
  %v1363 = vunpack.c.h.b16 %v170
  %v1364 = vunpack.c.l.b16 %v171
  %v1365 = vunpack.c.h.b16 %v171
  %v1366 = vunpack.c.l.b16 %v172
  %v1367 = vunpack.c.h.b16 %v172
  %v1368 = vunpack.c.l.b16 %v173
  %v1369 = vunpack.c.h.b16 %v173
  %v1370 = vunpack.c.l.b16 %v174
  %v1371 = vunpack.c.h.b16 %v174
  %v1372 = vunpack.c.l.b16 %v175
  %v1373 = vunpack.c.h.b16 %v175
  %v1374 = vunpack.c.l.b16 %v176
  %v1375 = vunpack.c.h.b16 %v176
  %v1376 = vunpack.c.l.b16 %v177
  %v1377 = vunpack.c.h.b16 %v177
  %v1378 = vunpack.c.l.b16 %v178
  %v1379 = vunpack.c.h.b16 %v178
  %v1380 = vunpack.c.l.b16 %v179
  %v1381 = vunpack.c.h.b16 %v179
  %v1382 = vunpack.c.l.b16 %v180
  %v1383 = vunpack.c.h.b16 %v180
  %v1384 = vunpack.c.l.b16 %v181
  %v1385 = vunpack.c.h.b16 %v181
  %v1386 = vunpack.c.l.b16 %v182
  %v1387 = vunpack.c.h.b16 %v182
  %v1388 = vunpack.c.l.b16 %v183
  %v1389 = vunpack.c.h.b16 %v183
  %v1390 = vunpack.c.l.b16 %v184
  %v1391 = vunpack.c.h.b16 %v184
  %v1392 = vunpack.c.l.b16 %v185
  %v1393 = vunpack.c.h.b16 %v185
  %v1394 = vunpack.c.l.b16 %v186
  %v1395 = vunpack.c.h.b16 %v186
  %v1396 = vunpack.c.l.b16 %v187
  %v1397 = vunpack.c.h.b16 %v187
  %v1398 = vunpack.c.l.b16 %v188
  %v1399 = vunpack.c.h.b16 %v188
  %v1400 = vunpack.c.l.b16 %v189
  %v1401 = vunpack.c.h.b16 %v189
  %v1402 = vunpack.c.l.b16 %v190
  %v1403 = vunpack.c.h.b16 %v190
  %v1404 = vunpack.c.l.b16 %v191
  %v1405 = vunpack.c.h.b16 %v191
  %v1406 = vunpack.c.l.b16 %v192
  %v1407 = vunpack.c.h.b16 %v192
  %v1408 = vunpack.c.l.b16 %v193
  %v1409 = vunpack.c.h.b16 %v193
  %v1410 = vunpack.c.l.b16 %v194
  %v1411 = vunpack.c.h.b16 %v194
  %v1412 = vunpack.c.l.b16 %v195
  %v1413 = vunpack.c.h.b16 %v195
  %v1414 = vunpack.c.l.b16 %v196
  %v1415 = vunpack.c.h.b16 %v196
  %v1416 = vunpack.c.l.b16 %v197
  %v1417 = vunpack.c.h.b16 %v197
  %v1418 = vunpack.c.l.b16 %v198
  %v1419 = vunpack.c.h.b16 %v198
  %v1420 = vunpack.c.l.b16 %v199
  %v1421 = vunpack.c.h.b16 %v199
  %v1422 = vunpack.c.l.b16 %v200
  %v1423 = vunpack.c.h.b16 %v200
  %v1424 = vunpack.c.l.b16 %v201
  %v1425 = vunpack.c.h.b16 %v201
  %v1426 = vunpack.c.l.b16 %v202
  %v1427 = vunpack.c.h.b16 %v202
  %v1428 = vunpack.c.l.b16 %v203
  %v1429 = vunpack.c.h.b16 %v203
  %v1430 = vunpack.c.l.b16 %v204
  %v1431 = vunpack.c.h.b16 %v204
  %v1432 = vunpack.c.l.b16 %v205
  %v1433 = vunpack.c.h.b16 %v205
  %v1434 = vunpack.c.l.b16 %v206
  %v1435 = vunpack.c.h.b16 %v206
  %v1436 = vunpack.c.l.b16 %v207
  %v1437 = vunpack.c.h.b16 %v207
  %v1438 = vunpack.c.l.b16 %v208
  %v1439 = vunpack.c.h.b16 %v208
  %v1440 = vunpack.c.l.b16 %v209
  %v1441 = vunpack.c.h.b16 %v209
  %v1442 = vunpack.c.l.b16 %v210
  %v1443 = vunpack.c.h.b16 %v210
  %v1444 = vunpack.c.l.b16 %v211
  %v1445 = vunpack.c.h.b16 %v211
  %v1446 = vunpack.c.l.b16 %v212
  %v1447 = vunpack.c.h.b16 %v212
  %v1448 = vunpack.c.l.b16 %v213
  %v1449 = vunpack.c.h.b16 %v213
  %v1450 = vunpack.c.l.b16 %v214
  %v1451 = vunpack.c.h.b16 %v214
  %v1452 = vunpack.c.l.b16 %v215
  %v1453 = vunpack.c.h.b16 %v215
  %v1454 = vunpack.c.l.b16 %v216
  %v1455 = vunpack.c.h.b16 %v216
  %v1456 = vunpack.c.l.b16 %v217
  %v1457 = vunpack.c.h.b16 %v217
  %v1458 = vunpack.c.l.b16 %v218
  %v1459 = vunpack.c.h.b16 %v218
  %v1460 = vunpack.c.l.b16 %v219
  %v1461 = vunpack.c.h.b16 %v219
  %v1462 = vunpack.c.l.b16 %v220
  %v1463 = vunpack.c.h.b16 %v220
  %v1464 = vunpack.c.l.b16 %v221
  %v1465 = vunpack.c.h.b16 %v221
  %v1466 = vunpack.c.l.b16 %v222
  %v1467 = vunpack.c.h.b16 %v222
  %v1468 = vunpack.c.l.b16 %v223
  %v1469 = vunpack.c.h.b16 %v223
  %v1470 = vunpack.c.l.b16 %v224
  %v1471 = vunpack.c.h.b16 %v224
  %v1472 = vunpack.c.l.b16 %v225
  %v1473 = vunpack.c.h.b16 %v225
  %v1474 = vunpack.c.l.b16 %v226
  %v1475 = vunpack.c.h.b16 %v226
  %v1476 = vunpack.c.l.b16 %v227
  %v1477 = vunpack.c.h.b16 %v227
  %v1478 = vunpack.c.l.b16 %v228
  %v1479 = vunpack.c.h.b16 %v228
  %v1480 = vunpack.c.l.b16 %v229
  %v1481 = vunpack.c.h.b16 %v229
  %v1482 = vunpack.c.l.b16 %v230
  %v1483 = vunpack.c.h.b16 %v230
  %v1484 = vunpack.c.l.b16 %v231
  %v1485 = vunpack.c.h.b16 %v231
  %v1486 = vunpack.c.l.b16 %v232
  %v1487 = vunpack.c.h.b16 %v232
  %v1488 = vunpack.c.l.b16 %v233
  %v1489 = vunpack.c.h.b16 %v233
  %v1490 = vunpack.c.l.b16 %v234
  %v1491 = vunpack.c.h.b16 %v234
  %v1492 = vunpack.c.l.b16 %v235
  %v1493 = vunpack.c.h.b16 %v235
  %v1494 = vunpack.c.l.b16 %v236
  %v1495 = vunpack.c.h.b16 %v236
  %v1496 = vunpack.c.l.b16 %v237
  %v1497 = vunpack.c.h.b16 %v237
  %v1498 = vunpack.c.l.b16 %v238
  %v1499 = vunpack.c.h.b16 %v238
  %v1500 = vunpack.c.l.b16 %v239
  %v1501 = vunpack.c.h.b16 %v239
  %v1502 = vunpack.c.l.b16 %v240
  %v1503 = vunpack.c.h.b16 %v240
  %v1504 = vunpack.c.l.b16 %v241
  %v1505 = vunpack.c.h.b16 %v241
  %v1506 = vunpack.c.l.b16 %v242
  %v1507 = vunpack.c.h.b16 %v242
  %v1508 = vunpack.c.l.b16 %v243
  %v1509 = vunpack.c.h.b16 %v243
  %v1510 = vunpack.c.l.b16 %v244
  %v1511 = vunpack.c.h.b16 %v244
  %v1512 = vunpack.c.l.b16 %v245
  %v1513 = vunpack.c.h.b16 %v245
  %v1514 = vunpack.c.l.b16 %v246
  %v1515 = vunpack.c.h.b16 %v246
  %v1516 = vunpack.c.l.b16 %v247
  %v1517 = vunpack.c.h.b16 %v247
  %v1518 = vunpack.c.l.b16 %v248
  %v1519 = vunpack.c.h.b16 %v248
  %v1520 = vunpack.c.l.b16 %v249
  %v1521 = vunpack.c.h.b16 %v249
  %v1522 = vunpack.c.l.b16 %v250
  %v1523 = vunpack.c.h.b16 %v250
  %v1524 = vunpack.c.l.b16 %v251
  %v1525 = vunpack.c.h.b16 %v251
  %v1526 = vunpack.c.l.b16 %v252
  %v1527 = vunpack.c.h.b16 %v252
  %v1528 = vunpack.c.l.b16 %v253
  %v1529 = vunpack.c.h.b16 %v253
  %v1530 = vunpack.c.l.b16 %v254
  %v1531 = vunpack.c.h.b16 %v254
  %v1532 = vunpack.c.l.b16 %v255
  %v1533 = vunpack.c.h.b16 %v255
  %v1534 = vunpack.c.l.b16 %v256
  %v1535 = vunpack.c.h.b16 %v256
  %v1536 = vunpack.c.l.b16 %v257
  %v1537 = vunpack.c.h.b16 %v257
  %v1538 = vunpack.c.l.b16 %v258
  %v1539 = vunpack.c.h.b16 %v258
  %v1540 = vunpack.c.l.b16 %v259
  %v1541 = vunpack.c.h.b16 %v259
  %v1542 = vunpack.c.l.b16 %v260
  %v1543 = vunpack.c.h.b16 %v260
  %v1544 = vunpack.c.l.b16 %v261
  %v1545 = vunpack.c.h.b16 %v261
  %v1546 = vunpack.c.l.b16 %v262
  %v1547 = vunpack.c.h.b16 %v262
  %v1548 = vunpack.c.l.b16 %v263
  %v1549 = vunpack.c.h.b16 %v263
  %v1550 = vunpack.c.l.b16 %v264
  %v1551 = vunpack.c.h.b16 %v264
  %v1552 = vunpack.c.l.b16 %v265
  %v1553 = vunpack.c.h.b16 %v265
  %v1554 = vunpack.c.l.b16 %v266
  %v1555 = vunpack.c.h.b16 %v266
  %v1556 = vunpack.c.l.b16 %v267
  %v1557 = vunpack.c.h.b16 %v267
  %v1558 = vunpack.c.l.b16 %v268
  %v1559 = vunpack.c.h.b16 %v268
  %v1560 = vunpack.c.l.b16 %v269
  %v1561 = vunpack.c.h.b16 %v269
  %v1562 = vunpack.c.l.b16 %v270
  %v1563 = vunpack.c.h.b16 %v270
  %v1564 = vunpack.c.l.b16 %v271
  %v1565 = vunpack.c.h.b16 %v271
  %v1566 = vunpack.c.l.b16 %v272
  %v1567 = vunpack.c.h.b16 %v272
  %v1568 = vunpack.c.l.b16 %v273
  %v1569 = vunpack.c.h.b16 %v273
  %v1570 = vunpack.c.l.b16 %v274
  %v1571 = vunpack.c.h.b16 %v274
  %v1572 = vunpack.c.l.b16 %v275
  %v1573 = vunpack.c.h.b16 %v275
  %v1574 = vunpack.c.l.b16 %v276
  %v1575 = vunpack.c.h.b16 %v276
  %v1576 = vunpack.c.l.b16 %v277
  %v1577 = vunpack.c.h.b16 %v277
  %v1578 = vunpack.c.l.b16 %v278
  %v1579 = vunpack.c.h.b16 %v278
  %v1580 = vunpack.c.l.b16 %v279
  %v1581 = vunpack.c.h.b16 %v279
  %v1582 = vunpack.c.l.b16 %v280
  %v1583 = vunpack.c.h.b16 %v280
  %v1584 = vunpack.c.l.b16 %v281
  %v1585 = vunpack.c.h.b16 %v281
  %v1586 = vunpack.c.l.b16 %v282
  %v1587 = vunpack.c.h.b16 %v282
  %v1588 = vunpack.c.l.b16 %v283
  %v1589 = vunpack.c.h.b16 %v283
  %v1590 = vunpack.c.l.b16 %v284
  %v1591 = vunpack.c.h.b16 %v284
  %v1592 = vunpack.c.l.b16 %v285
  %v1593 = vunpack.c.h.b16 %v285
  %v1594 = vunpack.c.l.b16 %v286
  %v1595 = vunpack.c.h.b16 %v286
  %v1596 = vunpack.c.l.b16 %v287
  %v1597 = vunpack.c.h.b16 %v287
  %v1598 = vunpack.c.l.b16 %v288
  %v1599 = vunpack.c.h.b16 %v288
  %v1600 = vunpack.c.l.b16 %v289
  %v1601 = vunpack.c.h.b16 %v289
  %v1602 = vunpack.c.l.b16 %v290
  %v1603 = vunpack.c.h.b16 %v290
  %v1604 = vunpack.c.l.b16 %v291
  %v1605 = vunpack.c.h.b16 %v291
  %v1606 = vunpack.c.l.b16 %v292
  %v1607 = vunpack.c.h.b16 %v292
  %v1608 = vunpack.c.l.b16 %v293
  %v1609 = vunpack.c.h.b16 %v293
  %v1610 = vunpack.c.l.b16 %v294
  %v1611 = vunpack.c.h.b16 %v294
  %v1612 = vunpack.c.l.b16 %v295
  %v1613 = vunpack.c.h.b16 %v295
  %v1614 = vunpack.c.l.b16 %v296
  %v1615 = vunpack.c.h.b16 %v296
  %v1616 = vunpack.c.l.b16 %v297
  %v1617 = vunpack.c.h.b16 %v297
  %v1618 = vunpack.c.l.b16 %v298
  %v1619 = vunpack.c.h.b16 %v298
  %v1620 = vunpack.c.l.b16 %v299
  %v1621 = vunpack.c.h.b16 %v299
  %v1622 = vunpack.c.l.b16 %v300
  %v1623 = vunpack.c.h.b16 %v300
  %v1624 = vunpack.c.l.b16 %v301
  %v1625 = vunpack.c.h.b16 %v301
  %v1626 = vunpack.c.l.b16 %v302
  %v1627 = vunpack.c.h.b16 %v302
  %v1628 = vunpack.c.l.b16 %v303
  %v1629 = vunpack.c.h.b16 %v303
  %v1630 = vunpack.c.l.b16 %v304
  %v1631 = vunpack.c.h.b16 %v304
  %v1632 = vunpack.c.l.b16 %v305
  %v1633 = vunpack.c.h.b16 %v305
  %v1634 = vunpack.c.l.b16 %v306
  %v1635 = vunpack.c.h.b16 %v306
  %v1636 = vunpack.c.l.b16 %v307
  %v1637 = vunpack.c.h.b16 %v307
  %v1638 = vunpack.c.l.b16 %v308
  %v1639 = vunpack.c.h.b16 %v308
  %v1640 = vunpack.c.l.b16 %v309
  %v1641 = vunpack.c.h.b16 %v309
  %v1642 = vunpack.c.l.b16 %v310
  %v1643 = vunpack.c.h.b16 %v310
  %v1644 = vunpack.c.l.b16 %v311
  %v1645 = vunpack.c.h.b16 %v311
  %v1646 = vunpack.c.l.b16 %v312
  %v1647 = vunpack.c.h.b16 %v312
  %v1648 = vunpack.c.l.b16 %v313
  %v1649 = vunpack.c.h.b16 %v313
  %v1650 = vunpack.c.l.b16 %v314
  %v1651 = vunpack.c.h.b16 %v314
  %v1652 = vunpack.c.l.b16 %v315
  %v1653 = vunpack.c.h.b16 %v315
  %v1654 = vunpack.c.l.b16 %v316
  %v1655 = vunpack.c.h.b16 %v316
  %v1656 = vunpack.c.l.b16 %v317
  %v1657 = vunpack.c.h.b16 %v317
  %v1658 = vunpack.c.l.b16 %v318
  %v1659 = vunpack.c.h.b16 %v318
  %v1660 = vunpack.c.l.b16 %v319
  %v1661 = vunpack.c.h.b16 %v319
  %v1662 = vunpack.c.l.b16 %v320
  %v1663 = vunpack.c.h.b16 %v320
  %v1664 = vunpack.c.l.b16 %v321
  %v1665 = vunpack.c.h.b16 %v321
  %v1666 = vunpack.c.l.b16 %v322
  %v1667 = vunpack.c.h.b16 %v322
  %v1668 = vunpack.c.l.b16 %v323
  %v1669 = vunpack.c.h.b16 %v323
  %v1670 = vunpack.c.l.b16 %v324
  %v1671 = vunpack.c.h.b16 %v324
  %v1672 = vunpack.c.l.b16 %v325
  %v1673 = vunpack.c.h.b16 %v325
  %v1674 = vunpack.c.l.b16 %v326
  %v1675 = vunpack.c.h.b16 %v326
  %v1676 = vunpack.c.l.b16 %v327
  %v1677 = vunpack.c.h.b16 %v327
  %v1678 = vunpack.c.l.b16 %v328
  %v1679 = vunpack.c.h.b16 %v328
  %v1680 = vunpack.c.l.b16 %v329
  %v1681 = vunpack.c.h.b16 %v329
  %v1682 = vunpack.c.l.b16 %v330
  %v1683 = vunpack.c.h.b16 %v330
  %v1684 = vunpack.c.l.b16 %v331
  %v1685 = vunpack.c.h.b16 %v331
  %v1686 = vunpack.c.l.b16 %v332
  %v1687 = vunpack.c.h.b16 %v332
  %v1688 = vunpack.c.l.b16 %v333
  %v1689 = vunpack.c.h.b16 %v333
  %v1690 = vunpack.c.l.b16 %v334
  %v1691 = vunpack.c.h.b16 %v334
  %v1692 = vunpack.c.l.b16 %v335
  %v1693 = vunpack.c.h.b16 %v335
  %v1694 = vunpack.c.l.b16 %v336
  %v1695 = vunpack.c.h.b16 %v336
  %v1696 = vunpack.c.l.b16 %v337
  %v1697 = vunpack.c.h.b16 %v337
  %v1698 = vunpack.c.l.b16 %v338
  %v1699 = vunpack.c.h.b16 %v338
  %v1700 = vunpack.c.l.b16 %v339
  %v1701 = vunpack.c.h.b16 %v339
  %v1702 = vunpack.c.l.b16 %v340
  %v1703 = vunpack.c.h.b16 %v340
  %v1704 = vunpack.c.l.b16 %v341
  %v1705 = vunpack.c.h.b16 %v341
  %v1706 = vunpack.c.l.b16 %v342
  %v1707 = vunpack.c.h.b16 %v342
  %v1708 = vunpack.c.l.b16 %v343
  %v1709 = vunpack.c.h.b16 %v343
  %v1710 = vunpack.c.l.b16 %v344
  %v1711 = vunpack.c.h.b16 %v344
  %v1712 = vunpack.c.l.b16 %v345
  %v1713 = vunpack.c.h.b16 %v345
  %v1714 = vunpack.c.l.b16 %v346
  %v1715 = vunpack.c.h.b16 %v346
  %v1716 = vunpack.c.l.b16 %v347
  %v1717 = vunpack.c.h.b16 %v347
  %v1718 = vunpack.c.l.b16 %v348
  %v1719 = vunpack.c.h.b16 %v348
  %v1720 = vunpack.c.l.b16 %v349
  %v1721 = vunpack.c.h.b16 %v349
  %v1722 = vunpack.c.l.b16 %v350
  %v1723 = vunpack.c.h.b16 %v350
  %v1724 = vunpack.c.l.b16 %v351
  %v1725 = vunpack.c.h.b16 %v351
  %v1726 = vunpack.c.l.b16 %v352
  %v1727 = vunpack.c.h.b16 %v352
  %v1728 = vunpack.c.l.b16 %v353
  %v1729 = vunpack.c.h.b16 %v353
  %v1730 = vunpack.c.l.b16 %v354
  %v1731 = vunpack.c.h.b16 %v354
  %v1732 = vunpack.c.l.b16 %v355
  %v1733 = vunpack.c.h.b16 %v355
  %v1734 = vunpack.c.l.b16 %v356
  %v1735 = vunpack.c.h.b16 %v356
  %v1736 = vunpack.c.l.b16 %v357
  %v1737 = vunpack.c.h.b16 %v357
  %v1738 = vunpack.c.l.b16 %v358
  %v1739 = vunpack.c.h.b16 %v358
  %v1740 = vunpack.c.l.b16 %v359
  %v1741 = vunpack.c.h.b16 %v359
  %v1742 = vunpack.c.l.b16 %v360
  %v1743 = vunpack.c.h.b16 %v360
  %v1744 = vunpack.c.l.b16 %v361
  %v1745 = vunpack.c.h.b16 %v361
  %v1746 = vunpack.c.l.b16 %v362
  %v1747 = vunpack.c.h.b16 %v362
  %v1748 = vunpack.c.l.b16 %v363
  %v1749 = vunpack.c.h.b16 %v363
  %v1750 = vunpack.c.l.b16 %v364
  %v1751 = vunpack.c.h.b16 %v364
  %v1752 = vunpack.c.l.b16 %v365
  %v1753 = vunpack.c.h.b16 %v365
  %v1754 = vunpack.c.l.b16 %v366
  %v1755 = vunpack.c.h.b16 %v366
  %v1756 = vunpack.c.l.b16 %v367
  %v1757 = vunpack.c.h.b16 %v367
  %v1758 = vunpack.c.l.b16 %v368
  %v1759 = vunpack.c.h.b16 %v368
  %v1760 = vunpack.c.l.b16 %v369
  %v1761 = vunpack.c.h.b16 %v369
  %v1762 = vunpack.c.l.b16 %v370
  %v1763 = vunpack.c.h.b16 %v370
  %v1764 = vunpack.c.l.b16 %v371
  %v1765 = vunpack.c.h.b16 %v371
  %v1766 = vunpack.c.l.b16 %v372
  %v1767 = vunpack.c.h.b16 %v372
  %v1768 = vunpack.c.l.b16 %v373
  %v1769 = vunpack.c.h.b16 %v373
  %v1770 = vunpack.c.l.b16 %v374
  %v1771 = vunpack.c.h.b16 %v374
  %v1772 = vunpack.c.l.b16 %v375
  %v1773 = vunpack.c.h.b16 %v375
  %v1774 = vunpack.c.l.b16 %v376
  %v1775 = vunpack.c.h.b16 %v376
  %v1776 = vunpack.c.l.b16 %v377
  %v1777 = vunpack.c.h.b16 %v377
  %v1778 = vunpack.c.l.b16 %v378
  %v1779 = vunpack.c.h.b16 %v378
  %v1780 = vunpack.c.l.b16 %v379
  %v1781 = vunpack.c.h.b16 %v379
  %v1782 = vunpack.c.l.b16 %v380
  %v1783 = vunpack.c.h.b16 %v380
  %v1784 = vunpack.c.l.b16 %v381
  %v1785 = vunpack.c.h.b16 %v381
  %v1786 = vunpack.c.l.b16 %v382
  %v1787 = vunpack.c.h.b16 %v382
  %v1788 = vunpack.c.l.b16 %v383
  %v1789 = vunpack.c.h.b16 %v383
  %v1790 = vunpack.c.l.b16 %v384
  %v1791 = vunpack.c.h.b16 %v384
  %v1792 = vunpack.c.l.b16 %v385
  %v1793 = vunpack.c.h.b16 %v385
  %v1794 = vunpack.c.l.b16 %v386
  %v1795 = vunpack.c.h.b16 %v386
  %v1796 = vunpack.c.l.b16 %v387
  %v1797 = vunpack.c.h.b16 %v387
  %v1798 = vunpack.c.l.b16 %v388
  %v1799 = vunpack.c.h.b16 %v388
  %v1800 = vunpack.c.l.b16 %v389
  %v1801 = vunpack.c.h.b16 %v389
  %v1802 = vunpack.c.l.b16 %v390
  %v1803 = vunpack.c.h.b16 %v390
  %v1804 = vunpack.c.l.b16 %v391
  %v1805 = vunpack.c.h.b16 %v391
  %v1806 = vunpack.c.l.b16 %v392
  %v1807 = vunpack.c.h.b16 %v392
  %v1808 = vunpack.c.l.b16 %v393
  %v1809 = vunpack.c.h.b16 %v393
  %v1810 = vunpack.c.l.b16 %v394
  %v1811 = vunpack.c.h.b16 %v394
  %v1812 = vunpack.c.l.b16 %v395
  %v1813 = vunpack.c.h.b16 %v395
  %v1814 = vunpack.c.l.b16 %v396
  %v1815 = vunpack.c.h.b16 %v396
  %v1816 = vunpack.c.l.b16 %v397
  %v1817 = vunpack.c.h.b16 %v397
  %v1818 = vpack.c.b16 %v1308, %v1306
  %v1819 = vpack.c.b16 %v1309, %v1307
  %v1820 = vpack.c.b16 %v1312, %v1310
  %v1821 = vpack.c.b16 %v1313, %v1311
  %v1822 = vpack.c.b16 %v1316, %v1314
  %v1823 = vpack.c.b16 %v1317, %v1315
  %v1824 = vpack.c.b16 %v1320, %v1318
  %v1825 = vpack.c.b16 %v1321, %v1319
  %v1826 = vpack.c.b16 %v1324, %v1322
  %v1827 = vpack.c.b16 %v1325, %v1323
  %v1828 = vpack.c.b16 %v1328, %v1326
  %v1829 = vpack.c.b16 %v1329, %v1327
  %v1830 = vpack.c.b16 %v1332, %v1330
  %v1831 = vpack.c.b16 %v1333, %v1331
  %v1832 = vpack.c.b16 %v1336, %v1334
  %v1833 = vpack.c.b16 %v1337, %v1335
  %v1834 = vpack.c.b16 %v1340, %v1338
  %v1835 = vpack.c.b16 %v1341, %v1339
  %v1836 = vpack.c.b16 %v1344, %v1342
  %v1837 = vpack.c.b16 %v1345, %v1343
  %v1838 = vpack.c.b16 %v1348, %v1346
  %v1839 = vpack.c.b16 %v1349, %v1347
  %v1840 = vpack.c.b16 %v1352, %v1350
  %v1841 = vpack.c.b16 %v1353, %v1351
  %v1842 = vpack.c.b16 %v1356, %v1354
  %v1843 = vpack.c.b16 %v1357, %v1355
  %v1844 = vpack.c.b16 %v1360, %v1358
  %v1845 = vpack.c.b16 %v1361, %v1359
  %v1846 = vpack.c.b16 %v1364, %v1362
  %v1847 = vpack.c.b16 %v1365, %v1363
  %v1848 = vpack.c.b16 %v1368, %v1366
  %v1849 = vpack.c.b16 %v1369, %v1367
  %v1850 = vpack.c.b16 %v1372, %v1370
  %v1851 = vpack.c.b16 %v1373, %v1371
  %v1852 = vpack.c.b16 %v1376, %v1374
  %v1853 = vpack.c.b16 %v1377, %v1375
  %v1854 = vpack.c.b16 %v1380, %v1378
  %v1855 = vpack.c.b16 %v1381, %v1379
  %v1856 = vpack.c.b16 %v1384, %v1382
  %v1857 = vpack.c.b16 %v1385, %v1383
  %v1858 = vpack.c.b16 %v1388, %v1386
  %v1859 = vpack.c.b16 %v1389, %v1387
  %v1860 = vpack.c.b16 %v1392, %v1390
  %v1861 = vpack.c.b16 %v1393, %v1391
  %v1862 = vpack.c.b16 %v1396, %v1394
  %v1863 = vpack.c.b16 %v1397, %v1395
  %v1864 = vpack.c.b16 %v1400, %v1398
  %v1865 = vpack.c.b16 %v1401, %v1399
  %v1866 = vpack.c.b16 %v1404, %v1402
  %v1867 = vpack.c.b16 %v1405, %v1403
  %v1868 = vpack.c.b16 %v1408, %v1406
  %v1869 = vpack.c.b16 %v1409, %v1407
  %v1870 = vpack.c.b16 %v1412, %v1410
  %v1871 = vpack.c.b16 %v1413, %v1411
  %v1872 = vpack.c.b16 %v1416, %v1414
  %v1873 = vpack.c.b16 %v1417, %v1415
  %v1874 = vpack.c.b16 %v1420, %v1418
  %v1875 = vpack.c.b16 %v1421, %v1419
  %v1876 = vpack.c.b16 %v1424, %v1422
  %v1877 = vpack.c.b16 %v1425, %v1423
  %v1878 = vpack.c.b16 %v1428, %v1426
  %v1879 = vpack.c.b16 %v1429, %v1427
  %v1880 = vpack.c.b16 %v1432, %v1430
  %v1881 = vpack.c.b16 %v1433, %v1431
  %v1882 = vpack.c.b16 %v1436, %v1434
  %v1883 = vpack.c.b16 %v1437, %v1435
  %v1884 = vpack.c.b16 %v1440, %v1438
  %v1885 = vpack.c.b16 %v1441, %v1439
  %v1886 = vpack.c.b16 %v1444, %v1442
  %v1887 = vpack.c.b16 %v1445, %v1443
  %v1888 = vpack.c.b16 %v1448, %v1446
  %v1889 = vpack.c.b16 %v1449, %v1447
  %v1890 = vpack.c.b16 %v1452, %v1450
  %v1891 = vpack.c.b16 %v1453, %v1451
  %v1892 = vpack.c.b16 %v1456, %v1454
  %v1893 = vpack.c.b16 %v1457, %v1455
  %v1894 = vpack.c.b16 %v1460, %v1458
  %v1895 = vpack.c.b16 %v1461, %v1459
  %v1896 = vpack.c.b16 %v1464, %v1462
  %v1897 = vpack.c.b16 %v1465, %v1463
  %v1898 = vpack.c.b16 %v1468, %v1466
  %v1899 = vpack.c.b16 %v1469, %v1467
  %v1900 = vpack.c.b16 %v1472, %v1470
  %v1901 = vpack.c.b16 %v1473, %v1471
  %v1902 = vpack.c.b16 %v1476, %v1474
  %v1903 = vpack.c.b16 %v1477, %v1475
  %v1904 = vpack.c.b16 %v1480, %v1478
  %v1905 = vpack.c.b16 %v1481, %v1479
  %v1906 = vpack.c.b16 %v1484, %v1482
  %v1907 = vpack.c.b16 %v1485, %v1483
  %v1908 = vpack.c.b16 %v1488, %v1486
  %v1909 = vpack.c.b16 %v1489, %v1487
  %v1910 = vpack.c.b16 %v1492, %v1490
  %v1911 = vpack.c.b16 %v1493, %v1491
  %v1912 = vpack.c.b16 %v1496, %v1494
  %v1913 = vpack.c.b16 %v1497, %v1495
  %v1914 = vpack.c.b16 %v1500, %v1498
  %v1915 = vpack.c.b16 %v1501, %v1499
  %v1916 = vpack.c.b16 %v1504, %v1502
  %v1917 = vpack.c.b16 %v1505, %v1503
  %v1918 = vpack.c.b16 %v1508, %v1506
  %v1919 = vpack.c.b16 %v1509, %v1507
  %v1920 = vpack.c.b16 %v1512, %v1510
  %v1921 = vpack.c.b16 %v1513, %v1511
  %v1922 = vpack.c.b16 %v1516, %v1514
  %v1923 = vpack.c.b16 %v1517, %v1515
  %v1924 = vpack.c.b16 %v1520, %v1518
  %v1925 = vpack.c.b16 %v1521, %v1519
  %v1926 = vpack.c.b16 %v1524, %v1522
  %v1927 = vpack.c.b16 %v1525, %v1523
  %v1928 = vpack.c.b16 %v1528, %v1526
  %v1929 = vpack.c.b16 %v1529, %v1527
  %v1930 = vpack.c.b16 %v1532, %v1530
  %v1931 = vpack.c.b16 %v1533, %v1531
  %v1932 = vpack.c.b16 %v1536, %v1534
  %v1933 = vpack.c.b16 %v1537, %v1535
  %v1934 = vpack.c.b16 %v1540, %v1538
  %v1935 = vpack.c.b16 %v1541, %v1539
  %v1936 = vpack.c.b16 %v1544, %v1542
  %v1937 = vpack.c.b16 %v1545, %v1543
  %v1938 = vpack.c.b16 %v1548, %v1546
  %v1939 = vpack.c.b16 %v1549, %v1547
  %v1940 = vpack.c.b16 %v1552, %v1550
  %v1941 = vpack.c.b16 %v1553, %v1551
  %v1942 = vpack.c.b16 %v1556, %v1554
  %v1943 = vpack.c.b16 %v1557, %v1555
  %v1944 = vpack.c.b16 %v1560, %v1558
  %v1945 = vpack.c.b16 %v1561, %v1559
  %v1946 = vpack.c.b16 %v1564, %v1562
  %v1947 = vpack.c.b16 %v1565, %v1563
  %v1948 = vpack.c.b16 %v1568, %v1566
  %v1949 = vpack.c.b16 %v1569, %v1567
  %v1950 = vpack.c.b16 %v1572, %v1570
  %v1951 = vpack.c.b16 %v1573, %v1571
  %v1952 = vpack.c.b16 %v1576, %v1574
  %v1953 = vpack.c.b16 %v1577, %v1575
  %v1954 = vpack.c.b16 %v1580, %v1578
  %v1955 = vpack.c.b16 %v1581, %v1579
  %v1956 = vpack.c.b16 %v1584, %v1582
  %v1957 = vpack.c.b16 %v1585, %v1583
  %v1958 = vpack.c.b16 %v1588, %v1586
  %v1959 = vpack.c.b16 %v1589, %v1587
  %v1960 = vpack.c.b16 %v1592, %v1590
  %v1961 = vpack.c.b16 %v1593, %v1591
  %v1962 = vpack.c.b16 %v1596, %v1594
  %v1963 = vpack.c.b16 %v1597, %v1595
  %v1964 = vpack.c.b16 %v1600, %v1598
  %v1965 = vpack.c.b16 %v1601, %v1599
  %v1966 = vpack.c.b16 %v1604, %v1602
  %v1967 = vpack.c.b16 %v1605, %v1603
  %v1968 = vpack.c.b16 %v1608, %v1606
  %v1969 = vpack.c.b16 %v1609, %v1607
  %v1970 = vpack.c.b16 %v1612, %v1610
  %v1971 = vpack.c.b16 %v1613, %v1611
  %v1972 = vpack.c.b16 %v1616, %v1614
  %v1973 = vpack.c.b16 %v1617, %v1615
  %v1974 = vpack.c.b16 %v1620, %v1618
  %v1975 = vpack.c.b16 %v1621, %v1619
  %v1976 = vpack.c.b16 %v1624, %v1622
  %v1977 = vpack.c.b16 %v1625, %v1623
  %v1978 = vpack.c.b16 %v1628, %v1626
  %v1979 = vpack.c.b16 %v1629, %v1627
  %v1980 = vpack.c.b16 %v1632, %v1630
  %v1981 = vpack.c.b16 %v1633, %v1631
  %v1982 = vpack.c.b16 %v1636, %v1634
  %v1983 = vpack.c.b16 %v1637, %v1635
  %v1984 = vpack.c.b16 %v1640, %v1638
  %v1985 = vpack.c.b16 %v1641, %v1639
  %v1986 = vpack.c.b16 %v1644, %v1642
  %v1987 = vpack.c.b16 %v1645, %v1643
  %v1988 = vpack.c.b16 %v1648, %v1646
  %v1989 = vpack.c.b16 %v1649, %v1647
  %v1990 = vpack.c.b16 %v1652, %v1650
  %v1991 = vpack.c.b16 %v1653, %v1651
  %v1992 = vpack.c.b16 %v1656, %v1654
  %v1993 = vpack.c.b16 %v1657, %v1655
  %v1994 = vpack.c.b16 %v1660, %v1658
  %v1995 = vpack.c.b16 %v1661, %v1659
  %v1996 = vpack.c.b16 %v1664, %v1662
  %v1997 = vpack.c.b16 %v1665, %v1663
  %v1998 = vpack.c.b16 %v1668, %v1666
  %v1999 = vpack.c.b16 %v1669, %v1667
  %v2000 = vpack.c.b16 %v1672, %v1670
  %v2001 = vpack.c.b16 %v1673, %v1671
  %v2002 = vpack.c.b16 %v1676, %v1674
  %v2003 = vpack.c.b16 %v1677, %v1675
  %v2004 = vpack.c.b16 %v1680, %v1678
  %v2005 = vpack.c.b16 %v1681, %v1679
  %v2006 = vpack.c.b16 %v1684, %v1682
  %v2007 = vpack.c.b16 %v1685, %v1683
  %v2008 = vpack.c.b16 %v1688, %v1686
  %v2009 = vpack.c.b16 %v1689, %v1687
  %v2010 = vpack.c.b16 %v1692, %v1690
  %v2011 = vpack.c.b16 %v1693, %v1691
  %v2012 = vpack.c.b16 %v1696, %v1694
  %v2013 = vpack.c.b16 %v1697, %v1695
  %v2014 = vpack.c.b16 %v1700, %v1698
  %v2015 = vpack.c.b16 %v1701, %v1699
  %v2016 = vpack.c.b16 %v1704, %v1702
  %v2017 = vpack.c.b16 %v1705, %v1703
  %v2018 = vpack.c.b16 %v1708, %v1706
  %v2019 = vpack.c.b16 %v1709, %v1707
  %v2020 = vpack.c.b16 %v1712, %v1710
  %v2021 = vpack.c.b16 %v1713, %v1711
  %v2022 = vpack.c.b16 %v1716, %v1714
  %v2023 = vpack.c.b16 %v1717, %v1715
  %v2024 = vpack.c.b16 %v1720, %v1718
  %v2025 = vpack.c.b16 %v1721, %v1719
  %v2026 = vpack.c.b16 %v1724, %v1722
  %v2027 = vpack.c.b16 %v1725, %v1723
  %v2028 = vpack.c.b16 %v1728, %v1726
  %v2029 = vpack.c.b16 %v1729, %v1727
  %v2030 = vpack.c.b16 %v1732, %v1730
  %v2031 = vpack.c.b16 %v1733, %v1731
  %v2032 = vpack.c.b16 %v1736, %v1734
  %v2033 = vpack.c.b16 %v1737, %v1735
  %v2034 = vpack.c.b16 %v1740, %v1738
  %v2035 = vpack.c.b16 %v1741, %v1739
  %v2036 = vpack.c.b16 %v1744, %v1742
  %v2037 = vpack.c.b16 %v1745, %v1743
  %v2038 = vpack.c.b16 %v1748, %v1746
  %v2039 = vpack.c.b16 %v1749, %v1747
  %v2040 = vpack.c.b16 %v1752, %v1750
  %v2041 = vpack.c.b16 %v1753, %v1751
  %v2042 = vpack.c.b16 %v1756, %v1754
  %v2043 = vpack.c.b16 %v1757, %v1755
  %v2044 = vpack.c.b16 %v1760, %v1758
  %v2045 = vpack.c.b16 %v1761, %v1759
  %v2046 = vpack.c.b16 %v1764, %v1762
  %v2047 = vpack.c.b16 %v1765, %v1763
  %v2048 = vpack.c.b16 %v1768, %v1766
  %v2049 = vpack.c.b16 %v1769, %v1767
  %v2050 = vpack.c.b16 %v1772, %v1770
  %v2051 = vpack.c.b16 %v1773, %v1771
  %v2052 = vpack.c.b16 %v1776, %v1774
  %v2053 = vpack.c.b16 %v1777, %v1775
  %v2054 = vpack.c.b16 %v1780, %v1778
  %v2055 = vpack.c.b16 %v1781, %v1779
  %v2056 = vpack.c.b16 %v1784, %v1782
  %v2057 = vpack.c.b16 %v1785, %v1783
  %v2058 = vpack.c.b16 %v1788, %v1786
  %v2059 = vpack.c.b16 %v1789, %v1787
  %v2060 = vpack.c.b16 %v1792, %v1790
  %v2061 = vpack.c.b16 %v1793, %v1791
  %v2062 = vpack.c.b16 %v1796, %v1794
  %v2063 = vpack.c.b16 %v1797, %v1795
  %v2064 = vpack.c.b16 %v1800, %v1798
  %v2065 = vpack.c.b16 %v1801, %v1799
  %v2066 = vpack.c.b16 %v1804, %v1802
  %v2067 = vpack.c.b16 %v1805, %v1803
  %v2068 = vpack.c.b16 %v1808, %v1806
  %v2069 = vpack.c.b16 %v1809, %v1807
  %v2070 = vpack.c.b16 %v1812, %v1810
  %v2071 = vpack.c.b16 %v1813, %v1811
  %v2072 = vpack.c.b16 %v1816, %v1814
  %v2073 = vpack.c.b16 %v1817, %v1815
  %2330 = vmatprep.subr.bf16.mxu0 %v1819
  %2331 = vmatpush1.bf16.msra.mxu0 %v1818
  %2332 = vmatprep.subr.bf16.mxu0 %v1821
  %2333 = vmatpush1.bf16.msra.mxu0 %v1820
  %2334 = vmatprep.subr.bf16.mxu0 %v1823
  %2335 = vmatpush1.bf16.msra.mxu0 %v1822
  %2336 = vmatprep.subr.bf16.mxu0 %v1825
  %2337 = vmatpush1.bf16.msra.mxu0 %v1824
  %2338 = vmatprep.subr.bf16.mxu0 %v1827
  %2339 = vmatpush1.bf16.msra.mxu0 %v1826
  %2340 = vmatprep.subr.bf16.mxu0 %v1829
  %2341 = vmatpush1.bf16.msra.mxu0 %v1828
  %2342 = vmatprep.subr.bf16.mxu0 %v1831
  %2343 = vmatpush1.bf16.msra.mxu0 %v1830
  %2344 = vmatprep.subr.bf16.mxu0 %v1833
  %2345 = vmatpush1.bf16.msra.mxu0 %v1832
  %2346 = vmatprep.subr.bf16.mxu0 %v1835
  %2347 = vmatpush1.bf16.msra.mxu0 %v1834
  %2348 = vmatprep.subr.bf16.mxu0 %v1837
  %2349 = vmatpush1.bf16.msra.mxu0 %v1836
  %2350 = vmatprep.subr.bf16.mxu0 %v1839
  %2351 = vmatpush1.bf16.msra.mxu0 %v1838
  %2352 = vmatprep.subr.bf16.mxu0 %v1841
  %2353 = vmatpush1.bf16.msra.mxu0 %v1840
  %2354 = vmatprep.subr.bf16.mxu0 %v1843
  %2355 = vmatpush1.bf16.msra.mxu0 %v1842
  %2356 = vmatprep.subr.bf16.mxu0 %v1845
  %2357 = vmatpush1.bf16.msra.mxu0 %v1844
  %2358 = vmatprep.subr.bf16.mxu0 %v1847
  %2359 = vmatpush1.bf16.msra.mxu0 %v1846
  %2360 = vmatprep.subr.bf16.mxu0 %v1849
  %2361 = vmatpush1.bf16.msra.mxu0 %v1848
  %2362 = vmatprep.mubr.bf16.mxu0 %v795
  %2363 = vmatmul.mubr.bf16.gmra.mrb[0].mxu0 %v794
  %v2364 = vpop.f32.mrb[0].mxu0
  %v2365 = vadd.f32 %v403, %v2364
  %v2366 = vpop.f32.mrb[0].mxu0
  %v2367 = vadd.f32 %v407, %v2366
  %v2368 = vpop.f32.mrb[0].mxu0
  %v2369 = vadd.f32 %v403, %v2368
  %v2370 = vpop.f32.mrb[0].mxu0
  %v2371 = vadd.f32 %v407, %v2370
  %2372 = vmatprep.mubr.bf16.mxu0 %v811
  %2373 = vmatmul.mubr.bf16.gmra.mrb[0].mxu0 %v810
  %v2374 = vpop.f32.mrb[0].mxu0
  %v2375 = vadd.f32 %v403, %v2374
  %v2376 = vpop.f32.mrb[0].mxu0
  %v2377 = vadd.f32 %v407, %v2376
  %v2378 = vpop.f32.mrb[0].mxu0
  %v2379 = vadd.f32 %v403, %v2378
  %v2380 = vpop.f32.mrb[0].mxu0
  %v2381 = vadd.f32 %v407, %v2380
  %2382 = vmatprep.mubr.bf16.mxu0 %v827
  %2383 = vmatmul.mubr.bf16.gmra.mrb[0].mxu0 %v826
  %v2384 = vpop.f32.mrb[0].mxu0
  %v2385 = vadd.f32 %v403, %v2384
  %v2386 = vpop.f32.mrb[0].mxu0
  %v2387 = vadd.f32 %v407, %v2386
  %v2388 = vpop.f32.mrb[0].mxu0
  %v2389 = vadd.f32 %v403, %v2388
  %v2390 = vpop.f32.mrb[0].mxu0
  %v2391 = vadd.f32 %v407, %v2390
  %2392 = vmatprep.mubr.bf16.mxu0 %v843
  %2393 = vmatmul.mubr.bf16.gmra.mrb[0].mxu0 %v842
  %v2394 = vpop.f32.mrb[0].mxu0
  %v2395 = vadd.f32 %v403, %v2394
  %v2396 = vpop.f32.mrb[0].mxu0
  %v2397 = vadd.f32 %v407, %v2396
  %v2398 = vpop.f32.mrb[0].mxu0
  %v2399 = vadd.f32 %v403, %v2398
  %v2400 = vpop.f32.mrb[0].mxu0
  %v2401 = vadd.f32 %v407, %v2400
  %2402 = vmatprep.mubr.bf16.mxu0 %v859
  %2403 = vmatmul.mubr.bf16.gmra.mrb[0].mxu0 %v858
  %v2404 = vpop.f32.mrb[0].mxu0
  %v2405 = vadd.f32 %v403, %v2404
  %v2406 = vpop.f32.mrb[0].mxu0
  %v2407 = vadd.f32 %v407, %v2406
  %v2408 = vpop.f32.mrb[0].mxu0
  %v2409 = vadd.f32 %v403, %v2408
  %v2410 = vpop.f32.mrb[0].mxu0
  %v2411 = vadd.f32 %v407, %v2410
  %2412 = vmatprep.mubr.bf16.mxu0 %v875
  %2413 = vmatmul.mubr.bf16.gmra.mrb[0].mxu0 %v874
  %v2414 = vpop.f32.mrb[0].mxu0
  %v2415 = vadd.f32 %v403, %v2414
  %v2416 = vpop.f32.mrb[0].mxu0
  %v2417 = vadd.f32 %v407, %v2416
  %v2418 = vpop.f32.mrb[0].mxu0
  %v2419 = vadd.f32 %v403, %v2418
  %v2420 = vpop.f32.mrb[0].mxu0
  %v2421 = vadd.f32 %v407, %v2420
  %2422 = vmatprep.mubr.bf16.mxu0 %v891
  %2423 = vmatmul.mubr.bf16.gmra.mrb[0].mxu0 %v890
  %v2424 = vpop.f32.mrb[0].mxu0
  %v2425 = vadd.f32 %v403, %v2424
  %v2426 = vpop.f32.mrb[0].mxu0
  %v2427 = vadd.f32 %v407, %v2426
  %v2428 = vpop.f32.mrb[0].mxu0
  %v2429 = vadd.f32 %v403, %v2428
  %v2430 = vpop.f32.mrb[0].mxu0
  %v2431 = vadd.f32 %v407, %v2430
  %2432 = vmatprep.mubr.bf16.mxu0 %v907
  %2433 = vmatmul.mubr.bf16.gmra.mrb[0].mxu0 %v906
  %v2434 = vpop.f32.mrb[0].mxu0
  %v2435 = vadd.f32 %v403, %v2434
  %v2436 = vpop.f32.mrb[0].mxu0
  %v2437 = vadd.f32 %v407, %v2436
  %v2438 = vpop.f32.mrb[0].mxu0
  %v2439 = vadd.f32 %v403, %v2438
  %v2440 = vpop.f32.mrb[0].mxu0
  %v2441 = vadd.f32 %v407, %v2440
  %2442 = vdwg.mxu0
  %2443 = vmatprep.subr.bf16.mxu0 %v1851
  %2444 = vmatpush1.bf16.msra.mxu0 %v1850
  %2445 = vmatprep.subr.bf16.mxu0 %v1853
  %2446 = vmatpush1.bf16.msra.mxu0 %v1852
  %2447 = vmatprep.subr.bf16.mxu0 %v1855
  %2448 = vmatpush1.bf16.msra.mxu0 %v1854
  %2449 = vmatprep.subr.bf16.mxu0 %v1857
  %2450 = vmatpush1.bf16.msra.mxu0 %v1856
  %2451 = vmatprep.subr.bf16.mxu0 %v1859
  %2452 = vmatpush1.bf16.msra.mxu0 %v1858
  %2453 = vmatprep.subr.bf16.mxu0 %v1861
  %2454 = vmatpush1.bf16.msra.mxu0 %v1860
  %2455 = vmatprep.subr.bf16.mxu0 %v1863
  %2456 = vmatpush1.bf16.msra.mxu0 %v1862
  %2457 = vmatprep.subr.bf16.mxu0 %v1865
  %2458 = vmatpush1.bf16.msra.mxu0 %v1864
  %2459 = vmatprep.subr.bf16.mxu0 %v1867
  %2460 = vmatpush1.bf16.msra.mxu0 %v1866
  %2461 = vmatprep.subr.bf16.mxu0 %v1869
  %2462 = vmatpush1.bf16.msra.mxu0 %v1868
  %2463 = vmatprep.subr.bf16.mxu0 %v1871
  %2464 = vmatpush1.bf16.msra.mxu0 %v1870
  %2465 = vmatprep.subr.bf16.mxu0 %v1873
  %2466 = vmatpush1.bf16.msra.mxu0 %v1872
  %2467 = vmatprep.subr.bf16.mxu0 %v1875
  %2468 = vmatpush1.bf16.msra.mxu0 %v1874
  %2469 = vmatprep.subr.bf16.mxu0 %v1877
  %2470 = vmatpush1.bf16.msra.mxu0 %v1876
  %2471 = vmatprep.subr.bf16.mxu0 %v1879
  %2472 = vmatpush1.bf16.msra.mxu0 %v1878
  %2473 = vmatprep.subr.bf16.mxu0 %v1881
  %2474 = vmatpush1.bf16.msra.mxu0 %v1880
  %2475 = vmatprep.mubr.bf16.mxu0 %v797
  %2476 = vmatmul.mubr.bf16.gmra.mrb[0].mxu0 %v796
  %v2477 = vpop.f32.mrb[0].mxu0
  %v2478 = vadd.f32 %v2365, %v2477
  %v2479 = vpop.f32.mrb[0].mxu0
  %v2480 = vadd.f32 %v2367, %v2479
  %v2481 = vpop.f32.mrb[0].mxu0
  %v2482 = vadd.f32 %v2369, %v2481
  %v2483 = vpop.f32.mrb[0].mxu0
  %v2484 = vadd.f32 %v2371, %v2483
  %2485 = vmatprep.mubr.bf16.mxu0 %v813
  %2486 = vmatmul.mubr.bf16.gmra.mrb[0].mxu0 %v812
  %v2487 = vpop.f32.mrb[0].mxu0
  %v2488 = vadd.f32 %v2375, %v2487
  %v2489 = vpop.f32.mrb[0].mxu0
  %v2490 = vadd.f32 %v2377, %v2489
  %v2491 = vpop.f32.mrb[0].mxu0
  %v2492 = vadd.f32 %v2379, %v2491
  %v2493 = vpop.f32.mrb[0].mxu0
  %v2494 = vadd.f32 %v2381, %v2493
  %2495 = vmatprep.mubr.bf16.mxu0 %v829
  %2496 = vmatmul.mubr.bf16.gmra.mrb[0].mxu0 %v828
  %v2497 = vpop.f32.mrb[0].mxu0
  %v2498 = vadd.f32 %v2385, %v2497
  %v2499 = vpop.f32.mrb[0].mxu0
  %v2500 = vadd.f32 %v2387, %v2499
  %v2501 = vpop.f32.mrb[0].mxu0
  %v2502 = vadd.f32 %v2389, %v2501
  %v2503 = vpop.f32.mrb[0].mxu0
  %v2504 = vadd.f32 %v2391, %v2503
  %2505 = vmatprep.mubr.bf16.mxu0 %v845
  %2506 = vmatmul.mubr.bf16.gmra.mrb[0].mxu0 %v844
  %v2507 = vpop.f32.mrb[0].mxu0
  %v2508 = vadd.f32 %v2395, %v2507
  %v2509 = vpop.f32.mrb[0].mxu0
  %v2510 = vadd.f32 %v2397, %v2509
  %v2511 = vpop.f32.mrb[0].mxu0
  %v2512 = vadd.f32 %v2399, %v2511
  %v2513 = vpop.f32.mrb[0].mxu0
  %v2514 = vadd.f32 %v2401, %v2513
  %2515 = vmatprep.mubr.bf16.mxu0 %v861
  %2516 = vmatmul.mubr.bf16.gmra.mrb[0].mxu0 %v860
  %v2517 = vpop.f32.mrb[0].mxu0
  %v2518 = vadd.f32 %v2405, %v2517
  %v2519 = vpop.f32.mrb[0].mxu0
  %v2520 = vadd.f32 %v2407, %v2519
  %v2521 = vpop.f32.mrb[0].mxu0
  %v2522 = vadd.f32 %v2409, %v2521
  %v2523 = vpop.f32.mrb[0].mxu0
  %v2524 = vadd.f32 %v2411, %v2523
  %2525 = vmatprep.mubr.bf16.mxu0 %v877
  %2526 = vmatmul.mubr.bf16.gmra.mrb[0].mxu0 %v876
  %v2527 = vpop.f32.mrb[0].mxu0
  %v2528 = vadd.f32 %v2415, %v2527
  %v2529 = vpop.f32.mrb[0].mxu0
  %v2530 = vadd.f32 %v2417, %v2529
  %v2531 = vpop.f32.mrb[0].mxu0
  %v2532 = vadd.f32 %v2419, %v2531
  %v2533 = vpop.f32.mrb[0].mxu0
  %v2534 = vadd.f32 %v2421, %v2533
  %2535 = vmatprep.mubr.bf16.mxu0 %v893
  %2536 = vmatmul.mubr.bf16.gmra.mrb[0].mxu0 %v892
  %v2537 = vpop.f32.mrb[0].mxu0
  %v2538 = vadd.f32 %v2425, %v2537
  %v2539 = vpop.f32.mrb[0].mxu0
  %v2540 = vadd.f32 %v2427, %v2539
  %v2541 = vpop.f32.mrb[0].mxu0
  %v2542 = vadd.f32 %v2429, %v2541
  %v2543 = vpop.f32.mrb[0].mxu0
  %v2544 = vadd.f32 %v2431, %v2543
  %2545 = vmatprep.mubr.bf16.mxu0 %v909
  %2546 = vmatmul.mubr.bf16.gmra.mrb[0].mxu0 %v908
  %v2547 = vpop.f32.mrb[0].mxu0
  %v2548 = vadd.f32 %v2435, %v2547
  %v2549 = vpop.f32.mrb[0].mxu0
  %v2550 = vadd.f32 %v2437, %v2549
  %v2551 = vpop.f32.mrb[0].mxu0
  %v2552 = vadd.f32 %v2439, %v2551
  %v2553 = vpop.f32.mrb[0].mxu0
  %v2554 = vadd.f32 %v2441, %v2553
  %2555 = vdwg.mxu0
  %2556 = vmatprep.subr.bf16.mxu0 %v1883
  %2557 = vmatpush1.bf16.msra.mxu0 %v1882
  %2558 = vmatprep.subr.bf16.mxu0 %v1885
  %2559 = vmatpush1.bf16.msra.mxu0 %v1884
  %2560 = vmatprep.subr.bf16.mxu0 %v1887
  %2561 = vmatpush1.bf16.msra.mxu0 %v1886
  %2562 = vmatprep.subr.bf16.mxu0 %v1889
  %2563 = vmatpush1.bf16.msra.mxu0 %v1888
  %2564 = vmatprep.subr.bf16.mxu0 %v1891
  %2565 = vmatpush1.bf16.msra.mxu0 %v1890
  %2566 = vmatprep.subr.bf16.mxu0 %v1893
  %2567 = vmatpush1.bf16.msra.mxu0 %v1892
  %2568 = vmatprep.subr.bf16.mxu0 %v1895
  %2569 = vmatpush1.bf16.msra.mxu0 %v1894
  %2570 = vmatprep.subr.bf16.mxu0 %v1897
  %2571 = vmatpush1.bf16.msra.mxu0 %v1896
  %2572 = vmatprep.subr.bf16.mxu0 %v1899
  %2573 = vmatpush1.bf16.msra.mxu0 %v1898
  %2574 = vmatprep.subr.bf16.mxu0 %v1901
  %2575 = vmatpush1.bf16.msra.mxu0 %v1900
  %2576 = vmatprep.subr.bf16.mxu0 %v1903
  %2577 = vmatpush1.bf16.msra.mxu0 %v1902
  %2578 = vmatprep.subr.bf16.mxu0 %v1905
  %2579 = vmatpush1.bf16.msra.mxu0 %v1904
  %2580 = vmatprep.subr.bf16.mxu0 %v1907
  %2581 = vmatpush1.bf16.msra.mxu0 %v1906
  %2582 = vmatprep.subr.bf16.mxu0 %v1909
  %2583 = vmatpush1.bf16.msra.mxu0 %v1908
  %2584 = vmatprep.subr.bf16.mxu0 %v1911
  %2585 = vmatpush1.bf16.msra.mxu0 %v1910
  %2586 = vmatprep.subr.bf16.mxu0 %v1913
  %2587 = vmatpush1.bf16.msra.mxu0 %v1912
  %2588 = vmatprep.mubr.bf16.mxu0 %v799
  %2589 = vmatmul.mubr.bf16.gmra.mrb[0].mxu0 %v798
  %v2590 = vpop.f32.mrb[0].mxu0
  %v2591 = vadd.f32 %v2478, %v2590
  %v2592 = vpop.f32.mrb[0].mxu0
  %v2593 = vadd.f32 %v2480, %v2592
  %v2594 = vpop.f32.mrb[0].mxu0
  %v2595 = vadd.f32 %v2482, %v2594
  %v2596 = vpop.f32.mrb[0].mxu0
  %v2597 = vadd.f32 %v2484, %v2596
  %2598 = vmatprep.mubr.bf16.mxu0 %v815
  %2599 = vmatmul.mubr.bf16.gmra.mrb[0].mxu0 %v814
  %v2600 = vpop.f32.mrb[0].mxu0
  %v2601 = vadd.f32 %v2488, %v2600
  %v2602 = vpop.f32.mrb[0].mxu0
  %v2603 = vadd.f32 %v2490, %v2602
  %v2604 = vpop.f32.mrb[0].mxu0
  %v2605 = vadd.f32 %v2492, %v2604
  %v2606 = vpop.f32.mrb[0].mxu0
  %v2607 = vadd.f32 %v2494, %v2606
  %2608 = vmatprep.mubr.bf16.mxu0 %v831
  %2609 = vmatmul.mubr.bf16.gmra.mrb[0].mxu0 %v830
  %v2610 = vpop.f32.mrb[0].mxu0
  %v2611 = vadd.f32 %v2498, %v2610
  %v2612 = vpop.f32.mrb[0].mxu0
  %v2613 = vadd.f32 %v2500, %v2612
  %v2614 = vpop.f32.mrb[0].mxu0
  %v2615 = vadd.f32 %v2502, %v2614
  %v2616 = vpop.f32.mrb[0].mxu0
  %v2617 = vadd.f32 %v2504, %v2616
  %2618 = vmatprep.mubr.bf16.mxu0 %v847
  %2619 = vmatmul.mubr.bf16.gmra.mrb[0].mxu0 %v846
  %v2620 = vpop.f32.mrb[0].mxu0
  %v2621 = vadd.f32 %v2508, %v2620
  %v2622 = vpop.f32.mrb[0].mxu0
  %v2623 = vadd.f32 %v2510, %v2622
  %v2624 = vpop.f32.mrb[0].mxu0
  %v2625 = vadd.f32 %v2512, %v2624
  %v2626 = vpop.f32.mrb[0].mxu0
  %v2627 = vadd.f32 %v2514, %v2626
  %2628 = vmatprep.mubr.bf16.mxu0 %v863
  %2629 = vmatmul.mubr.bf16.gmra.mrb[0].mxu0 %v862
  %v2630 = vpop.f32.mrb[0].mxu0
  %v2631 = vadd.f32 %v2518, %v2630
  %v2632 = vpop.f32.mrb[0].mxu0
  %v2633 = vadd.f32 %v2520, %v2632
  %v2634 = vpop.f32.mrb[0].mxu0
  %v2635 = vadd.f32 %v2522, %v2634
  %v2636 = vpop.f32.mrb[0].mxu0
  %v2637 = vadd.f32 %v2524, %v2636
  %2638 = vmatprep.mubr.bf16.mxu0 %v879
  %2639 = vmatmul.mubr.bf16.gmra.mrb[0].mxu0 %v878
  %v2640 = vpop.f32.mrb[0].mxu0
  %v2641 = vadd.f32 %v2528, %v2640
  %v2642 = vpop.f32.mrb[0].mxu0
  %v2643 = vadd.f32 %v2530, %v2642
  %v2644 = vpop.f32.mrb[0].mxu0
  %v2645 = vadd.f32 %v2532, %v2644
  %v2646 = vpop.f32.mrb[0].mxu0
  %v2647 = vadd.f32 %v2534, %v2646
  %2648 = vmatprep.mubr.bf16.mxu0 %v895
  %2649 = vmatmul.mubr.bf16.gmra.mrb[0].mxu0 %v894
  %v2650 = vpop.f32.mrb[0].mxu0
  %v2651 = vadd.f32 %v2538, %v2650
  %v2652 = vpop.f32.mrb[0].mxu0
  %v2653 = vadd.f32 %v2540, %v2652
  %v2654 = vpop.f32.mrb[0].mxu0
  %v2655 = vadd.f32 %v2542, %v2654
  %v2656 = vpop.f32.mrb[0].mxu0
  %v2657 = vadd.f32 %v2544, %v2656
  %2658 = vmatprep.mubr.bf16.mxu0 %v911
  %2659 = vmatmul.mubr.bf16.gmra.mrb[0].mxu0 %v910
  %v2660 = vpop.f32.mrb[0].mxu0
  %v2661 = vadd.f32 %v2548, %v2660
  %v2662 = vpop.f32.mrb[0].mxu0
  %v2663 = vadd.f32 %v2550, %v2662
  %v2664 = vpop.f32.mrb[0].mxu0
  %v2665 = vadd.f32 %v2552, %v2664
  %v2666 = vpop.f32.mrb[0].mxu0
  %v2667 = vadd.f32 %v2554, %v2666
  %2668 = vdwg.mxu0
  %2669 = vmatprep.subr.bf16.mxu0 %v1915
  %2670 = vmatpush1.bf16.msra.mxu0 %v1914
  %2671 = vmatprep.subr.bf16.mxu0 %v1917
  %2672 = vmatpush1.bf16.msra.mxu0 %v1916
  %2673 = vmatprep.subr.bf16.mxu0 %v1919
  %2674 = vmatpush1.bf16.msra.mxu0 %v1918
  %2675 = vmatprep.subr.bf16.mxu0 %v1921
  %2676 = vmatpush1.bf16.msra.mxu0 %v1920
  %2677 = vmatprep.subr.bf16.mxu0 %v1923
  %2678 = vmatpush1.bf16.msra.mxu0 %v1922
  %2679 = vmatprep.subr.bf16.mxu0 %v1925
  %2680 = vmatpush1.bf16.msra.mxu0 %v1924
  %2681 = vmatprep.subr.bf16.mxu0 %v1927
  %2682 = vmatpush1.bf16.msra.mxu0 %v1926
  %2683 = vmatprep.subr.bf16.mxu0 %v1929
  %2684 = vmatpush1.bf16.msra.mxu0 %v1928
  %2685 = vmatprep.subr.bf16.mxu0 %v1931
  %2686 = vmatpush1.bf16.msra.mxu0 %v1930
  %2687 = vmatprep.subr.bf16.mxu0 %v1933
  %2688 = vmatpush1.bf16.msra.mxu0 %v1932
  %2689 = vmatprep.subr.bf16.mxu0 %v1935
  %2690 = vmatpush1.bf16.msra.mxu0 %v1934
  %2691 = vmatprep.subr.bf16.mxu0 %v1937
  %2692 = vmatpush1.bf16.msra.mxu0 %v1936
  %2693 = vmatprep.subr.bf16.mxu0 %v1939
  %2694 = vmatpush1.bf16.msra.mxu0 %v1938
  %2695 = vmatprep.subr.bf16.mxu0 %v1941
  %2696 = vmatpush1.bf16.msra.mxu0 %v1940
  %2697 = vmatprep.subr.bf16.mxu0 %v1943
  %2698 = vmatpush1.bf16.msra.mxu0 %v1942
  %2699 = vmatprep.subr.bf16.mxu0 %v1945
  %2700 = vmatpush1.bf16.msra.mxu0 %v1944
  %2701 = vmatprep.mubr.bf16.mxu0 %v801
  %2702 = vmatmul.mubr.bf16.gmra.mrb[0].mxu0 %v800
  %v2703 = vpop.f32.mrb[0].mxu0
  %v2704 = vadd.f32 %v2591, %v2703
  %v2705 = vpop.f32.mrb[0].mxu0
  %v2706 = vadd.f32 %v2593, %v2705
  %v2707 = vpop.f32.mrb[0].mxu0
  %v2708 = vadd.f32 %v2595, %v2707
  %v2709 = vpop.f32.mrb[0].mxu0
  %v2710 = vadd.f32 %v2597, %v2709
  %2711 = vmatprep.mubr.bf16.mxu0 %v817
  %2712 = vmatmul.mubr.bf16.gmra.mrb[0].mxu0 %v816
  %v2713 = vpop.f32.mrb[0].mxu0
  %v2714 = vadd.f32 %v2601, %v2713
  %v2715 = vpop.f32.mrb[0].mxu0
  %v2716 = vadd.f32 %v2603, %v2715
  %v2717 = vpop.f32.mrb[0].mxu0
  %v2718 = vadd.f32 %v2605, %v2717
  %v2719 = vpop.f32.mrb[0].mxu0
  %v2720 = vadd.f32 %v2607, %v2719
  %2721 = vmatprep.mubr.bf16.mxu0 %v833
  %2722 = vmatmul.mubr.bf16.gmra.mrb[0].mxu0 %v832
  %v2723 = vpop.f32.mrb[0].mxu0
  %v2724 = vadd.f32 %v2611, %v2723
  %v2725 = vpop.f32.mrb[0].mxu0
  %v2726 = vadd.f32 %v2613, %v2725
  %v2727 = vpop.f32.mrb[0].mxu0
  %v2728 = vadd.f32 %v2615, %v2727
  %v2729 = vpop.f32.mrb[0].mxu0
  %v2730 = vadd.f32 %v2617, %v2729
  %2731 = vmatprep.mubr.bf16.mxu0 %v849
  %2732 = vmatmul.mubr.bf16.gmra.mrb[0].mxu0 %v848
  %v2733 = vpop.f32.mrb[0].mxu0
  %v2734 = vadd.f32 %v2621, %v2733
  %v2735 = vpop.f32.mrb[0].mxu0
  %v2736 = vadd.f32 %v2623, %v2735
  %v2737 = vpop.f32.mrb[0].mxu0
  %v2738 = vadd.f32 %v2625, %v2737
  %v2739 = vpop.f32.mrb[0].mxu0
  %v2740 = vadd.f32 %v2627, %v2739
  %2741 = vmatprep.mubr.bf16.mxu0 %v865
  %2742 = vmatmul.mubr.bf16.gmra.mrb[0].mxu0 %v864
  %v2743 = vpop.f32.mrb[0].mxu0
  %v2744 = vadd.f32 %v2631, %v2743
  %v2745 = vpop.f32.mrb[0].mxu0
  %v2746 = vadd.f32 %v2633, %v2745
  %v2747 = vpop.f32.mrb[0].mxu0
  %v2748 = vadd.f32 %v2635, %v2747
  %v2749 = vpop.f32.mrb[0].mxu0
  %v2750 = vadd.f32 %v2637, %v2749
  %2751 = vmatprep.mubr.bf16.mxu0 %v881
  %2752 = vmatmul.mubr.bf16.gmra.mrb[0].mxu0 %v880
  %v2753 = vpop.f32.mrb[0].mxu0
  %v2754 = vadd.f32 %v2641, %v2753
  %v2755 = vpop.f32.mrb[0].mxu0
  %v2756 = vadd.f32 %v2643, %v2755
  %v2757 = vpop.f32.mrb[0].mxu0
  %v2758 = vadd.f32 %v2645, %v2757
  %v2759 = vpop.f32.mrb[0].mxu0
  %v2760 = vadd.f32 %v2647, %v2759
  %2761 = vmatprep.mubr.bf16.mxu0 %v897
  %2762 = vmatmul.mubr.bf16.gmra.mrb[0].mxu0 %v896
  %v2763 = vpop.f32.mrb[0].mxu0
  %v2764 = vadd.f32 %v2651, %v2763
  %v2765 = vpop.f32.mrb[0].mxu0
  %v2766 = vadd.f32 %v2653, %v2765
  %v2767 = vpop.f32.mrb[0].mxu0
  %v2768 = vadd.f32 %v2655, %v2767
  %v2769 = vpop.f32.mrb[0].mxu0
  %v2770 = vadd.f32 %v2657, %v2769
  %2771 = vmatprep.mubr.bf16.mxu0 %v913
  %2772 = vmatmul.mubr.bf16.gmra.mrb[0].mxu0 %v912
  %v2773 = vpop.f32.mrb[0].mxu0
  %v2774 = vadd.f32 %v2661, %v2773
  %v2775 = vpop.f32.mrb[0].mxu0
  %v2776 = vadd.f32 %v2663, %v2775
  %v2777 = vpop.f32.mrb[0].mxu0
  %v2778 = vadd.f32 %v2665, %v2777
  %v2779 = vpop.f32.mrb[0].mxu0
  %v2780 = vadd.f32 %v2667, %v2779
  %2781 = vdwg.mxu0
  %2782 = vmatprep.subr.bf16.mxu0 %v1947
  %2783 = vmatpush1.bf16.msra.mxu0 %v1946
  %2784 = vmatprep.subr.bf16.mxu0 %v1949
  %2785 = vmatpush1.bf16.msra.mxu0 %v1948
  %2786 = vmatprep.subr.bf16.mxu0 %v1951
  %2787 = vmatpush1.bf16.msra.mxu0 %v1950
  %2788 = vmatprep.subr.bf16.mxu0 %v1953
  %2789 = vmatpush1.bf16.msra.mxu0 %v1952
  %2790 = vmatprep.subr.bf16.mxu0 %v1955
  %2791 = vmatpush1.bf16.msra.mxu0 %v1954
  %2792 = vmatprep.subr.bf16.mxu0 %v1957
  %2793 = vmatpush1.bf16.msra.mxu0 %v1956
  %2794 = vmatprep.subr.bf16.mxu0 %v1959
  %2795 = vmatpush1.bf16.msra.mxu0 %v1958
  %2796 = vmatprep.subr.bf16.mxu0 %v1961
  %2797 = vmatpush1.bf16.msra.mxu0 %v1960
  %2798 = vmatprep.subr.bf16.mxu0 %v1963
  %2799 = vmatpush1.bf16.msra.mxu0 %v1962
  %2800 = vmatprep.subr.bf16.mxu0 %v1965
  %2801 = vmatpush1.bf16.msra.mxu0 %v1964
  %2802 = vmatprep.subr.bf16.mxu0 %v1967
  %2803 = vmatpush1.bf16.msra.mxu0 %v1966
  %2804 = vmatprep.subr.bf16.mxu0 %v1969
  %2805 = vmatpush1.bf16.msra.mxu0 %v1968
  %2806 = vmatprep.subr.bf16.mxu0 %v1971
  %2807 = vmatpush1.bf16.msra.mxu0 %v1970
  %2808 = vmatprep.subr.bf16.mxu0 %v1973
  %2809 = vmatpush1.bf16.msra.mxu0 %v1972
  %2810 = vmatprep.subr.bf16.mxu0 %v1975
  %2811 = vmatpush1.bf16.msra.mxu0 %v1974
  %2812 = vmatprep.subr.bf16.mxu0 %v1977
  %2813 = vmatpush1.bf16.msra.mxu0 %v1976
  %2814 = vmatprep.mubr.bf16.mxu0 %v803
  %2815 = vmatmul.mubr.bf16.gmra.mrb[0].mxu0 %v802
  %v2816 = vpop.f32.mrb[0].mxu0
  %v2817 = vadd.f32 %v2704, %v2816
  %v2818 = vpop.f32.mrb[0].mxu0
  %v2819 = vadd.f32 %v2706, %v2818
  %v2820 = vpop.f32.mrb[0].mxu0
  %v2821 = vadd.f32 %v2708, %v2820
  %v2822 = vpop.f32.mrb[0].mxu0
  %v2823 = vadd.f32 %v2710, %v2822
  %2824 = vmatprep.mubr.bf16.mxu0 %v819
  %2825 = vmatmul.mubr.bf16.gmra.mrb[0].mxu0 %v818
  %v2826 = vpop.f32.mrb[0].mxu0
  %v2827 = vadd.f32 %v2714, %v2826
  %v2828 = vpop.f32.mrb[0].mxu0
  %v2829 = vadd.f32 %v2716, %v2828
  %v2830 = vpop.f32.mrb[0].mxu0
  %v2831 = vadd.f32 %v2718, %v2830
  %v2832 = vpop.f32.mrb[0].mxu0
  %v2833 = vadd.f32 %v2720, %v2832
  %2834 = vmatprep.mubr.bf16.mxu0 %v835
  %2835 = vmatmul.mubr.bf16.gmra.mrb[0].mxu0 %v834
  %v2836 = vpop.f32.mrb[0].mxu0
  %v2837 = vadd.f32 %v2724, %v2836
  %v2838 = vpop.f32.mrb[0].mxu0
  %v2839 = vadd.f32 %v2726, %v2838
  %v2840 = vpop.f32.mrb[0].mxu0
  %v2841 = vadd.f32 %v2728, %v2840
  %v2842 = vpop.f32.mrb[0].mxu0
  %v2843 = vadd.f32 %v2730, %v2842
  %2844 = vmatprep.mubr.bf16.mxu0 %v851
  %2845 = vmatmul.mubr.bf16.gmra.mrb[0].mxu0 %v850
  %v2846 = vpop.f32.mrb[0].mxu0
  %v2847 = vadd.f32 %v2734, %v2846
  %v2848 = vpop.f32.mrb[0].mxu0
  %v2849 = vadd.f32 %v2736, %v2848
  %v2850 = vpop.f32.mrb[0].mxu0
  %v2851 = vadd.f32 %v2738, %v2850
  %v2852 = vpop.f32.mrb[0].mxu0
  %v2853 = vadd.f32 %v2740, %v2852
  %2854 = vmatprep.mubr.bf16.mxu0 %v867
  %2855 = vmatmul.mubr.bf16.gmra.mrb[0].mxu0 %v866
  %v2856 = vpop.f32.mrb[0].mxu0
  %v2857 = vadd.f32 %v2744, %v2856
  %v2858 = vpop.f32.mrb[0].mxu0
  %v2859 = vadd.f32 %v2746, %v2858
  %v2860 = vpop.f32.mrb[0].mxu0
  %v2861 = vadd.f32 %v2748, %v2860
  %v2862 = vpop.f32.mrb[0].mxu0
  %v2863 = vadd.f32 %v2750, %v2862
  %2864 = vmatprep.mubr.bf16.mxu0 %v883
  %2865 = vmatmul.mubr.bf16.gmra.mrb[0].mxu0 %v882
  %v2866 = vpop.f32.mrb[0].mxu0
  %v2867 = vadd.f32 %v2754, %v2866
  %v2868 = vpop.f32.mrb[0].mxu0
  %v2869 = vadd.f32 %v2756, %v2868
  %v2870 = vpop.f32.mrb[0].mxu0
  %v2871 = vadd.f32 %v2758, %v2870
  %v2872 = vpop.f32.mrb[0].mxu0
  %v2873 = vadd.f32 %v2760, %v2872
  %2874 = vmatprep.mubr.bf16.mxu0 %v899
  %2875 = vmatmul.mubr.bf16.gmra.mrb[0].mxu0 %v898
  %v2876 = vpop.f32.mrb[0].mxu0
  %v2877 = vadd.f32 %v2764, %v2876
  %v2878 = vpop.f32.mrb[0].mxu0
  %v2879 = vadd.f32 %v2766, %v2878
  %v2880 = vpop.f32.mrb[0].mxu0
  %v2881 = vadd.f32 %v2768, %v2880
  %v2882 = vpop.f32.mrb[0].mxu0
  %v2883 = vadd.f32 %v2770, %v2882
  %2884 = vmatprep.mubr.bf16.mxu0 %v915
  %2885 = vmatmul.mubr.bf16.gmra.mrb[0].mxu0 %v914
  %v2886 = vpop.f32.mrb[0].mxu0
  %v2887 = vadd.f32 %v2774, %v2886
  %v2888 = vpop.f32.mrb[0].mxu0
  %v2889 = vadd.f32 %v2776, %v2888
  %v2890 = vpop.f32.mrb[0].mxu0
  %v2891 = vadd.f32 %v2778, %v2890
  %v2892 = vpop.f32.mrb[0].mxu0
  %v2893 = vadd.f32 %v2780, %v2892
  %2894 = vdwg.mxu0
  %2895 = vmatprep.subr.bf16.mxu0 %v1979
  %2896 = vmatpush1.bf16.msra.mxu0 %v1978
  %2897 = vmatprep.subr.bf16.mxu0 %v1981
  %2898 = vmatpush1.bf16.msra.mxu0 %v1980
  %2899 = vmatprep.subr.bf16.mxu0 %v1983
  %2900 = vmatpush1.bf16.msra.mxu0 %v1982
  %2901 = vmatprep.subr.bf16.mxu0 %v1985
  %2902 = vmatpush1.bf16.msra.mxu0 %v1984
  %2903 = vmatprep.subr.bf16.mxu0 %v1987
  %2904 = vmatpush1.bf16.msra.mxu0 %v1986
  %2905 = vmatprep.subr.bf16.mxu0 %v1989
  %2906 = vmatpush1.bf16.msra.mxu0 %v1988
  %2907 = vmatprep.subr.bf16.mxu0 %v1991
  %2908 = vmatpush1.bf16.msra.mxu0 %v1990
  %2909 = vmatprep.subr.bf16.mxu0 %v1993
  %2910 = vmatpush1.bf16.msra.mxu0 %v1992
  %2911 = vmatprep.subr.bf16.mxu0 %v1995
  %2912 = vmatpush1.bf16.msra.mxu0 %v1994
  %2913 = vmatprep.subr.bf16.mxu0 %v1997
  %2914 = vmatpush1.bf16.msra.mxu0 %v1996
  %2915 = vmatprep.subr.bf16.mxu0 %v1999
  %2916 = vmatpush1.bf16.msra.mxu0 %v1998
  %2917 = vmatprep.subr.bf16.mxu0 %v2001
  %2918 = vmatpush1.bf16.msra.mxu0 %v2000
  %2919 = vmatprep.subr.bf16.mxu0 %v2003
  %2920 = vmatpush1.bf16.msra.mxu0 %v2002
  %2921 = vmatprep.subr.bf16.mxu0 %v2005
  %2922 = vmatpush1.bf16.msra.mxu0 %v2004
  %2923 = vmatprep.subr.bf16.mxu0 %v2007
  %2924 = vmatpush1.bf16.msra.mxu0 %v2006
  %2925 = vmatprep.subr.bf16.mxu0 %v2009
  %2926 = vmatpush1.bf16.msra.mxu0 %v2008
  %2927 = vmatprep.mubr.bf16.mxu0 %v805
  %2928 = vmatmul.mubr.bf16.gmra.mrb[0].mxu0 %v804
  %v2929 = vpop.f32.mrb[0].mxu0
  %v2930 = vadd.f32 %v2817, %v2929
  %v2931 = vpop.f32.mrb[0].mxu0
  %v2932 = vadd.f32 %v2819, %v2931
  %v2933 = vpop.f32.mrb[0].mxu0
  %v2934 = vadd.f32 %v2821, %v2933
  %v2935 = vpop.f32.mrb[0].mxu0
  %v2936 = vadd.f32 %v2823, %v2935
  %2937 = vmatprep.mubr.bf16.mxu0 %v821
  %2938 = vmatmul.mubr.bf16.gmra.mrb[0].mxu0 %v820
  %v2939 = vpop.f32.mrb[0].mxu0
  %v2940 = vadd.f32 %v2827, %v2939
  %v2941 = vpop.f32.mrb[0].mxu0
  %v2942 = vadd.f32 %v2829, %v2941
  %v2943 = vpop.f32.mrb[0].mxu0
  %v2944 = vadd.f32 %v2831, %v2943
  %v2945 = vpop.f32.mrb[0].mxu0
  %v2946 = vadd.f32 %v2833, %v2945
  %2947 = vmatprep.mubr.bf16.mxu0 %v837
  %2948 = vmatmul.mubr.bf16.gmra.mrb[0].mxu0 %v836
  %v2949 = vpop.f32.mrb[0].mxu0
  %v2950 = vadd.f32 %v2837, %v2949
  %v2951 = vpop.f32.mrb[0].mxu0
  %v2952 = vadd.f32 %v2839, %v2951
  %v2953 = vpop.f32.mrb[0].mxu0
  %v2954 = vadd.f32 %v2841, %v2953
  %v2955 = vpop.f32.mrb[0].mxu0
  %v2956 = vadd.f32 %v2843, %v2955
  %2957 = vmatprep.mubr.bf16.mxu0 %v853
  %2958 = vmatmul.mubr.bf16.gmra.mrb[0].mxu0 %v852
  %v2959 = vpop.f32.mrb[0].mxu0
  %v2960 = vadd.f32 %v2847, %v2959
  %v2961 = vpop.f32.mrb[0].mxu0
  %v2962 = vadd.f32 %v2849, %v2961
  %v2963 = vpop.f32.mrb[0].mxu0
  %v2964 = vadd.f32 %v2851, %v2963
  %v2965 = vpop.f32.mrb[0].mxu0
  %v2966 = vadd.f32 %v2853, %v2965
  %2967 = vmatprep.mubr.bf16.mxu0 %v869
  %2968 = vmatmul.mubr.bf16.gmra.mrb[0].mxu0 %v868
  %v2969 = vpop.f32.mrb[0].mxu0
  %v2970 = vadd.f32 %v2857, %v2969
  %v2971 = vpop.f32.mrb[0].mxu0
  %v2972 = vadd.f32 %v2859, %v2971
  %v2973 = vpop.f32.mrb[0].mxu0
  %v2974 = vadd.f32 %v2861, %v2973
  %v2975 = vpop.f32.mrb[0].mxu0
  %v2976 = vadd.f32 %v2863, %v2975
  %2977 = vmatprep.mubr.bf16.mxu0 %v885
  %2978 = vmatmul.mubr.bf16.gmra.mrb[0].mxu0 %v884
  %v2979 = vpop.f32.mrb[0].mxu0
  %v2980 = vadd.f32 %v2867, %v2979
  %v2981 = vpop.f32.mrb[0].mxu0
  %v2982 = vadd.f32 %v2869, %v2981
  %v2983 = vpop.f32.mrb[0].mxu0
  %v2984 = vadd.f32 %v2871, %v2983
  %v2985 = vpop.f32.mrb[0].mxu0
  %v2986 = vadd.f32 %v2873, %v2985
  %2987 = vmatprep.mubr.bf16.mxu0 %v901
  %2988 = vmatmul.mubr.bf16.gmra.mrb[0].mxu0 %v900
  %v2989 = vpop.f32.mrb[0].mxu0
  %v2990 = vadd.f32 %v2877, %v2989
  %v2991 = vpop.f32.mrb[0].mxu0
  %v2992 = vadd.f32 %v2879, %v2991
  %v2993 = vpop.f32.mrb[0].mxu0
  %v2994 = vadd.f32 %v2881, %v2993
  %v2995 = vpop.f32.mrb[0].mxu0
  %v2996 = vadd.f32 %v2883, %v2995
  %2997 = vmatprep.mubr.bf16.mxu0 %v917
  %2998 = vmatmul.mubr.bf16.gmra.mrb[0].mxu0 %v916
  %v2999 = vpop.f32.mrb[0].mxu0
  %v3000 = vadd.f32 %v2887, %v2999
  %v3001 = vpop.f32.mrb[0].mxu0
  %v3002 = vadd.f32 %v2889, %v3001
  %v3003 = vpop.f32.mrb[0].mxu0
  %v3004 = vadd.f32 %v2891, %v3003
  %v3005 = vpop.f32.mrb[0].mxu0
  %v3006 = vadd.f32 %v2893, %v3005
  %3007 = vdwg.mxu0
  %3008 = vmatprep.subr.bf16.mxu0 %v2011
  %3009 = vmatpush1.bf16.msra.mxu0 %v2010
  %3010 = vmatprep.subr.bf16.mxu0 %v2013
  %3011 = vmatpush1.bf16.msra.mxu0 %v2012
  %3012 = vmatprep.subr.bf16.mxu0 %v2015
  %3013 = vmatpush1.bf16.msra.mxu0 %v2014
  %3014 = vmatprep.subr.bf16.mxu0 %v2017
  %3015 = vmatpush1.bf16.msra.mxu0 %v2016
  %3016 = vmatprep.subr.bf16.mxu0 %v2019
  %3017 = vmatpush1.bf16.msra.mxu0 %v2018
  %3018 = vmatprep.subr.bf16.mxu0 %v2021
  %3019 = vmatpush1.bf16.msra.mxu0 %v2020
  %3020 = vmatprep.subr.bf16.mxu0 %v2023
  %3021 = vmatpush1.bf16.msra.mxu0 %v2022
  %3022 = vmatprep.subr.bf16.mxu0 %v2025
  %3023 = vmatpush1.bf16.msra.mxu0 %v2024
  %3024 = vmatprep.subr.bf16.mxu0 %v2027
  %3025 = vmatpush1.bf16.msra.mxu0 %v2026
  %3026 = vmatprep.subr.bf16.mxu0 %v2029
  %3027 = vmatpush1.bf16.msra.mxu0 %v2028
  %3028 = vmatprep.subr.bf16.mxu0 %v2031
  %3029 = vmatpush1.bf16.msra.mxu0 %v2030
  %3030 = vmatprep.subr.bf16.mxu0 %v2033
  %3031 = vmatpush1.bf16.msra.mxu0 %v2032
  %3032 = vmatprep.subr.bf16.mxu0 %v2035
  %3033 = vmatpush1.bf16.msra.mxu0 %v2034
  %3034 = vmatprep.subr.bf16.mxu0 %v2037
  %3035 = vmatpush1.bf16.msra.mxu0 %v2036
  %3036 = vmatprep.subr.bf16.mxu0 %v2039
  %3037 = vmatpush1.bf16.msra.mxu0 %v2038
  %3038 = vmatprep.subr.bf16.mxu0 %v2041
  %3039 = vmatpush1.bf16.msra.mxu0 %v2040
  %3040 = vmatprep.mubr.bf16.mxu0 %v807
  %3041 = vmatmul.mubr.bf16.gmra.mrb[0].mxu0 %v806
  %v3042 = vpop.f32.mrb[0].mxu0
  %v3043 = vadd.f32 %v2930, %v3042
  %v3044 = vpop.f32.mrb[0].mxu0
  %v3045 = vadd.f32 %v2932, %v3044
  %v3046 = vpop.f32.mrb[0].mxu0
  %v3047 = vadd.f32 %v2934, %v3046
  %v3048 = vpop.f32.mrb[0].mxu0
  %v3049 = vadd.f32 %v2936, %v3048
  %3050 = vmatprep.mubr.bf16.mxu0 %v823
  %3051 = vmatmul.mubr.bf16.gmra.mrb[0].mxu0 %v822
  %v3052 = vpop.f32.mrb[0].mxu0
  %v3053 = vadd.f32 %v2940, %v3052
  %v3054 = vpop.f32.mrb[0].mxu0
  %v3055 = vadd.f32 %v2942, %v3054
  %v3056 = vpop.f32.mrb[0].mxu0
  %v3057 = vadd.f32 %v2944, %v3056
  %v3058 = vpop.f32.mrb[0].mxu0
  %v3059 = vadd.f32 %v2946, %v3058
  %3060 = vmatprep.mubr.bf16.mxu0 %v839
  %3061 = vmatmul.mubr.bf16.gmra.mrb[0].mxu0 %v838
  %v3062 = vpop.f32.mrb[0].mxu0
  %v3063 = vadd.f32 %v2950, %v3062
  %v3064 = vpop.f32.mrb[0].mxu0
  %v3065 = vadd.f32 %v2952, %v3064
  %v3066 = vpop.f32.mrb[0].mxu0
  %v3067 = vadd.f32 %v2954, %v3066
  %v3068 = vpop.f32.mrb[0].mxu0
  %v3069 = vadd.f32 %v2956, %v3068
  %3070 = vmatprep.mubr.bf16.mxu0 %v855
  %3071 = vmatmul.mubr.bf16.gmra.mrb[0].mxu0 %v854
  %v3072 = vpop.f32.mrb[0].mxu0
  %v3073 = vadd.f32 %v2960, %v3072
  %v3074 = vpop.f32.mrb[0].mxu0
  %v3075 = vadd.f32 %v2962, %v3074
  %v3076 = vpop.f32.mrb[0].mxu0
  %v3077 = vadd.f32 %v2964, %v3076
  %v3078 = vpop.f32.mrb[0].mxu0
  %v3079 = vadd.f32 %v2966, %v3078
  %3080 = vmatprep.mubr.bf16.mxu0 %v871
  %3081 = vmatmul.mubr.bf16.gmra.mrb[0].mxu0 %v870
  %v3082 = vpop.f32.mrb[0].mxu0
  %v3083 = vadd.f32 %v2970, %v3082
  %v3084 = vpop.f32.mrb[0].mxu0
  %v3085 = vadd.f32 %v2972, %v3084
  %v3086 = vpop.f32.mrb[0].mxu0
  %v3087 = vadd.f32 %v2974, %v3086
  %v3088 = vpop.f32.mrb[0].mxu0
  %v3089 = vadd.f32 %v2976, %v3088
  %3090 = vmatprep.mubr.bf16.mxu0 %v887
  %3091 = vmatmul.mubr.bf16.gmra.mrb[0].mxu0 %v886
  %v3092 = vpop.f32.mrb[0].mxu0
  %v3093 = vadd.f32 %v2980, %v3092
  %v3094 = vpop.f32.mrb[0].mxu0
  %v3095 = vadd.f32 %v2982, %v3094
  %v3096 = vpop.f32.mrb[0].mxu0
  %v3097 = vadd.f32 %v2984, %v3096
  %v3098 = vpop.f32.mrb[0].mxu0
  %v3099 = vadd.f32 %v2986, %v3098
  %3100 = vmatprep.mubr.bf16.mxu0 %v903
  %3101 = vmatmul.mubr.bf16.gmra.mrb[0].mxu0 %v902
  %v3102 = vpop.f32.mrb[0].mxu0
  %v3103 = vadd.f32 %v2990, %v3102
  %v3104 = vpop.f32.mrb[0].mxu0
  %v3105 = vadd.f32 %v2992, %v3104
  %v3106 = vpop.f32.mrb[0].mxu0
  %v3107 = vadd.f32 %v2994, %v3106
  %v3108 = vpop.f32.mrb[0].mxu0
  %v3109 = vadd.f32 %v2996, %v3108
  %3110 = vmatprep.mubr.bf16.mxu0 %v919
  %3111 = vmatmul.mubr.bf16.gmra.mrb[0].mxu0 %v918
  %v3112 = vpop.f32.mrb[0].mxu0
  %v3113 = vadd.f32 %v3000, %v3112
  %v3114 = vpop.f32.mrb[0].mxu0
  %v3115 = vadd.f32 %v3002, %v3114
  %v3116 = vpop.f32.mrb[0].mxu0
  %v3117 = vadd.f32 %v3004, %v3116
  %v3118 = vpop.f32.mrb[0].mxu0
  %v3119 = vadd.f32 %v3006, %v3118
  %3120 = vdwg.mxu0
  %3121 = vmatprep.subr.bf16.mxu0 %v2043
  %3122 = vmatpush1.bf16.msra.mxu0 %v2042
  %3123 = vmatprep.subr.bf16.mxu0 %v2045
  %3124 = vmatpush1.bf16.msra.mxu0 %v2044
  %3125 = vmatprep.subr.bf16.mxu0 %v2047
  %3126 = vmatpush1.bf16.msra.mxu0 %v2046
  %3127 = vmatprep.subr.bf16.mxu0 %v2049
  %3128 = vmatpush1.bf16.msra.mxu0 %v2048
  %3129 = vmatprep.subr.bf16.mxu0 %v2051
  %3130 = vmatpush1.bf16.msra.mxu0 %v2050
  %3131 = vmatprep.subr.bf16.mxu0 %v2053
  %3132 = vmatpush1.bf16.msra.mxu0 %v2052
  %3133 = vmatprep.subr.bf16.mxu0 %v2055
  %3134 = vmatpush1.bf16.msra.mxu0 %v2054
  %3135 = vmatprep.subr.bf16.mxu0 %v2057
  %3136 = vmatpush1.bf16.msra.mxu0 %v2056
  %3137 = vmatprep.subr.bf16.mxu0 %v2059
  %3138 = vmatpush1.bf16.msra.mxu0 %v2058
  %3139 = vmatprep.subr.bf16.mxu0 %v2061
  %3140 = vmatpush1.bf16.msra.mxu0 %v2060
  %3141 = vmatprep.subr.bf16.mxu0 %v2063
  %3142 = vmatpush1.bf16.msra.mxu0 %v2062
  %3143 = vmatprep.subr.bf16.mxu0 %v2065
  %3144 = vmatpush1.bf16.msra.mxu0 %v2064
  %3145 = vmatprep.subr.bf16.mxu0 %v2067
  %3146 = vmatpush1.bf16.msra.mxu0 %v2066
  %3147 = vmatprep.subr.bf16.mxu0 %v2069
  %3148 = vmatpush1.bf16.msra.mxu0 %v2068
  %3149 = vmatprep.subr.bf16.mxu0 %v2071
  %3150 = vmatpush1.bf16.msra.mxu0 %v2070
  %3151 = vmatprep.subr.bf16.mxu0 %v2073
  %3152 = vmatpush1.bf16.msra.mxu0 %v2072
  %3153 = vmatprep.mubr.bf16.mxu0 %v809
  %3154 = vmatmul.mubr.bf16.gmra.mrb[0].mxu0 %v808
  %v3155 = vpop.f32.mrb[0].mxu0
  %v3156 = vadd.f32 %v3043, %v3155
  %v3157 = vpop.f32.mrb[0].mxu0
  %v3158 = vadd.f32 %v3045, %v3157
  %v3159 = vpop.f32.mrb[0].mxu0
  %v3160 = vadd.f32 %v3047, %v3159
  %v3161 = vpop.f32.mrb[0].mxu0
  %v3162 = vadd.f32 %v3049, %v3161
  %3163 = vmatprep.mubr.bf16.mxu0 %v825
  %3164 = vmatmul.mubr.bf16.gmra.mrb[0].mxu0 %v824
  %v3165 = vpop.f32.mrb[0].mxu0
  %v3166 = vadd.f32 %v3053, %v3165
  %v3167 = vpop.f32.mrb[0].mxu0
  %v3168 = vadd.f32 %v3055, %v3167
  %v3169 = vpop.f32.mrb[0].mxu0
  %v3170 = vadd.f32 %v3057, %v3169
  %v3171 = vpop.f32.mrb[0].mxu0
  %v3172 = vadd.f32 %v3059, %v3171
  %3173 = vmatprep.mubr.bf16.mxu0 %v841
  %3174 = vmatmul.mubr.bf16.gmra.mrb[0].mxu0 %v840
  %v3175 = vpop.f32.mrb[0].mxu0
  %v3176 = vadd.f32 %v3063, %v3175
  %v3177 = vpop.f32.mrb[0].mxu0
  %v3178 = vadd.f32 %v3065, %v3177
  %v3179 = vpop.f32.mrb[0].mxu0
  %v3180 = vadd.f32 %v3067, %v3179
  %v3181 = vpop.f32.mrb[0].mxu0
  %v3182 = vadd.f32 %v3069, %v3181
  %3183 = vmatprep.mubr.bf16.mxu0 %v857
  %3184 = vmatmul.mubr.bf16.gmra.mrb[0].mxu0 %v856
  %v3185 = vpop.f32.mrb[0].mxu0
  %v3186 = vadd.f32 %v3073, %v3185
  %v3187 = vpop.f32.mrb[0].mxu0
  %v3188 = vadd.f32 %v3075, %v3187
  %v3189 = vpop.f32.mrb[0].mxu0
  %v3190 = vadd.f32 %v3077, %v3189
  %v3191 = vpop.f32.mrb[0].mxu0
  %v3192 = vadd.f32 %v3079, %v3191
  %3193 = vmatprep.mubr.bf16.mxu0 %v873
  %3194 = vmatmul.mubr.bf16.gmra.mrb[0].mxu0 %v872
  %v3195 = vpop.f32.mrb[0].mxu0
  %v3196 = vadd.f32 %v3083, %v3195
  %v3197 = vpop.f32.mrb[0].mxu0
  %v3198 = vadd.f32 %v3085, %v3197
  %v3199 = vpop.f32.mrb[0].mxu0
  %v3200 = vadd.f32 %v3087, %v3199
  %v3201 = vpop.f32.mrb[0].mxu0
  %v3202 = vadd.f32 %v3089, %v3201
  %3203 = vmatprep.mubr.bf16.mxu0 %v889
  %3204 = vmatmul.mubr.bf16.gmra.mrb[0].mxu0 %v888
  %v3205 = vpop.f32.mrb[0].mxu0
  %v3206 = vadd.f32 %v3093, %v3205
  %v3207 = vpop.f32.mrb[0].mxu0
  %v3208 = vadd.f32 %v3095, %v3207
  %v3209 = vpop.f32.mrb[0].mxu0
  %v3210 = vadd.f32 %v3097, %v3209
  %v3211 = vpop.f32.mrb[0].mxu0
  %v3212 = vadd.f32 %v3099, %v3211
  %3213 = vmatprep.mubr.bf16.mxu0 %v905
  %3214 = vmatmul.mubr.bf16.gmra.mrb[0].mxu0 %v904
  %v3215 = vpop.f32.mrb[0].mxu0
  %v3216 = vadd.f32 %v3103, %v3215
  %v3217 = vpop.f32.mrb[0].mxu0
  %v3218 = vadd.f32 %v3105, %v3217
  %v3219 = vpop.f32.mrb[0].mxu0
  %v3220 = vadd.f32 %v3107, %v3219
  %v3221 = vpop.f32.mrb[0].mxu0
  %v3222 = vadd.f32 %v3109, %v3221
  %3223 = vmatprep.mubr.bf16.mxu0 %v921
  %3224 = vmatmul.mubr.bf16.gmra.mrb[0].mxu0 %v920
  %v3225 = vpop.f32.mrb[0].mxu0
  %v3226 = vadd.f32 %v3113, %v3225
  %v3227 = vpop.f32.mrb[0].mxu0
  %v3228 = vadd.f32 %v3115, %v3227
  %v3229 = vpop.f32.mrb[0].mxu0
  %v3230 = vadd.f32 %v3117, %v3229
  %v3231 = vpop.f32.mrb[0].mxu0
  %v3232 = vadd.f32 %v3119, %v3231
  %3233 = vdwg.mxu0
  %v3234 = vmax.f32 %v3156, 0.0
  %v3235 = vmax.f32 %v3158, 0.0
  %v3236 = vmax.f32 %v3160, 0.0
  %v3237 = vmax.f32 %v3162, 0.0
  %v3238 = vmax.f32 %v3166, 0.0
  %v3239 = vmax.f32 %v3168, 0.0
  %v3240 = vmax.f32 %v3170, 0.0
  %v3241 = vmax.f32 %v3172, 0.0
  %v3242 = vmax.f32 %v3176, 0.0
  %v3243 = vmax.f32 %v3178, 0.0
  %v3244 = vmax.f32 %v3180, 0.0
  %v3245 = vmax.f32 %v3182, 0.0
  %v3246 = vmax.f32 %v3186, 0.0
  %v3247 = vmax.f32 %v3188, 0.0
  %v3248 = vmax.f32 %v3190, 0.0
  %v3249 = vmax.f32 %v3192, 0.0
  %v3250 = vmax.f32 %v3196, 0.0
  %v3251 = vmax.f32 %v3198, 0.0
  %v3252 = vmax.f32 %v3200, 0.0
  %v3253 = vmax.f32 %v3202, 0.0
  %v3254 = vmax.f32 %v3206, 0.0
  %v3255 = vmax.f32 %v3208, 0.0
  %v3256 = vmax.f32 %v3210, 0.0
  %v3257 = vmax.f32 %v3212, 0.0
  %v3258 = vmax.f32 %v3216, 0.0
  %v3259 = vmax.f32 %v3218, 0.0
  %v3260 = vmax.f32 %v3220, 0.0
  %v3261 = vmax.f32 %v3222, 0.0
  %v3262 = vmax.f32 %v3226, 0.0
  %v3263 = vmax.f32 %v3228, 0.0
  %v3264 = vmax.f32 %v3230, 0.0
  %v3265 = vmax.f32 %v3232, 0.0
  %v3266 = vpack.c.bf16 %v3236, %v3234
  %v3267 = vpack.c.bf16 %v3237, %v3235
  %v3268 = vpack.c.bf16 %v3240, %v3238
  %v3269 = vpack.c.bf16 %v3241, %v3239
  %v3270 = vpack.c.bf16 %v3244, %v3242
  %v3271 = vpack.c.bf16 %v3245, %v3243
  %v3272 = vpack.c.bf16 %v3248, %v3246
  %v3273 = vpack.c.bf16 %v3249, %v3247
  %v3274 = vpack.c.bf16 %v3252, %v3250
  %v3275 = vpack.c.bf16 %v3253, %v3251
  %v3276 = vpack.c.bf16 %v3256, %v3254
  %v3277 = vpack.c.bf16 %v3257, %v3255
  %v3278 = vpack.c.bf16 %v3260, %v3258
  %v3279 = vpack.c.bf16 %v3261, %v3259
  %v3280 = vpack.c.bf16 %v3264, %v3262
  %v3281 = vpack.c.bf16 %v3265, %v3263
  %v3298 = vunpack.c.l.b16 %v3266
  %v3299 = vunpack.c.l.b16 %v3267
  %v3300 = vunpack.c.h.b16 %v3266
  %v3301 = vunpack.c.h.b16 %v3267
  %v3302 = vunpack.c.l.b16 %v3268
  %v3303 = vunpack.c.l.b16 %v3269
  %v3304 = vunpack.c.h.b16 %v3268
  %v3305 = vunpack.c.h.b16 %v3269
  %v3306 = vunpack.c.l.b16 %v3270
  %v3307 = vunpack.c.l.b16 %v3271
  %v3308 = vunpack.c.h.b16 %v3270
  %v3309 = vunpack.c.h.b16 %v3271
  %v3310 = vunpack.c.l.b16 %v3272
  %v3311 = vunpack.c.l.b16 %v3273
  %v3312 = vunpack.c.h.b16 %v3272
  %v3313 = vunpack.c.h.b16 %v3273
  %v3314 = vunpack.c.l.b16 %v3274
  %v3315 = vunpack.c.l.b16 %v3275
  %v3316 = vunpack.c.h.b16 %v3274
  %v3317 = vunpack.c.h.b16 %v3275
  %v3318 = vunpack.c.l.b16 %v3276
  %v3319 = vunpack.c.l.b16 %v3277
  %v3320 = vunpack.c.h.b16 %v3276
  %v3321 = vunpack.c.h.b16 %v3277
  %v3322 = vunpack.c.l.b16 %v3278
  %v3323 = vunpack.c.l.b16 %v3279
  %v3324 = vunpack.c.h.b16 %v3278
  %v3325 = vunpack.c.h.b16 %v3279
  %v3326 = vunpack.c.l.b16 %v3280
  %v3327 = vunpack.c.l.b16 %v3281
  %v3328 = vunpack.c.h.b16 %v3280
  %v3329 = vunpack.c.h.b16 %v3281
  %v3330 = vpack.c.b16 %v3299, %v3298
  %v3331 = vpack.c.b16 %v3301, %v3300
  %v3332 = vpack.c.b16 %v3303, %v3302
  %v3333 = vpack.c.b16 %v3305, %v3304
  %v3334 = vpack.c.b16 %v3307, %v3306
  %v3335 = vpack.c.b16 %v3309, %v3308
  %v3336 = vpack.c.b16 %v3311, %v3310
  %v3337 = vpack.c.b16 %v3313, %v3312
  %v3338 = vpack.c.b16 %v3315, %v3314
  %v3339 = vpack.c.b16 %v3317, %v3316
  %v3340 = vpack.c.b16 %v3319, %v3318
  %v3341 = vpack.c.b16 %v3321, %v3320
  %v3342 = vpack.c.b16 %v3323, %v3322
  %v3343 = vpack.c.b16 %v3325, %v3324
  %v3344 = vpack.c.b16 %v3327, %v3326
  %v3345 = vpack.c.b16 %v3329, %v3328
  %3362 = vst [vmem:[%s3] sm:$0xff] %v3330
  %3363 = vst [vmem:[%s3 + $0x8] sm:$0xff] %v3331
  %3364 = vst [vmem:[%s3 + $0x10] sm:$0xff] %v3332
  %3365 = vst [vmem:[%s3 + $0x18] sm:$0xff] %v3333
  %3366 = vst [vmem:[%s3 + $0x20] sm:$0xff] %v3334
  %3367 = vst [vmem:[%s3 + $0x28] sm:$0xff] %v3335
  %3368 = vst [vmem:[%s3 + $0x30] sm:$0xff] %v3336
  %3369 = vst [vmem:[%s3 + $0x38] sm:$0xff] %v3337
  %3370 = vst [vmem:[%s3 + $0x40] sm:$0xff] %v3338
  %3371 = vst [vmem:[%s3 + $0x48] sm:$0xff] %v3339
  %3372 = vst [vmem:[%s3 + $0x50] sm:$0xff] %v3340
  %3373 = vst [vmem:[%s3 + $0x58] sm:$0xff] %v3341
  %3374 = vst [vmem:[%s3 + $0x60] sm:$0xff] %v3342
  %3375 = vst [vmem:[%s3 + $0x68] sm:$0xff] %v3343
  %3376 = vst [vmem:[%s3 + $0x70] sm:$0xff] %v3344
  %3377 = vst [vmem:[%s3 + $0x78] sm:$0xff] %v3345
  // Predicated region
  $region14: #{encoder_forward.7} parent=0 // pred_check
    _
  $region15: #{encoder_forward.7} parent=0 // pred_check_branch
    %3379 = sbr.rel (0) target = $region17
  $region16: #{encoder_forward.7} parent=0 // pred_region
    _
  $region17: #{encoder_forward.7} parent=0 // pred_fallthru
    _
  // Predicated region
  $region18: #{encoder_forward.7} parent=0 // pred_check
    _
  $region19: #{encoder_forward.7} parent=0 // pred_check_branch
    %3381 = sbr.rel (0) target = $region21
  $region20: #{encoder_forward.7} parent=0 // pred_region
    _
  $region21: #{encoder_forward.7} parent=0 // pred_fallthru
    _

// kernel: encoder_forward.9
$region0: #{encoder_forward.9}
  #allocation0 [shape = 'u32[]', space=smem, size = 0x4, offset = 0x4, fixed_abs, tag = 'smem constant byte address 0x4 - core index']
  #allocation1 [shape = 'u32[144,128]{1,0:T(1,128)}', space=vmem, size = 0x12000, scoped, tag = 'internal scratch']
  %s0 = inlined_call_operand.vmem [shape: bf16[2,1024], index: 0, kind: input, shape index: {}]
  %s1 = inlined_call_operand.vmem [shape: bf16[1024,512], index: 1, kind: input, shape index: {}]
  %s2 = inlined_call_operand.vmem [shape: f32[1,512], index: 2, kind: input, shape index: {}]
  %s3 = inlined_call_operand.vmem [shape: f32[2,512], index: 3, kind: output, shape index: {}]
  %s4 = sld [smem:[#allocation0]]
  $region22: #{encoder_forward.9} parent=0
    _
  %s6 = ssub.s32 1, %s4
  %s7 = scalar_select 0, %s6, %s4
  // Predicated region
  $region2: #{encoder_forward.9} parent=0 // pred_check
    _
  $region3: #{encoder_forward.9} parent=0 // pred_check_branch
    %9 = sbr.rel (0) target = $region5
  $region4: #{encoder_forward.9} parent=0 // pred_region
    _
  $region5: #{encoder_forward.9} parent=0 // pred_fallthru
    _
  // Predicated region
  $region6: #{encoder_forward.9} parent=0 // pred_check
    _
  $region7: #{encoder_forward.9} parent=0 // pred_check_branch
    %11 = sbr.rel (0) target = $region9
  $region8: #{encoder_forward.9} parent=0 // pred_region
    _
  $region9: #{encoder_forward.9} parent=0 // pred_fallthru
    _
  // Predicated region
  $region10: #{encoder_forward.9} parent=0 // pred_check
    _
  $region11: #{encoder_forward.9} parent=0 // pred_check_branch
    %13 = sbr.rel (0) target = $region13
  $region12: #{encoder_forward.9} parent=0 // pred_region
    _
  $region13: #{encoder_forward.9} parent=0 // pred_fallthru
    _
  %v14 = vld [vmem:[%s0] sm:$0xff]
  %v15 = vld [vmem:[%s1] sm:$0xff]
  %v16 = vld [vmem:[%s1 + $0x8] sm:$0xff]
  %v17 = vld [vmem:[%s1 + $0x10] sm:$0xff]
  %v18 = vld [vmem:[%s1 + $0x18] sm:$0xff]
  %v19 = vld [vmem:[%s1 + $0x20] sm:$0xff]
  %v20 = vld [vmem:[%s1 + $0x28] sm:$0xff]
  %v21 = vld [vmem:[%s1 + $0x30] sm:$0xff]
  %v22 = vld [vmem:[%s1 + $0x38] sm:$0xff]
  %v23 = vld [vmem:[%s1 + $0x40] sm:$0xff]
  %v24 = vld [vmem:[%s1 + $0x48] sm:$0xff]
  %v25 = vld [vmem:[%s1 + $0x50] sm:$0xff]
  %v26 = vld [vmem:[%s1 + $0x58] sm:$0xff]
  %v27 = vld [vmem:[%s1 + $0x60] sm:$0xff]
  %v28 = vld [vmem:[%s1 + $0x68] sm:$0xff]
  %v29 = vld [vmem:[%s1 + $0x70] sm:$0xff]
  %v30 = vld [vmem:[%s1 + $0x78] sm:$0xff]
  %v31 = vld [vmem:[%s1 + $0x80] sm:$0xff]
  %v32 = vld [vmem:[%s1 + $0x88] sm:$0xff]
  %v33 = vld [vmem:[%s1 + $0x90] sm:$0xff]
  %v34 = vld [vmem:[%s1 + $0x98] sm:$0xff]
  %v35 = vld [vmem:[%s1 + $0xa0] sm:$0xff]
  %v36 = vld [vmem:[%s1 + $0xa8] sm:$0xff]
  %v37 = vld [vmem:[%s1 + $0xb0] sm:$0xff]
  %v38 = vld [vmem:[%s1 + $0xb8] sm:$0xff]
  %v39 = vld [vmem:[%s1 + $0xc0] sm:$0xff]
  %v40 = vld [vmem:[%s1 + $0xc8] sm:$0xff]
  %v41 = vld [vmem:[%s1 + $0xd0] sm:$0xff]
  %v42 = vld [vmem:[%s1 + $0xd8] sm:$0xff]
  %v43 = vld [vmem:[%s1 + $0xe0] sm:$0xff]
  %v44 = vld [vmem:[%s1 + $0xe8] sm:$0xff]
  %v45 = vld [vmem:[%s1 + $0xf0] sm:$0xff]
  %v46 = vld [vmem:[%s1 + $0xf8] sm:$0xff]
  %v47 = vld [vmem:[%s1 + $0x100] sm:$0xff]
  %v48 = vld [vmem:[%s1 + $0x108] sm:$0xff]
  %v49 = vld [vmem:[%s1 + $0x110] sm:$0xff]
  %v50 = vld [vmem:[%s1 + $0x118] sm:$0xff]
  %v51 = vld [vmem:[%s1 + $0x120] sm:$0xff]
  %v52 = vld [vmem:[%s1 + $0x128] sm:$0xff]
  %v53 = vld [vmem:[%s1 + $0x130] sm:$0xff]
  %v54 = vld [vmem:[%s1 + $0x138] sm:$0xff]
  %v55 = vld [vmem:[%s1 + $0x140] sm:$0xff]
  %v56 = vld [vmem:[%s1 + $0x148] sm:$0xff]
  %v57 = vld [vmem:[%s1 + $0x150] sm:$0xff]
  %v58 = vld [vmem:[%s1 + $0x158] sm:$0xff]
  %v59 = vld [vmem:[%s1 + $0x160] sm:$0xff]
  %v60 = vld [vmem:[%s1 + $0x168] sm:$0xff]
  %v61 = vld [vmem:[%s1 + $0x170] sm:$0xff]
  %v62 = vld [vmem:[%s1 + $0x178] sm:$0xff]
  %v63 = vld [vmem:[%s1 + $0x180] sm:$0xff]
  %v64 = vld [vmem:[%s1 + $0x188] sm:$0xff]
  %v65 = vld [vmem:[%s1 + $0x190] sm:$0xff]
  %v66 = vld [vmem:[%s1 + $0x198] sm:$0xff]
  %v67 = vld [vmem:[%s1 + $0x1a0] sm:$0xff]
  %v68 = vld [vmem:[%s1 + $0x1a8] sm:$0xff]
  %v69 = vld [vmem:[%s1 + $0x1b0] sm:$0xff]
  %v70 = vld [vmem:[%s1 + $0x1b8] sm:$0xff]
  %v71 = vld [vmem:[%s1 + $0x1c0] sm:$0xff]
  %v72 = vld [vmem:[%s1 + $0x1c8] sm:$0xff]
  %v73 = vld [vmem:[%s1 + $0x1d0] sm:$0xff]
  %v74 = vld [vmem:[%s1 + $0x1d8] sm:$0xff]
  %v75 = vld [vmem:[%s1 + $0x1e0] sm:$0xff]
  %v76 = vld [vmem:[%s1 + $0x1e8] sm:$0xff]
  %v77 = vld [vmem:[%s1 + $0x1f0] sm:$0xff]
  %v78 = vld [vmem:[%s1 + $0x1f8] sm:$0xff]
  %v79 = vld [vmem:[%s1 + $0x200] sm:$0xff]
  %v80 = vld [vmem:[%s1 + $0x208] sm:$0xff]
  %v81 = vld [vmem:[%s1 + $0x210] sm:$0xff]
  %v82 = vld [vmem:[%s1 + $0x218] sm:$0xff]
  %v83 = vld [vmem:[%s1 + $0x220] sm:$0xff]
  %v84 = vld [vmem:[%s1 + $0x228] sm:$0xff]
  %v85 = vld [vmem:[%s1 + $0x230] sm:$0xff]
  %v86 = vld [vmem:[%s1 + $0x238] sm:$0xff]
  %v87 = vld [vmem:[%s1 + $0x240] sm:$0xff]
  %v88 = vld [vmem:[%s1 + $0x248] sm:$0xff]
  %v89 = vld [vmem:[%s1 + $0x250] sm:$0xff]
  %v90 = vld [vmem:[%s1 + $0x258] sm:$0xff]
  %v91 = vld [vmem:[%s1 + $0x260] sm:$0xff]
  %v92 = vld [vmem:[%s1 + $0x268] sm:$0xff]
  %v93 = vld [vmem:[%s1 + $0x270] sm:$0xff]
  %v94 = vld [vmem:[%s1 + $0x278] sm:$0xff]
  %v95 = vld [vmem:[%s1 + $0x280] sm:$0xff]
  %v96 = vld [vmem:[%s1 + $0x288] sm:$0xff]
  %v97 = vld [vmem:[%s1 + $0x290] sm:$0xff]
  %v98 = vld [vmem:[%s1 + $0x298] sm:$0xff]
  %v99 = vld [vmem:[%s1 + $0x2a0] sm:$0xff]
  %v100 = vld [vmem:[%s1 + $0x2a8] sm:$0xff]
  %v101 = vld [vmem:[%s1 + $0x2b0] sm:$0xff]
  %v102 = vld [vmem:[%s1 + $0x2b8] sm:$0xff]
  %v103 = vld [vmem:[%s1 + $0x2c0] sm:$0xff]
  %v104 = vld [vmem:[%s1 + $0x2c8] sm:$0xff]
  %v105 = vld [vmem:[%s1 + $0x2d0] sm:$0xff]
  %v106 = vld [vmem:[%s1 + $0x2d8] sm:$0xff]
  %v107 = vld [vmem:[%s1 + $0x2e0] sm:$0xff]
  %v108 = vld [vmem:[%s1 + $0x2e8] sm:$0xff]
  %v109 = vld [vmem:[%s1 + $0x2f0] sm:$0xff]
  %v110 = vld [vmem:[%s1 + $0x2f8] sm:$0xff]
  %v111 = vld [vmem:[%s1 + $0x300] sm:$0xff]
  %v112 = vld [vmem:[%s1 + $0x308] sm:$0xff]
  %v113 = vld [vmem:[%s1 + $0x310] sm:$0xff]
  %v114 = vld [vmem:[%s1 + $0x318] sm:$0xff]
  %v115 = vld [vmem:[%s1 + $0x320] sm:$0xff]
  %v116 = vld [vmem:[%s1 + $0x328] sm:$0xff]
  %v117 = vld [vmem:[%s1 + $0x330] sm:$0xff]
  %v118 = vld [vmem:[%s1 + $0x338] sm:$0xff]
  %v119 = vld [vmem:[%s1 + $0x340] sm:$0xff]
  %v120 = vld [vmem:[%s1 + $0x348] sm:$0xff]
  %v121 = vld [vmem:[%s1 + $0x350] sm:$0xff]
  %v122 = vld [vmem:[%s1 + $0x358] sm:$0xff]
  %v123 = vld [vmem:[%s1 + $0x360] sm:$0xff]
  %v124 = vld [vmem:[%s1 + $0x368] sm:$0xff]
  %v125 = vld [vmem:[%s1 + $0x370] sm:$0xff]
  %v126 = vld [vmem:[%s1 + $0x378] sm:$0xff]
  %v127 = vld [vmem:[%s1 + $0x380] sm:$0xff]
  %v128 = vld [vmem:[%s1 + $0x388] sm:$0xff]
  %v129 = vld [vmem:[%s1 + $0x390] sm:$0xff]
  %v130 = vld [vmem:[%s1 + $0x398] sm:$0xff]
  %v131 = vld [vmem:[%s1 + $0x3a0] sm:$0xff]
  %v132 = vld [vmem:[%s1 + $0x3a8] sm:$0xff]
  %v133 = vld [vmem:[%s1 + $0x3b0] sm:$0xff]
  %v134 = vld [vmem:[%s1 + $0x3b8] sm:$0xff]
  %v135 = vld [vmem:[%s1 + $0x3c0] sm:$0xff]
  %v136 = vld [vmem:[%s1 + $0x3c8] sm:$0xff]
  %v137 = vld [vmem:[%s1 + $0x3d0] sm:$0xff]
  %v138 = vld [vmem:[%s1 + $0x3d8] sm:$0xff]
  %v139 = vld [vmem:[%s1 + $0x3e0] sm:$0xff]
  %v140 = vld [vmem:[%s1 + $0x3e8] sm:$0xff]
  %v141 = vld [vmem:[%s1 + $0x3f0] sm:$0xff]
  %v142 = vld [vmem:[%s1 + $0x3f8] sm:$0xff]
  %v143 = vld [vmem:[%s1 + $0x400] sm:$0xff]
  %v144 = vld [vmem:[%s1 + $0x408] sm:$0xff]
  %v145 = vld [vmem:[%s1 + $0x410] sm:$0xff]
  %v146 = vld [vmem:[%s1 + $0x418] sm:$0xff]
  %v147 = vld [vmem:[%s1 + $0x420] sm:$0xff]
  %v148 = vld [vmem:[%s1 + $0x428] sm:$0xff]
  %v149 = vld [vmem:[%s1 + $0x430] sm:$0xff]
  %v150 = vld [vmem:[%s1 + $0x438] sm:$0xff]
  %v151 = vld [vmem:[%s1 + $0x440] sm:$0xff]
  %v152 = vld [vmem:[%s1 + $0x448] sm:$0xff]
  %v153 = vld [vmem:[%s1 + $0x450] sm:$0xff]
  %v154 = vld [vmem:[%s1 + $0x458] sm:$0xff]
  %v155 = vld [vmem:[%s1 + $0x460] sm:$0xff]
  %v156 = vld [vmem:[%s1 + $0x468] sm:$0xff]
  %v157 = vld [vmem:[%s1 + $0x470] sm:$0xff]
  %v158 = vld [vmem:[%s1 + $0x478] sm:$0xff]
  %v159 = vld [vmem:[%s1 + $0x480] sm:$0xff]
  %v160 = vld [vmem:[%s1 + $0x488] sm:$0xff]
  %v161 = vld [vmem:[%s1 + $0x490] sm:$0xff]
  %v162 = vld [vmem:[%s1 + $0x498] sm:$0xff]
  %v163 = vld [vmem:[%s1 + $0x4a0] sm:$0xff]
  %v164 = vld [vmem:[%s1 + $0x4a8] sm:$0xff]
  %v165 = vld [vmem:[%s1 + $0x4b0] sm:$0xff]
  %v166 = vld [vmem:[%s1 + $0x4b8] sm:$0xff]
  %v167 = vld [vmem:[%s1 + $0x4c0] sm:$0xff]
  %v168 = vld [vmem:[%s1 + $0x4c8] sm:$0xff]
  %v169 = vld [vmem:[%s1 + $0x4d0] sm:$0xff]
  %v170 = vld [vmem:[%s1 + $0x4d8] sm:$0xff]
  %v171 = vld [vmem:[%s1 + $0x4e0] sm:$0xff]
  %v172 = vld [vmem:[%s1 + $0x4e8] sm:$0xff]
  %v173 = vld [vmem:[%s1 + $0x4f0] sm:$0xff]
  %v174 = vld [vmem:[%s1 + $0x4f8] sm:$0xff]
  %v175 = vld [vmem:[%s1 + $0x500] sm:$0xff]
  %v176 = vld [vmem:[%s1 + $0x508] sm:$0xff]
  %v177 = vld [vmem:[%s1 + $0x510] sm:$0xff]
  %v178 = vld [vmem:[%s1 + $0x518] sm:$0xff]
  %v179 = vld [vmem:[%s1 + $0x520] sm:$0xff]
  %v180 = vld [vmem:[%s1 + $0x528] sm:$0xff]
  %v181 = vld [vmem:[%s1 + $0x530] sm:$0xff]
  %v182 = vld [vmem:[%s1 + $0x538] sm:$0xff]
  %v183 = vld [vmem:[%s1 + $0x540] sm:$0xff]
  %v184 = vld [vmem:[%s1 + $0x548] sm:$0xff]
  %v185 = vld [vmem:[%s1 + $0x550] sm:$0xff]
  %v186 = vld [vmem:[%s1 + $0x558] sm:$0xff]
  %v187 = vld [vmem:[%s1 + $0x560] sm:$0xff]
  %v188 = vld [vmem:[%s1 + $0x568] sm:$0xff]
  %v189 = vld [vmem:[%s1 + $0x570] sm:$0xff]
  %v190 = vld [vmem:[%s1 + $0x578] sm:$0xff]
  %v191 = vld [vmem:[%s1 + $0x580] sm:$0xff]
  %v192 = vld [vmem:[%s1 + $0x588] sm:$0xff]
  %v193 = vld [vmem:[%s1 + $0x590] sm:$0xff]
  %v194 = vld [vmem:[%s1 + $0x598] sm:$0xff]
  %v195 = vld [vmem:[%s1 + $0x5a0] sm:$0xff]
  %v196 = vld [vmem:[%s1 + $0x5a8] sm:$0xff]
  %v197 = vld [vmem:[%s1 + $0x5b0] sm:$0xff]
  %v198 = vld [vmem:[%s1 + $0x5b8] sm:$0xff]
  %v199 = vld [vmem:[%s1 + $0x5c0] sm:$0xff]
  %v200 = vld [vmem:[%s1 + $0x5c8] sm:$0xff]
  %v201 = vld [vmem:[%s1 + $0x5d0] sm:$0xff]
  %v202 = vld [vmem:[%s1 + $0x5d8] sm:$0xff]
  %v203 = vld [vmem:[%s1 + $0x5e0] sm:$0xff]
  %v204 = vld [vmem:[%s1 + $0x5e8] sm:$0xff]
  %v205 = vld [vmem:[%s1 + $0x5f0] sm:$0xff]
  %v206 = vld [vmem:[%s1 + $0x5f8] sm:$0xff]
  %v207 = vld [vmem:[%s1 + $0x600] sm:$0xff]
  %v208 = vld [vmem:[%s1 + $0x608] sm:$0xff]
  %v209 = vld [vmem:[%s1 + $0x610] sm:$0xff]
  %v210 = vld [vmem:[%s1 + $0x618] sm:$0xff]
  %v211 = vld [vmem:[%s1 + $0x620] sm:$0xff]
  %v212 = vld [vmem:[%s1 + $0x628] sm:$0xff]
  %v213 = vld [vmem:[%s1 + $0x630] sm:$0xff]
  %v214 = vld [vmem:[%s1 + $0x638] sm:$0xff]
  %v215 = vld [vmem:[%s1 + $0x640] sm:$0xff]
  %v216 = vld [vmem:[%s1 + $0x648] sm:$0xff]
  %v217 = vld [vmem:[%s1 + $0x650] sm:$0xff]
  %v218 = vld [vmem:[%s1 + $0x658] sm:$0xff]
  %v219 = vld [vmem:[%s1 + $0x660] sm:$0xff]
  %v220 = vld [vmem:[%s1 + $0x668] sm:$0xff]
  %v221 = vld [vmem:[%s1 + $0x670] sm:$0xff]
  %v222 = vld [vmem:[%s1 + $0x678] sm:$0xff]
  %v223 = vld [vmem:[%s1 + $0x680] sm:$0xff]
  %v224 = vld [vmem:[%s1 + $0x688] sm:$0xff]
  %v225 = vld [vmem:[%s1 + $0x690] sm:$0xff]
  %v226 = vld [vmem:[%s1 + $0x698] sm:$0xff]
  %v227 = vld [vmem:[%s1 + $0x6a0] sm:$0xff]
  %v228 = vld [vmem:[%s1 + $0x6a8] sm:$0xff]
  %v229 = vld [vmem:[%s1 + $0x6b0] sm:$0xff]
  %v230 = vld [vmem:[%s1 + $0x6b8] sm:$0xff]
  %v231 = vld [vmem:[%s1 + $0x6c0] sm:$0xff]
  %v232 = vld [vmem:[%s1 + $0x6c8] sm:$0xff]
  %v233 = vld [vmem:[%s1 + $0x6d0] sm:$0xff]
  %v234 = vld [vmem:[%s1 + $0x6d8] sm:$0xff]
  %v235 = vld [vmem:[%s1 + $0x6e0] sm:$0xff]
  %v236 = vld [vmem:[%s1 + $0x6e8] sm:$0xff]
  %v237 = vld [vmem:[%s1 + $0x6f0] sm:$0xff]
  %v238 = vld [vmem:[%s1 + $0x6f8] sm:$0xff]
  %v239 = vld [vmem:[%s1 + $0x700] sm:$0xff]
  %v240 = vld [vmem:[%s1 + $0x708] sm:$0xff]
  %v241 = vld [vmem:[%s1 + $0x710] sm:$0xff]
  %v242 = vld [vmem:[%s1 + $0x718] sm:$0xff]
  %v243 = vld [vmem:[%s1 + $0x720] sm:$0xff]
  %v244 = vld [vmem:[%s1 + $0x728] sm:$0xff]
  %v245 = vld [vmem:[%s1 + $0x730] sm:$0xff]
  %v246 = vld [vmem:[%s1 + $0x738] sm:$0xff]
  %v247 = vld [vmem:[%s1 + $0x740] sm:$0xff]
  %v248 = vld [vmem:[%s1 + $0x748] sm:$0xff]
  %v249 = vld [vmem:[%s1 + $0x750] sm:$0xff]
  %v250 = vld [vmem:[%s1 + $0x758] sm:$0xff]
  %v251 = vld [vmem:[%s1 + $0x760] sm:$0xff]
  %v252 = vld [vmem:[%s1 + $0x768] sm:$0xff]
  %v253 = vld [vmem:[%s1 + $0x770] sm:$0xff]
  %v254 = vld [vmem:[%s1 + $0x778] sm:$0xff]
  %v255 = vld [vmem:[%s1 + $0x780] sm:$0xff]
  %v256 = vld [vmem:[%s1 + $0x788] sm:$0xff]
  %v257 = vld [vmem:[%s1 + $0x790] sm:$0xff]
  %v258 = vld [vmem:[%s1 + $0x798] sm:$0xff]
  %v259 = vld [vmem:[%s1 + $0x7a0] sm:$0xff]
  %v260 = vld [vmem:[%s1 + $0x7a8] sm:$0xff]
  %v261 = vld [vmem:[%s1 + $0x7b0] sm:$0xff]
  %v262 = vld [vmem:[%s1 + $0x7b8] sm:$0xff]
  %v263 = vld [vmem:[%s1 + $0x7c0] sm:$0xff]
  %v264 = vld [vmem:[%s1 + $0x7c8] sm:$0xff]
  %v265 = vld [vmem:[%s1 + $0x7d0] sm:$0xff]
  %v266 = vld [vmem:[%s1 + $0x7d8] sm:$0xff]
  %v267 = vld [vmem:[%s1 + $0x7e0] sm:$0xff]
  %v268 = vld [vmem:[%s1 + $0x7e8] sm:$0xff]
  %v269 = vld [vmem:[%s1 + $0x7f0] sm:$0xff]
  %v270 = vld [vmem:[%s1 + $0x7f8] sm:$0xff]
  %v271 = vld [vmem:[%s2] sm:$0xf]
  %v273 = vlaneseq
  %v274 = vshrl.u32 %v273, 7
  %v275 = vsub.s32 0, %v274
  %v276 = vrot.slane %v271, %v275
  %v277 = vlaneseq
  %v278 = vshrl.u32 %v277, 7
  %v279 = vsub.s32 1, %v278
  %v280 = vrot.slane %v271, %v279
  %v281 = vlaneseq
  %v282 = vshrl.u32 %v281, 7
  %v283 = vsub.s32 2, %v282
  %v284 = vrot.slane %v271, %v283
  %v285 = vlaneseq
  %v286 = vshrl.u32 %v285, 7
  %v287 = vsub.s32 3, %v286
  %v288 = vrot.slane %v271, %v287
  %v294 = vcombine.high %v14, %v14
  %v296 = vunpack.c.l.s4 1966171168
  %v297 = vunpack.c.0.s8 %v296
  %v298 = vlaneseq
  %v299 = vshrl.u32 %v298, 7
  %v300 = vsub.s32 %v297, %v299
  %v301 = vrot.slane %v14, %v300
  %v303 = vunpack.c.l.s4 1966171168
  %v304 = vunpack.c.0.s8 %v303
  %v305 = vlaneseq
  %v306 = vshrl.u32 %v305, 7
  %v307 = vsub.s32 %v304, %v306
  %v308 = vrot.slane %v294, %v307
  %v309 = vcombine.high %v301, %v301
  %v310 = vcombine.high %v308, %v308
  %v312 = vunpack.c.l.s4 1966171168
  %v313 = vunpack.c.0.s8 %v312
  %v314 = vlaneseq
  %v315 = vshrl.u32 %v314, 7
  %v316 = vsub.s32 %v313, %v315
  %v317 = vrot.slane %v301, %v316
  %v319 = vunpack.c.l.s4 1966171168
  %v320 = vunpack.c.0.s8 %v319
  %v321 = vlaneseq
  %v322 = vshrl.u32 %v321, 7
  %v323 = vsub.s32 %v320, %v322
  %v324 = vrot.slane %v308, %v323
  %v326 = vunpack.c.l.s4 1966171168
  %v327 = vunpack.c.0.s8 %v326
  %v328 = vlaneseq
  %v329 = vshrl.u32 %v328, 7
  %v330 = vsub.s32 %v327, %v329
  %v331 = vrot.slane %v309, %v330
  %v333 = vunpack.c.l.s4 1966171168
  %v334 = vunpack.c.0.s8 %v333
  %v335 = vlaneseq
  %v336 = vshrl.u32 %v335, 7
  %v337 = vsub.s32 %v334, %v336
  %v338 = vrot.slane %v310, %v337
  %v339 = vcombine.high %v317, %v317
  %v340 = vcombine.high %v324, %v324
  %v341 = vcombine.high %v331, %v331
  %v342 = vcombine.high %v338, %v338
  %v607 = vunpack.c.l.b16 %v15
  %v608 = vunpack.c.h.b16 %v15
  %v609 = vunpack.c.l.b16 %v16
  %v610 = vunpack.c.h.b16 %v16
  %v611 = vunpack.c.l.b16 %v17
  %v612 = vunpack.c.h.b16 %v17
  %v613 = vunpack.c.l.b16 %v18
  %v614 = vunpack.c.h.b16 %v18
  %v615 = vunpack.c.l.b16 %v19
  %v616 = vunpack.c.h.b16 %v19
  %v617 = vunpack.c.l.b16 %v20
  %v618 = vunpack.c.h.b16 %v20
  %v619 = vunpack.c.l.b16 %v21
  %v620 = vunpack.c.h.b16 %v21
  %v621 = vunpack.c.l.b16 %v22
  %v622 = vunpack.c.h.b16 %v22
  %v623 = vunpack.c.l.b16 %v23
  %v624 = vunpack.c.h.b16 %v23
  %v625 = vunpack.c.l.b16 %v24
  %v626 = vunpack.c.h.b16 %v24
  %v627 = vunpack.c.l.b16 %v25
  %v628 = vunpack.c.h.b16 %v25
  %v629 = vunpack.c.l.b16 %v26
  %v630 = vunpack.c.h.b16 %v26
  %v631 = vunpack.c.l.b16 %v27
  %v632 = vunpack.c.h.b16 %v27
  %v633 = vunpack.c.l.b16 %v28
  %v634 = vunpack.c.h.b16 %v28
  %v635 = vunpack.c.l.b16 %v29
  %v636 = vunpack.c.h.b16 %v29
  %v637 = vunpack.c.l.b16 %v30
  %v638 = vunpack.c.h.b16 %v30
  %v639 = vunpack.c.l.b16 %v31
  %v640 = vunpack.c.h.b16 %v31
  %v641 = vunpack.c.l.b16 %v32
  %v642 = vunpack.c.h.b16 %v32
  %v643 = vunpack.c.l.b16 %v33
  %v644 = vunpack.c.h.b16 %v33
  %v645 = vunpack.c.l.b16 %v34
  %v646 = vunpack.c.h.b16 %v34
  %v647 = vunpack.c.l.b16 %v35
  %v648 = vunpack.c.h.b16 %v35
  %v649 = vunpack.c.l.b16 %v36
  %v650 = vunpack.c.h.b16 %v36
  %v651 = vunpack.c.l.b16 %v37
  %v652 = vunpack.c.h.b16 %v37
  %v653 = vunpack.c.l.b16 %v38
  %v654 = vunpack.c.h.b16 %v38
  %v655 = vunpack.c.l.b16 %v39
  %v656 = vunpack.c.h.b16 %v39
  %v657 = vunpack.c.l.b16 %v40
  %v658 = vunpack.c.h.b16 %v40
  %v659 = vunpack.c.l.b16 %v41
  %v660 = vunpack.c.h.b16 %v41
  %v661 = vunpack.c.l.b16 %v42
  %v662 = vunpack.c.h.b16 %v42
  %v663 = vunpack.c.l.b16 %v43
  %v664 = vunpack.c.h.b16 %v43
  %v665 = vunpack.c.l.b16 %v44
  %v666 = vunpack.c.h.b16 %v44
  %v667 = vunpack.c.l.b16 %v45
  %v668 = vunpack.c.h.b16 %v45
  %v669 = vunpack.c.l.b16 %v46
  %v670 = vunpack.c.h.b16 %v46
  %v671 = vunpack.c.l.b16 %v47
  %v672 = vunpack.c.h.b16 %v47
  %v673 = vunpack.c.l.b16 %v48
  %v674 = vunpack.c.h.b16 %v48
  %v675 = vunpack.c.l.b16 %v49
  %v676 = vunpack.c.h.b16 %v49
  %v677 = vunpack.c.l.b16 %v50
  %v678 = vunpack.c.h.b16 %v50
  %v679 = vunpack.c.l.b16 %v51
  %v680 = vunpack.c.h.b16 %v51
  %v681 = vunpack.c.l.b16 %v52
  %v682 = vunpack.c.h.b16 %v52
  %v683 = vunpack.c.l.b16 %v53
  %v684 = vunpack.c.h.b16 %v53
  %v685 = vunpack.c.l.b16 %v54
  %v686 = vunpack.c.h.b16 %v54
  %v687 = vunpack.c.l.b16 %v55
  %v688 = vunpack.c.h.b16 %v55
  %v689 = vunpack.c.l.b16 %v56
  %v690 = vunpack.c.h.b16 %v56
  %v691 = vunpack.c.l.b16 %v57
  %v692 = vunpack.c.h.b16 %v57
  %v693 = vunpack.c.l.b16 %v58
  %v694 = vunpack.c.h.b16 %v58
  %v695 = vunpack.c.l.b16 %v59
  %v696 = vunpack.c.h.b16 %v59
  %v697 = vunpack.c.l.b16 %v60
  %v698 = vunpack.c.h.b16 %v60
  %v699 = vunpack.c.l.b16 %v61
  %v700 = vunpack.c.h.b16 %v61
  %v701 = vunpack.c.l.b16 %v62
  %v702 = vunpack.c.h.b16 %v62
  %v703 = vunpack.c.l.b16 %v63
  %v704 = vunpack.c.h.b16 %v63
  %v705 = vunpack.c.l.b16 %v64
  %v706 = vunpack.c.h.b16 %v64
  %v707 = vunpack.c.l.b16 %v65
  %v708 = vunpack.c.h.b16 %v65
  %v709 = vunpack.c.l.b16 %v66
  %v710 = vunpack.c.h.b16 %v66
  %v711 = vunpack.c.l.b16 %v67
  %v712 = vunpack.c.h.b16 %v67
  %v713 = vunpack.c.l.b16 %v68
  %v714 = vunpack.c.h.b16 %v68
  %v715 = vunpack.c.l.b16 %v69
  %v716 = vunpack.c.h.b16 %v69
  %v717 = vunpack.c.l.b16 %v70
  %v718 = vunpack.c.h.b16 %v70
  %v719 = vunpack.c.l.b16 %v71
  %v720 = vunpack.c.h.b16 %v71
  %v721 = vunpack.c.l.b16 %v72
  %v722 = vunpack.c.h.b16 %v72
  %v723 = vunpack.c.l.b16 %v73
  %v724 = vunpack.c.h.b16 %v73
  %v725 = vunpack.c.l.b16 %v74
  %v726 = vunpack.c.h.b16 %v74
  %v727 = vunpack.c.l.b16 %v75
  %v728 = vunpack.c.h.b16 %v75
  %v729 = vunpack.c.l.b16 %v76
  %v730 = vunpack.c.h.b16 %v76
  %v731 = vunpack.c.l.b16 %v77
  %v732 = vunpack.c.h.b16 %v77
  %v733 = vunpack.c.l.b16 %v78
  %v734 = vunpack.c.h.b16 %v78
  %v735 = vunpack.c.l.b16 %v79
  %v736 = vunpack.c.h.b16 %v79
  %v737 = vunpack.c.l.b16 %v80
  %v738 = vunpack.c.h.b16 %v80
  %v739 = vunpack.c.l.b16 %v81
  %v740 = vunpack.c.h.b16 %v81
  %v741 = vunpack.c.l.b16 %v82
  %v742 = vunpack.c.h.b16 %v82
  %v743 = vunpack.c.l.b16 %v83
  %v744 = vunpack.c.h.b16 %v83
  %v745 = vunpack.c.l.b16 %v84
  %v746 = vunpack.c.h.b16 %v84
  %v747 = vunpack.c.l.b16 %v85
  %v748 = vunpack.c.h.b16 %v85
  %v749 = vunpack.c.l.b16 %v86
  %v750 = vunpack.c.h.b16 %v86
  %v751 = vunpack.c.l.b16 %v87
  %v752 = vunpack.c.h.b16 %v87
  %v753 = vunpack.c.l.b16 %v88
  %v754 = vunpack.c.h.b16 %v88
  %v755 = vunpack.c.l.b16 %v89
  %v756 = vunpack.c.h.b16 %v89
  %v757 = vunpack.c.l.b16 %v90
  %v758 = vunpack.c.h.b16 %v90
  %v759 = vunpack.c.l.b16 %v91
  %v760 = vunpack.c.h.b16 %v91
  %v761 = vunpack.c.l.b16 %v92
  %v762 = vunpack.c.h.b16 %v92
  %v763 = vunpack.c.l.b16 %v93
  %v764 = vunpack.c.h.b16 %v93
  %v765 = vunpack.c.l.b16 %v94
  %v766 = vunpack.c.h.b16 %v94
  %v767 = vunpack.c.l.b16 %v95
  %v768 = vunpack.c.h.b16 %v95
  %v769 = vunpack.c.l.b16 %v96
  %v770 = vunpack.c.h.b16 %v96
  %v771 = vunpack.c.l.b16 %v97
  %v772 = vunpack.c.h.b16 %v97
  %v773 = vunpack.c.l.b16 %v98
  %v774 = vunpack.c.h.b16 %v98
  %v775 = vunpack.c.l.b16 %v99
  %v776 = vunpack.c.h.b16 %v99
  %v777 = vunpack.c.l.b16 %v100
  %v778 = vunpack.c.h.b16 %v100
  %v779 = vunpack.c.l.b16 %v101
  %v780 = vunpack.c.h.b16 %v101
  %v781 = vunpack.c.l.b16 %v102
  %v782 = vunpack.c.h.b16 %v102
  %v783 = vunpack.c.l.b16 %v103
  %v784 = vunpack.c.h.b16 %v103
  %v785 = vunpack.c.l.b16 %v104
  %v786 = vunpack.c.h.b16 %v104
  %v787 = vunpack.c.l.b16 %v105
  %v788 = vunpack.c.h.b16 %v105
  %v789 = vunpack.c.l.b16 %v106
  %v790 = vunpack.c.h.b16 %v106
  %v791 = vunpack.c.l.b16 %v107
  %v792 = vunpack.c.h.b16 %v107
  %v793 = vunpack.c.l.b16 %v108
  %v794 = vunpack.c.h.b16 %v108
  %v795 = vunpack.c.l.b16 %v109
  %v796 = vunpack.c.h.b16 %v109
  %v797 = vunpack.c.l.b16 %v110
  %v798 = vunpack.c.h.b16 %v110
  %v799 = vunpack.c.l.b16 %v111
  %v800 = vunpack.c.h.b16 %v111
  %v801 = vunpack.c.l.b16 %v112
  %v802 = vunpack.c.h.b16 %v112
  %v803 = vunpack.c.l.b16 %v113
  %v804 = vunpack.c.h.b16 %v113
  %v805 = vunpack.c.l.b16 %v114
  %v806 = vunpack.c.h.b16 %v114
  %v807 = vunpack.c.l.b16 %v115
  %v808 = vunpack.c.h.b16 %v115
  %v809 = vunpack.c.l.b16 %v116
  %v810 = vunpack.c.h.b16 %v116
  %v811 = vunpack.c.l.b16 %v117
  %v812 = vunpack.c.h.b16 %v117
  %v813 = vunpack.c.l.b16 %v118
  %v814 = vunpack.c.h.b16 %v118
  %v815 = vunpack.c.l.b16 %v119
  %v816 = vunpack.c.h.b16 %v119
  %v817 = vunpack.c.l.b16 %v120
  %v818 = vunpack.c.h.b16 %v120
  %v819 = vunpack.c.l.b16 %v121
  %v820 = vunpack.c.h.b16 %v121
  %v821 = vunpack.c.l.b16 %v122
  %v822 = vunpack.c.h.b16 %v122
  %v823 = vunpack.c.l.b16 %v123
  %v824 = vunpack.c.h.b16 %v123
  %v825 = vunpack.c.l.b16 %v124
  %v826 = vunpack.c.h.b16 %v124
  %v827 = vunpack.c.l.b16 %v125
  %v828 = vunpack.c.h.b16 %v125
  %v829 = vunpack.c.l.b16 %v126
  %v830 = vunpack.c.h.b16 %v126
  %v831 = vunpack.c.l.b16 %v127
  %v832 = vunpack.c.h.b16 %v127
  %v833 = vunpack.c.l.b16 %v128
  %v834 = vunpack.c.h.b16 %v128
  %v835 = vunpack.c.l.b16 %v129
  %v836 = vunpack.c.h.b16 %v129
  %v837 = vunpack.c.l.b16 %v130
  %v838 = vunpack.c.h.b16 %v130
  %v839 = vunpack.c.l.b16 %v131
  %v840 = vunpack.c.h.b16 %v131
  %v841 = vunpack.c.l.b16 %v132
  %v842 = vunpack.c.h.b16 %v132
  %v843 = vunpack.c.l.b16 %v133
  %v844 = vunpack.c.h.b16 %v133
  %v845 = vunpack.c.l.b16 %v134
  %v846 = vunpack.c.h.b16 %v134
  %v847 = vunpack.c.l.b16 %v135
  %v848 = vunpack.c.h.b16 %v135
  %v849 = vunpack.c.l.b16 %v136
  %v850 = vunpack.c.h.b16 %v136
  %v851 = vunpack.c.l.b16 %v137
  %v852 = vunpack.c.h.b16 %v137
  %v853 = vunpack.c.l.b16 %v138
  %v854 = vunpack.c.h.b16 %v138
  %v855 = vunpack.c.l.b16 %v139
  %v856 = vunpack.c.h.b16 %v139
  %v857 = vunpack.c.l.b16 %v140
  %v858 = vunpack.c.h.b16 %v140
  %v859 = vunpack.c.l.b16 %v141
  %v860 = vunpack.c.h.b16 %v141
  %v861 = vunpack.c.l.b16 %v142
  %v862 = vunpack.c.h.b16 %v142
  %v863 = vunpack.c.l.b16 %v143
  %v864 = vunpack.c.h.b16 %v143
  %v865 = vunpack.c.l.b16 %v144
  %v866 = vunpack.c.h.b16 %v144
  %v867 = vunpack.c.l.b16 %v145
  %v868 = vunpack.c.h.b16 %v145
  %v869 = vunpack.c.l.b16 %v146
  %v870 = vunpack.c.h.b16 %v146
  %v871 = vunpack.c.l.b16 %v147
  %v872 = vunpack.c.h.b16 %v147
  %v873 = vunpack.c.l.b16 %v148
  %v874 = vunpack.c.h.b16 %v148
  %v875 = vunpack.c.l.b16 %v149
  %v876 = vunpack.c.h.b16 %v149
  %v877 = vunpack.c.l.b16 %v150
  %v878 = vunpack.c.h.b16 %v150
  %v879 = vunpack.c.l.b16 %v151
  %v880 = vunpack.c.h.b16 %v151
  %v881 = vunpack.c.l.b16 %v152
  %v882 = vunpack.c.h.b16 %v152
  %v883 = vunpack.c.l.b16 %v153
  %v884 = vunpack.c.h.b16 %v153
  %v885 = vunpack.c.l.b16 %v154
  %v886 = vunpack.c.h.b16 %v154
  %v887 = vunpack.c.l.b16 %v155
  %v888 = vunpack.c.h.b16 %v155
  %v889 = vunpack.c.l.b16 %v156
  %v890 = vunpack.c.h.b16 %v156
  %v891 = vunpack.c.l.b16 %v157
  %v892 = vunpack.c.h.b16 %v157
  %v893 = vunpack.c.l.b16 %v158
  %v894 = vunpack.c.h.b16 %v158
  %v895 = vunpack.c.l.b16 %v159
  %v896 = vunpack.c.h.b16 %v159
  %v897 = vunpack.c.l.b16 %v160
  %v898 = vunpack.c.h.b16 %v160
  %v899 = vunpack.c.l.b16 %v161
  %v900 = vunpack.c.h.b16 %v161
  %v901 = vunpack.c.l.b16 %v162
  %v902 = vunpack.c.h.b16 %v162
  %v903 = vunpack.c.l.b16 %v163
  %v904 = vunpack.c.h.b16 %v163
  %v905 = vunpack.c.l.b16 %v164
  %v906 = vunpack.c.h.b16 %v164
  %v907 = vunpack.c.l.b16 %v165
  %v908 = vunpack.c.h.b16 %v165
  %v909 = vunpack.c.l.b16 %v166
  %v910 = vunpack.c.h.b16 %v166
  %v911 = vunpack.c.l.b16 %v167
  %v912 = vunpack.c.h.b16 %v167
  %v913 = vunpack.c.l.b16 %v168
  %v914 = vunpack.c.h.b16 %v168
  %v915 = vunpack.c.l.b16 %v169
  %v916 = vunpack.c.h.b16 %v169
  %v917 = vunpack.c.l.b16 %v170
  %v918 = vunpack.c.h.b16 %v170
  %v919 = vunpack.c.l.b16 %v171
  %v920 = vunpack.c.h.b16 %v171
  %v921 = vunpack.c.l.b16 %v172
  %v922 = vunpack.c.h.b16 %v172
  %v923 = vunpack.c.l.b16 %v173
  %v924 = vunpack.c.h.b16 %v173
  %v925 = vunpack.c.l.b16 %v174
  %v926 = vunpack.c.h.b16 %v174
  %v927 = vunpack.c.l.b16 %v175
  %v928 = vunpack.c.h.b16 %v175
  %v929 = vunpack.c.l.b16 %v176
  %v930 = vunpack.c.h.b16 %v176
  %v931 = vunpack.c.l.b16 %v177
  %v932 = vunpack.c.h.b16 %v177
  %v933 = vunpack.c.l.b16 %v178
  %v934 = vunpack.c.h.b16 %v178
  %v935 = vunpack.c.l.b16 %v179
  %v936 = vunpack.c.h.b16 %v179
  %v937 = vunpack.c.l.b16 %v180
  %v938 = vunpack.c.h.b16 %v180
  %v939 = vunpack.c.l.b16 %v181
  %v940 = vunpack.c.h.b16 %v181
  %v941 = vunpack.c.l.b16 %v182
  %v942 = vunpack.c.h.b16 %v182
  %v943 = vunpack.c.l.b16 %v183
  %v944 = vunpack.c.h.b16 %v183
  %v945 = vunpack.c.l.b16 %v184
  %v946 = vunpack.c.h.b16 %v184
  %v947 = vunpack.c.l.b16 %v185
  %v948 = vunpack.c.h.b16 %v185
  %v949 = vunpack.c.l.b16 %v186
  %v950 = vunpack.c.h.b16 %v186
  %v951 = vunpack.c.l.b16 %v187
  %v952 = vunpack.c.h.b16 %v187
  %v953 = vunpack.c.l.b16 %v188
  %v954 = vunpack.c.h.b16 %v188
  %v955 = vunpack.c.l.b16 %v189
  %v956 = vunpack.c.h.b16 %v189
  %v957 = vunpack.c.l.b16 %v190
  %v958 = vunpack.c.h.b16 %v190
  %v959 = vunpack.c.l.b16 %v191
  %v960 = vunpack.c.h.b16 %v191
  %v961 = vunpack.c.l.b16 %v192
  %v962 = vunpack.c.h.b16 %v192
  %v963 = vunpack.c.l.b16 %v193
  %v964 = vunpack.c.h.b16 %v193
  %v965 = vunpack.c.l.b16 %v194
  %v966 = vunpack.c.h.b16 %v194
  %v967 = vunpack.c.l.b16 %v195
  %v968 = vunpack.c.h.b16 %v195
  %v969 = vunpack.c.l.b16 %v196
  %v970 = vunpack.c.h.b16 %v196
  %v971 = vunpack.c.l.b16 %v197
  %v972 = vunpack.c.h.b16 %v197
  %v973 = vunpack.c.l.b16 %v198
  %v974 = vunpack.c.h.b16 %v198
  %v975 = vunpack.c.l.b16 %v199
  %v976 = vunpack.c.h.b16 %v199
  %v977 = vunpack.c.l.b16 %v200
  %v978 = vunpack.c.h.b16 %v200
  %v979 = vunpack.c.l.b16 %v201
  %v980 = vunpack.c.h.b16 %v201
  %v981 = vunpack.c.l.b16 %v202
  %v982 = vunpack.c.h.b16 %v202
  %v983 = vunpack.c.l.b16 %v203
  %v984 = vunpack.c.h.b16 %v203
  %v985 = vunpack.c.l.b16 %v204
  %v986 = vunpack.c.h.b16 %v204
  %v987 = vunpack.c.l.b16 %v205
  %v988 = vunpack.c.h.b16 %v205
  %v989 = vunpack.c.l.b16 %v206
  %v990 = vunpack.c.h.b16 %v206
  %v991 = vunpack.c.l.b16 %v207
  %v992 = vunpack.c.h.b16 %v207
  %v993 = vunpack.c.l.b16 %v208
  %v994 = vunpack.c.h.b16 %v208
  %v995 = vunpack.c.l.b16 %v209
  %v996 = vunpack.c.h.b16 %v209
  %v997 = vunpack.c.l.b16 %v210
  %v998 = vunpack.c.h.b16 %v210
  %v999 = vunpack.c.l.b16 %v211
  %v1000 = vunpack.c.h.b16 %v211
  %v1001 = vunpack.c.l.b16 %v212
  %v1002 = vunpack.c.h.b16 %v212
  %v1003 = vunpack.c.l.b16 %v213
  %v1004 = vunpack.c.h.b16 %v213
  %v1005 = vunpack.c.l.b16 %v214
  %v1006 = vunpack.c.h.b16 %v214
  %v1007 = vunpack.c.l.b16 %v215
  %v1008 = vunpack.c.h.b16 %v215
  %v1009 = vunpack.c.l.b16 %v216
  %v1010 = vunpack.c.h.b16 %v216
  %v1011 = vunpack.c.l.b16 %v217
  %v1012 = vunpack.c.h.b16 %v217
  %v1013 = vunpack.c.l.b16 %v218
  %v1014 = vunpack.c.h.b16 %v218
  %v1015 = vunpack.c.l.b16 %v219
  %v1016 = vunpack.c.h.b16 %v219
  %v1017 = vunpack.c.l.b16 %v220
  %v1018 = vunpack.c.h.b16 %v220
  %v1019 = vunpack.c.l.b16 %v221
  %v1020 = vunpack.c.h.b16 %v221
  %v1021 = vunpack.c.l.b16 %v222
  %v1022 = vunpack.c.h.b16 %v222
  %v1023 = vunpack.c.l.b16 %v223
  %v1024 = vunpack.c.h.b16 %v223
  %v1025 = vunpack.c.l.b16 %v224
  %v1026 = vunpack.c.h.b16 %v224
  %v1027 = vunpack.c.l.b16 %v225
  %v1028 = vunpack.c.h.b16 %v225
  %v1029 = vunpack.c.l.b16 %v226
  %v1030 = vunpack.c.h.b16 %v226
  %v1031 = vunpack.c.l.b16 %v227
  %v1032 = vunpack.c.h.b16 %v227
  %v1033 = vunpack.c.l.b16 %v228
  %v1034 = vunpack.c.h.b16 %v228
  %v1035 = vunpack.c.l.b16 %v229
  %v1036 = vunpack.c.h.b16 %v229
  %v1037 = vunpack.c.l.b16 %v230
  %v1038 = vunpack.c.h.b16 %v230
  %v1039 = vunpack.c.l.b16 %v231
  %v1040 = vunpack.c.h.b16 %v231
  %v1041 = vunpack.c.l.b16 %v232
  %v1042 = vunpack.c.h.b16 %v232
  %v1043 = vunpack.c.l.b16 %v233
  %v1044 = vunpack.c.h.b16 %v233
  %v1045 = vunpack.c.l.b16 %v234
  %v1046 = vunpack.c.h.b16 %v234
  %v1047 = vunpack.c.l.b16 %v235
  %v1048 = vunpack.c.h.b16 %v235
  %v1049 = vunpack.c.l.b16 %v236
  %v1050 = vunpack.c.h.b16 %v236
  %v1051 = vunpack.c.l.b16 %v237
  %v1052 = vunpack.c.h.b16 %v237
  %v1053 = vunpack.c.l.b16 %v238
  %v1054 = vunpack.c.h.b16 %v238
  %v1055 = vunpack.c.l.b16 %v239
  %v1056 = vunpack.c.h.b16 %v239
  %v1057 = vunpack.c.l.b16 %v240
  %v1058 = vunpack.c.h.b16 %v240
  %v1059 = vunpack.c.l.b16 %v241
  %v1060 = vunpack.c.h.b16 %v241
  %v1061 = vunpack.c.l.b16 %v242
  %v1062 = vunpack.c.h.b16 %v242
  %v1063 = vunpack.c.l.b16 %v243
  %v1064 = vunpack.c.h.b16 %v243
  %v1065 = vunpack.c.l.b16 %v244
  %v1066 = vunpack.c.h.b16 %v244
  %v1067 = vunpack.c.l.b16 %v245
  %v1068 = vunpack.c.h.b16 %v245
  %v1069 = vunpack.c.l.b16 %v246
  %v1070 = vunpack.c.h.b16 %v246
  %v1071 = vunpack.c.l.b16 %v247
  %v1072 = vunpack.c.h.b16 %v247
  %v1073 = vunpack.c.l.b16 %v248
  %v1074 = vunpack.c.h.b16 %v248
  %v1075 = vunpack.c.l.b16 %v249
  %v1076 = vunpack.c.h.b16 %v249
  %v1077 = vunpack.c.l.b16 %v250
  %v1078 = vunpack.c.h.b16 %v250
  %v1079 = vunpack.c.l.b16 %v251
  %v1080 = vunpack.c.h.b16 %v251
  %v1081 = vunpack.c.l.b16 %v252
  %v1082 = vunpack.c.h.b16 %v252
  %v1083 = vunpack.c.l.b16 %v253
  %v1084 = vunpack.c.h.b16 %v253
  %v1085 = vunpack.c.l.b16 %v254
  %v1086 = vunpack.c.h.b16 %v254
  %v1087 = vunpack.c.l.b16 %v255
  %v1088 = vunpack.c.h.b16 %v255
  %v1089 = vunpack.c.l.b16 %v256
  %v1090 = vunpack.c.h.b16 %v256
  %v1091 = vunpack.c.l.b16 %v257
  %v1092 = vunpack.c.h.b16 %v257
  %v1093 = vunpack.c.l.b16 %v258
  %v1094 = vunpack.c.h.b16 %v258
  %v1095 = vunpack.c.l.b16 %v259
  %v1096 = vunpack.c.h.b16 %v259
  %v1097 = vunpack.c.l.b16 %v260
  %v1098 = vunpack.c.h.b16 %v260
  %v1099 = vunpack.c.l.b16 %v261
  %v1100 = vunpack.c.h.b16 %v261
  %v1101 = vunpack.c.l.b16 %v262
  %v1102 = vunpack.c.h.b16 %v262
  %v1103 = vunpack.c.l.b16 %v263
  %v1104 = vunpack.c.h.b16 %v263
  %v1105 = vunpack.c.l.b16 %v264
  %v1106 = vunpack.c.h.b16 %v264
  %v1107 = vunpack.c.l.b16 %v265
  %v1108 = vunpack.c.h.b16 %v265
  %v1109 = vunpack.c.l.b16 %v266
  %v1110 = vunpack.c.h.b16 %v266
  %v1111 = vunpack.c.l.b16 %v267
  %v1112 = vunpack.c.h.b16 %v267
  %v1113 = vunpack.c.l.b16 %v268
  %v1114 = vunpack.c.h.b16 %v268
  %v1115 = vunpack.c.l.b16 %v269
  %v1116 = vunpack.c.h.b16 %v269
  %v1117 = vunpack.c.l.b16 %v270
  %v1118 = vunpack.c.h.b16 %v270
  %v1119 = vpack.c.b16 %v611, %v607
  %v1120 = vpack.c.b16 %v612, %v608
  %v1121 = vpack.c.b16 %v613, %v609
  %v1122 = vpack.c.b16 %v614, %v610
  %v1123 = vpack.c.b16 %v619, %v615
  %v1124 = vpack.c.b16 %v620, %v616
  %v1125 = vpack.c.b16 %v621, %v617
  %v1126 = vpack.c.b16 %v622, %v618
  %v1127 = vpack.c.b16 %v627, %v623
  %v1128 = vpack.c.b16 %v628, %v624
  %v1129 = vpack.c.b16 %v629, %v625
  %v1130 = vpack.c.b16 %v630, %v626
  %v1131 = vpack.c.b16 %v635, %v631
  %v1132 = vpack.c.b16 %v636, %v632
  %v1133 = vpack.c.b16 %v637, %v633
  %v1134 = vpack.c.b16 %v638, %v634
  %v1135 = vpack.c.b16 %v643, %v639
  %v1136 = vpack.c.b16 %v644, %v640
  %v1137 = vpack.c.b16 %v645, %v641
  %v1138 = vpack.c.b16 %v646, %v642
  %v1139 = vpack.c.b16 %v651, %v647
  %v1140 = vpack.c.b16 %v652, %v648
  %v1141 = vpack.c.b16 %v653, %v649
  %v1142 = vpack.c.b16 %v654, %v650
  %v1143 = vpack.c.b16 %v659, %v655
  %v1144 = vpack.c.b16 %v660, %v656
  %v1145 = vpack.c.b16 %v661, %v657
  %v1146 = vpack.c.b16 %v662, %v658
  %v1147 = vpack.c.b16 %v667, %v663
  %v1148 = vpack.c.b16 %v668, %v664
  %v1149 = vpack.c.b16 %v669, %v665
  %v1150 = vpack.c.b16 %v670, %v666
  %v1151 = vpack.c.b16 %v675, %v671
  %v1152 = vpack.c.b16 %v676, %v672
  %v1153 = vpack.c.b16 %v677, %v673
  %v1154 = vpack.c.b16 %v678, %v674
  %v1155 = vpack.c.b16 %v683, %v679
  %v1156 = vpack.c.b16 %v684, %v680
  %v1157 = vpack.c.b16 %v685, %v681
  %v1158 = vpack.c.b16 %v686, %v682
  %v1159 = vpack.c.b16 %v691, %v687
  %v1160 = vpack.c.b16 %v692, %v688
  %v1161 = vpack.c.b16 %v693, %v689
  %v1162 = vpack.c.b16 %v694, %v690
  %v1163 = vpack.c.b16 %v699, %v695
  %v1164 = vpack.c.b16 %v700, %v696
  %v1165 = vpack.c.b16 %v701, %v697
  %v1166 = vpack.c.b16 %v702, %v698
  %v1167 = vpack.c.b16 %v707, %v703
  %v1168 = vpack.c.b16 %v708, %v704
  %v1169 = vpack.c.b16 %v709, %v705
  %v1170 = vpack.c.b16 %v710, %v706
  %v1171 = vpack.c.b16 %v715, %v711
  %v1172 = vpack.c.b16 %v716, %v712
  %v1173 = vpack.c.b16 %v717, %v713
  %v1174 = vpack.c.b16 %v718, %v714
  %v1175 = vpack.c.b16 %v723, %v719
  %v1176 = vpack.c.b16 %v724, %v720
  %v1177 = vpack.c.b16 %v725, %v721
  %v1178 = vpack.c.b16 %v726, %v722
  %v1179 = vpack.c.b16 %v731, %v727
  %v1180 = vpack.c.b16 %v732, %v728
  %v1181 = vpack.c.b16 %v733, %v729
  %v1182 = vpack.c.b16 %v734, %v730
  %v1183 = vpack.c.b16 %v739, %v735
  %v1184 = vpack.c.b16 %v740, %v736
  %v1185 = vpack.c.b16 %v741, %v737
  %v1186 = vpack.c.b16 %v742, %v738
  %v1187 = vpack.c.b16 %v747, %v743
  %v1188 = vpack.c.b16 %v748, %v744
  %v1189 = vpack.c.b16 %v749, %v745
  %v1190 = vpack.c.b16 %v750, %v746
  %v1191 = vpack.c.b16 %v755, %v751
  %v1192 = vpack.c.b16 %v756, %v752
  %v1193 = vpack.c.b16 %v757, %v753
  %v1194 = vpack.c.b16 %v758, %v754
  %v1195 = vpack.c.b16 %v763, %v759
  %v1196 = vpack.c.b16 %v764, %v760
  %v1197 = vpack.c.b16 %v765, %v761
  %v1198 = vpack.c.b16 %v766, %v762
  %v1199 = vpack.c.b16 %v771, %v767
  %v1200 = vpack.c.b16 %v772, %v768
  %v1201 = vpack.c.b16 %v773, %v769
  %v1202 = vpack.c.b16 %v774, %v770
  %v1203 = vpack.c.b16 %v779, %v775
  %v1204 = vpack.c.b16 %v780, %v776
  %v1205 = vpack.c.b16 %v781, %v777
  %v1206 = vpack.c.b16 %v782, %v778
  %v1207 = vpack.c.b16 %v787, %v783
  %v1208 = vpack.c.b16 %v788, %v784
  %v1209 = vpack.c.b16 %v789, %v785
  %v1210 = vpack.c.b16 %v790, %v786
  %v1211 = vpack.c.b16 %v795, %v791
  %v1212 = vpack.c.b16 %v796, %v792
  %v1213 = vpack.c.b16 %v797, %v793
  %v1214 = vpack.c.b16 %v798, %v794
  %v1215 = vpack.c.b16 %v803, %v799
  %v1216 = vpack.c.b16 %v804, %v800
  %v1217 = vpack.c.b16 %v805, %v801
  %v1218 = vpack.c.b16 %v806, %v802
  %v1219 = vpack.c.b16 %v811, %v807
  %v1220 = vpack.c.b16 %v812, %v808
  %v1221 = vpack.c.b16 %v813, %v809
  %v1222 = vpack.c.b16 %v814, %v810
  %v1223 = vpack.c.b16 %v819, %v815
  %v1224 = vpack.c.b16 %v820, %v816
  %v1225 = vpack.c.b16 %v821, %v817
  %v1226 = vpack.c.b16 %v822, %v818
  %v1227 = vpack.c.b16 %v827, %v823
  %v1228 = vpack.c.b16 %v828, %v824
  %v1229 = vpack.c.b16 %v829, %v825
  %v1230 = vpack.c.b16 %v830, %v826
  %v1231 = vpack.c.b16 %v835, %v831
  %v1232 = vpack.c.b16 %v836, %v832
  %v1233 = vpack.c.b16 %v837, %v833
  %v1234 = vpack.c.b16 %v838, %v834
  %v1235 = vpack.c.b16 %v843, %v839
  %v1236 = vpack.c.b16 %v844, %v840
  %v1237 = vpack.c.b16 %v845, %v841
  %v1238 = vpack.c.b16 %v846, %v842
  %v1239 = vpack.c.b16 %v851, %v847
  %v1240 = vpack.c.b16 %v852, %v848
  %v1241 = vpack.c.b16 %v853, %v849
  %v1242 = vpack.c.b16 %v854, %v850
  %v1243 = vpack.c.b16 %v859, %v855
  %v1244 = vpack.c.b16 %v860, %v856
  %v1245 = vpack.c.b16 %v861, %v857
  %v1246 = vpack.c.b16 %v862, %v858
  %v1247 = vpack.c.b16 %v867, %v863
  %v1248 = vpack.c.b16 %v868, %v864
  %v1249 = vpack.c.b16 %v869, %v865
  %v1250 = vpack.c.b16 %v870, %v866
  %v1251 = vpack.c.b16 %v875, %v871
  %v1252 = vpack.c.b16 %v876, %v872
  %v1253 = vpack.c.b16 %v877, %v873
  %v1254 = vpack.c.b16 %v878, %v874
  %v1255 = vpack.c.b16 %v883, %v879
  %v1256 = vpack.c.b16 %v884, %v880
  %v1257 = vpack.c.b16 %v885, %v881
  %v1258 = vpack.c.b16 %v886, %v882
  %v1259 = vpack.c.b16 %v891, %v887
  %v1260 = vpack.c.b16 %v892, %v888
  %v1261 = vpack.c.b16 %v893, %v889
  %v1262 = vpack.c.b16 %v894, %v890
  %v1263 = vpack.c.b16 %v899, %v895
  %v1264 = vpack.c.b16 %v900, %v896
  %v1265 = vpack.c.b16 %v901, %v897
  %v1266 = vpack.c.b16 %v902, %v898
  %v1267 = vpack.c.b16 %v907, %v903
  %v1268 = vpack.c.b16 %v908, %v904
  %v1269 = vpack.c.b16 %v909, %v905
  %v1270 = vpack.c.b16 %v910, %v906
  %v1271 = vpack.c.b16 %v915, %v911
  %v1272 = vpack.c.b16 %v916, %v912
  %v1273 = vpack.c.b16 %v917, %v913
  %v1274 = vpack.c.b16 %v918, %v914
  %v1275 = vpack.c.b16 %v923, %v919
  %v1276 = vpack.c.b16 %v924, %v920
  %v1277 = vpack.c.b16 %v925, %v921
  %v1278 = vpack.c.b16 %v926, %v922
  %v1279 = vpack.c.b16 %v931, %v927
  %v1280 = vpack.c.b16 %v932, %v928
  %v1281 = vpack.c.b16 %v933, %v929
  %v1282 = vpack.c.b16 %v934, %v930
  %v1283 = vpack.c.b16 %v939, %v935
  %v1284 = vpack.c.b16 %v940, %v936
  %v1285 = vpack.c.b16 %v941, %v937
  %v1286 = vpack.c.b16 %v942, %v938
  %v1287 = vpack.c.b16 %v947, %v943
  %v1288 = vpack.c.b16 %v948, %v944
  %v1289 = vpack.c.b16 %v949, %v945
  %v1290 = vpack.c.b16 %v950, %v946
  %v1291 = vpack.c.b16 %v955, %v951
  %v1292 = vpack.c.b16 %v956, %v952
  %v1293 = vpack.c.b16 %v957, %v953
  %v1294 = vpack.c.b16 %v958, %v954
  %v1295 = vpack.c.b16 %v963, %v959
  %v1296 = vpack.c.b16 %v964, %v960
  %v1297 = vpack.c.b16 %v965, %v961
  %v1298 = vpack.c.b16 %v966, %v962
  %v1299 = vpack.c.b16 %v971, %v967
  %v1300 = vpack.c.b16 %v972, %v968
  %v1301 = vpack.c.b16 %v973, %v969
  %v1302 = vpack.c.b16 %v974, %v970
  %v1303 = vpack.c.b16 %v979, %v975
  %v1304 = vpack.c.b16 %v980, %v976
  %v1305 = vpack.c.b16 %v981, %v977
  %v1306 = vpack.c.b16 %v982, %v978
  %v1307 = vpack.c.b16 %v987, %v983
  %v1308 = vpack.c.b16 %v988, %v984
  %v1309 = vpack.c.b16 %v989, %v985
  %v1310 = vpack.c.b16 %v990, %v986
  %v1311 = vpack.c.b16 %v995, %v991
  %v1312 = vpack.c.b16 %v996, %v992
  %v1313 = vpack.c.b16 %v997, %v993
  %v1314 = vpack.c.b16 %v998, %v994
  %v1315 = vpack.c.b16 %v1003, %v999
  %v1316 = vpack.c.b16 %v1004, %v1000
  %v1317 = vpack.c.b16 %v1005, %v1001
  %v1318 = vpack.c.b16 %v1006, %v1002
  %v1319 = vpack.c.b16 %v1011, %v1007
  %v1320 = vpack.c.b16 %v1012, %v1008
  %v1321 = vpack.c.b16 %v1013, %v1009
  %v1322 = vpack.c.b16 %v1014, %v1010
  %v1323 = vpack.c.b16 %v1019, %v1015
  %v1324 = vpack.c.b16 %v1020, %v1016
  %v1325 = vpack.c.b16 %v1021, %v1017
  %v1326 = vpack.c.b16 %v1022, %v1018
  %v1327 = vpack.c.b16 %v1027, %v1023
  %v1328 = vpack.c.b16 %v1028, %v1024
  %v1329 = vpack.c.b16 %v1029, %v1025
  %v1330 = vpack.c.b16 %v1030, %v1026
  %v1331 = vpack.c.b16 %v1035, %v1031
  %v1332 = vpack.c.b16 %v1036, %v1032
  %v1333 = vpack.c.b16 %v1037, %v1033
  %v1334 = vpack.c.b16 %v1038, %v1034
  %v1335 = vpack.c.b16 %v1043, %v1039
  %v1336 = vpack.c.b16 %v1044, %v1040
  %v1337 = vpack.c.b16 %v1045, %v1041
  %v1338 = vpack.c.b16 %v1046, %v1042
  %v1339 = vpack.c.b16 %v1051, %v1047
  %v1340 = vpack.c.b16 %v1052, %v1048
  %v1341 = vpack.c.b16 %v1053, %v1049
  %v1342 = vpack.c.b16 %v1054, %v1050
  %v1343 = vpack.c.b16 %v1059, %v1055
  %v1344 = vpack.c.b16 %v1060, %v1056
  %v1345 = vpack.c.b16 %v1061, %v1057
  %v1346 = vpack.c.b16 %v1062, %v1058
  %v1347 = vpack.c.b16 %v1067, %v1063
  %v1348 = vpack.c.b16 %v1068, %v1064
  %v1349 = vpack.c.b16 %v1069, %v1065
  %v1350 = vpack.c.b16 %v1070, %v1066
  %v1351 = vpack.c.b16 %v1075, %v1071
  %v1352 = vpack.c.b16 %v1076, %v1072
  %v1353 = vpack.c.b16 %v1077, %v1073
  %v1354 = vpack.c.b16 %v1078, %v1074
  %v1355 = vpack.c.b16 %v1083, %v1079
  %v1356 = vpack.c.b16 %v1084, %v1080
  %v1357 = vpack.c.b16 %v1085, %v1081
  %v1358 = vpack.c.b16 %v1086, %v1082
  %v1359 = vpack.c.b16 %v1091, %v1087
  %v1360 = vpack.c.b16 %v1092, %v1088
  %v1361 = vpack.c.b16 %v1093, %v1089
  %v1362 = vpack.c.b16 %v1094, %v1090
  %v1363 = vpack.c.b16 %v1099, %v1095
  %v1364 = vpack.c.b16 %v1100, %v1096
  %v1365 = vpack.c.b16 %v1101, %v1097
  %v1366 = vpack.c.b16 %v1102, %v1098
  %v1367 = vpack.c.b16 %v1107, %v1103
  %v1368 = vpack.c.b16 %v1108, %v1104
  %v1369 = vpack.c.b16 %v1109, %v1105
  %v1370 = vpack.c.b16 %v1110, %v1106
  %v1371 = vpack.c.b16 %v1115, %v1111
  %v1372 = vpack.c.b16 %v1116, %v1112
  %v1373 = vpack.c.b16 %v1117, %v1113
  %v1374 = vpack.c.b16 %v1118, %v1114
  %1631 = vmatprep.subr.bf16.mxu0 %v1120
  %1632 = vmatpush1.bf16.msra.mxu0 %v1119
  %1633 = vmatprep.subr.bf16.mxu0 %v1124
  %1634 = vmatpush1.bf16.msra.mxu0 %v1123
  %1635 = vmatprep.subr.bf16.mxu0 %v1128
  %1636 = vmatpush1.bf16.msra.mxu0 %v1127
  %1637 = vmatprep.subr.bf16.mxu0 %v1132
  %1638 = vmatpush1.bf16.msra.mxu0 %v1131
  %1639 = vmatprep.subr.bf16.mxu0 %v1136
  %1640 = vmatpush1.bf16.msra.mxu0 %v1135
  %1641 = vmatprep.subr.bf16.mxu0 %v1140
  %1642 = vmatpush1.bf16.msra.mxu0 %v1139
  %1643 = vmatprep.subr.bf16.mxu0 %v1144
  %1644 = vmatpush1.bf16.msra.mxu0 %v1143
  %1645 = vmatprep.subr.bf16.mxu0 %v1148
  %1646 = vmatpush1.bf16.msra.mxu0 %v1147
  %1647 = vmatprep.subr.bf16.mxu0 %v1152
  %1648 = vmatpush1.bf16.msra.mxu0 %v1151
  %1649 = vmatprep.subr.bf16.mxu0 %v1156
  %1650 = vmatpush1.bf16.msra.mxu0 %v1155
  %1651 = vmatprep.subr.bf16.mxu0 %v1160
  %1652 = vmatpush1.bf16.msra.mxu0 %v1159
  %1653 = vmatprep.subr.bf16.mxu0 %v1164
  %1654 = vmatpush1.bf16.msra.mxu0 %v1163
  %1655 = vmatprep.subr.bf16.mxu0 %v1168
  %1656 = vmatpush1.bf16.msra.mxu0 %v1167
  %1657 = vmatprep.subr.bf16.mxu0 %v1172
  %1658 = vmatpush1.bf16.msra.mxu0 %v1171
  %1659 = vmatprep.subr.bf16.mxu0 %v1176
  %1660 = vmatpush1.bf16.msra.mxu0 %v1175
  %1661 = vmatprep.subr.bf16.mxu0 %v1180
  %1662 = vmatpush1.bf16.msra.mxu0 %v1179
  %1663 = vmatprep.mubr.bf16.mxu0 %v331
  %1664 = vmatmul.mubr.bf16.gmra.mrb[0].mxu0 %v317
  %v1665 = vpop.f32.mrb[0].mxu0
  %v1666 = vadd.f32 %v276, %v1665
  %v1667 = vpop.f32.mrb[0].mxu0
  %v1668 = vadd.f32 %v280, %v1667
  %v1669 = vpop.f32.mrb[0].mxu0
  %v1670 = vpop.f32.mrb[0].mxu0
  %1671 = vdwg.mxu0
  %1672 = vmatprep.subr.bf16.mxu0 %v1184
  %1673 = vmatpush1.bf16.msra.mxu0 %v1183
  %1674 = vmatprep.subr.bf16.mxu0 %v1188
  %1675 = vmatpush1.bf16.msra.mxu0 %v1187
  %1676 = vmatprep.subr.bf16.mxu0 %v1192
  %1677 = vmatpush1.bf16.msra.mxu0 %v1191
  %1678 = vmatprep.subr.bf16.mxu0 %v1196
  %1679 = vmatpush1.bf16.msra.mxu0 %v1195
  %1680 = vmatprep.subr.bf16.mxu0 %v1200
  %1681 = vmatpush1.bf16.msra.mxu0 %v1199
  %1682 = vmatprep.subr.bf16.mxu0 %v1204
  %1683 = vmatpush1.bf16.msra.mxu0 %v1203
  %1684 = vmatprep.subr.bf16.mxu0 %v1208
  %1685 = vmatpush1.bf16.msra.mxu0 %v1207
  %1686 = vmatprep.subr.bf16.mxu0 %v1212
  %1687 = vmatpush1.bf16.msra.mxu0 %v1211
  %1688 = vmatprep.subr.bf16.mxu0 %v1216
  %1689 = vmatpush1.bf16.msra.mxu0 %v1215
  %1690 = vmatprep.subr.bf16.mxu0 %v1220
  %1691 = vmatpush1.bf16.msra.mxu0 %v1219
  %1692 = vmatprep.subr.bf16.mxu0 %v1224
  %1693 = vmatpush1.bf16.msra.mxu0 %v1223
  %1694 = vmatprep.subr.bf16.mxu0 %v1228
  %1695 = vmatpush1.bf16.msra.mxu0 %v1227
  %1696 = vmatprep.subr.bf16.mxu0 %v1232
  %1697 = vmatpush1.bf16.msra.mxu0 %v1231
  %1698 = vmatprep.subr.bf16.mxu0 %v1236
  %1699 = vmatpush1.bf16.msra.mxu0 %v1235
  %1700 = vmatprep.subr.bf16.mxu0 %v1240
  %1701 = vmatpush1.bf16.msra.mxu0 %v1239
  %1702 = vmatprep.subr.bf16.mxu0 %v1244
  %1703 = vmatpush1.bf16.msra.mxu0 %v1243
  %1704 = vmatprep.mubr.bf16.mxu0 %v341
  %1705 = vmatmul.mubr.bf16.gmra.mrb[0].mxu0 %v339
  %v1706 = vpop.f32.mrb[0].mxu0
  %v1707 = vadd.f32 %v1666, %v1706
  %v1708 = vpop.f32.mrb[0].mxu0
  %v1709 = vadd.f32 %v1668, %v1708
  %v1710 = vpop.f32.mrb[0].mxu0
  %v1711 = vpop.f32.mrb[0].mxu0
  %1712 = vdwg.mxu0
  %1713 = vmatprep.subr.bf16.mxu0 %v1248
  %1714 = vmatpush1.bf16.msra.mxu0 %v1247
  %1715 = vmatprep.subr.bf16.mxu0 %v1252
  %1716 = vmatpush1.bf16.msra.mxu0 %v1251
  %1717 = vmatprep.subr.bf16.mxu0 %v1256
  %1718 = vmatpush1.bf16.msra.mxu0 %v1255
  %1719 = vmatprep.subr.bf16.mxu0 %v1260
  %1720 = vmatpush1.bf16.msra.mxu0 %v1259
  %1721 = vmatprep.subr.bf16.mxu0 %v1264
  %1722 = vmatpush1.bf16.msra.mxu0 %v1263
  %1723 = vmatprep.subr.bf16.mxu0 %v1268
  %1724 = vmatpush1.bf16.msra.mxu0 %v1267
  %1725 = vmatprep.subr.bf16.mxu0 %v1272
  %1726 = vmatpush1.bf16.msra.mxu0 %v1271
  %1727 = vmatprep.subr.bf16.mxu0 %v1276
  %1728 = vmatpush1.bf16.msra.mxu0 %v1275
  %1729 = vmatprep.subr.bf16.mxu0 %v1280
  %1730 = vmatpush1.bf16.msra.mxu0 %v1279
  %1731 = vmatprep.subr.bf16.mxu0 %v1284
  %1732 = vmatpush1.bf16.msra.mxu0 %v1283
  %1733 = vmatprep.subr.bf16.mxu0 %v1288
  %1734 = vmatpush1.bf16.msra.mxu0 %v1287
  %1735 = vmatprep.subr.bf16.mxu0 %v1292
  %1736 = vmatpush1.bf16.msra.mxu0 %v1291
  %1737 = vmatprep.subr.bf16.mxu0 %v1296
  %1738 = vmatpush1.bf16.msra.mxu0 %v1295
  %1739 = vmatprep.subr.bf16.mxu0 %v1300
  %1740 = vmatpush1.bf16.msra.mxu0 %v1299
  %1741 = vmatprep.subr.bf16.mxu0 %v1304
  %1742 = vmatpush1.bf16.msra.mxu0 %v1303
  %1743 = vmatprep.subr.bf16.mxu0 %v1308
  %1744 = vmatpush1.bf16.msra.mxu0 %v1307
  %1745 = vmatprep.mubr.bf16.mxu0 %v338
  %1746 = vmatmul.mubr.bf16.gmra.mrb[0].mxu0 %v324
  %v1747 = vpop.f32.mrb[0].mxu0
  %v1748 = vadd.f32 %v1707, %v1747
  %v1749 = vpop.f32.mrb[0].mxu0
  %v1750 = vadd.f32 %v1709, %v1749
  %v1751 = vpop.f32.mrb[0].mxu0
  %v1752 = vpop.f32.mrb[0].mxu0
  %1753 = vdwg.mxu0
  %1754 = vmatprep.subr.bf16.mxu0 %v1312
  %1755 = vmatpush1.bf16.msra.mxu0 %v1311
  %1756 = vmatprep.subr.bf16.mxu0 %v1316
  %1757 = vmatpush1.bf16.msra.mxu0 %v1315
  %1758 = vmatprep.subr.bf16.mxu0 %v1320
  %1759 = vmatpush1.bf16.msra.mxu0 %v1319
  %1760 = vmatprep.subr.bf16.mxu0 %v1324
  %1761 = vmatpush1.bf16.msra.mxu0 %v1323
  %1762 = vmatprep.subr.bf16.mxu0 %v1328
  %1763 = vmatpush1.bf16.msra.mxu0 %v1327
  %1764 = vmatprep.subr.bf16.mxu0 %v1332
  %1765 = vmatpush1.bf16.msra.mxu0 %v1331
  %1766 = vmatprep.subr.bf16.mxu0 %v1336
  %1767 = vmatpush1.bf16.msra.mxu0 %v1335
  %1768 = vmatprep.subr.bf16.mxu0 %v1340
  %1769 = vmatpush1.bf16.msra.mxu0 %v1339
  %1770 = vmatprep.subr.bf16.mxu0 %v1344
  %1771 = vmatpush1.bf16.msra.mxu0 %v1343
  %1772 = vmatprep.subr.bf16.mxu0 %v1348
  %1773 = vmatpush1.bf16.msra.mxu0 %v1347
  %1774 = vmatprep.subr.bf16.mxu0 %v1352
  %1775 = vmatpush1.bf16.msra.mxu0 %v1351
  %1776 = vmatprep.subr.bf16.mxu0 %v1356
  %1777 = vmatpush1.bf16.msra.mxu0 %v1355
  %1778 = vmatprep.subr.bf16.mxu0 %v1360
  %1779 = vmatpush1.bf16.msra.mxu0 %v1359
  %1780 = vmatprep.subr.bf16.mxu0 %v1364
  %1781 = vmatpush1.bf16.msra.mxu0 %v1363
  %1782 = vmatprep.subr.bf16.mxu0 %v1368
  %1783 = vmatpush1.bf16.msra.mxu0 %v1367
  %1784 = vmatprep.subr.bf16.mxu0 %v1372
  %1785 = vmatpush1.bf16.msra.mxu0 %v1371
  %1786 = vmatprep.mubr.bf16.mxu0 %v342
  %1787 = vmatmul.mubr.bf16.gmra.mrb[0].mxu0 %v340
  %v1788 = vpop.f32.mrb[0].mxu0
  %v1789 = vadd.f32 %v1748, %v1788
  %v1790 = vpop.f32.mrb[0].mxu0
  %v1791 = vadd.f32 %v1750, %v1790
  %v1792 = vpop.f32.mrb[0].mxu0
  %v1793 = vpop.f32.mrb[0].mxu0
  %1794 = vdwg.mxu0
  %1795 = vmatprep.subr.bf16.mxu0 %v1122
  %1796 = vmatpush1.bf16.msra.mxu0 %v1121
  %1797 = vmatprep.subr.bf16.mxu0 %v1126
  %1798 = vmatpush1.bf16.msra.mxu0 %v1125
  %1799 = vmatprep.subr.bf16.mxu0 %v1130
  %1800 = vmatpush1.bf16.msra.mxu0 %v1129
  %1801 = vmatprep.subr.bf16.mxu0 %v1134
  %1802 = vmatpush1.bf16.msra.mxu0 %v1133
  %1803 = vmatprep.subr.bf16.mxu0 %v1138
  %1804 = vmatpush1.bf16.msra.mxu0 %v1137
  %1805 = vmatprep.subr.bf16.mxu0 %v1142
  %1806 = vmatpush1.bf16.msra.mxu0 %v1141
  %1807 = vmatprep.subr.bf16.mxu0 %v1146
  %1808 = vmatpush1.bf16.msra.mxu0 %v1145
  %1809 = vmatprep.subr.bf16.mxu0 %v1150
  %1810 = vmatpush1.bf16.msra.mxu0 %v1149
  %1811 = vmatprep.subr.bf16.mxu0 %v1154
  %1812 = vmatpush1.bf16.msra.mxu0 %v1153
  %1813 = vmatprep.subr.bf16.mxu0 %v1158
  %1814 = vmatpush1.bf16.msra.mxu0 %v1157
  %1815 = vmatprep.subr.bf16.mxu0 %v1162
  %1816 = vmatpush1.bf16.msra.mxu0 %v1161
  %1817 = vmatprep.subr.bf16.mxu0 %v1166
  %1818 = vmatpush1.bf16.msra.mxu0 %v1165
  %1819 = vmatprep.subr.bf16.mxu0 %v1170
  %1820 = vmatpush1.bf16.msra.mxu0 %v1169
  %1821 = vmatprep.subr.bf16.mxu0 %v1174
  %1822 = vmatpush1.bf16.msra.mxu0 %v1173
  %1823 = vmatprep.subr.bf16.mxu0 %v1178
  %1824 = vmatpush1.bf16.msra.mxu0 %v1177
  %1825 = vmatprep.subr.bf16.mxu0 %v1182
  %1826 = vmatpush1.bf16.msra.mxu0 %v1181
  %1827 = vmatprep.mubr.bf16.mxu0 %v331
  %1828 = vmatmul.mubr.bf16.gmra.mrb[0].mxu0 %v317
  %v1829 = vpop.f32.mrb[0].mxu0
  %v1830 = vadd.f32 %v284, %v1829
  %v1831 = vpop.f32.mrb[0].mxu0
  %v1832 = vadd.f32 %v288, %v1831
  %v1833 = vpop.f32.mrb[0].mxu0
  %v1834 = vpop.f32.mrb[0].mxu0
  %1835 = vdwg.mxu0
  %1836 = vmatprep.subr.bf16.mxu0 %v1186
  %1837 = vmatpush1.bf16.msra.mxu0 %v1185
  %1838 = vmatprep.subr.bf16.mxu0 %v1190
  %1839 = vmatpush1.bf16.msra.mxu0 %v1189
  %1840 = vmatprep.subr.bf16.mxu0 %v1194
  %1841 = vmatpush1.bf16.msra.mxu0 %v1193
  %1842 = vmatprep.subr.bf16.mxu0 %v1198
  %1843 = vmatpush1.bf16.msra.mxu0 %v1197
  %1844 = vmatprep.subr.bf16.mxu0 %v1202
  %1845 = vmatpush1.bf16.msra.mxu0 %v1201
  %1846 = vmatprep.subr.bf16.mxu0 %v1206
  %1847 = vmatpush1.bf16.msra.mxu0 %v1205
  %1848 = vmatprep.subr.bf16.mxu0 %v1210
  %1849 = vmatpush1.bf16.msra.mxu0 %v1209
  %1850 = vmatprep.subr.bf16.mxu0 %v1214
  %1851 = vmatpush1.bf16.msra.mxu0 %v1213
  %1852 = vmatprep.subr.bf16.mxu0 %v1218
  %1853 = vmatpush1.bf16.msra.mxu0 %v1217
  %1854 = vmatprep.subr.bf16.mxu0 %v1222
  %1855 = vmatpush1.bf16.msra.mxu0 %v1221
  %1856 = vmatprep.subr.bf16.mxu0 %v1226
  %1857 = vmatpush1.bf16.msra.mxu0 %v1225
  %1858 = vmatprep.subr.bf16.mxu0 %v1230
  %1859 = vmatpush1.bf16.msra.mxu0 %v1229
  %1860 = vmatprep.subr.bf16.mxu0 %v1234
  %1861 = vmatpush1.bf16.msra.mxu0 %v1233
  %1862 = vmatprep.subr.bf16.mxu0 %v1238
  %1863 = vmatpush1.bf16.msra.mxu0 %v1237
  %1864 = vmatprep.subr.bf16.mxu0 %v1242
  %1865 = vmatpush1.bf16.msra.mxu0 %v1241
  %1866 = vmatprep.subr.bf16.mxu0 %v1246
  %1867 = vmatpush1.bf16.msra.mxu0 %v1245
  %1868 = vmatprep.mubr.bf16.mxu0 %v341
  %1869 = vmatmul.mubr.bf16.gmra.mrb[0].mxu0 %v339
  %v1870 = vpop.f32.mrb[0].mxu0
  %v1871 = vadd.f32 %v1830, %v1870
  %v1872 = vpop.f32.mrb[0].mxu0
  %v1873 = vadd.f32 %v1832, %v1872
  %v1874 = vpop.f32.mrb[0].mxu0
  %v1875 = vpop.f32.mrb[0].mxu0
  %1876 = vdwg.mxu0
  %1877 = vmatprep.subr.bf16.mxu0 %v1250
  %1878 = vmatpush1.bf16.msra.mxu0 %v1249
  %1879 = vmatprep.subr.bf16.mxu0 %v1254
  %1880 = vmatpush1.bf16.msra.mxu0 %v1253
  %1881 = vmatprep.subr.bf16.mxu0 %v1258
  %1882 = vmatpush1.bf16.msra.mxu0 %v1257
  %1883 = vmatprep.subr.bf16.mxu0 %v1262
  %1884 = vmatpush1.bf16.msra.mxu0 %v1261
  %1885 = vmatprep.subr.bf16.mxu0 %v1266
  %1886 = vmatpush1.bf16.msra.mxu0 %v1265
  %1887 = vmatprep.subr.bf16.mxu0 %v1270
  %1888 = vmatpush1.bf16.msra.mxu0 %v1269
  %1889 = vmatprep.subr.bf16.mxu0 %v1274
  %1890 = vmatpush1.bf16.msra.mxu0 %v1273
  %1891 = vmatprep.subr.bf16.mxu0 %v1278
  %1892 = vmatpush1.bf16.msra.mxu0 %v1277
  %1893 = vmatprep.subr.bf16.mxu0 %v1282
  %1894 = vmatpush1.bf16.msra.mxu0 %v1281
  %1895 = vmatprep.subr.bf16.mxu0 %v1286
  %1896 = vmatpush1.bf16.msra.mxu0 %v1285
  %1897 = vmatprep.subr.bf16.mxu0 %v1290
  %1898 = vmatpush1.bf16.msra.mxu0 %v1289
  %1899 = vmatprep.subr.bf16.mxu0 %v1294
  %1900 = vmatpush1.bf16.msra.mxu0 %v1293
  %1901 = vmatprep.subr.bf16.mxu0 %v1298
  %1902 = vmatpush1.bf16.msra.mxu0 %v1297
  %1903 = vmatprep.subr.bf16.mxu0 %v1302
  %1904 = vmatpush1.bf16.msra.mxu0 %v1301
  %1905 = vmatprep.subr.bf16.mxu0 %v1306
  %1906 = vmatpush1.bf16.msra.mxu0 %v1305
  %1907 = vmatprep.subr.bf16.mxu0 %v1310
  %1908 = vmatpush1.bf16.msra.mxu0 %v1309
  %1909 = vmatprep.mubr.bf16.mxu0 %v338
  %1910 = vmatmul.mubr.bf16.gmra.mrb[0].mxu0 %v324
  %v1911 = vpop.f32.mrb[0].mxu0
  %v1912 = vadd.f32 %v1871, %v1911
  %v1913 = vpop.f32.mrb[0].mxu0
  %v1914 = vadd.f32 %v1873, %v1913
  %v1915 = vpop.f32.mrb[0].mxu0
  %v1916 = vpop.f32.mrb[0].mxu0
  %1917 = vdwg.mxu0
  %1918 = vmatprep.subr.bf16.mxu0 %v1314
  %1919 = vmatpush1.bf16.msra.mxu0 %v1313
  %1920 = vmatprep.subr.bf16.mxu0 %v1318
  %1921 = vmatpush1.bf16.msra.mxu0 %v1317
  %1922 = vmatprep.subr.bf16.mxu0 %v1322
  %1923 = vmatpush1.bf16.msra.mxu0 %v1321
  %1924 = vmatprep.subr.bf16.mxu0 %v1326
  %1925 = vmatpush1.bf16.msra.mxu0 %v1325
  %1926 = vmatprep.subr.bf16.mxu0 %v1330
  %1927 = vmatpush1.bf16.msra.mxu0 %v1329
  %1928 = vmatprep.subr.bf16.mxu0 %v1334
  %1929 = vmatpush1.bf16.msra.mxu0 %v1333
  %1930 = vmatprep.subr.bf16.mxu0 %v1338
  %1931 = vmatpush1.bf16.msra.mxu0 %v1337
  %1932 = vmatprep.subr.bf16.mxu0 %v1342
  %1933 = vmatpush1.bf16.msra.mxu0 %v1341
  %1934 = vmatprep.subr.bf16.mxu0 %v1346
  %1935 = vmatpush1.bf16.msra.mxu0 %v1345
  %1936 = vmatprep.subr.bf16.mxu0 %v1350
  %1937 = vmatpush1.bf16.msra.mxu0 %v1349
  %1938 = vmatprep.subr.bf16.mxu0 %v1354
  %1939 = vmatpush1.bf16.msra.mxu0 %v1353
  %1940 = vmatprep.subr.bf16.mxu0 %v1358
  %1941 = vmatpush1.bf16.msra.mxu0 %v1357
  %1942 = vmatprep.subr.bf16.mxu0 %v1362
  %1943 = vmatpush1.bf16.msra.mxu0 %v1361
  %1944 = vmatprep.subr.bf16.mxu0 %v1366
  %1945 = vmatpush1.bf16.msra.mxu0 %v1365
  %1946 = vmatprep.subr.bf16.mxu0 %v1370
  %1947 = vmatpush1.bf16.msra.mxu0 %v1369
  %1948 = vmatprep.subr.bf16.mxu0 %v1374
  %1949 = vmatpush1.bf16.msra.mxu0 %v1373
  %1950 = vmatprep.mubr.bf16.mxu0 %v342
  %1951 = vmatmul.mubr.bf16.gmra.mrb[0].mxu0 %v340
  %v1952 = vpop.f32.mrb[0].mxu0
  %v1953 = vadd.f32 %v1912, %v1952
  %v1954 = vpop.f32.mrb[0].mxu0
  %v1955 = vadd.f32 %v1914, %v1954
  %v1956 = vpop.f32.mrb[0].mxu0
  %v1957 = vpop.f32.mrb[0].mxu0
  %1958 = vdwg.mxu0
  %v1963 = vcombine.low %v1789, %v1791
  %v1964 = vcombine.low %v1953, %v1955
  %v1966 = vunpack.c.l.s4 1983009808
  %v1967 = vunpack.c.0.s8 %v1966
  %v1968 = vlaneseq
  %v1969 = vshrl.u32 %v1968, 7
  %v1970 = vsub.s32 %v1967, %v1969
  %v1971 = vrot.slane %v1963, %v1970
  %v1973 = vunpack.c.l.s4 1983009808
  %v1974 = vunpack.c.0.s8 %v1973
  %v1975 = vlaneseq
  %v1976 = vshrl.u32 %v1975, 7
  %v1977 = vsub.s32 %v1974, %v1976
  %v1978 = vrot.slane %v1964, %v1977
  %v1979 = vcombine.low %v1971, %v1978
  %1981 = vst [vmem:[%s3] sm:$0xff] %v1979
  // Predicated region
  $region14: #{encoder_forward.9} parent=0 // pred_check
    _
  $region15: #{encoder_forward.9} parent=0 // pred_check_branch
    %1983 = sbr.rel (0) target = $region17
  $region16: #{encoder_forward.9} parent=0 // pred_region
    _
  $region17: #{encoder_forward.9} parent=0 // pred_fallthru
    _
  // Predicated region
  $region18: #{encoder_forward.9} parent=0 // pred_check
    _
  $region19: #{encoder_forward.9} parent=0 // pred_check_branch
    %1985 = sbr.rel (0) target = $region21
  $region20: #{encoder_forward.9} parent=0 // pred_region
    _
  $region21: #{encoder_forward.9} parent=0 // pred_fallthru
    _

// kernel: encoder_forward.8
$region0: #{encoder_forward.8}
  #allocation0 [shape = 'u32[]', space=smem, size = 0x4, offset = 0x4, fixed_abs, tag = 'smem constant byte address 0x4 - core index']
  #allocation1 [shape = 'u32[144,128]{1,0:T(1,128)}', space=vmem, size = 0x12000, scoped, tag = 'internal scratch']
  %s0 = inlined_call_operand.vmem [shape: bf16[32,4096], index: 0, kind: input, shape index: {}]
  %s1 = inlined_call_operand.vmem [shape: bf16[4096,64], index: 1, kind: input, shape index: {}]
  %s2 = inlined_call_operand.vmem [shape: f32[1,64], index: 2, kind: input, shape index: {}]
  %s3 = inlined_call_operand.vmem [shape: bf16[32,64], index: 3, kind: output, shape index: {}]
  %s4 = sld [smem:[#allocation0]]
  $region22: #{encoder_forward.8} parent=0
    _
  %s6 = ssub.s32 1, %s4
  %s7 = scalar_select 0, %s6, %s4
  // Predicated region
  $region2: #{encoder_forward.8} parent=0 // pred_check
    _
  $region3: #{encoder_forward.8} parent=0 // pred_check_branch
    %9 = sbr.rel (0) target = $region5
  $region4: #{encoder_forward.8} parent=0 // pred_region
    _
  $region5: #{encoder_forward.8} parent=0 // pred_fallthru
    _
  // Predicated region
  $region6: #{encoder_forward.8} parent=0 // pred_check
    _
  $region7: #{encoder_forward.8} parent=0 // pred_check_branch
    %11 = sbr.rel (0) target = $region9
  $region8: #{encoder_forward.8} parent=0 // pred_region
    _
  $region9: #{encoder_forward.8} parent=0 // pred_fallthru
    _
  // Predicated region
  $region10: #{encoder_forward.8} parent=0 // pred_check
    _
  $region11: #{encoder_forward.8} parent=0 // pred_check_branch
    %13 = sbr.rel (0) target = $region13
  $region12: #{encoder_forward.8} parent=0 // pred_region
    _
  $region13: #{encoder_forward.8} parent=0 // pred_fallthru
    _
  %v15 = vld [vmem:[%s0] sm:$0xff]
  %v16 = vld [vmem:[%s0 + $0x8] sm:$0xff]
  %v17 = vld [vmem:[%s0 + $0x10] sm:$0xff]
  %v18 = vld [vmem:[%s0 + $0x18] sm:$0xff]
  %v19 = vld [vmem:[%s0 + $0x20] sm:$0xff]
  %v20 = vld [vmem:[%s0 + $0x28] sm:$0xff]
  %v21 = vld [vmem:[%s0 + $0x30] sm:$0xff]
  %v22 = vld [vmem:[%s0 + $0x38] sm:$0xff]
  %v23 = vld [vmem:[%s0 + $0x40] sm:$0xff]
  %v24 = vld [vmem:[%s0 + $0x48] sm:$0xff]
  %v25 = vld [vmem:[%s0 + $0x50] sm:$0xff]
  %v26 = vld [vmem:[%s0 + $0x58] sm:$0xff]
  %v27 = vld [vmem:[%s0 + $0x60] sm:$0xff]
  %v28 = vld [vmem:[%s0 + $0x68] sm:$0xff]
  %v29 = vld [vmem:[%s0 + $0x70] sm:$0xff]
  %v30 = vld [vmem:[%s0 + $0x78] sm:$0xff]
  %v31 = vld [vmem:[%s0 + $0x80] sm:$0xff]
  %v32 = vld [vmem:[%s0 + $0x88] sm:$0xff]
  %v33 = vld [vmem:[%s0 + $0x90] sm:$0xff]
  %v34 = vld [vmem:[%s0 + $0x98] sm:$0xff]
  %v35 = vld [vmem:[%s0 + $0xa0] sm:$0xff]
  %v36 = vld [vmem:[%s0 + $0xa8] sm:$0xff]
  %v37 = vld [vmem:[%s0 + $0xb0] sm:$0xff]
  %v38 = vld [vmem:[%s0 + $0xb8] sm:$0xff]
  %v39 = vld [vmem:[%s0 + $0xc0] sm:$0xff]
  %v40 = vld [vmem:[%s0 + $0xc8] sm:$0xff]
  %v41 = vld [vmem:[%s0 + $0xd0] sm:$0xff]
  %v42 = vld [vmem:[%s0 + $0xd8] sm:$0xff]
  %v43 = vld [vmem:[%s0 + $0xe0] sm:$0xff]
  %v44 = vld [vmem:[%s0 + $0xe8] sm:$0xff]
  %v45 = vld [vmem:[%s0 + $0xf0] sm:$0xff]
  %v46 = vld [vmem:[%s0 + $0xf8] sm:$0xff]
  %v47 = vld [vmem:[%s0 + $0x100] sm:$0xff]
  %v48 = vld [vmem:[%s0 + $0x108] sm:$0xff]
  %v49 = vld [vmem:[%s0 + $0x110] sm:$0xff]
  %v50 = vld [vmem:[%s0 + $0x118] sm:$0xff]
  %v51 = vld [vmem:[%s0 + $0x120] sm:$0xff]
  %v52 = vld [vmem:[%s0 + $0x128] sm:$0xff]
  %v53 = vld [vmem:[%s0 + $0x130] sm:$0xff]
  %v54 = vld [vmem:[%s0 + $0x138] sm:$0xff]
  %v55 = vld [vmem:[%s0 + $0x140] sm:$0xff]
  %v56 = vld [vmem:[%s0 + $0x148] sm:$0xff]
  %v57 = vld [vmem:[%s0 + $0x150] sm:$0xff]
  %v58 = vld [vmem:[%s0 + $0x158] sm:$0xff]
  %v59 = vld [vmem:[%s0 + $0x160] sm:$0xff]
  %v60 = vld [vmem:[%s0 + $0x168] sm:$0xff]
  %v61 = vld [vmem:[%s0 + $0x170] sm:$0xff]
  %v62 = vld [vmem:[%s0 + $0x178] sm:$0xff]
  %v63 = vld [vmem:[%s0 + $0x180] sm:$0xff]
  %v64 = vld [vmem:[%s0 + $0x188] sm:$0xff]
  %v65 = vld [vmem:[%s0 + $0x190] sm:$0xff]
  %v66 = vld [vmem:[%s0 + $0x198] sm:$0xff]
  %v67 = vld [vmem:[%s0 + $0x1a0] sm:$0xff]
  %v68 = vld [vmem:[%s0 + $0x1a8] sm:$0xff]
  %v69 = vld [vmem:[%s0 + $0x1b0] sm:$0xff]
  %v70 = vld [vmem:[%s0 + $0x1b8] sm:$0xff]
  %v71 = vld [vmem:[%s0 + $0x1c0] sm:$0xff]
  %v72 = vld [vmem:[%s0 + $0x1c8] sm:$0xff]
  %v73 = vld [vmem:[%s0 + $0x1d0] sm:$0xff]
  %v74 = vld [vmem:[%s0 + $0x1d8] sm:$0xff]
  %v75 = vld [vmem:[%s0 + $0x1e0] sm:$0xff]
  %v76 = vld [vmem:[%s0 + $0x1e8] sm:$0xff]
  %v77 = vld [vmem:[%s0 + $0x1f0] sm:$0xff]
  %v78 = vld [vmem:[%s0 + $0x1f8] sm:$0xff]
  %v79 = vld [vmem:[%s1] sm:$0xf]
  %v80 = vld [vmem:[%s1 + $0x4] sm:$0xf]
  %v81 = vld [vmem:[%s1 + $0x8] sm:$0xf]
  %v82 = vld [vmem:[%s1 + $0xc] sm:$0xf]
  %v83 = vld [vmem:[%s1 + $0x10] sm:$0xf]
  %v84 = vld [vmem:[%s1 + $0x14] sm:$0xf]
  %v85 = vld [vmem:[%s1 + $0x18] sm:$0xf]
  %v86 = vld [vmem:[%s1 + $0x1c] sm:$0xf]
  %v87 = vld [vmem:[%s1 + $0x20] sm:$0xf]
  %v88 = vld [vmem:[%s1 + $0x24] sm:$0xf]
  %v89 = vld [vmem:[%s1 + $0x28] sm:$0xf]
  %v90 = vld [vmem:[%s1 + $0x2c] sm:$0xf]
  %v91 = vld [vmem:[%s1 + $0x30] sm:$0xf]
  %v92 = vld [vmem:[%s1 + $0x34] sm:$0xf]
  %v93 = vld [vmem:[%s1 + $0x38] sm:$0xf]
  %v94 = vld [vmem:[%s1 + $0x3c] sm:$0xf]
  %v95 = vld [vmem:[%s1 + $0x40] sm:$0xf]
  %v96 = vld [vmem:[%s1 + $0x44] sm:$0xf]
  %v97 = vld [vmem:[%s1 + $0x48] sm:$0xf]
  %v98 = vld [vmem:[%s1 + $0x4c] sm:$0xf]
  %v99 = vld [vmem:[%s1 + $0x50] sm:$0xf]
  %v100 = vld [vmem:[%s1 + $0x54] sm:$0xf]
  %v101 = vld [vmem:[%s1 + $0x58] sm:$0xf]
  %v102 = vld [vmem:[%s1 + $0x5c] sm:$0xf]
  %v103 = vld [vmem:[%s1 + $0x60] sm:$0xf]
  %v104 = vld [vmem:[%s1 + $0x64] sm:$0xf]
  %v105 = vld [vmem:[%s1 + $0x68] sm:$0xf]
  %v106 = vld [vmem:[%s1 + $0x6c] sm:$0xf]
  %v107 = vld [vmem:[%s1 + $0x70] sm:$0xf]
  %v108 = vld [vmem:[%s1 + $0x74] sm:$0xf]
  %v109 = vld [vmem:[%s1 + $0x78] sm:$0xf]
  %v110 = vld [vmem:[%s1 + $0x7c] sm:$0xf]
  %v111 = vld [vmem:[%s1 + $0x80] sm:$0xf]
  %v112 = vld [vmem:[%s1 + $0x84] sm:$0xf]
  %v113 = vld [vmem:[%s1 + $0x88] sm:$0xf]
  %v114 = vld [vmem:[%s1 + $0x8c] sm:$0xf]
  %v115 = vld [vmem:[%s1 + $0x90] sm:$0xf]
  %v116 = vld [vmem:[%s1 + $0x94] sm:$0xf]
  %v117 = vld [vmem:[%s1 + $0x98] sm:$0xf]
  %v118 = vld [vmem:[%s1 + $0x9c] sm:$0xf]
  %v119 = vld [vmem:[%s1 + $0xa0] sm:$0xf]
  %v120 = vld [vmem:[%s1 + $0xa4] sm:$0xf]
  %v121 = vld [vmem:[%s1 + $0xa8] sm:$0xf]
  %v122 = vld [vmem:[%s1 + $0xac] sm:$0xf]
  %v123 = vld [vmem:[%s1 + $0xb0] sm:$0xf]
  %v124 = vld [vmem:[%s1 + $0xb4] sm:$0xf]
  %v125 = vld [vmem:[%s1 + $0xb8] sm:$0xf]
  %v126 = vld [vmem:[%s1 + $0xbc] sm:$0xf]
  %v127 = vld [vmem:[%s1 + $0xc0] sm:$0xf]
  %v128 = vld [vmem:[%s1 + $0xc4] sm:$0xf]
  %v129 = vld [vmem:[%s1 + $0xc8] sm:$0xf]
  %v130 = vld [vmem:[%s1 + $0xcc] sm:$0xf]
  %v131 = vld [vmem:[%s1 + $0xd0] sm:$0xf]
  %v132 = vld [vmem:[%s1 + $0xd4] sm:$0xf]
  %v133 = vld [vmem:[%s1 + $0xd8] sm:$0xf]
  %v134 = vld [vmem:[%s1 + $0xdc] sm:$0xf]
  %v135 = vld [vmem:[%s1 + $0xe0] sm:$0xf]
  %v136 = vld [vmem:[%s1 + $0xe4] sm:$0xf]
  %v137 = vld [vmem:[%s1 + $0xe8] sm:$0xf]
  %v138 = vld [vmem:[%s1 + $0xec] sm:$0xf]
  %v139 = vld [vmem:[%s1 + $0xf0] sm:$0xf]
  %v140 = vld [vmem:[%s1 + $0xf4] sm:$0xf]
  %v141 = vld [vmem:[%s1 + $0xf8] sm:$0xf]
  %v142 = vld [vmem:[%s1 + $0xfc] sm:$0xf]
  %v143 = vld [vmem:[%s1 + $0x100] sm:$0xf]
  %v144 = vld [vmem:[%s1 + $0x104] sm:$0xf]
  %v145 = vld [vmem:[%s1 + $0x108] sm:$0xf]
  %v146 = vld [vmem:[%s1 + $0x10c] sm:$0xf]
  %v147 = vld [vmem:[%s1 + $0x110] sm:$0xf]
  %v148 = vld [vmem:[%s1 + $0x114] sm:$0xf]
  %v149 = vld [vmem:[%s1 + $0x118] sm:$0xf]
  %v150 = vld [vmem:[%s1 + $0x11c] sm:$0xf]
  %v151 = vld [vmem:[%s1 + $0x120] sm:$0xf]
  %v152 = vld [vmem:[%s1 + $0x124] sm:$0xf]
  %v153 = vld [vmem:[%s1 + $0x128] sm:$0xf]
  %v154 = vld [vmem:[%s1 + $0x12c] sm:$0xf]
  %v155 = vld [vmem:[%s1 + $0x130] sm:$0xf]
  %v156 = vld [vmem:[%s1 + $0x134] sm:$0xf]
  %v157 = vld [vmem:[%s1 + $0x138] sm:$0xf]
  %v158 = vld [vmem:[%s1 + $0x13c] sm:$0xf]
  %v159 = vld [vmem:[%s1 + $0x140] sm:$0xf]
  %v160 = vld [vmem:[%s1 + $0x144] sm:$0xf]
  %v161 = vld [vmem:[%s1 + $0x148] sm:$0xf]
  %v162 = vld [vmem:[%s1 + $0x14c] sm:$0xf]
  %v163 = vld [vmem:[%s1 + $0x150] sm:$0xf]
  %v164 = vld [vmem:[%s1 + $0x154] sm:$0xf]
  %v165 = vld [vmem:[%s1 + $0x158] sm:$0xf]
  %v166 = vld [vmem:[%s1 + $0x15c] sm:$0xf]
  %v167 = vld [vmem:[%s1 + $0x160] sm:$0xf]
  %v168 = vld [vmem:[%s1 + $0x164] sm:$0xf]
  %v169 = vld [vmem:[%s1 + $0x168] sm:$0xf]
  %v170 = vld [vmem:[%s1 + $0x16c] sm:$0xf]
  %v171 = vld [vmem:[%s1 + $0x170] sm:$0xf]
  %v172 = vld [vmem:[%s1 + $0x174] sm:$0xf]
  %v173 = vld [vmem:[%s1 + $0x178] sm:$0xf]
  %v174 = vld [vmem:[%s1 + $0x17c] sm:$0xf]
  %v175 = vld [vmem:[%s1 + $0x180] sm:$0xf]
  %v176 = vld [vmem:[%s1 + $0x184] sm:$0xf]
  %v177 = vld [vmem:[%s1 + $0x188] sm:$0xf]
  %v178 = vld [vmem:[%s1 + $0x18c] sm:$0xf]
  %v179 = vld [vmem:[%s1 + $0x190] sm:$0xf]
  %v180 = vld [vmem:[%s1 + $0x194] sm:$0xf]
  %v181 = vld [vmem:[%s1 + $0x198] sm:$0xf]
  %v182 = vld [vmem:[%s1 + $0x19c] sm:$0xf]
  %v183 = vld [vmem:[%s1 + $0x1a0] sm:$0xf]
  %v184 = vld [vmem:[%s1 + $0x1a4] sm:$0xf]
  %v185 = vld [vmem:[%s1 + $0x1a8] sm:$0xf]
  %v186 = vld [vmem:[%s1 + $0x1ac] sm:$0xf]
  %v187 = vld [vmem:[%s1 + $0x1b0] sm:$0xf]
  %v188 = vld [vmem:[%s1 + $0x1b4] sm:$0xf]
  %v189 = vld [vmem:[%s1 + $0x1b8] sm:$0xf]
  %v190 = vld [vmem:[%s1 + $0x1bc] sm:$0xf]
  %v191 = vld [vmem:[%s1 + $0x1c0] sm:$0xf]
  %v192 = vld [vmem:[%s1 + $0x1c4] sm:$0xf]
  %v193 = vld [vmem:[%s1 + $0x1c8] sm:$0xf]
  %v194 = vld [vmem:[%s1 + $0x1cc] sm:$0xf]
  %v195 = vld [vmem:[%s1 + $0x1d0] sm:$0xf]
  %v196 = vld [vmem:[%s1 + $0x1d4] sm:$0xf]
  %v197 = vld [vmem:[%s1 + $0x1d8] sm:$0xf]
  %v198 = vld [vmem:[%s1 + $0x1dc] sm:$0xf]
  %v199 = vld [vmem:[%s1 + $0x1e0] sm:$0xf]
  %v200 = vld [vmem:[%s1 + $0x1e4] sm:$0xf]
  %v201 = vld [vmem:[%s1 + $0x1e8] sm:$0xf]
  %v202 = vld [vmem:[%s1 + $0x1ec] sm:$0xf]
  %v203 = vld [vmem:[%s1 + $0x1f0] sm:$0xf]
  %v204 = vld [vmem:[%s1 + $0x1f4] sm:$0xf]
  %v205 = vld [vmem:[%s1 + $0x1f8] sm:$0xf]
  %v206 = vld [vmem:[%s1 + $0x1fc] sm:$0xf]
  %v207 = vld [vmem:[%s1 + $0x200] sm:$0xf]
  %v208 = vld [vmem:[%s1 + $0x204] sm:$0xf]
  %v209 = vld [vmem:[%s1 + $0x208] sm:$0xf]
  %v210 = vld [vmem:[%s1 + $0x20c] sm:$0xf]
  %v211 = vld [vmem:[%s1 + $0x210] sm:$0xf]
  %v212 = vld [vmem:[%s1 + $0x214] sm:$0xf]
  %v213 = vld [vmem:[%s1 + $0x218] sm:$0xf]
  %v214 = vld [vmem:[%s1 + $0x21c] sm:$0xf]
  %v215 = vld [vmem:[%s1 + $0x220] sm:$0xf]
  %v216 = vld [vmem:[%s1 + $0x224] sm:$0xf]
  %v217 = vld [vmem:[%s1 + $0x228] sm:$0xf]
  %v218 = vld [vmem:[%s1 + $0x22c] sm:$0xf]
  %v219 = vld [vmem:[%s1 + $0x230] sm:$0xf]
  %v220 = vld [vmem:[%s1 + $0x234] sm:$0xf]
  %v221 = vld [vmem:[%s1 + $0x238] sm:$0xf]
  %v222 = vld [vmem:[%s1 + $0x23c] sm:$0xf]
  %v223 = vld [vmem:[%s1 + $0x240] sm:$0xf]
  %v224 = vld [vmem:[%s1 + $0x244] sm:$0xf]
  %v225 = vld [vmem:[%s1 + $0x248] sm:$0xf]
  %v226 = vld [vmem:[%s1 + $0x24c] sm:$0xf]
  %v227 = vld [vmem:[%s1 + $0x250] sm:$0xf]
  %v228 = vld [vmem:[%s1 + $0x254] sm:$0xf]
  %v229 = vld [vmem:[%s1 + $0x258] sm:$0xf]
  %v230 = vld [vmem:[%s1 + $0x25c] sm:$0xf]
  %v231 = vld [vmem:[%s1 + $0x260] sm:$0xf]
  %v232 = vld [vmem:[%s1 + $0x264] sm:$0xf]
  %v233 = vld [vmem:[%s1 + $0x268] sm:$0xf]
  %v234 = vld [vmem:[%s1 + $0x26c] sm:$0xf]
  %v235 = vld [vmem:[%s1 + $0x270] sm:$0xf]
  %v236 = vld [vmem:[%s1 + $0x274] sm:$0xf]
  %v237 = vld [vmem:[%s1 + $0x278] sm:$0xf]
  %v238 = vld [vmem:[%s1 + $0x27c] sm:$0xf]
  %v239 = vld [vmem:[%s1 + $0x280] sm:$0xf]
  %v240 = vld [vmem:[%s1 + $0x284] sm:$0xf]
  %v241 = vld [vmem:[%s1 + $0x288] sm:$0xf]
  %v242 = vld [vmem:[%s1 + $0x28c] sm:$0xf]
  %v243 = vld [vmem:[%s1 + $0x290] sm:$0xf]
  %v244 = vld [vmem:[%s1 + $0x294] sm:$0xf]
  %v245 = vld [vmem:[%s1 + $0x298] sm:$0xf]
  %v246 = vld [vmem:[%s1 + $0x29c] sm:$0xf]
  %v247 = vld [vmem:[%s1 + $0x2a0] sm:$0xf]
  %v248 = vld [vmem:[%s1 + $0x2a4] sm:$0xf]
  %v249 = vld [vmem:[%s1 + $0x2a8] sm:$0xf]
  %v250 = vld [vmem:[%s1 + $0x2ac] sm:$0xf]
  %v251 = vld [vmem:[%s1 + $0x2b0] sm:$0xf]
  %v252 = vld [vmem:[%s1 + $0x2b4] sm:$0xf]
  %v253 = vld [vmem:[%s1 + $0x2b8] sm:$0xf]
  %v254 = vld [vmem:[%s1 + $0x2bc] sm:$0xf]
  %v255 = vld [vmem:[%s1 + $0x2c0] sm:$0xf]
  %v256 = vld [vmem:[%s1 + $0x2c4] sm:$0xf]
  %v257 = vld [vmem:[%s1 + $0x2c8] sm:$0xf]
  %v258 = vld [vmem:[%s1 + $0x2cc] sm:$0xf]
  %v259 = vld [vmem:[%s1 + $0x2d0] sm:$0xf]
  %v260 = vld [vmem:[%s1 + $0x2d4] sm:$0xf]
  %v261 = vld [vmem:[%s1 + $0x2d8] sm:$0xf]
  %v262 = vld [vmem:[%s1 + $0x2dc] sm:$0xf]
  %v263 = vld [vmem:[%s1 + $0x2e0] sm:$0xf]
  %v264 = vld [vmem:[%s1 + $0x2e4] sm:$0xf]
  %v265 = vld [vmem:[%s1 + $0x2e8] sm:$0xf]
  %v266 = vld [vmem:[%s1 + $0x2ec] sm:$0xf]
  %v267 = vld [vmem:[%s1 + $0x2f0] sm:$0xf]
  %v268 = vld [vmem:[%s1 + $0x2f4] sm:$0xf]
  %v269 = vld [vmem:[%s1 + $0x2f8] sm:$0xf]
  %v270 = vld [vmem:[%s1 + $0x2fc] sm:$0xf]
  %v271 = vld [vmem:[%s1 + $0x300] sm:$0xf]
  %v272 = vld [vmem:[%s1 + $0x304] sm:$0xf]
  %v273 = vld [vmem:[%s1 + $0x308] sm:$0xf]
  %v274 = vld [vmem:[%s1 + $0x30c] sm:$0xf]
  %v275 = vld [vmem:[%s1 + $0x310] sm:$0xf]
  %v276 = vld [vmem:[%s1 + $0x314] sm:$0xf]
  %v277 = vld [vmem:[%s1 + $0x318] sm:$0xf]
  %v278 = vld [vmem:[%s1 + $0x31c] sm:$0xf]
  %v279 = vld [vmem:[%s1 + $0x320] sm:$0xf]
  %v280 = vld [vmem:[%s1 + $0x324] sm:$0xf]
  %v281 = vld [vmem:[%s1 + $0x328] sm:$0xf]
  %v282 = vld [vmem:[%s1 + $0x32c] sm:$0xf]
  %v283 = vld [vmem:[%s1 + $0x330] sm:$0xf]
  %v284 = vld [vmem:[%s1 + $0x334] sm:$0xf]
  %v285 = vld [vmem:[%s1 + $0x338] sm:$0xf]
  %v286 = vld [vmem:[%s1 + $0x33c] sm:$0xf]
  %v287 = vld [vmem:[%s1 + $0x340] sm:$0xf]
  %v288 = vld [vmem:[%s1 + $0x344] sm:$0xf]
  %v289 = vld [vmem:[%s1 + $0x348] sm:$0xf]
  %v290 = vld [vmem:[%s1 + $0x34c] sm:$0xf]
  %v291 = vld [vmem:[%s1 + $0x350] sm:$0xf]
  %v292 = vld [vmem:[%s1 + $0x354] sm:$0xf]
  %v293 = vld [vmem:[%s1 + $0x358] sm:$0xf]
  %v294 = vld [vmem:[%s1 + $0x35c] sm:$0xf]
  %v295 = vld [vmem:[%s1 + $0x360] sm:$0xf]
  %v296 = vld [vmem:[%s1 + $0x364] sm:$0xf]
  %v297 = vld [vmem:[%s1 + $0x368] sm:$0xf]
  %v298 = vld [vmem:[%s1 + $0x36c] sm:$0xf]
  %v299 = vld [vmem:[%s1 + $0x370] sm:$0xf]
  %v300 = vld [vmem:[%s1 + $0x374] sm:$0xf]
  %v301 = vld [vmem:[%s1 + $0x378] sm:$0xf]
  %v302 = vld [vmem:[%s1 + $0x37c] sm:$0xf]
  %v303 = vld [vmem:[%s1 + $0x380] sm:$0xf]
  %v304 = vld [vmem:[%s1 + $0x384] sm:$0xf]
  %v305 = vld [vmem:[%s1 + $0x388] sm:$0xf]
  %v306 = vld [vmem:[%s1 + $0x38c] sm:$0xf]
  %v307 = vld [vmem:[%s1 + $0x390] sm:$0xf]
  %v308 = vld [vmem:[%s1 + $0x394] sm:$0xf]
  %v309 = vld [vmem:[%s1 + $0x398] sm:$0xf]
  %v310 = vld [vmem:[%s1 + $0x39c] sm:$0xf]
  %v311 = vld [vmem:[%s1 + $0x3a0] sm:$0xf]
  %v312 = vld [vmem:[%s1 + $0x3a4] sm:$0xf]
  %v313 = vld [vmem:[%s1 + $0x3a8] sm:$0xf]
  %v314 = vld [vmem:[%s1 + $0x3ac] sm:$0xf]
  %v315 = vld [vmem:[%s1 + $0x3b0] sm:$0xf]
  %v316 = vld [vmem:[%s1 + $0x3b4] sm:$0xf]
  %v317 = vld [vmem:[%s1 + $0x3b8] sm:$0xf]
  %v318 = vld [vmem:[%s1 + $0x3bc] sm:$0xf]
  %v319 = vld [vmem:[%s1 + $0x3c0] sm:$0xf]
  %v320 = vld [vmem:[%s1 + $0x3c4] sm:$0xf]
  %v321 = vld [vmem:[%s1 + $0x3c8] sm:$0xf]
  %v322 = vld [vmem:[%s1 + $0x3cc] sm:$0xf]
  %v323 = vld [vmem:[%s1 + $0x3d0] sm:$0xf]
  %v324 = vld [vmem:[%s1 + $0x3d4] sm:$0xf]
  %v325 = vld [vmem:[%s1 + $0x3d8] sm:$0xf]
  %v326 = vld [vmem:[%s1 + $0x3dc] sm:$0xf]
  %v327 = vld [vmem:[%s1 + $0x3e0] sm:$0xf]
  %v328 = vld [vmem:[%s1 + $0x3e4] sm:$0xf]
  %v329 = vld [vmem:[%s1 + $0x3e8] sm:$0xf]
  %v330 = vld [vmem:[%s1 + $0x3ec] sm:$0xf]
  %v331 = vld [vmem:[%s1 + $0x3f0] sm:$0xf]
  %v332 = vld [vmem:[%s1 + $0x3f4] sm:$0xf]
  %v333 = vld [vmem:[%s1 + $0x3f8] sm:$0xf]
  %v334 = vld [vmem:[%s1 + $0x3fc] sm:$0xf]
  %v335 = vld [vmem:[%s1 + $0x400] sm:$0xf]
  %v336 = vld [vmem:[%s1 + $0x404] sm:$0xf]
  %v337 = vld [vmem:[%s1 + $0x408] sm:$0xf]
  %v338 = vld [vmem:[%s1 + $0x40c] sm:$0xf]
  %v339 = vld [vmem:[%s1 + $0x410] sm:$0xf]
  %v340 = vld [vmem:[%s1 + $0x414] sm:$0xf]
  %v341 = vld [vmem:[%s1 + $0x418] sm:$0xf]
  %v342 = vld [vmem:[%s1 + $0x41c] sm:$0xf]
  %v343 = vld [vmem:[%s1 + $0x420] sm:$0xf]
  %v344 = vld [vmem:[%s1 + $0x424] sm:$0xf]
  %v345 = vld [vmem:[%s1 + $0x428] sm:$0xf]
  %v346 = vld [vmem:[%s1 + $0x42c] sm:$0xf]
  %v347 = vld [vmem:[%s1 + $0x430] sm:$0xf]
  %v348 = vld [vmem:[%s1 + $0x434] sm:$0xf]
  %v349 = vld [vmem:[%s1 + $0x438] sm:$0xf]
  %v350 = vld [vmem:[%s1 + $0x43c] sm:$0xf]
  %v351 = vld [vmem:[%s1 + $0x440] sm:$0xf]
  %v352 = vld [vmem:[%s1 + $0x444] sm:$0xf]
  %v353 = vld [vmem:[%s1 + $0x448] sm:$0xf]
  %v354 = vld [vmem:[%s1 + $0x44c] sm:$0xf]
  %v355 = vld [vmem:[%s1 + $0x450] sm:$0xf]
  %v356 = vld [vmem:[%s1 + $0x454] sm:$0xf]
  %v357 = vld [vmem:[%s1 + $0x458] sm:$0xf]
  %v358 = vld [vmem:[%s1 + $0x45c] sm:$0xf]
  %v359 = vld [vmem:[%s1 + $0x460] sm:$0xf]
  %v360 = vld [vmem:[%s1 + $0x464] sm:$0xf]
  %v361 = vld [vmem:[%s1 + $0x468] sm:$0xf]
  %v362 = vld [vmem:[%s1 + $0x46c] sm:$0xf]
  %v363 = vld [vmem:[%s1 + $0x470] sm:$0xf]
  %v364 = vld [vmem:[%s1 + $0x474] sm:$0xf]
  %v365 = vld [vmem:[%s1 + $0x478] sm:$0xf]
  %v366 = vld [vmem:[%s1 + $0x47c] sm:$0xf]
  %v367 = vld [vmem:[%s1 + $0x480] sm:$0xf]
  %v368 = vld [vmem:[%s1 + $0x484] sm:$0xf]
  %v369 = vld [vmem:[%s1 + $0x488] sm:$0xf]
  %v370 = vld [vmem:[%s1 + $0x48c] sm:$0xf]
  %v371 = vld [vmem:[%s1 + $0x490] sm:$0xf]
  %v372 = vld [vmem:[%s1 + $0x494] sm:$0xf]
  %v373 = vld [vmem:[%s1 + $0x498] sm:$0xf]
  %v374 = vld [vmem:[%s1 + $0x49c] sm:$0xf]
  %v375 = vld [vmem:[%s1 + $0x4a0] sm:$0xf]
  %v376 = vld [vmem:[%s1 + $0x4a4] sm:$0xf]
  %v377 = vld [vmem:[%s1 + $0x4a8] sm:$0xf]
  %v378 = vld [vmem:[%s1 + $0x4ac] sm:$0xf]
  %v379 = vld [vmem:[%s1 + $0x4b0] sm:$0xf]
  %v380 = vld [vmem:[%s1 + $0x4b4] sm:$0xf]
  %v381 = vld [vmem:[%s1 + $0x4b8] sm:$0xf]
  %v382 = vld [vmem:[%s1 + $0x4bc] sm:$0xf]
  %v383 = vld [vmem:[%s1 + $0x4c0] sm:$0xf]
  %v384 = vld [vmem:[%s1 + $0x4c4] sm:$0xf]
  %v385 = vld [vmem:[%s1 + $0x4c8] sm:$0xf]
  %v386 = vld [vmem:[%s1 + $0x4cc] sm:$0xf]
  %v387 = vld [vmem:[%s1 + $0x4d0] sm:$0xf]
  %v388 = vld [vmem:[%s1 + $0x4d4] sm:$0xf]
  %v389 = vld [vmem:[%s1 + $0x4d8] sm:$0xf]
  %v390 = vld [vmem:[%s1 + $0x4dc] sm:$0xf]
  %v391 = vld [vmem:[%s1 + $0x4e0] sm:$0xf]
  %v392 = vld [vmem:[%s1 + $0x4e4] sm:$0xf]
  %v393 = vld [vmem:[%s1 + $0x4e8] sm:$0xf]
  %v394 = vld [vmem:[%s1 + $0x4ec] sm:$0xf]
  %v395 = vld [vmem:[%s1 + $0x4f0] sm:$0xf]
  %v396 = vld [vmem:[%s1 + $0x4f4] sm:$0xf]
  %v397 = vld [vmem:[%s1 + $0x4f8] sm:$0xf]
  %v398 = vld [vmem:[%s1 + $0x4fc] sm:$0xf]
  %v399 = vld [vmem:[%s1 + $0x500] sm:$0xf]
  %v400 = vld [vmem:[%s1 + $0x504] sm:$0xf]
  %v401 = vld [vmem:[%s1 + $0x508] sm:$0xf]
  %v402 = vld [vmem:[%s1 + $0x50c] sm:$0xf]
  %v403 = vld [vmem:[%s1 + $0x510] sm:$0xf]
  %v404 = vld [vmem:[%s1 + $0x514] sm:$0xf]
  %v405 = vld [vmem:[%s1 + $0x518] sm:$0xf]
  %v406 = vld [vmem:[%s1 + $0x51c] sm:$0xf]
  %v407 = vld [vmem:[%s1 + $0x520] sm:$0xf]
  %v408 = vld [vmem:[%s1 + $0x524] sm:$0xf]
  %v409 = vld [vmem:[%s1 + $0x528] sm:$0xf]
  %v410 = vld [vmem:[%s1 + $0x52c] sm:$0xf]
  %v411 = vld [vmem:[%s1 + $0x530] sm:$0xf]
  %v412 = vld [vmem:[%s1 + $0x534] sm:$0xf]
  %v413 = vld [vmem:[%s1 + $0x538] sm:$0xf]
  %v414 = vld [vmem:[%s1 + $0x53c] sm:$0xf]
  %v415 = vld [vmem:[%s1 + $0x540] sm:$0xf]
  %v416 = vld [vmem:[%s1 + $0x544] sm:$0xf]
  %v417 = vld [vmem:[%s1 + $0x548] sm:$0xf]
  %v418 = vld [vmem:[%s1 + $0x54c] sm:$0xf]
  %v419 = vld [vmem:[%s1 + $0x550] sm:$0xf]
  %v420 = vld [vmem:[%s1 + $0x554] sm:$0xf]
  %v421 = vld [vmem:[%s1 + $0x558] sm:$0xf]
  %v422 = vld [vmem:[%s1 + $0x55c] sm:$0xf]
  %v423 = vld [vmem:[%s1 + $0x560] sm:$0xf]
  %v424 = vld [vmem:[%s1 + $0x564] sm:$0xf]
  %v425 = vld [vmem:[%s1 + $0x568] sm:$0xf]
  %v426 = vld [vmem:[%s1 + $0x56c] sm:$0xf]
  %v427 = vld [vmem:[%s1 + $0x570] sm:$0xf]
  %v428 = vld [vmem:[%s1 + $0x574] sm:$0xf]
  %v429 = vld [vmem:[%s1 + $0x578] sm:$0xf]
  %v430 = vld [vmem:[%s1 + $0x57c] sm:$0xf]
  %v431 = vld [vmem:[%s1 + $0x580] sm:$0xf]
  %v432 = vld [vmem:[%s1 + $0x584] sm:$0xf]
  %v433 = vld [vmem:[%s1 + $0x588] sm:$0xf]
  %v434 = vld [vmem:[%s1 + $0x58c] sm:$0xf]
  %v435 = vld [vmem:[%s1 + $0x590] sm:$0xf]
  %v436 = vld [vmem:[%s1 + $0x594] sm:$0xf]
  %v437 = vld [vmem:[%s1 + $0x598] sm:$0xf]
  %v438 = vld [vmem:[%s1 + $0x59c] sm:$0xf]
  %v439 = vld [vmem:[%s1 + $0x5a0] sm:$0xf]
  %v440 = vld [vmem:[%s1 + $0x5a4] sm:$0xf]
  %v441 = vld [vmem:[%s1 + $0x5a8] sm:$0xf]
  %v442 = vld [vmem:[%s1 + $0x5ac] sm:$0xf]
  %v443 = vld [vmem:[%s1 + $0x5b0] sm:$0xf]
  %v444 = vld [vmem:[%s1 + $0x5b4] sm:$0xf]
  %v445 = vld [vmem:[%s1 + $0x5b8] sm:$0xf]
  %v446 = vld [vmem:[%s1 + $0x5bc] sm:$0xf]
  %v447 = vld [vmem:[%s1 + $0x5c0] sm:$0xf]
  %v448 = vld [vmem:[%s1 + $0x5c4] sm:$0xf]
  %v449 = vld [vmem:[%s1 + $0x5c8] sm:$0xf]
  %v450 = vld [vmem:[%s1 + $0x5cc] sm:$0xf]
  %v451 = vld [vmem:[%s1 + $0x5d0] sm:$0xf]
  %v452 = vld [vmem:[%s1 + $0x5d4] sm:$0xf]
  %v453 = vld [vmem:[%s1 + $0x5d8] sm:$0xf]
  %v454 = vld [vmem:[%s1 + $0x5dc] sm:$0xf]
  %v455 = vld [vmem:[%s1 + $0x5e0] sm:$0xf]
  %v456 = vld [vmem:[%s1 + $0x5e4] sm:$0xf]
  %v457 = vld [vmem:[%s1 + $0x5e8] sm:$0xf]
  %v458 = vld [vmem:[%s1 + $0x5ec] sm:$0xf]
  %v459 = vld [vmem:[%s1 + $0x5f0] sm:$0xf]
  %v460 = vld [vmem:[%s1 + $0x5f4] sm:$0xf]
  %v461 = vld [vmem:[%s1 + $0x5f8] sm:$0xf]
  %v462 = vld [vmem:[%s1 + $0x5fc] sm:$0xf]
  %v463 = vld [vmem:[%s1 + $0x600] sm:$0xf]
  %v464 = vld [vmem:[%s1 + $0x604] sm:$0xf]
  %v465 = vld [vmem:[%s1 + $0x608] sm:$0xf]
  %v466 = vld [vmem:[%s1 + $0x60c] sm:$0xf]
  %v467 = vld [vmem:[%s1 + $0x610] sm:$0xf]
  %v468 = vld [vmem:[%s1 + $0x614] sm:$0xf]
  %v469 = vld [vmem:[%s1 + $0x618] sm:$0xf]
  %v470 = vld [vmem:[%s1 + $0x61c] sm:$0xf]
  %v471 = vld [vmem:[%s1 + $0x620] sm:$0xf]
  %v472 = vld [vmem:[%s1 + $0x624] sm:$0xf]
  %v473 = vld [vmem:[%s1 + $0x628] sm:$0xf]
  %v474 = vld [vmem:[%s1 + $0x62c] sm:$0xf]
  %v475 = vld [vmem:[%s1 + $0x630] sm:$0xf]
  %v476 = vld [vmem:[%s1 + $0x634] sm:$0xf]
  %v477 = vld [vmem:[%s1 + $0x638] sm:$0xf]
  %v478 = vld [vmem:[%s1 + $0x63c] sm:$0xf]
  %v479 = vld [vmem:[%s1 + $0x640] sm:$0xf]
  %v480 = vld [vmem:[%s1 + $0x644] sm:$0xf]
  %v481 = vld [vmem:[%s1 + $0x648] sm:$0xf]
  %v482 = vld [vmem:[%s1 + $0x64c] sm:$0xf]
  %v483 = vld [vmem:[%s1 + $0x650] sm:$0xf]
  %v484 = vld [vmem:[%s1 + $0x654] sm:$0xf]
  %v485 = vld [vmem:[%s1 + $0x658] sm:$0xf]
  %v486 = vld [vmem:[%s1 + $0x65c] sm:$0xf]
  %v487 = vld [vmem:[%s1 + $0x660] sm:$0xf]
  %v488 = vld [vmem:[%s1 + $0x664] sm:$0xf]
  %v489 = vld [vmem:[%s1 + $0x668] sm:$0xf]
  %v490 = vld [vmem:[%s1 + $0x66c] sm:$0xf]
  %v491 = vld [vmem:[%s1 + $0x670] sm:$0xf]
  %v492 = vld [vmem:[%s1 + $0x674] sm:$0xf]
  %v493 = vld [vmem:[%s1 + $0x678] sm:$0xf]
  %v494 = vld [vmem:[%s1 + $0x67c] sm:$0xf]
  %v495 = vld [vmem:[%s1 + $0x680] sm:$0xf]
  %v496 = vld [vmem:[%s1 + $0x684] sm:$0xf]
  %v497 = vld [vmem:[%s1 + $0x688] sm:$0xf]
  %v498 = vld [vmem:[%s1 + $0x68c] sm:$0xf]
  %v499 = vld [vmem:[%s1 + $0x690] sm:$0xf]
  %v500 = vld [vmem:[%s1 + $0x694] sm:$0xf]
  %v501 = vld [vmem:[%s1 + $0x698] sm:$0xf]
  %v502 = vld [vmem:[%s1 + $0x69c] sm:$0xf]
  %v503 = vld [vmem:[%s1 + $0x6a0] sm:$0xf]
  %v504 = vld [vmem:[%s1 + $0x6a4] sm:$0xf]
  %v505 = vld [vmem:[%s1 + $0x6a8] sm:$0xf]
  %v506 = vld [vmem:[%s1 + $0x6ac] sm:$0xf]
  %v507 = vld [vmem:[%s1 + $0x6b0] sm:$0xf]
  %v508 = vld [vmem:[%s1 + $0x6b4] sm:$0xf]
  %v509 = vld [vmem:[%s1 + $0x6b8] sm:$0xf]
  %v510 = vld [vmem:[%s1 + $0x6bc] sm:$0xf]
  %v511 = vld [vmem:[%s1 + $0x6c0] sm:$0xf]
  %v512 = vld [vmem:[%s1 + $0x6c4] sm:$0xf]
  %v513 = vld [vmem:[%s1 + $0x6c8] sm:$0xf]
  %v514 = vld [vmem:[%s1 + $0x6cc] sm:$0xf]
  %v515 = vld [vmem:[%s1 + $0x6d0] sm:$0xf]
  %v516 = vld [vmem:[%s1 + $0x6d4] sm:$0xf]
  %v517 = vld [vmem:[%s1 + $0x6d8] sm:$0xf]
  %v518 = vld [vmem:[%s1 + $0x6dc] sm:$0xf]
  %v519 = vld [vmem:[%s1 + $0x6e0] sm:$0xf]
  %v520 = vld [vmem:[%s1 + $0x6e4] sm:$0xf]
  %v521 = vld [vmem:[%s1 + $0x6e8] sm:$0xf]
  %v522 = vld [vmem:[%s1 + $0x6ec] sm:$0xf]
  %v523 = vld [vmem:[%s1 + $0x6f0] sm:$0xf]
  %v524 = vld [vmem:[%s1 + $0x6f4] sm:$0xf]
  %v525 = vld [vmem:[%s1 + $0x6f8] sm:$0xf]
  %v526 = vld [vmem:[%s1 + $0x6fc] sm:$0xf]
  %v527 = vld [vmem:[%s1 + $0x700] sm:$0xf]
  %v528 = vld [vmem:[%s1 + $0x704] sm:$0xf]
  %v529 = vld [vmem:[%s1 + $0x708] sm:$0xf]
  %v530 = vld [vmem:[%s1 + $0x70c] sm:$0xf]
  %v531 = vld [vmem:[%s1 + $0x710] sm:$0xf]
  %v532 = vld [vmem:[%s1 + $0x714] sm:$0xf]
  %v533 = vld [vmem:[%s1 + $0x718] sm:$0xf]
  %v534 = vld [vmem:[%s1 + $0x71c] sm:$0xf]
  %v535 = vld [vmem:[%s1 + $0x720] sm:$0xf]
  %v536 = vld [vmem:[%s1 + $0x724] sm:$0xf]
  %v537 = vld [vmem:[%s1 + $0x728] sm:$0xf]
  %v538 = vld [vmem:[%s1 + $0x72c] sm:$0xf]
  %v539 = vld [vmem:[%s1 + $0x730] sm:$0xf]
  %v540 = vld [vmem:[%s1 + $0x734] sm:$0xf]
  %v541 = vld [vmem:[%s1 + $0x738] sm:$0xf]
  %v542 = vld [vmem:[%s1 + $0x73c] sm:$0xf]
  %v543 = vld [vmem:[%s1 + $0x740] sm:$0xf]
  %v544 = vld [vmem:[%s1 + $0x744] sm:$0xf]
  %v545 = vld [vmem:[%s1 + $0x748] sm:$0xf]
  %v546 = vld [vmem:[%s1 + $0x74c] sm:$0xf]
  %v547 = vld [vmem:[%s1 + $0x750] sm:$0xf]
  %v548 = vld [vmem:[%s1 + $0x754] sm:$0xf]
  %v549 = vld [vmem:[%s1 + $0x758] sm:$0xf]
  %v550 = vld [vmem:[%s1 + $0x75c] sm:$0xf]
  %v551 = vld [vmem:[%s1 + $0x760] sm:$0xf]
  %v552 = vld [vmem:[%s1 + $0x764] sm:$0xf]
  %v553 = vld [vmem:[%s1 + $0x768] sm:$0xf]
  %v554 = vld [vmem:[%s1 + $0x76c] sm:$0xf]
  %v555 = vld [vmem:[%s1 + $0x770] sm:$0xf]
  %v556 = vld [vmem:[%s1 + $0x774] sm:$0xf]
  %v557 = vld [vmem:[%s1 + $0x778] sm:$0xf]
  %v558 = vld [vmem:[%s1 + $0x77c] sm:$0xf]
  %v559 = vld [vmem:[%s1 + $0x780] sm:$0xf]
  %v560 = vld [vmem:[%s1 + $0x784] sm:$0xf]
  %v561 = vld [vmem:[%s1 + $0x788] sm:$0xf]
  %v562 = vld [vmem:[%s1 + $0x78c] sm:$0xf]
  %v563 = vld [vmem:[%s1 + $0x790] sm:$0xf]
  %v564 = vld [vmem:[%s1 + $0x794] sm:$0xf]
  %v565 = vld [vmem:[%s1 + $0x798] sm:$0xf]
  %v566 = vld [vmem:[%s1 + $0x79c] sm:$0xf]
  %v567 = vld [vmem:[%s1 + $0x7a0] sm:$0xf]
  %v568 = vld [vmem:[%s1 + $0x7a4] sm:$0xf]
  %v569 = vld [vmem:[%s1 + $0x7a8] sm:$0xf]
  %v570 = vld [vmem:[%s1 + $0x7ac] sm:$0xf]
  %v571 = vld [vmem:[%s1 + $0x7b0] sm:$0xf]
  %v572 = vld [vmem:[%s1 + $0x7b4] sm:$0xf]
  %v573 = vld [vmem:[%s1 + $0x7b8] sm:$0xf]
  %v574 = vld [vmem:[%s1 + $0x7bc] sm:$0xf]
  %v575 = vld [vmem:[%s1 + $0x7c0] sm:$0xf]
  %v576 = vld [vmem:[%s1 + $0x7c4] sm:$0xf]
  %v577 = vld [vmem:[%s1 + $0x7c8] sm:$0xf]
  %v578 = vld [vmem:[%s1 + $0x7cc] sm:$0xf]
  %v579 = vld [vmem:[%s1 + $0x7d0] sm:$0xf]
  %v580 = vld [vmem:[%s1 + $0x7d4] sm:$0xf]
  %v581 = vld [vmem:[%s1 + $0x7d8] sm:$0xf]
  %v582 = vld [vmem:[%s1 + $0x7dc] sm:$0xf]
  %v583 = vld [vmem:[%s1 + $0x7e0] sm:$0xf]
  %v584 = vld [vmem:[%s1 + $0x7e4] sm:$0xf]
  %v585 = vld [vmem:[%s1 + $0x7e8] sm:$0xf]
  %v586 = vld [vmem:[%s1 + $0x7ec] sm:$0xf]
  %v587 = vld [vmem:[%s1 + $0x7f0] sm:$0xf]
  %v588 = vld [vmem:[%s1 + $0x7f4] sm:$0xf]
  %v589 = vld [vmem:[%s1 + $0x7f8] sm:$0xf]
  %v590 = vld [vmem:[%s1 + $0x7fc] sm:$0xf]
  %v591 = vld [vmem:[%s2] sm:$0x1]
  %v593 = vlaneseq
  %v594 = vshrl.u32 %v593, 7
  %v595 = vsub.s32 0, %v594
  %v596 = vrot.slane %v591, %v595
  %v662 = vunpack.c.l.b16 %v15
  %v663 = vunpack.c.h.b16 %v15
  %v664 = vunpack.c.l.b16 %v16
  %v665 = vunpack.c.h.b16 %v16
  %v666 = vunpack.c.l.b16 %v17
  %v667 = vunpack.c.h.b16 %v17
  %v668 = vunpack.c.l.b16 %v18
  %v669 = vunpack.c.h.b16 %v18
  %v670 = vunpack.c.l.b16 %v19
  %v671 = vunpack.c.h.b16 %v19
  %v672 = vunpack.c.l.b16 %v20
  %v673 = vunpack.c.h.b16 %v20
  %v674 = vunpack.c.l.b16 %v21
  %v675 = vunpack.c.h.b16 %v21
  %v676 = vunpack.c.l.b16 %v22
  %v677 = vunpack.c.h.b16 %v22
  %v678 = vunpack.c.l.b16 %v23
  %v679 = vunpack.c.h.b16 %v23
  %v680 = vunpack.c.l.b16 %v24
  %v681 = vunpack.c.h.b16 %v24
  %v682 = vunpack.c.l.b16 %v25
  %v683 = vunpack.c.h.b16 %v25
  %v684 = vunpack.c.l.b16 %v26
  %v685 = vunpack.c.h.b16 %v26
  %v686 = vunpack.c.l.b16 %v27
  %v687 = vunpack.c.h.b16 %v27
  %v688 = vunpack.c.l.b16 %v28
  %v689 = vunpack.c.h.b16 %v28
  %v690 = vunpack.c.l.b16 %v29
  %v691 = vunpack.c.h.b16 %v29
  %v692 = vunpack.c.l.b16 %v30
  %v693 = vunpack.c.h.b16 %v30
  %v694 = vunpack.c.l.b16 %v31
  %v695 = vunpack.c.h.b16 %v31
  %v696 = vunpack.c.l.b16 %v32
  %v697 = vunpack.c.h.b16 %v32
  %v698 = vunpack.c.l.b16 %v33
  %v699 = vunpack.c.h.b16 %v33
  %v700 = vunpack.c.l.b16 %v34
  %v701 = vunpack.c.h.b16 %v34
  %v702 = vunpack.c.l.b16 %v35
  %v703 = vunpack.c.h.b16 %v35
  %v704 = vunpack.c.l.b16 %v36
  %v705 = vunpack.c.h.b16 %v36
  %v706 = vunpack.c.l.b16 %v37
  %v707 = vunpack.c.h.b16 %v37
  %v708 = vunpack.c.l.b16 %v38
  %v709 = vunpack.c.h.b16 %v38
  %v710 = vunpack.c.l.b16 %v39
  %v711 = vunpack.c.h.b16 %v39
  %v712 = vunpack.c.l.b16 %v40
  %v713 = vunpack.c.h.b16 %v40
  %v714 = vunpack.c.l.b16 %v41
  %v715 = vunpack.c.h.b16 %v41
  %v716 = vunpack.c.l.b16 %v42
  %v717 = vunpack.c.h.b16 %v42
  %v718 = vunpack.c.l.b16 %v43
  %v719 = vunpack.c.h.b16 %v43
  %v720 = vunpack.c.l.b16 %v44
  %v721 = vunpack.c.h.b16 %v44
  %v722 = vunpack.c.l.b16 %v45
  %v723 = vunpack.c.h.b16 %v45
  %v724 = vunpack.c.l.b16 %v46
  %v725 = vunpack.c.h.b16 %v46
  %v726 = vunpack.c.l.b16 %v47
  %v727 = vunpack.c.h.b16 %v47
  %v728 = vunpack.c.l.b16 %v48
  %v729 = vunpack.c.h.b16 %v48
  %v730 = vunpack.c.l.b16 %v49
  %v731 = vunpack.c.h.b16 %v49
  %v732 = vunpack.c.l.b16 %v50
  %v733 = vunpack.c.h.b16 %v50
  %v734 = vunpack.c.l.b16 %v51
  %v735 = vunpack.c.h.b16 %v51
  %v736 = vunpack.c.l.b16 %v52
  %v737 = vunpack.c.h.b16 %v52
  %v738 = vunpack.c.l.b16 %v53
  %v739 = vunpack.c.h.b16 %v53
  %v740 = vunpack.c.l.b16 %v54
  %v741 = vunpack.c.h.b16 %v54
  %v742 = vunpack.c.l.b16 %v55
  %v743 = vunpack.c.h.b16 %v55
  %v744 = vunpack.c.l.b16 %v56
  %v745 = vunpack.c.h.b16 %v56
  %v746 = vunpack.c.l.b16 %v57
  %v747 = vunpack.c.h.b16 %v57
  %v748 = vunpack.c.l.b16 %v58
  %v749 = vunpack.c.h.b16 %v58
  %v750 = vunpack.c.l.b16 %v59
  %v751 = vunpack.c.h.b16 %v59
  %v752 = vunpack.c.l.b16 %v60
  %v753 = vunpack.c.h.b16 %v60
  %v754 = vunpack.c.l.b16 %v61
  %v755 = vunpack.c.h.b16 %v61
  %v756 = vunpack.c.l.b16 %v62
  %v757 = vunpack.c.h.b16 %v62
  %v758 = vunpack.c.l.b16 %v63
  %v759 = vunpack.c.h.b16 %v63
  %v760 = vunpack.c.l.b16 %v64
  %v761 = vunpack.c.h.b16 %v64
  %v762 = vunpack.c.l.b16 %v65
  %v763 = vunpack.c.h.b16 %v65
  %v764 = vunpack.c.l.b16 %v66
  %v765 = vunpack.c.h.b16 %v66
  %v766 = vunpack.c.l.b16 %v67
  %v767 = vunpack.c.h.b16 %v67
  %v768 = vunpack.c.l.b16 %v68
  %v769 = vunpack.c.h.b16 %v68
  %v770 = vunpack.c.l.b16 %v69
  %v771 = vunpack.c.h.b16 %v69
  %v772 = vunpack.c.l.b16 %v70
  %v773 = vunpack.c.h.b16 %v70
  %v774 = vunpack.c.l.b16 %v71
  %v775 = vunpack.c.h.b16 %v71
  %v776 = vunpack.c.l.b16 %v72
  %v777 = vunpack.c.h.b16 %v72
  %v778 = vunpack.c.l.b16 %v73
  %v779 = vunpack.c.h.b16 %v73
  %v780 = vunpack.c.l.b16 %v74
  %v781 = vunpack.c.h.b16 %v74
  %v782 = vunpack.c.l.b16 %v75
  %v783 = vunpack.c.h.b16 %v75
  %v784 = vunpack.c.l.b16 %v76
  %v785 = vunpack.c.h.b16 %v76
  %v786 = vunpack.c.l.b16 %v77
  %v787 = vunpack.c.h.b16 %v77
  %v788 = vunpack.c.l.b16 %v78
  %v789 = vunpack.c.h.b16 %v78
  %v790 = vpack.c.b16 %v694, %v662
  %v791 = vpack.c.b16 %v695, %v663
  %v792 = vpack.c.b16 %v696, %v664
  %v793 = vpack.c.b16 %v697, %v665
  %v794 = vpack.c.b16 %v698, %v666
  %v795 = vpack.c.b16 %v699, %v667
  %v796 = vpack.c.b16 %v700, %v668
  %v797 = vpack.c.b16 %v701, %v669
  %v798 = vpack.c.b16 %v702, %v670
  %v799 = vpack.c.b16 %v703, %v671
  %v800 = vpack.c.b16 %v704, %v672
  %v801 = vpack.c.b16 %v705, %v673
  %v802 = vpack.c.b16 %v706, %v674
  %v803 = vpack.c.b16 %v707, %v675
  %v804 = vpack.c.b16 %v708, %v676
  %v805 = vpack.c.b16 %v709, %v677
  %v806 = vpack.c.b16 %v710, %v678
  %v807 = vpack.c.b16 %v711, %v679
  %v808 = vpack.c.b16 %v712, %v680
  %v809 = vpack.c.b16 %v713, %v681
  %v810 = vpack.c.b16 %v714, %v682
  %v811 = vpack.c.b16 %v715, %v683
  %v812 = vpack.c.b16 %v716, %v684
  %v813 = vpack.c.b16 %v717, %v685
  %v814 = vpack.c.b16 %v718, %v686
  %v815 = vpack.c.b16 %v719, %v687
  %v816 = vpack.c.b16 %v720, %v688
  %v817 = vpack.c.b16 %v721, %v689
  %v818 = vpack.c.b16 %v722, %v690
  %v819 = vpack.c.b16 %v723, %v691
  %v820 = vpack.c.b16 %v724, %v692
  %v821 = vpack.c.b16 %v725, %v693
  %v822 = vpack.c.b16 %v758, %v726
  %v823 = vpack.c.b16 %v759, %v727
  %v824 = vpack.c.b16 %v760, %v728
  %v825 = vpack.c.b16 %v761, %v729
  %v826 = vpack.c.b16 %v762, %v730
  %v827 = vpack.c.b16 %v763, %v731
  %v828 = vpack.c.b16 %v764, %v732
  %v829 = vpack.c.b16 %v765, %v733
  %v830 = vpack.c.b16 %v766, %v734
  %v831 = vpack.c.b16 %v767, %v735
  %v832 = vpack.c.b16 %v768, %v736
  %v833 = vpack.c.b16 %v769, %v737
  %v834 = vpack.c.b16 %v770, %v738
  %v835 = vpack.c.b16 %v771, %v739
  %v836 = vpack.c.b16 %v772, %v740
  %v837 = vpack.c.b16 %v773, %v741
  %v838 = vpack.c.b16 %v774, %v742
  %v839 = vpack.c.b16 %v775, %v743
  %v840 = vpack.c.b16 %v776, %v744
  %v841 = vpack.c.b16 %v777, %v745
  %v842 = vpack.c.b16 %v778, %v746
  %v843 = vpack.c.b16 %v779, %v747
  %v844 = vpack.c.b16 %v780, %v748
  %v845 = vpack.c.b16 %v781, %v749
  %v846 = vpack.c.b16 %v782, %v750
  %v847 = vpack.c.b16 %v783, %v751
  %v848 = vpack.c.b16 %v784, %v752
  %v849 = vpack.c.b16 %v785, %v753
  %v850 = vpack.c.b16 %v786, %v754
  %v851 = vpack.c.b16 %v787, %v755
  %v852 = vpack.c.b16 %v788, %v756
  %v853 = vpack.c.b16 %v789, %v757
  %v1430 = vunpack.c.l.b16 %v79
  %v1431 = vunpack.c.l.b16 %v80
  %v1432 = vunpack.c.l.b16 %v81
  %v1433 = vunpack.c.l.b16 %v82
  %v1434 = vunpack.c.l.b16 %v83
  %v1435 = vunpack.c.l.b16 %v84
  %v1436 = vunpack.c.l.b16 %v85
  %v1437 = vunpack.c.l.b16 %v86
  %v1438 = vunpack.c.l.b16 %v87
  %v1439 = vunpack.c.l.b16 %v88
  %v1440 = vunpack.c.l.b16 %v89
  %v1441 = vunpack.c.l.b16 %v90
  %v1442 = vunpack.c.l.b16 %v91
  %v1443 = vunpack.c.l.b16 %v92
  %v1444 = vunpack.c.l.b16 %v93
  %v1445 = vunpack.c.l.b16 %v94
  %v1446 = vunpack.c.l.b16 %v95
  %v1447 = vunpack.c.l.b16 %v96
  %v1448 = vunpack.c.l.b16 %v97
  %v1449 = vunpack.c.l.b16 %v98
  %v1450 = vunpack.c.l.b16 %v99
  %v1451 = vunpack.c.l.b16 %v100
  %v1452 = vunpack.c.l.b16 %v101
  %v1453 = vunpack.c.l.b16 %v102
  %v1454 = vunpack.c.l.b16 %v103
  %v1455 = vunpack.c.l.b16 %v104
  %v1456 = vunpack.c.l.b16 %v105
  %v1457 = vunpack.c.l.b16 %v106
  %v1458 = vunpack.c.l.b16 %v107
  %v1459 = vunpack.c.l.b16 %v108
  %v1460 = vunpack.c.l.b16 %v109
  %v1461 = vunpack.c.l.b16 %v110
  %v1462 = vunpack.c.l.b16 %v111
  %v1463 = vunpack.c.l.b16 %v112
  %v1464 = vunpack.c.l.b16 %v113
  %v1465 = vunpack.c.l.b16 %v114
  %v1466 = vunpack.c.l.b16 %v115
  %v1467 = vunpack.c.l.b16 %v116
  %v1468 = vunpack.c.l.b16 %v117
  %v1469 = vunpack.c.l.b16 %v118
  %v1470 = vunpack.c.l.b16 %v119
  %v1471 = vunpack.c.l.b16 %v120
  %v1472 = vunpack.c.l.b16 %v121
  %v1473 = vunpack.c.l.b16 %v122
  %v1474 = vunpack.c.l.b16 %v123
  %v1475 = vunpack.c.l.b16 %v124
  %v1476 = vunpack.c.l.b16 %v125
  %v1477 = vunpack.c.l.b16 %v126
  %v1478 = vunpack.c.l.b16 %v127
  %v1479 = vunpack.c.l.b16 %v128
  %v1480 = vunpack.c.l.b16 %v129
  %v1481 = vunpack.c.l.b16 %v130
  %v1482 = vunpack.c.l.b16 %v131
  %v1483 = vunpack.c.l.b16 %v132
  %v1484 = vunpack.c.l.b16 %v133
  %v1485 = vunpack.c.l.b16 %v134
  %v1486 = vunpack.c.l.b16 %v135
  %v1487 = vunpack.c.l.b16 %v136
  %v1488 = vunpack.c.l.b16 %v137
  %v1489 = vunpack.c.l.b16 %v138
  %v1490 = vunpack.c.l.b16 %v139
  %v1491 = vunpack.c.l.b16 %v140
  %v1492 = vunpack.c.l.b16 %v141
  %v1493 = vunpack.c.l.b16 %v142
  %v1494 = vunpack.c.l.b16 %v143
  %v1495 = vunpack.c.l.b16 %v144
  %v1496 = vunpack.c.l.b16 %v145
  %v1497 = vunpack.c.l.b16 %v146
  %v1498 = vunpack.c.l.b16 %v147
  %v1499 = vunpack.c.l.b16 %v148
  %v1500 = vunpack.c.l.b16 %v149
  %v1501 = vunpack.c.l.b16 %v150
  %v1502 = vunpack.c.l.b16 %v151
  %v1503 = vunpack.c.l.b16 %v152
  %v1504 = vunpack.c.l.b16 %v153
  %v1505 = vunpack.c.l.b16 %v154
  %v1506 = vunpack.c.l.b16 %v155
  %v1507 = vunpack.c.l.b16 %v156
  %v1508 = vunpack.c.l.b16 %v157
  %v1509 = vunpack.c.l.b16 %v158
  %v1510 = vunpack.c.l.b16 %v159
  %v1511 = vunpack.c.l.b16 %v160
  %v1512 = vunpack.c.l.b16 %v161
  %v1513 = vunpack.c.l.b16 %v162
  %v1514 = vunpack.c.l.b16 %v163
  %v1515 = vunpack.c.l.b16 %v164
  %v1516 = vunpack.c.l.b16 %v165
  %v1517 = vunpack.c.l.b16 %v166
  %v1518 = vunpack.c.l.b16 %v167
  %v1519 = vunpack.c.l.b16 %v168
  %v1520 = vunpack.c.l.b16 %v169
  %v1521 = vunpack.c.l.b16 %v170
  %v1522 = vunpack.c.l.b16 %v171
  %v1523 = vunpack.c.l.b16 %v172
  %v1524 = vunpack.c.l.b16 %v173
  %v1525 = vunpack.c.l.b16 %v174
  %v1526 = vunpack.c.l.b16 %v175
  %v1527 = vunpack.c.l.b16 %v176
  %v1528 = vunpack.c.l.b16 %v177
  %v1529 = vunpack.c.l.b16 %v178
  %v1530 = vunpack.c.l.b16 %v179
  %v1531 = vunpack.c.l.b16 %v180
  %v1532 = vunpack.c.l.b16 %v181
  %v1533 = vunpack.c.l.b16 %v182
  %v1534 = vunpack.c.l.b16 %v183
  %v1535 = vunpack.c.l.b16 %v184
  %v1536 = vunpack.c.l.b16 %v185
  %v1537 = vunpack.c.l.b16 %v186
  %v1538 = vunpack.c.l.b16 %v187
  %v1539 = vunpack.c.l.b16 %v188
  %v1540 = vunpack.c.l.b16 %v189
  %v1541 = vunpack.c.l.b16 %v190
  %v1542 = vunpack.c.l.b16 %v191
  %v1543 = vunpack.c.l.b16 %v192
  %v1544 = vunpack.c.l.b16 %v193
  %v1545 = vunpack.c.l.b16 %v194
  %v1546 = vunpack.c.l.b16 %v195
  %v1547 = vunpack.c.l.b16 %v196
  %v1548 = vunpack.c.l.b16 %v197
  %v1549 = vunpack.c.l.b16 %v198
  %v1550 = vunpack.c.l.b16 %v199
  %v1551 = vunpack.c.l.b16 %v200
  %v1552 = vunpack.c.l.b16 %v201
  %v1553 = vunpack.c.l.b16 %v202
  %v1554 = vunpack.c.l.b16 %v203
  %v1555 = vunpack.c.l.b16 %v204
  %v1556 = vunpack.c.l.b16 %v205
  %v1557 = vunpack.c.l.b16 %v206
  %v1558 = vunpack.c.l.b16 %v207
  %v1559 = vunpack.c.l.b16 %v208
  %v1560 = vunpack.c.l.b16 %v209
  %v1561 = vunpack.c.l.b16 %v210
  %v1562 = vunpack.c.l.b16 %v211
  %v1563 = vunpack.c.l.b16 %v212
  %v1564 = vunpack.c.l.b16 %v213
  %v1565 = vunpack.c.l.b16 %v214
  %v1566 = vunpack.c.l.b16 %v215
  %v1567 = vunpack.c.l.b16 %v216
  %v1568 = vunpack.c.l.b16 %v217
  %v1569 = vunpack.c.l.b16 %v218
  %v1570 = vunpack.c.l.b16 %v219
  %v1571 = vunpack.c.l.b16 %v220
  %v1572 = vunpack.c.l.b16 %v221
  %v1573 = vunpack.c.l.b16 %v222
  %v1574 = vunpack.c.l.b16 %v223
  %v1575 = vunpack.c.l.b16 %v224
  %v1576 = vunpack.c.l.b16 %v225
  %v1577 = vunpack.c.l.b16 %v226
  %v1578 = vunpack.c.l.b16 %v227
  %v1579 = vunpack.c.l.b16 %v228
  %v1580 = vunpack.c.l.b16 %v229
  %v1581 = vunpack.c.l.b16 %v230
  %v1582 = vunpack.c.l.b16 %v231
  %v1583 = vunpack.c.l.b16 %v232
  %v1584 = vunpack.c.l.b16 %v233
  %v1585 = vunpack.c.l.b16 %v234
  %v1586 = vunpack.c.l.b16 %v235
  %v1587 = vunpack.c.l.b16 %v236
  %v1588 = vunpack.c.l.b16 %v237
  %v1589 = vunpack.c.l.b16 %v238
  %v1590 = vunpack.c.l.b16 %v239
  %v1591 = vunpack.c.l.b16 %v240
  %v1592 = vunpack.c.l.b16 %v241
  %v1593 = vunpack.c.l.b16 %v242
  %v1594 = vunpack.c.l.b16 %v243
  %v1595 = vunpack.c.l.b16 %v244
  %v1596 = vunpack.c.l.b16 %v245
  %v1597 = vunpack.c.l.b16 %v246
  %v1598 = vunpack.c.l.b16 %v247
  %v1599 = vunpack.c.l.b16 %v248
  %v1600 = vunpack.c.l.b16 %v249
  %v1601 = vunpack.c.l.b16 %v250
  %v1602 = vunpack.c.l.b16 %v251
  %v1603 = vunpack.c.l.b16 %v252
  %v1604 = vunpack.c.l.b16 %v253
  %v1605 = vunpack.c.l.b16 %v254
  %v1606 = vunpack.c.l.b16 %v255
  %v1607 = vunpack.c.l.b16 %v256
  %v1608 = vunpack.c.l.b16 %v257
  %v1609 = vunpack.c.l.b16 %v258
  %v1610 = vunpack.c.l.b16 %v259
  %v1611 = vunpack.c.l.b16 %v260
  %v1612 = vunpack.c.l.b16 %v261
  %v1613 = vunpack.c.l.b16 %v262
  %v1614 = vunpack.c.l.b16 %v263
  %v1615 = vunpack.c.l.b16 %v264
  %v1616 = vunpack.c.l.b16 %v265
  %v1617 = vunpack.c.l.b16 %v266
  %v1618 = vunpack.c.l.b16 %v267
  %v1619 = vunpack.c.l.b16 %v268
  %v1620 = vunpack.c.l.b16 %v269
  %v1621 = vunpack.c.l.b16 %v270
  %v1622 = vunpack.c.l.b16 %v271
  %v1623 = vunpack.c.l.b16 %v272
  %v1624 = vunpack.c.l.b16 %v273
  %v1625 = vunpack.c.l.b16 %v274
  %v1626 = vunpack.c.l.b16 %v275
  %v1627 = vunpack.c.l.b16 %v276
  %v1628 = vunpack.c.l.b16 %v277
  %v1629 = vunpack.c.l.b16 %v278
  %v1630 = vunpack.c.l.b16 %v279
  %v1631 = vunpack.c.l.b16 %v280
  %v1632 = vunpack.c.l.b16 %v281
  %v1633 = vunpack.c.l.b16 %v282
  %v1634 = vunpack.c.l.b16 %v283
  %v1635 = vunpack.c.l.b16 %v284
  %v1636 = vunpack.c.l.b16 %v285
  %v1637 = vunpack.c.l.b16 %v286
  %v1638 = vunpack.c.l.b16 %v287
  %v1639 = vunpack.c.l.b16 %v288
  %v1640 = vunpack.c.l.b16 %v289
  %v1641 = vunpack.c.l.b16 %v290
  %v1642 = vunpack.c.l.b16 %v291
  %v1643 = vunpack.c.l.b16 %v292
  %v1644 = vunpack.c.l.b16 %v293
  %v1645 = vunpack.c.l.b16 %v294
  %v1646 = vunpack.c.l.b16 %v295
  %v1647 = vunpack.c.l.b16 %v296
  %v1648 = vunpack.c.l.b16 %v297
  %v1649 = vunpack.c.l.b16 %v298
  %v1650 = vunpack.c.l.b16 %v299
  %v1651 = vunpack.c.l.b16 %v300
  %v1652 = vunpack.c.l.b16 %v301
  %v1653 = vunpack.c.l.b16 %v302
  %v1654 = vunpack.c.l.b16 %v303
  %v1655 = vunpack.c.l.b16 %v304
  %v1656 = vunpack.c.l.b16 %v305
  %v1657 = vunpack.c.l.b16 %v306
  %v1658 = vunpack.c.l.b16 %v307
  %v1659 = vunpack.c.l.b16 %v308
  %v1660 = vunpack.c.l.b16 %v309
  %v1661 = vunpack.c.l.b16 %v310
  %v1662 = vunpack.c.l.b16 %v311
  %v1663 = vunpack.c.l.b16 %v312
  %v1664 = vunpack.c.l.b16 %v313
  %v1665 = vunpack.c.l.b16 %v314
  %v1666 = vunpack.c.l.b16 %v315
  %v1667 = vunpack.c.l.b16 %v316
  %v1668 = vunpack.c.l.b16 %v317
  %v1669 = vunpack.c.l.b16 %v318
  %v1670 = vunpack.c.l.b16 %v319
  %v1671 = vunpack.c.l.b16 %v320
  %v1672 = vunpack.c.l.b16 %v321
  %v1673 = vunpack.c.l.b16 %v322
  %v1674 = vunpack.c.l.b16 %v323
  %v1675 = vunpack.c.l.b16 %v324
  %v1676 = vunpack.c.l.b16 %v325
  %v1677 = vunpack.c.l.b16 %v326
  %v1678 = vunpack.c.l.b16 %v327
  %v1679 = vunpack.c.l.b16 %v328
  %v1680 = vunpack.c.l.b16 %v329
  %v1681 = vunpack.c.l.b16 %v330
  %v1682 = vunpack.c.l.b16 %v331
  %v1683 = vunpack.c.l.b16 %v332
  %v1684 = vunpack.c.l.b16 %v333
  %v1685 = vunpack.c.l.b16 %v334
  %v1686 = vunpack.c.l.b16 %v335
  %v1687 = vunpack.c.l.b16 %v336
  %v1688 = vunpack.c.l.b16 %v337
  %v1689 = vunpack.c.l.b16 %v338
  %v1690 = vunpack.c.l.b16 %v339
  %v1691 = vunpack.c.l.b16 %v340
  %v1692 = vunpack.c.l.b16 %v341
  %v1693 = vunpack.c.l.b16 %v342
  %v1694 = vunpack.c.l.b16 %v343
  %v1695 = vunpack.c.l.b16 %v344
  %v1696 = vunpack.c.l.b16 %v345
  %v1697 = vunpack.c.l.b16 %v346
  %v1698 = vunpack.c.l.b16 %v347
  %v1699 = vunpack.c.l.b16 %v348
  %v1700 = vunpack.c.l.b16 %v349
  %v1701 = vunpack.c.l.b16 %v350
  %v1702 = vunpack.c.l.b16 %v351
  %v1703 = vunpack.c.l.b16 %v352
  %v1704 = vunpack.c.l.b16 %v353
  %v1705 = vunpack.c.l.b16 %v354
  %v1706 = vunpack.c.l.b16 %v355
  %v1707 = vunpack.c.l.b16 %v356
  %v1708 = vunpack.c.l.b16 %v357
  %v1709 = vunpack.c.l.b16 %v358
  %v1710 = vunpack.c.l.b16 %v359
  %v1711 = vunpack.c.l.b16 %v360
  %v1712 = vunpack.c.l.b16 %v361
  %v1713 = vunpack.c.l.b16 %v362
  %v1714 = vunpack.c.l.b16 %v363
  %v1715 = vunpack.c.l.b16 %v364
  %v1716 = vunpack.c.l.b16 %v365
  %v1717 = vunpack.c.l.b16 %v366
  %v1718 = vunpack.c.l.b16 %v367
  %v1719 = vunpack.c.l.b16 %v368
  %v1720 = vunpack.c.l.b16 %v369
  %v1721 = vunpack.c.l.b16 %v370
  %v1722 = vunpack.c.l.b16 %v371
  %v1723 = vunpack.c.l.b16 %v372
  %v1724 = vunpack.c.l.b16 %v373
  %v1725 = vunpack.c.l.b16 %v374
  %v1726 = vunpack.c.l.b16 %v375
  %v1727 = vunpack.c.l.b16 %v376
  %v1728 = vunpack.c.l.b16 %v377
  %v1729 = vunpack.c.l.b16 %v378
  %v1730 = vunpack.c.l.b16 %v379
  %v1731 = vunpack.c.l.b16 %v380
  %v1732 = vunpack.c.l.b16 %v381
  %v1733 = vunpack.c.l.b16 %v382
  %v1734 = vunpack.c.l.b16 %v383
  %v1735 = vunpack.c.l.b16 %v384
  %v1736 = vunpack.c.l.b16 %v385
  %v1737 = vunpack.c.l.b16 %v386
  %v1738 = vunpack.c.l.b16 %v387
  %v1739 = vunpack.c.l.b16 %v388
  %v1740 = vunpack.c.l.b16 %v389
  %v1741 = vunpack.c.l.b16 %v390
  %v1742 = vunpack.c.l.b16 %v391
  %v1743 = vunpack.c.l.b16 %v392
  %v1744 = vunpack.c.l.b16 %v393
  %v1745 = vunpack.c.l.b16 %v394
  %v1746 = vunpack.c.l.b16 %v395
  %v1747 = vunpack.c.l.b16 %v396
  %v1748 = vunpack.c.l.b16 %v397
  %v1749 = vunpack.c.l.b16 %v398
  %v1750 = vunpack.c.l.b16 %v399
  %v1751 = vunpack.c.l.b16 %v400
  %v1752 = vunpack.c.l.b16 %v401
  %v1753 = vunpack.c.l.b16 %v402
  %v1754 = vunpack.c.l.b16 %v403
  %v1755 = vunpack.c.l.b16 %v404
  %v1756 = vunpack.c.l.b16 %v405
  %v1757 = vunpack.c.l.b16 %v406
  %v1758 = vunpack.c.l.b16 %v407
  %v1759 = vunpack.c.l.b16 %v408
  %v1760 = vunpack.c.l.b16 %v409
  %v1761 = vunpack.c.l.b16 %v410
  %v1762 = vunpack.c.l.b16 %v411
  %v1763 = vunpack.c.l.b16 %v412
  %v1764 = vunpack.c.l.b16 %v413
  %v1765 = vunpack.c.l.b16 %v414
  %v1766 = vunpack.c.l.b16 %v415
  %v1767 = vunpack.c.l.b16 %v416
  %v1768 = vunpack.c.l.b16 %v417
  %v1769 = vunpack.c.l.b16 %v418
  %v1770 = vunpack.c.l.b16 %v419
  %v1771 = vunpack.c.l.b16 %v420
  %v1772 = vunpack.c.l.b16 %v421
  %v1773 = vunpack.c.l.b16 %v422
  %v1774 = vunpack.c.l.b16 %v423
  %v1775 = vunpack.c.l.b16 %v424
  %v1776 = vunpack.c.l.b16 %v425
  %v1777 = vunpack.c.l.b16 %v426
  %v1778 = vunpack.c.l.b16 %v427
  %v1779 = vunpack.c.l.b16 %v428
  %v1780 = vunpack.c.l.b16 %v429
  %v1781 = vunpack.c.l.b16 %v430
  %v1782 = vunpack.c.l.b16 %v431
  %v1783 = vunpack.c.l.b16 %v432
  %v1784 = vunpack.c.l.b16 %v433
  %v1785 = vunpack.c.l.b16 %v434
  %v1786 = vunpack.c.l.b16 %v435
  %v1787 = vunpack.c.l.b16 %v436
  %v1788 = vunpack.c.l.b16 %v437
  %v1789 = vunpack.c.l.b16 %v438
  %v1790 = vunpack.c.l.b16 %v439
  %v1791 = vunpack.c.l.b16 %v440
  %v1792 = vunpack.c.l.b16 %v441
  %v1793 = vunpack.c.l.b16 %v442
  %v1794 = vunpack.c.l.b16 %v443
  %v1795 = vunpack.c.l.b16 %v444
  %v1796 = vunpack.c.l.b16 %v445
  %v1797 = vunpack.c.l.b16 %v446
  %v1798 = vunpack.c.l.b16 %v447
  %v1799 = vunpack.c.l.b16 %v448
  %v1800 = vunpack.c.l.b16 %v449
  %v1801 = vunpack.c.l.b16 %v450
  %v1802 = vunpack.c.l.b16 %v451
  %v1803 = vunpack.c.l.b16 %v452
  %v1804 = vunpack.c.l.b16 %v453
  %v1805 = vunpack.c.l.b16 %v454
  %v1806 = vunpack.c.l.b16 %v455
  %v1807 = vunpack.c.l.b16 %v456
  %v1808 = vunpack.c.l.b16 %v457
  %v1809 = vunpack.c.l.b16 %v458
  %v1810 = vunpack.c.l.b16 %v459
  %v1811 = vunpack.c.l.b16 %v460
  %v1812 = vunpack.c.l.b16 %v461
  %v1813 = vunpack.c.l.b16 %v462
  %v1814 = vunpack.c.l.b16 %v463
  %v1815 = vunpack.c.l.b16 %v464
  %v1816 = vunpack.c.l.b16 %v465
  %v1817 = vunpack.c.l.b16 %v466
  %v1818 = vunpack.c.l.b16 %v467
  %v1819 = vunpack.c.l.b16 %v468
  %v1820 = vunpack.c.l.b16 %v469
  %v1821 = vunpack.c.l.b16 %v470
  %v1822 = vunpack.c.l.b16 %v471
  %v1823 = vunpack.c.l.b16 %v472
  %v1824 = vunpack.c.l.b16 %v473
  %v1825 = vunpack.c.l.b16 %v474
  %v1826 = vunpack.c.l.b16 %v475
  %v1827 = vunpack.c.l.b16 %v476
  %v1828 = vunpack.c.l.b16 %v477
  %v1829 = vunpack.c.l.b16 %v478
  %v1830 = vunpack.c.l.b16 %v479
  %v1831 = vunpack.c.l.b16 %v480
  %v1832 = vunpack.c.l.b16 %v481
  %v1833 = vunpack.c.l.b16 %v482
  %v1834 = vunpack.c.l.b16 %v483
  %v1835 = vunpack.c.l.b16 %v484
  %v1836 = vunpack.c.l.b16 %v485
  %v1837 = vunpack.c.l.b16 %v486
  %v1838 = vunpack.c.l.b16 %v487
  %v1839 = vunpack.c.l.b16 %v488
  %v1840 = vunpack.c.l.b16 %v489
  %v1841 = vunpack.c.l.b16 %v490
  %v1842 = vunpack.c.l.b16 %v491
  %v1843 = vunpack.c.l.b16 %v492
  %v1844 = vunpack.c.l.b16 %v493
  %v1845 = vunpack.c.l.b16 %v494
  %v1846 = vunpack.c.l.b16 %v495
  %v1847 = vunpack.c.l.b16 %v496
  %v1848 = vunpack.c.l.b16 %v497
  %v1849 = vunpack.c.l.b16 %v498
  %v1850 = vunpack.c.l.b16 %v499
  %v1851 = vunpack.c.l.b16 %v500
  %v1852 = vunpack.c.l.b16 %v501
  %v1853 = vunpack.c.l.b16 %v502
  %v1854 = vunpack.c.l.b16 %v503
  %v1855 = vunpack.c.l.b16 %v504
  %v1856 = vunpack.c.l.b16 %v505
  %v1857 = vunpack.c.l.b16 %v506
  %v1858 = vunpack.c.l.b16 %v507
  %v1859 = vunpack.c.l.b16 %v508
  %v1860 = vunpack.c.l.b16 %v509
  %v1861 = vunpack.c.l.b16 %v510
  %v1862 = vunpack.c.l.b16 %v511
  %v1863 = vunpack.c.l.b16 %v512
  %v1864 = vunpack.c.l.b16 %v513
  %v1865 = vunpack.c.l.b16 %v514
  %v1866 = vunpack.c.l.b16 %v515
  %v1867 = vunpack.c.l.b16 %v516
  %v1868 = vunpack.c.l.b16 %v517
  %v1869 = vunpack.c.l.b16 %v518
  %v1870 = vunpack.c.l.b16 %v519
  %v1871 = vunpack.c.l.b16 %v520
  %v1872 = vunpack.c.l.b16 %v521
  %v1873 = vunpack.c.l.b16 %v522
  %v1874 = vunpack.c.l.b16 %v523
  %v1875 = vunpack.c.l.b16 %v524
  %v1876 = vunpack.c.l.b16 %v525
  %v1877 = vunpack.c.l.b16 %v526
  %v1878 = vunpack.c.l.b16 %v527
  %v1879 = vunpack.c.l.b16 %v528
  %v1880 = vunpack.c.l.b16 %v529
  %v1881 = vunpack.c.l.b16 %v530
  %v1882 = vunpack.c.l.b16 %v531
  %v1883 = vunpack.c.l.b16 %v532
  %v1884 = vunpack.c.l.b16 %v533
  %v1885 = vunpack.c.l.b16 %v534
  %v1886 = vunpack.c.l.b16 %v535
  %v1887 = vunpack.c.l.b16 %v536
  %v1888 = vunpack.c.l.b16 %v537
  %v1889 = vunpack.c.l.b16 %v538
  %v1890 = vunpack.c.l.b16 %v539
  %v1891 = vunpack.c.l.b16 %v540
  %v1892 = vunpack.c.l.b16 %v541
  %v1893 = vunpack.c.l.b16 %v542
  %v1894 = vunpack.c.l.b16 %v543
  %v1895 = vunpack.c.l.b16 %v544
  %v1896 = vunpack.c.l.b16 %v545
  %v1897 = vunpack.c.l.b16 %v546
  %v1898 = vunpack.c.l.b16 %v547
  %v1899 = vunpack.c.l.b16 %v548
  %v1900 = vunpack.c.l.b16 %v549
  %v1901 = vunpack.c.l.b16 %v550
  %v1902 = vunpack.c.l.b16 %v551
  %v1903 = vunpack.c.l.b16 %v552
  %v1904 = vunpack.c.l.b16 %v553
  %v1905 = vunpack.c.l.b16 %v554
  %v1906 = vunpack.c.l.b16 %v555
  %v1907 = vunpack.c.l.b16 %v556
  %v1908 = vunpack.c.l.b16 %v557
  %v1909 = vunpack.c.l.b16 %v558
  %v1910 = vunpack.c.l.b16 %v559
  %v1911 = vunpack.c.l.b16 %v560
  %v1912 = vunpack.c.l.b16 %v561
  %v1913 = vunpack.c.l.b16 %v562
  %v1914 = vunpack.c.l.b16 %v563
  %v1915 = vunpack.c.l.b16 %v564
  %v1916 = vunpack.c.l.b16 %v565
  %v1917 = vunpack.c.l.b16 %v566
  %v1918 = vunpack.c.l.b16 %v567
  %v1919 = vunpack.c.l.b16 %v568
  %v1920 = vunpack.c.l.b16 %v569
  %v1921 = vunpack.c.l.b16 %v570
  %v1922 = vunpack.c.l.b16 %v571
  %v1923 = vunpack.c.l.b16 %v572
  %v1924 = vunpack.c.l.b16 %v573
  %v1925 = vunpack.c.l.b16 %v574
  %v1926 = vunpack.c.l.b16 %v575
  %v1927 = vunpack.c.l.b16 %v576
  %v1928 = vunpack.c.l.b16 %v577
  %v1929 = vunpack.c.l.b16 %v578
  %v1930 = vunpack.c.l.b16 %v579
  %v1931 = vunpack.c.l.b16 %v580
  %v1932 = vunpack.c.l.b16 %v581
  %v1933 = vunpack.c.l.b16 %v582
  %v1934 = vunpack.c.l.b16 %v583
  %v1935 = vunpack.c.l.b16 %v584
  %v1936 = vunpack.c.l.b16 %v585
  %v1937 = vunpack.c.l.b16 %v586
  %v1938 = vunpack.c.l.b16 %v587
  %v1939 = vunpack.c.l.b16 %v588
  %v1940 = vunpack.c.l.b16 %v589
  %v1941 = vunpack.c.l.b16 %v590
  %v1942 = vpack.c.b16 %v1431, %v1430
  %v1943 = vpack.c.b16 %v1433, %v1432
  %v1944 = vpack.c.b16 %v1435, %v1434
  %v1945 = vpack.c.b16 %v1437, %v1436
  %v1946 = vpack.c.b16 %v1439, %v1438
  %v1947 = vpack.c.b16 %v1441, %v1440
  %v1948 = vpack.c.b16 %v1443, %v1442
  %v1949 = vpack.c.b16 %v1445, %v1444
  %v1950 = vpack.c.b16 %v1447, %v1446
  %v1951 = vpack.c.b16 %v1449, %v1448
  %v1952 = vpack.c.b16 %v1451, %v1450
  %v1953 = vpack.c.b16 %v1453, %v1452
  %v1954 = vpack.c.b16 %v1455, %v1454
  %v1955 = vpack.c.b16 %v1457, %v1456
  %v1956 = vpack.c.b16 %v1459, %v1458
  %v1957 = vpack.c.b16 %v1461, %v1460
  %v1958 = vpack.c.b16 %v1463, %v1462
  %v1959 = vpack.c.b16 %v1465, %v1464
  %v1960 = vpack.c.b16 %v1467, %v1466
  %v1961 = vpack.c.b16 %v1469, %v1468
  %v1962 = vpack.c.b16 %v1471, %v1470
  %v1963 = vpack.c.b16 %v1473, %v1472
  %v1964 = vpack.c.b16 %v1475, %v1474
  %v1965 = vpack.c.b16 %v1477, %v1476
  %v1966 = vpack.c.b16 %v1479, %v1478
  %v1967 = vpack.c.b16 %v1481, %v1480
  %v1968 = vpack.c.b16 %v1483, %v1482
  %v1969 = vpack.c.b16 %v1485, %v1484
  %v1970 = vpack.c.b16 %v1487, %v1486
  %v1971 = vpack.c.b16 %v1489, %v1488
  %v1972 = vpack.c.b16 %v1491, %v1490
  %v1973 = vpack.c.b16 %v1493, %v1492
  %v1974 = vpack.c.b16 %v1495, %v1494
  %v1975 = vpack.c.b16 %v1497, %v1496
  %v1976 = vpack.c.b16 %v1499, %v1498
  %v1977 = vpack.c.b16 %v1501, %v1500
  %v1978 = vpack.c.b16 %v1503, %v1502
  %v1979 = vpack.c.b16 %v1505, %v1504
  %v1980 = vpack.c.b16 %v1507, %v1506
  %v1981 = vpack.c.b16 %v1509, %v1508
  %v1982 = vpack.c.b16 %v1511, %v1510
  %v1983 = vpack.c.b16 %v1513, %v1512
  %v1984 = vpack.c.b16 %v1515, %v1514
  %v1985 = vpack.c.b16 %v1517, %v1516
  %v1986 = vpack.c.b16 %v1519, %v1518
  %v1987 = vpack.c.b16 %v1521, %v1520
  %v1988 = vpack.c.b16 %v1523, %v1522
  %v1989 = vpack.c.b16 %v1525, %v1524
  %v1990 = vpack.c.b16 %v1527, %v1526
  %v1991 = vpack.c.b16 %v1529, %v1528
  %v1992 = vpack.c.b16 %v1531, %v1530
  %v1993 = vpack.c.b16 %v1533, %v1532
  %v1994 = vpack.c.b16 %v1535, %v1534
  %v1995 = vpack.c.b16 %v1537, %v1536
  %v1996 = vpack.c.b16 %v1539, %v1538
  %v1997 = vpack.c.b16 %v1541, %v1540
  %v1998 = vpack.c.b16 %v1543, %v1542
  %v1999 = vpack.c.b16 %v1545, %v1544
  %v2000 = vpack.c.b16 %v1547, %v1546
  %v2001 = vpack.c.b16 %v1549, %v1548
  %v2002 = vpack.c.b16 %v1551, %v1550
  %v2003 = vpack.c.b16 %v1553, %v1552
  %v2004 = vpack.c.b16 %v1555, %v1554
  %v2005 = vpack.c.b16 %v1557, %v1556
  %v2006 = vpack.c.b16 %v1559, %v1558
  %v2007 = vpack.c.b16 %v1561, %v1560
  %v2008 = vpack.c.b16 %v1563, %v1562
  %v2009 = vpack.c.b16 %v1565, %v1564
  %v2010 = vpack.c.b16 %v1567, %v1566
  %v2011 = vpack.c.b16 %v1569, %v1568
  %v2012 = vpack.c.b16 %v1571, %v1570
  %v2013 = vpack.c.b16 %v1573, %v1572
  %v2014 = vpack.c.b16 %v1575, %v1574
  %v2015 = vpack.c.b16 %v1577, %v1576
  %v2016 = vpack.c.b16 %v1579, %v1578
  %v2017 = vpack.c.b16 %v1581, %v1580
  %v2018 = vpack.c.b16 %v1583, %v1582
  %v2019 = vpack.c.b16 %v1585, %v1584
  %v2020 = vpack.c.b16 %v1587, %v1586
  %v2021 = vpack.c.b16 %v1589, %v1588
  %v2022 = vpack.c.b16 %v1591, %v1590
  %v2023 = vpack.c.b16 %v1593, %v1592
  %v2024 = vpack.c.b16 %v1595, %v1594
  %v2025 = vpack.c.b16 %v1597, %v1596
  %v2026 = vpack.c.b16 %v1599, %v1598
  %v2027 = vpack.c.b16 %v1601, %v1600
  %v2028 = vpack.c.b16 %v1603, %v1602
  %v2029 = vpack.c.b16 %v1605, %v1604
  %v2030 = vpack.c.b16 %v1607, %v1606
  %v2031 = vpack.c.b16 %v1609, %v1608
  %v2032 = vpack.c.b16 %v1611, %v1610
  %v2033 = vpack.c.b16 %v1613, %v1612
  %v2034 = vpack.c.b16 %v1615, %v1614
  %v2035 = vpack.c.b16 %v1617, %v1616
  %v2036 = vpack.c.b16 %v1619, %v1618
  %v2037 = vpack.c.b16 %v1621, %v1620
  %v2038 = vpack.c.b16 %v1623, %v1622
  %v2039 = vpack.c.b16 %v1625, %v1624
  %v2040 = vpack.c.b16 %v1627, %v1626
  %v2041 = vpack.c.b16 %v1629, %v1628
  %v2042 = vpack.c.b16 %v1631, %v1630
  %v2043 = vpack.c.b16 %v1633, %v1632
  %v2044 = vpack.c.b16 %v1635, %v1634
  %v2045 = vpack.c.b16 %v1637, %v1636
  %v2046 = vpack.c.b16 %v1639, %v1638
  %v2047 = vpack.c.b16 %v1641, %v1640
  %v2048 = vpack.c.b16 %v1643, %v1642
  %v2049 = vpack.c.b16 %v1645, %v1644
  %v2050 = vpack.c.b16 %v1647, %v1646
  %v2051 = vpack.c.b16 %v1649, %v1648
  %v2052 = vpack.c.b16 %v1651, %v1650
  %v2053 = vpack.c.b16 %v1653, %v1652
  %v2054 = vpack.c.b16 %v1655, %v1654
  %v2055 = vpack.c.b16 %v1657, %v1656
  %v2056 = vpack.c.b16 %v1659, %v1658
  %v2057 = vpack.c.b16 %v1661, %v1660
  %v2058 = vpack.c.b16 %v1663, %v1662
  %v2059 = vpack.c.b16 %v1665, %v1664
  %v2060 = vpack.c.b16 %v1667, %v1666
  %v2061 = vpack.c.b16 %v1669, %v1668
  %v2062 = vpack.c.b16 %v1671, %v1670
  %v2063 = vpack.c.b16 %v1673, %v1672
  %v2064 = vpack.c.b16 %v1675, %v1674
  %v2065 = vpack.c.b16 %v1677, %v1676
  %v2066 = vpack.c.b16 %v1679, %v1678
  %v2067 = vpack.c.b16 %v1681, %v1680
  %v2068 = vpack.c.b16 %v1683, %v1682
  %v2069 = vpack.c.b16 %v1685, %v1684
  %v2070 = vpack.c.b16 %v1687, %v1686
  %v2071 = vpack.c.b16 %v1689, %v1688
  %v2072 = vpack.c.b16 %v1691, %v1690
  %v2073 = vpack.c.b16 %v1693, %v1692
  %v2074 = vpack.c.b16 %v1695, %v1694
  %v2075 = vpack.c.b16 %v1697, %v1696
  %v2076 = vpack.c.b16 %v1699, %v1698
  %v2077 = vpack.c.b16 %v1701, %v1700
  %v2078 = vpack.c.b16 %v1703, %v1702
  %v2079 = vpack.c.b16 %v1705, %v1704
  %v2080 = vpack.c.b16 %v1707, %v1706
  %v2081 = vpack.c.b16 %v1709, %v1708
  %v2082 = vpack.c.b16 %v1711, %v1710
  %v2083 = vpack.c.b16 %v1713, %v1712
  %v2084 = vpack.c.b16 %v1715, %v1714
  %v2085 = vpack.c.b16 %v1717, %v1716
  %v2086 = vpack.c.b16 %v1719, %v1718
  %v2087 = vpack.c.b16 %v1721, %v1720
  %v2088 = vpack.c.b16 %v1723, %v1722
  %v2089 = vpack.c.b16 %v1725, %v1724
  %v2090 = vpack.c.b16 %v1727, %v1726
  %v2091 = vpack.c.b16 %v1729, %v1728
  %v2092 = vpack.c.b16 %v1731, %v1730
  %v2093 = vpack.c.b16 %v1733, %v1732
  %v2094 = vpack.c.b16 %v1735, %v1734
  %v2095 = vpack.c.b16 %v1737, %v1736
  %v2096 = vpack.c.b16 %v1739, %v1738
  %v2097 = vpack.c.b16 %v1741, %v1740
  %v2098 = vpack.c.b16 %v1743, %v1742
  %v2099 = vpack.c.b16 %v1745, %v1744
  %v2100 = vpack.c.b16 %v1747, %v1746
  %v2101 = vpack.c.b16 %v1749, %v1748
  %v2102 = vpack.c.b16 %v1751, %v1750
  %v2103 = vpack.c.b16 %v1753, %v1752
  %v2104 = vpack.c.b16 %v1755, %v1754
  %v2105 = vpack.c.b16 %v1757, %v1756
  %v2106 = vpack.c.b16 %v1759, %v1758
  %v2107 = vpack.c.b16 %v1761, %v1760
  %v2108 = vpack.c.b16 %v1763, %v1762
  %v2109 = vpack.c.b16 %v1765, %v1764
  %v2110 = vpack.c.b16 %v1767, %v1766
  %v2111 = vpack.c.b16 %v1769, %v1768
  %v2112 = vpack.c.b16 %v1771, %v1770
  %v2113 = vpack.c.b16 %v1773, %v1772
  %v2114 = vpack.c.b16 %v1775, %v1774
  %v2115 = vpack.c.b16 %v1777, %v1776
  %v2116 = vpack.c.b16 %v1779, %v1778
  %v2117 = vpack.c.b16 %v1781, %v1780
  %v2118 = vpack.c.b16 %v1783, %v1782
  %v2119 = vpack.c.b16 %v1785, %v1784
  %v2120 = vpack.c.b16 %v1787, %v1786
  %v2121 = vpack.c.b16 %v1789, %v1788
  %v2122 = vpack.c.b16 %v1791, %v1790
  %v2123 = vpack.c.b16 %v1793, %v1792
  %v2124 = vpack.c.b16 %v1795, %v1794
  %v2125 = vpack.c.b16 %v1797, %v1796
  %v2126 = vpack.c.b16 %v1799, %v1798
  %v2127 = vpack.c.b16 %v1801, %v1800
  %v2128 = vpack.c.b16 %v1803, %v1802
  %v2129 = vpack.c.b16 %v1805, %v1804
  %v2130 = vpack.c.b16 %v1807, %v1806
  %v2131 = vpack.c.b16 %v1809, %v1808
  %v2132 = vpack.c.b16 %v1811, %v1810
  %v2133 = vpack.c.b16 %v1813, %v1812
  %v2134 = vpack.c.b16 %v1815, %v1814
  %v2135 = vpack.c.b16 %v1817, %v1816
  %v2136 = vpack.c.b16 %v1819, %v1818
  %v2137 = vpack.c.b16 %v1821, %v1820
  %v2138 = vpack.c.b16 %v1823, %v1822
  %v2139 = vpack.c.b16 %v1825, %v1824
  %v2140 = vpack.c.b16 %v1827, %v1826
  %v2141 = vpack.c.b16 %v1829, %v1828
  %v2142 = vpack.c.b16 %v1831, %v1830
  %v2143 = vpack.c.b16 %v1833, %v1832
  %v2144 = vpack.c.b16 %v1835, %v1834
  %v2145 = vpack.c.b16 %v1837, %v1836
  %v2146 = vpack.c.b16 %v1839, %v1838
  %v2147 = vpack.c.b16 %v1841, %v1840
  %v2148 = vpack.c.b16 %v1843, %v1842
  %v2149 = vpack.c.b16 %v1845, %v1844
  %v2150 = vpack.c.b16 %v1847, %v1846
  %v2151 = vpack.c.b16 %v1849, %v1848
  %v2152 = vpack.c.b16 %v1851, %v1850
  %v2153 = vpack.c.b16 %v1853, %v1852
  %v2154 = vpack.c.b16 %v1855, %v1854
  %v2155 = vpack.c.b16 %v1857, %v1856
  %v2156 = vpack.c.b16 %v1859, %v1858
  %v2157 = vpack.c.b16 %v1861, %v1860
  %v2158 = vpack.c.b16 %v1863, %v1862
  %v2159 = vpack.c.b16 %v1865, %v1864
  %v2160 = vpack.c.b16 %v1867, %v1866
  %v2161 = vpack.c.b16 %v1869, %v1868
  %v2162 = vpack.c.b16 %v1871, %v1870
  %v2163 = vpack.c.b16 %v1873, %v1872
  %v2164 = vpack.c.b16 %v1875, %v1874
  %v2165 = vpack.c.b16 %v1877, %v1876
  %v2166 = vpack.c.b16 %v1879, %v1878
  %v2167 = vpack.c.b16 %v1881, %v1880
  %v2168 = vpack.c.b16 %v1883, %v1882
  %v2169 = vpack.c.b16 %v1885, %v1884
  %v2170 = vpack.c.b16 %v1887, %v1886
  %v2171 = vpack.c.b16 %v1889, %v1888
  %v2172 = vpack.c.b16 %v1891, %v1890
  %v2173 = vpack.c.b16 %v1893, %v1892
  %v2174 = vpack.c.b16 %v1895, %v1894
  %v2175 = vpack.c.b16 %v1897, %v1896
  %v2176 = vpack.c.b16 %v1899, %v1898
  %v2177 = vpack.c.b16 %v1901, %v1900
  %v2178 = vpack.c.b16 %v1903, %v1902
  %v2179 = vpack.c.b16 %v1905, %v1904
  %v2180 = vpack.c.b16 %v1907, %v1906
  %v2181 = vpack.c.b16 %v1909, %v1908
  %v2182 = vpack.c.b16 %v1911, %v1910
  %v2183 = vpack.c.b16 %v1913, %v1912
  %v2184 = vpack.c.b16 %v1915, %v1914
  %v2185 = vpack.c.b16 %v1917, %v1916
  %v2186 = vpack.c.b16 %v1919, %v1918
  %v2187 = vpack.c.b16 %v1921, %v1920
  %v2188 = vpack.c.b16 %v1923, %v1922
  %v2189 = vpack.c.b16 %v1925, %v1924
  %v2190 = vpack.c.b16 %v1927, %v1926
  %v2191 = vpack.c.b16 %v1929, %v1928
  %v2192 = vpack.c.b16 %v1931, %v1930
  %v2193 = vpack.c.b16 %v1933, %v1932
  %v2194 = vpack.c.b16 %v1935, %v1934
  %v2195 = vpack.c.b16 %v1937, %v1936
  %v2196 = vpack.c.b16 %v1939, %v1938
  %v2197 = vpack.c.b16 %v1941, %v1940
  %2454 = vmatprep.subr.bf16.mxu0 0
  %2455 = vmatpush1.bf16.msra.mxu0 %v1942
  %2456 = vmatprep.subr.bf16.mxu0 0
  %2457 = vmatpush1.bf16.msra.mxu0 %v1943
  %2458 = vmatprep.subr.bf16.mxu0 0
  %2459 = vmatpush1.bf16.msra.mxu0 %v1944
  %2460 = vmatprep.subr.bf16.mxu0 0
  %2461 = vmatpush1.bf16.msra.mxu0 %v1945
  %2462 = vmatprep.subr.bf16.mxu0 0
  %2463 = vmatpush1.bf16.msra.mxu0 %v1946
  %2464 = vmatprep.subr.bf16.mxu0 0
  %2465 = vmatpush1.bf16.msra.mxu0 %v1947
  %2466 = vmatprep.subr.bf16.mxu0 0
  %2467 = vmatpush1.bf16.msra.mxu0 %v1948
  %2468 = vmatprep.subr.bf16.mxu0 0
  %2469 = vmatpush1.bf16.msra.mxu0 %v1949
  %2470 = vmatprep.subr.bf16.mxu0 0
  %2471 = vmatpush1.bf16.msra.mxu0 %v1950
  %2472 = vmatprep.subr.bf16.mxu0 0
  %2473 = vmatpush1.bf16.msra.mxu0 %v1951
  %2474 = vmatprep.subr.bf16.mxu0 0
  %2475 = vmatpush1.bf16.msra.mxu0 %v1952
  %2476 = vmatprep.subr.bf16.mxu0 0
  %2477 = vmatpush1.bf16.msra.mxu0 %v1953
  %2478 = vmatprep.subr.bf16.mxu0 0
  %2479 = vmatpush1.bf16.msra.mxu0 %v1954
  %2480 = vmatprep.subr.bf16.mxu0 0
  %2481 = vmatpush1.bf16.msra.mxu0 %v1955
  %2482 = vmatprep.subr.bf16.mxu0 0
  %2483 = vmatpush1.bf16.msra.mxu0 %v1956
  %2484 = vmatprep.subr.bf16.mxu0 0
  %2485 = vmatpush1.bf16.msra.mxu0 %v1957
  %2486 = vmatprep.mubr.bf16.mxu0 %v791
  %2487 = vmatmul.mubr.bf16.gmra.mrb[0].mxu0 %v790
  %v2488 = vpop.f32.mrb[0].mxu0
  %v2489 = vadd.f32 %v596, %v2488
  %v2490 = vpop.f32.mrb[0].mxu0
  %v2491 = vpop.f32.mrb[0].mxu0
  %v2492 = vadd.f32 %v596, %v2491
  %v2493 = vpop.f32.mrb[0].mxu0
  %2494 = vmatprep.mubr.bf16.mxu0 %v823
  %2495 = vmatmul.mubr.bf16.gmra.mrb[0].mxu0 %v822
  %v2496 = vpop.f32.mrb[0].mxu0
  %v2497 = vadd.f32 %v596, %v2496
  %v2498 = vpop.f32.mrb[0].mxu0
  %v2499 = vpop.f32.mrb[0].mxu0
  %v2500 = vadd.f32 %v596, %v2499
  %v2501 = vpop.f32.mrb[0].mxu0
  %2502 = vdwg.mxu0
  %2503 = vmatprep.subr.bf16.mxu0 0
  %2504 = vmatpush1.bf16.msra.mxu0 %v1958
  %2505 = vmatprep.subr.bf16.mxu0 0
  %2506 = vmatpush1.bf16.msra.mxu0 %v1959
  %2507 = vmatprep.subr.bf16.mxu0 0
  %2508 = vmatpush1.bf16.msra.mxu0 %v1960
  %2509 = vmatprep.subr.bf16.mxu0 0
  %2510 = vmatpush1.bf16.msra.mxu0 %v1961
  %2511 = vmatprep.subr.bf16.mxu0 0
  %2512 = vmatpush1.bf16.msra.mxu0 %v1962
  %2513 = vmatprep.subr.bf16.mxu0 0
  %2514 = vmatpush1.bf16.msra.mxu0 %v1963
  %2515 = vmatprep.subr.bf16.mxu0 0
  %2516 = vmatpush1.bf16.msra.mxu0 %v1964
  %2517 = vmatprep.subr.bf16.mxu0 0
  %2518 = vmatpush1.bf16.msra.mxu0 %v1965
  %2519 = vmatprep.subr.bf16.mxu0 0
  %2520 = vmatpush1.bf16.msra.mxu0 %v1966
  %2521 = vmatprep.subr.bf16.mxu0 0
  %2522 = vmatpush1.bf16.msra.mxu0 %v1967
  %2523 = vmatprep.subr.bf16.mxu0 0
  %2524 = vmatpush1.bf16.msra.mxu0 %v1968
  %2525 = vmatprep.subr.bf16.mxu0 0
  %2526 = vmatpush1.bf16.msra.mxu0 %v1969
  %2527 = vmatprep.subr.bf16.mxu0 0
  %2528 = vmatpush1.bf16.msra.mxu0 %v1970
  %2529 = vmatprep.subr.bf16.mxu0 0
  %2530 = vmatpush1.bf16.msra.mxu0 %v1971
  %2531 = vmatprep.subr.bf16.mxu0 0
  %2532 = vmatpush1.bf16.msra.mxu0 %v1972
  %2533 = vmatprep.subr.bf16.mxu0 0
  %2534 = vmatpush1.bf16.msra.mxu0 %v1973
  %2535 = vmatprep.mubr.bf16.mxu0 %v793
  %2536 = vmatmul.mubr.bf16.gmra.mrb[0].mxu0 %v792
  %v2537 = vpop.f32.mrb[0].mxu0
  %v2538 = vadd.f32 %v2489, %v2537
  %v2539 = vpop.f32.mrb[0].mxu0
  %v2540 = vpop.f32.mrb[0].mxu0
  %v2541 = vadd.f32 %v2492, %v2540
  %v2542 = vpop.f32.mrb[0].mxu0
  %2543 = vmatprep.mubr.bf16.mxu0 %v825
  %2544 = vmatmul.mubr.bf16.gmra.mrb[0].mxu0 %v824
  %v2545 = vpop.f32.mrb[0].mxu0
  %v2546 = vadd.f32 %v2497, %v2545
  %v2547 = vpop.f32.mrb[0].mxu0
  %v2548 = vpop.f32.mrb[0].mxu0
  %v2549 = vadd.f32 %v2500, %v2548
  %v2550 = vpop.f32.mrb[0].mxu0
  %2551 = vdwg.mxu0
  %2552 = vmatprep.subr.bf16.mxu0 0
  %2553 = vmatpush1.bf16.msra.mxu0 %v1974
  %2554 = vmatprep.subr.bf16.mxu0 0
  %2555 = vmatpush1.bf16.msra.mxu0 %v1975
  %2556 = vmatprep.subr.bf16.mxu0 0
  %2557 = vmatpush1.bf16.msra.mxu0 %v1976
  %2558 = vmatprep.subr.bf16.mxu0 0
  %2559 = vmatpush1.bf16.msra.mxu0 %v1977
  %2560 = vmatprep.subr.bf16.mxu0 0
  %2561 = vmatpush1.bf16.msra.mxu0 %v1978
  %2562 = vmatprep.subr.bf16.mxu0 0
  %2563 = vmatpush1.bf16.msra.mxu0 %v1979
  %2564 = vmatprep.subr.bf16.mxu0 0
  %2565 = vmatpush1.bf16.msra.mxu0 %v1980
  %2566 = vmatprep.subr.bf16.mxu0 0
  %2567 = vmatpush1.bf16.msra.mxu0 %v1981
  %2568 = vmatprep.subr.bf16.mxu0 0
  %2569 = vmatpush1.bf16.msra.mxu0 %v1982
  %2570 = vmatprep.subr.bf16.mxu0 0
  %2571 = vmatpush1.bf16.msra.mxu0 %v1983
  %2572 = vmatprep.subr.bf16.mxu0 0
  %2573 = vmatpush1.bf16.msra.mxu0 %v1984
  %2574 = vmatprep.subr.bf16.mxu0 0
  %2575 = vmatpush1.bf16.msra.mxu0 %v1985
  %2576 = vmatprep.subr.bf16.mxu0 0
  %2577 = vmatpush1.bf16.msra.mxu0 %v1986
  %2578 = vmatprep.subr.bf16.mxu0 0
  %2579 = vmatpush1.bf16.msra.mxu0 %v1987
  %2580 = vmatprep.subr.bf16.mxu0 0
  %2581 = vmatpush1.bf16.msra.mxu0 %v1988
  %2582 = vmatprep.subr.bf16.mxu0 0
  %2583 = vmatpush1.bf16.msra.mxu0 %v1989
  %2584 = vmatprep.mubr.bf16.mxu0 %v795
  %2585 = vmatmul.mubr.bf16.gmra.mrb[0].mxu0 %v794
  %v2586 = vpop.f32.mrb[0].mxu0
  %v2587 = vadd.f32 %v2538, %v2586
  %v2588 = vpop.f32.mrb[0].mxu0
  %v2589 = vpop.f32.mrb[0].mxu0
  %v2590 = vadd.f32 %v2541, %v2589
  %v2591 = vpop.f32.mrb[0].mxu0
  %2592 = vmatprep.mubr.bf16.mxu0 %v827
  %2593 = vmatmul.mubr.bf16.gmra.mrb[0].mxu0 %v826
  %v2594 = vpop.f32.mrb[0].mxu0
  %v2595 = vadd.f32 %v2546, %v2594
  %v2596 = vpop.f32.mrb[0].mxu0
  %v2597 = vpop.f32.mrb[0].mxu0
  %v2598 = vadd.f32 %v2549, %v2597
  %v2599 = vpop.f32.mrb[0].mxu0
  %2600 = vdwg.mxu0
  %2601 = vmatprep.subr.bf16.mxu0 0
  %2602 = vmatpush1.bf16.msra.mxu0 %v1990
  %2603 = vmatprep.subr.bf16.mxu0 0
  %2604 = vmatpush1.bf16.msra.mxu0 %v1991
  %2605 = vmatprep.subr.bf16.mxu0 0
  %2606 = vmatpush1.bf16.msra.mxu0 %v1992
  %2607 = vmatprep.subr.bf16.mxu0 0
  %2608 = vmatpush1.bf16.msra.mxu0 %v1993
  %2609 = vmatprep.subr.bf16.mxu0 0
  %2610 = vmatpush1.bf16.msra.mxu0 %v1994
  %2611 = vmatprep.subr.bf16.mxu0 0
  %2612 = vmatpush1.bf16.msra.mxu0 %v1995
  %2613 = vmatprep.subr.bf16.mxu0 0
  %2614 = vmatpush1.bf16.msra.mxu0 %v1996
  %2615 = vmatprep.subr.bf16.mxu0 0
  %2616 = vmatpush1.bf16.msra.mxu0 %v1997
  %2617 = vmatprep.subr.bf16.mxu0 0
  %2618 = vmatpush1.bf16.msra.mxu0 %v1998
  %2619 = vmatprep.subr.bf16.mxu0 0
  %2620 = vmatpush1.bf16.msra.mxu0 %v1999
  %2621 = vmatprep.subr.bf16.mxu0 0
  %2622 = vmatpush1.bf16.msra.mxu0 %v2000
  %2623 = vmatprep.subr.bf16.mxu0 0
  %2624 = vmatpush1.bf16.msra.mxu0 %v2001
  %2625 = vmatprep.subr.bf16.mxu0 0
  %2626 = vmatpush1.bf16.msra.mxu0 %v2002
  %2627 = vmatprep.subr.bf16.mxu0 0
  %2628 = vmatpush1.bf16.msra.mxu0 %v2003
  %2629 = vmatprep.subr.bf16.mxu0 0
  %2630 = vmatpush1.bf16.msra.mxu0 %v2004
  %2631 = vmatprep.subr.bf16.mxu0 0
  %2632 = vmatpush1.bf16.msra.mxu0 %v2005
  %2633 = vmatprep.mubr.bf16.mxu0 %v797
  %2634 = vmatmul.mubr.bf16.gmra.mrb[0].mxu0 %v796
  %v2635 = vpop.f32.mrb[0].mxu0
  %v2636 = vadd.f32 %v2587, %v2635
  %v2637 = vpop.f32.mrb[0].mxu0
  %v2638 = vpop.f32.mrb[0].mxu0
  %v2639 = vadd.f32 %v2590, %v2638
  %v2640 = vpop.f32.mrb[0].mxu0
  %2641 = vmatprep.mubr.bf16.mxu0 %v829
  %2642 = vmatmul.mubr.bf16.gmra.mrb[0].mxu0 %v828
  %v2643 = vpop.f32.mrb[0].mxu0
  %v2644 = vadd.f32 %v2595, %v2643
  %v2645 = vpop.f32.mrb[0].mxu0
  %v2646 = vpop.f32.mrb[0].mxu0
  %v2647 = vadd.f32 %v2598, %v2646
  %v2648 = vpop.f32.mrb[0].mxu0
  %2649 = vdwg.mxu0
  %2650 = vmatprep.subr.bf16.mxu0 0
  %2651 = vmatpush1.bf16.msra.mxu0 %v2006
  %2652 = vmatprep.subr.bf16.mxu0 0
  %2653 = vmatpush1.bf16.msra.mxu0 %v2007
  %2654 = vmatprep.subr.bf16.mxu0 0
  %2655 = vmatpush1.bf16.msra.mxu0 %v2008
  %2656 = vmatprep.subr.bf16.mxu0 0
  %2657 = vmatpush1.bf16.msra.mxu0 %v2009
  %2658 = vmatprep.subr.bf16.mxu0 0
  %2659 = vmatpush1.bf16.msra.mxu0 %v2010
  %2660 = vmatprep.subr.bf16.mxu0 0
  %2661 = vmatpush1.bf16.msra.mxu0 %v2011
  %2662 = vmatprep.subr.bf16.mxu0 0
  %2663 = vmatpush1.bf16.msra.mxu0 %v2012
  %2664 = vmatprep.subr.bf16.mxu0 0
  %2665 = vmatpush1.bf16.msra.mxu0 %v2013
  %2666 = vmatprep.subr.bf16.mxu0 0
  %2667 = vmatpush1.bf16.msra.mxu0 %v2014
  %2668 = vmatprep.subr.bf16.mxu0 0
  %2669 = vmatpush1.bf16.msra.mxu0 %v2015
  %2670 = vmatprep.subr.bf16.mxu0 0
  %2671 = vmatpush1.bf16.msra.mxu0 %v2016
  %2672 = vmatprep.subr.bf16.mxu0 0
  %2673 = vmatpush1.bf16.msra.mxu0 %v2017
  %2674 = vmatprep.subr.bf16.mxu0 0
  %2675 = vmatpush1.bf16.msra.mxu0 %v2018
  %2676 = vmatprep.subr.bf16.mxu0 0
  %2677 = vmatpush1.bf16.msra.mxu0 %v2019
  %2678 = vmatprep.subr.bf16.mxu0 0
  %2679 = vmatpush1.bf16.msra.mxu0 %v2020
  %2680 = vmatprep.subr.bf16.mxu0 0
  %2681 = vmatpush1.bf16.msra.mxu0 %v2021
  %2682 = vmatprep.mubr.bf16.mxu0 %v799
  %2683 = vmatmul.mubr.bf16.gmra.mrb[0].mxu0 %v798
  %v2684 = vpop.f32.mrb[0].mxu0
  %v2685 = vadd.f32 %v2636, %v2684
  %v2686 = vpop.f32.mrb[0].mxu0
  %v2687 = vpop.f32.mrb[0].mxu0
  %v2688 = vadd.f32 %v2639, %v2687
  %v2689 = vpop.f32.mrb[0].mxu0
  %2690 = vmatprep.mubr.bf16.mxu0 %v831
  %2691 = vmatmul.mubr.bf16.gmra.mrb[0].mxu0 %v830
  %v2692 = vpop.f32.mrb[0].mxu0
  %v2693 = vadd.f32 %v2644, %v2692
  %v2694 = vpop.f32.mrb[0].mxu0
  %v2695 = vpop.f32.mrb[0].mxu0
  %v2696 = vadd.f32 %v2647, %v2695
  %v2697 = vpop.f32.mrb[0].mxu0
  %2698 = vdwg.mxu0
  %2699 = vmatprep.subr.bf16.mxu0 0
  %2700 = vmatpush1.bf16.msra.mxu0 %v2022
  %2701 = vmatprep.subr.bf16.mxu0 0
  %2702 = vmatpush1.bf16.msra.mxu0 %v2023
  %2703 = vmatprep.subr.bf16.mxu0 0
  %2704 = vmatpush1.bf16.msra.mxu0 %v2024
  %2705 = vmatprep.subr.bf16.mxu0 0
  %2706 = vmatpush1.bf16.msra.mxu0 %v2025
  %2707 = vmatprep.subr.bf16.mxu0 0
  %2708 = vmatpush1.bf16.msra.mxu0 %v2026
  %2709 = vmatprep.subr.bf16.mxu0 0
  %2710 = vmatpush1.bf16.msra.mxu0 %v2027
  %2711 = vmatprep.subr.bf16.mxu0 0
  %2712 = vmatpush1.bf16.msra.mxu0 %v2028
  %2713 = vmatprep.subr.bf16.mxu0 0
  %2714 = vmatpush1.bf16.msra.mxu0 %v2029
  %2715 = vmatprep.subr.bf16.mxu0 0
  %2716 = vmatpush1.bf16.msra.mxu0 %v2030
  %2717 = vmatprep.subr.bf16.mxu0 0
  %2718 = vmatpush1.bf16.msra.mxu0 %v2031
  %2719 = vmatprep.subr.bf16.mxu0 0
  %2720 = vmatpush1.bf16.msra.mxu0 %v2032
  %2721 = vmatprep.subr.bf16.mxu0 0
  %2722 = vmatpush1.bf16.msra.mxu0 %v2033
  %2723 = vmatprep.subr.bf16.mxu0 0
  %2724 = vmatpush1.bf16.msra.mxu0 %v2034
  %2725 = vmatprep.subr.bf16.mxu0 0
  %2726 = vmatpush1.bf16.msra.mxu0 %v2035
  %2727 = vmatprep.subr.bf16.mxu0 0
  %2728 = vmatpush1.bf16.msra.mxu0 %v2036
  %2729 = vmatprep.subr.bf16.mxu0 0
  %2730 = vmatpush1.bf16.msra.mxu0 %v2037
  %2731 = vmatprep.mubr.bf16.mxu0 %v801
  %2732 = vmatmul.mubr.bf16.gmra.mrb[0].mxu0 %v800
  %v2733 = vpop.f32.mrb[0].mxu0
  %v2734 = vadd.f32 %v2685, %v2733
  %v2735 = vpop.f32.mrb[0].mxu0
  %v2736 = vpop.f32.mrb[0].mxu0
  %v2737 = vadd.f32 %v2688, %v2736
  %v2738 = vpop.f32.mrb[0].mxu0
  %2739 = vmatprep.mubr.bf16.mxu0 %v833
  %2740 = vmatmul.mubr.bf16.gmra.mrb[0].mxu0 %v832
  %v2741 = vpop.f32.mrb[0].mxu0
  %v2742 = vadd.f32 %v2693, %v2741
  %v2743 = vpop.f32.mrb[0].mxu0
  %v2744 = vpop.f32.mrb[0].mxu0
  %v2745 = vadd.f32 %v2696, %v2744
  %v2746 = vpop.f32.mrb[0].mxu0
  %2747 = vdwg.mxu0
  %2748 = vmatprep.subr.bf16.mxu0 0
  %2749 = vmatpush1.bf16.msra.mxu0 %v2038
  %2750 = vmatprep.subr.bf16.mxu0 0
  %2751 = vmatpush1.bf16.msra.mxu0 %v2039
  %2752 = vmatprep.subr.bf16.mxu0 0
  %2753 = vmatpush1.bf16.msra.mxu0 %v2040
  %2754 = vmatprep.subr.bf16.mxu0 0
  %2755 = vmatpush1.bf16.msra.mxu0 %v2041
  %2756 = vmatprep.subr.bf16.mxu0 0
  %2757 = vmatpush1.bf16.msra.mxu0 %v2042
  %2758 = vmatprep.subr.bf16.mxu0 0
  %2759 = vmatpush1.bf16.msra.mxu0 %v2043
  %2760 = vmatprep.subr.bf16.mxu0 0
  %2761 = vmatpush1.bf16.msra.mxu0 %v2044
  %2762 = vmatprep.subr.bf16.mxu0 0
  %2763 = vmatpush1.bf16.msra.mxu0 %v2045
  %2764 = vmatprep.subr.bf16.mxu0 0
  %2765 = vmatpush1.bf16.msra.mxu0 %v2046
  %2766 = vmatprep.subr.bf16.mxu0 0
  %2767 = vmatpush1.bf16.msra.mxu0 %v2047
  %2768 = vmatprep.subr.bf16.mxu0 0
  %2769 = vmatpush1.bf16.msra.mxu0 %v2048
  %2770 = vmatprep.subr.bf16.mxu0 0
  %2771 = vmatpush1.bf16.msra.mxu0 %v2049
  %2772 = vmatprep.subr.bf16.mxu0 0
  %2773 = vmatpush1.bf16.msra.mxu0 %v2050
  %2774 = vmatprep.subr.bf16.mxu0 0
  %2775 = vmatpush1.bf16.msra.mxu0 %v2051
  %2776 = vmatprep.subr.bf16.mxu0 0
  %2777 = vmatpush1.bf16.msra.mxu0 %v2052
  %2778 = vmatprep.subr.bf16.mxu0 0
  %2779 = vmatpush1.bf16.msra.mxu0 %v2053
  %2780 = vmatprep.mubr.bf16.mxu0 %v803
  %2781 = vmatmul.mubr.bf16.gmra.mrb[0].mxu0 %v802
  %v2782 = vpop.f32.mrb[0].mxu0
  %v2783 = vadd.f32 %v2734, %v2782
  %v2784 = vpop.f32.mrb[0].mxu0
  %v2785 = vpop.f32.mrb[0].mxu0
  %v2786 = vadd.f32 %v2737, %v2785
  %v2787 = vpop.f32.mrb[0].mxu0
  %2788 = vmatprep.mubr.bf16.mxu0 %v835
  %2789 = vmatmul.mubr.bf16.gmra.mrb[0].mxu0 %v834
  %v2790 = vpop.f32.mrb[0].mxu0
  %v2791 = vadd.f32 %v2742, %v2790
  %v2792 = vpop.f32.mrb[0].mxu0
  %v2793 = vpop.f32.mrb[0].mxu0
  %v2794 = vadd.f32 %v2745, %v2793
  %v2795 = vpop.f32.mrb[0].mxu0
  %2796 = vdwg.mxu0
  %2797 = vmatprep.subr.bf16.mxu0 0
  %2798 = vmatpush1.bf16.msra.mxu0 %v2054
  %2799 = vmatprep.subr.bf16.mxu0 0
  %2800 = vmatpush1.bf16.msra.mxu0 %v2055
  %2801 = vmatprep.subr.bf16.mxu0 0
  %2802 = vmatpush1.bf16.msra.mxu0 %v2056
  %2803 = vmatprep.subr.bf16.mxu0 0
  %2804 = vmatpush1.bf16.msra.mxu0 %v2057
  %2805 = vmatprep.subr.bf16.mxu0 0
  %2806 = vmatpush1.bf16.msra.mxu0 %v2058
  %2807 = vmatprep.subr.bf16.mxu0 0
  %2808 = vmatpush1.bf16.msra.mxu0 %v2059
  %2809 = vmatprep.subr.bf16.mxu0 0
  %2810 = vmatpush1.bf16.msra.mxu0 %v2060
  %2811 = vmatprep.subr.bf16.mxu0 0
  %2812 = vmatpush1.bf16.msra.mxu0 %v2061
  %2813 = vmatprep.subr.bf16.mxu0 0
  %2814 = vmatpush1.bf16.msra.mxu0 %v2062
  %2815 = vmatprep.subr.bf16.mxu0 0
  %2816 = vmatpush1.bf16.msra.mxu0 %v2063
  %2817 = vmatprep.subr.bf16.mxu0 0
  %2818 = vmatpush1.bf16.msra.mxu0 %v2064
  %2819 = vmatprep.subr.bf16.mxu0 0
  %2820 = vmatpush1.bf16.msra.mxu0 %v2065
  %2821 = vmatprep.subr.bf16.mxu0 0
  %2822 = vmatpush1.bf16.msra.mxu0 %v2066
  %2823 = vmatprep.subr.bf16.mxu0 0
  %2824 = vmatpush1.bf16.msra.mxu0 %v2067
  %2825 = vmatprep.subr.bf16.mxu0 0
  %2826 = vmatpush1.bf16.msra.mxu0 %v2068
  %2827 = vmatprep.subr.bf16.mxu0 0
  %2828 = vmatpush1.bf16.msra.mxu0 %v2069
  %2829 = vmatprep.mubr.bf16.mxu0 %v805
  %2830 = vmatmul.mubr.bf16.gmra.mrb[0].mxu0 %v804
  %v2831 = vpop.f32.mrb[0].mxu0
  %v2832 = vadd.f32 %v2783, %v2831
  %v2833 = vpop.f32.mrb[0].mxu0
  %v2834 = vpop.f32.mrb[0].mxu0
  %v2835 = vadd.f32 %v2786, %v2834
  %v2836 = vpop.f32.mrb[0].mxu0
  %2837 = vmatprep.mubr.bf16.mxu0 %v837
  %2838 = vmatmul.mubr.bf16.gmra.mrb[0].mxu0 %v836
  %v2839 = vpop.f32.mrb[0].mxu0
  %v2840 = vadd.f32 %v2791, %v2839
  %v2841 = vpop.f32.mrb[0].mxu0
  %v2842 = vpop.f32.mrb[0].mxu0
  %v2843 = vadd.f32 %v2794, %v2842
  %v2844 = vpop.f32.mrb[0].mxu0
  %2845 = vdwg.mxu0
  %2846 = vmatprep.subr.bf16.mxu0 0
  %2847 = vmatpush1.bf16.msra.mxu0 %v2070
  %2848 = vmatprep.subr.bf16.mxu0 0
  %2849 = vmatpush1.bf16.msra.mxu0 %v2071
  %2850 = vmatprep.subr.bf16.mxu0 0
  %2851 = vmatpush1.bf16.msra.mxu0 %v2072
  %2852 = vmatprep.subr.bf16.mxu0 0
  %2853 = vmatpush1.bf16.msra.mxu0 %v2073
  %2854 = vmatprep.subr.bf16.mxu0 0
  %2855 = vmatpush1.bf16.msra.mxu0 %v2074
  %2856 = vmatprep.subr.bf16.mxu0 0
  %2857 = vmatpush1.bf16.msra.mxu0 %v2075
  %2858 = vmatprep.subr.bf16.mxu0 0
  %2859 = vmatpush1.bf16.msra.mxu0 %v2076
  %2860 = vmatprep.subr.bf16.mxu0 0
  %2861 = vmatpush1.bf16.msra.mxu0 %v2077
  %2862 = vmatprep.subr.bf16.mxu0 0
  %2863 = vmatpush1.bf16.msra.mxu0 %v2078
  %2864 = vmatprep.subr.bf16.mxu0 0
  %2865 = vmatpush1.bf16.msra.mxu0 %v2079
  %2866 = vmatprep.subr.bf16.mxu0 0
  %2867 = vmatpush1.bf16.msra.mxu0 %v2080
  %2868 = vmatprep.subr.bf16.mxu0 0
  %2869 = vmatpush1.bf16.msra.mxu0 %v2081
  %2870 = vmatprep.subr.bf16.mxu0 0
  %2871 = vmatpush1.bf16.msra.mxu0 %v2082
  %2872 = vmatprep.subr.bf16.mxu0 0
  %2873 = vmatpush1.bf16.msra.mxu0 %v2083
  %2874 = vmatprep.subr.bf16.mxu0 0
  %2875 = vmatpush1.bf16.msra.mxu0 %v2084
  %2876 = vmatprep.subr.bf16.mxu0 0
  %2877 = vmatpush1.bf16.msra.mxu0 %v2085
  %2878 = vmatprep.mubr.bf16.mxu0 %v807
  %2879 = vmatmul.mubr.bf16.gmra.mrb[0].mxu0 %v806
  %v2880 = vpop.f32.mrb[0].mxu0
  %v2881 = vadd.f32 %v2832, %v2880
  %v2882 = vpop.f32.mrb[0].mxu0
  %v2883 = vpop.f32.mrb[0].mxu0
  %v2884 = vadd.f32 %v2835, %v2883
  %v2885 = vpop.f32.mrb[0].mxu0
  %2886 = vmatprep.mubr.bf16.mxu0 %v839
  %2887 = vmatmul.mubr.bf16.gmra.mrb[0].mxu0 %v838
  %v2888 = vpop.f32.mrb[0].mxu0
  %v2889 = vadd.f32 %v2840, %v2888
  %v2890 = vpop.f32.mrb[0].mxu0
  %v2891 = vpop.f32.mrb[0].mxu0
  %v2892 = vadd.f32 %v2843, %v2891
  %v2893 = vpop.f32.mrb[0].mxu0
  %2894 = vdwg.mxu0
  %2895 = vmatprep.subr.bf16.mxu0 0
  %2896 = vmatpush1.bf16.msra.mxu0 %v2086
  %2897 = vmatprep.subr.bf16.mxu0 0
  %2898 = vmatpush1.bf16.msra.mxu0 %v2087
  %2899 = vmatprep.subr.bf16.mxu0 0
  %2900 = vmatpush1.bf16.msra.mxu0 %v2088
  %2901 = vmatprep.subr.bf16.mxu0 0
  %2902 = vmatpush1.bf16.msra.mxu0 %v2089
  %2903 = vmatprep.subr.bf16.mxu0 0
  %2904 = vmatpush1.bf16.msra.mxu0 %v2090
  %2905 = vmatprep.subr.bf16.mxu0 0
  %2906 = vmatpush1.bf16.msra.mxu0 %v2091
  %2907 = vmatprep.subr.bf16.mxu0 0
  %2908 = vmatpush1.bf16.msra.mxu0 %v2092
  %2909 = vmatprep.subr.bf16.mxu0 0
  %2910 = vmatpush1.bf16.msra.mxu0 %v2093
  %2911 = vmatprep.subr.bf16.mxu0 0
  %2912 = vmatpush1.bf16.msra.mxu0 %v2094
  %2913 = vmatprep.subr.bf16.mxu0 0
  %2914 = vmatpush1.bf16.msra.mxu0 %v2095
  %2915 = vmatprep.subr.bf16.mxu0 0
  %2916 = vmatpush1.bf16.msra.mxu0 %v2096
  %2917 = vmatprep.subr.bf16.mxu0 0
  %2918 = vmatpush1.bf16.msra.mxu0 %v2097
  %2919 = vmatprep.subr.bf16.mxu0 0
  %2920 = vmatpush1.bf16.msra.mxu0 %v2098
  %2921 = vmatprep.subr.bf16.mxu0 0
  %2922 = vmatpush1.bf16.msra.mxu0 %v2099
  %2923 = vmatprep.subr.bf16.mxu0 0
  %2924 = vmatpush1.bf16.msra.mxu0 %v2100
  %2925 = vmatprep.subr.bf16.mxu0 0
  %2926 = vmatpush1.bf16.msra.mxu0 %v2101
  %2927 = vmatprep.mubr.bf16.mxu0 %v809
  %2928 = vmatmul.mubr.bf16.gmra.mrb[0].mxu0 %v808
  %v2929 = vpop.f32.mrb[0].mxu0
  %v2930 = vadd.f32 %v2881, %v2929
  %v2931 = vpop.f32.mrb[0].mxu0
  %v2932 = vpop.f32.mrb[0].mxu0
  %v2933 = vadd.f32 %v2884, %v2932
  %v2934 = vpop.f32.mrb[0].mxu0
  %2935 = vmatprep.mubr.bf16.mxu0 %v841
  %2936 = vmatmul.mubr.bf16.gmra.mrb[0].mxu0 %v840
  %v2937 = vpop.f32.mrb[0].mxu0
  %v2938 = vadd.f32 %v2889, %v2937
  %v2939 = vpop.f32.mrb[0].mxu0
  %v2940 = vpop.f32.mrb[0].mxu0
  %v2941 = vadd.f32 %v2892, %v2940
  %v2942 = vpop.f32.mrb[0].mxu0
  %2943 = vdwg.mxu0
  %2944 = vmatprep.subr.bf16.mxu0 0
  %2945 = vmatpush1.bf16.msra.mxu0 %v2102
  %2946 = vmatprep.subr.bf16.mxu0 0
  %2947 = vmatpush1.bf16.msra.mxu0 %v2103
  %2948 = vmatprep.subr.bf16.mxu0 0
  %2949 = vmatpush1.bf16.msra.mxu0 %v2104
  %2950 = vmatprep.subr.bf16.mxu0 0
  %2951 = vmatpush1.bf16.msra.mxu0 %v2105
  %2952 = vmatprep.subr.bf16.mxu0 0
  %2953 = vmatpush1.bf16.msra.mxu0 %v2106
  %2954 = vmatprep.subr.bf16.mxu0 0
  %2955 = vmatpush1.bf16.msra.mxu0 %v2107
  %2956 = vmatprep.subr.bf16.mxu0 0
  %2957 = vmatpush1.bf16.msra.mxu0 %v2108
  %2958 = vmatprep.subr.bf16.mxu0 0
  %2959 = vmatpush1.bf16.msra.mxu0 %v2109
  %2960 = vmatprep.subr.bf16.mxu0 0
  %2961 = vmatpush1.bf16.msra.mxu0 %v2110
  %2962 = vmatprep.subr.bf16.mxu0 0
  %2963 = vmatpush1.bf16.msra.mxu0 %v2111
  %2964 = vmatprep.subr.bf16.mxu0 0
  %2965 = vmatpush1.bf16.msra.mxu0 %v2112
  %2966 = vmatprep.subr.bf16.mxu0 0
  %2967 = vmatpush1.bf16.msra.mxu0 %v2113
  %2968 = vmatprep.subr.bf16.mxu0 0
  %2969 = vmatpush1.bf16.msra.mxu0 %v2114
  %2970 = vmatprep.subr.bf16.mxu0 0
  %2971 = vmatpush1.bf16.msra.mxu0 %v2115
  %2972 = vmatprep.subr.bf16.mxu0 0
  %2973 = vmatpush1.bf16.msra.mxu0 %v2116
  %2974 = vmatprep.subr.bf16.mxu0 0
  %2975 = vmatpush1.bf16.msra.mxu0 %v2117
  %2976 = vmatprep.mubr.bf16.mxu0 %v811
  %2977 = vmatmul.mubr.bf16.gmra.mrb[0].mxu0 %v810
  %v2978 = vpop.f32.mrb[0].mxu0
  %v2979 = vadd.f32 %v2930, %v2978
  %v2980 = vpop.f32.mrb[0].mxu0
  %v2981 = vpop.f32.mrb[0].mxu0
  %v2982 = vadd.f32 %v2933, %v2981
  %v2983 = vpop.f32.mrb[0].mxu0
  %2984 = vmatprep.mubr.bf16.mxu0 %v843
  %2985 = vmatmul.mubr.bf16.gmra.mrb[0].mxu0 %v842
  %v2986 = vpop.f32.mrb[0].mxu0
  %v2987 = vadd.f32 %v2938, %v2986
  %v2988 = vpop.f32.mrb[0].mxu0
  %v2989 = vpop.f32.mrb[0].mxu0
  %v2990 = vadd.f32 %v2941, %v2989
  %v2991 = vpop.f32.mrb[0].mxu0
  %2992 = vdwg.mxu0
  %2993 = vmatprep.subr.bf16.mxu0 0
  %2994 = vmatpush1.bf16.msra.mxu0 %v2118
  %2995 = vmatprep.subr.bf16.mxu0 0
  %2996 = vmatpush1.bf16.msra.mxu0 %v2119
  %2997 = vmatprep.subr.bf16.mxu0 0
  %2998 = vmatpush1.bf16.msra.mxu0 %v2120
  %2999 = vmatprep.subr.bf16.mxu0 0
  %3000 = vmatpush1.bf16.msra.mxu0 %v2121
  %3001 = vmatprep.subr.bf16.mxu0 0
  %3002 = vmatpush1.bf16.msra.mxu0 %v2122
  %3003 = vmatprep.subr.bf16.mxu0 0
  %3004 = vmatpush1.bf16.msra.mxu0 %v2123
  %3005 = vmatprep.subr.bf16.mxu0 0
  %3006 = vmatpush1.bf16.msra.mxu0 %v2124
  %3007 = vmatprep.subr.bf16.mxu0 0
  %3008 = vmatpush1.bf16.msra.mxu0 %v2125
  %3009 = vmatprep.subr.bf16.mxu0 0
  %3010 = vmatpush1.bf16.msra.mxu0 %v2126
  %3011 = vmatprep.subr.bf16.mxu0 0
  %3012 = vmatpush1.bf16.msra.mxu0 %v2127
  %3013 = vmatprep.subr.bf16.mxu0 0
  %3014 = vmatpush1.bf16.msra.mxu0 %v2128
  %3015 = vmatprep.subr.bf16.mxu0 0
  %3016 = vmatpush1.bf16.msra.mxu0 %v2129
  %3017 = vmatprep.subr.bf16.mxu0 0
  %3018 = vmatpush1.bf16.msra.mxu0 %v2130
  %3019 = vmatprep.subr.bf16.mxu0 0
  %3020 = vmatpush1.bf16.msra.mxu0 %v2131
  %3021 = vmatprep.subr.bf16.mxu0 0
  %3022 = vmatpush1.bf16.msra.mxu0 %v2132
  %3023 = vmatprep.subr.bf16.mxu0 0
  %3024 = vmatpush1.bf16.msra.mxu0 %v2133
  %3025 = vmatprep.mubr.bf16.mxu0 %v813
  %3026 = vmatmul.mubr.bf16.gmra.mrb[0].mxu0 %v812
  %v3027 = vpop.f32.mrb[0].mxu0
  %v3028 = vadd.f32 %v2979, %v3027
  %v3029 = vpop.f32.mrb[0].mxu0
  %v3030 = vpop.f32.mrb[0].mxu0
  %v3031 = vadd.f32 %v2982, %v3030
  %v3032 = vpop.f32.mrb[0].mxu0
  %3033 = vmatprep.mubr.bf16.mxu0 %v845
  %3034 = vmatmul.mubr.bf16.gmra.mrb[0].mxu0 %v844
  %v3035 = vpop.f32.mrb[0].mxu0
  %v3036 = vadd.f32 %v2987, %v3035
  %v3037 = vpop.f32.mrb[0].mxu0
  %v3038 = vpop.f32.mrb[0].mxu0
  %v3039 = vadd.f32 %v2990, %v3038
  %v3040 = vpop.f32.mrb[0].mxu0
  %3041 = vdwg.mxu0
  %3042 = vmatprep.subr.bf16.mxu0 0
  %3043 = vmatpush1.bf16.msra.mxu0 %v2134
  %3044 = vmatprep.subr.bf16.mxu0 0
  %3045 = vmatpush1.bf16.msra.mxu0 %v2135
  %3046 = vmatprep.subr.bf16.mxu0 0
  %3047 = vmatpush1.bf16.msra.mxu0 %v2136
  %3048 = vmatprep.subr.bf16.mxu0 0
  %3049 = vmatpush1.bf16.msra.mxu0 %v2137
  %3050 = vmatprep.subr.bf16.mxu0 0
  %3051 = vmatpush1.bf16.msra.mxu0 %v2138
  %3052 = vmatprep.subr.bf16.mxu0 0
  %3053 = vmatpush1.bf16.msra.mxu0 %v2139
  %3054 = vmatprep.subr.bf16.mxu0 0
  %3055 = vmatpush1.bf16.msra.mxu0 %v2140
  %3056 = vmatprep.subr.bf16.mxu0 0
  %3057 = vmatpush1.bf16.msra.mxu0 %v2141
  %3058 = vmatprep.subr.bf16.mxu0 0
  %3059 = vmatpush1.bf16.msra.mxu0 %v2142
  %3060 = vmatprep.subr.bf16.mxu0 0
  %3061 = vmatpush1.bf16.msra.mxu0 %v2143
  %3062 = vmatprep.subr.bf16.mxu0 0
  %3063 = vmatpush1.bf16.msra.mxu0 %v2144
  %3064 = vmatprep.subr.bf16.mxu0 0
  %3065 = vmatpush1.bf16.msra.mxu0 %v2145
  %3066 = vmatprep.subr.bf16.mxu0 0
  %3067 = vmatpush1.bf16.msra.mxu0 %v2146
  %3068 = vmatprep.subr.bf16.mxu0 0
  %3069 = vmatpush1.bf16.msra.mxu0 %v2147
  %3070 = vmatprep.subr.bf16.mxu0 0
  %3071 = vmatpush1.bf16.msra.mxu0 %v2148
  %3072 = vmatprep.subr.bf16.mxu0 0
  %3073 = vmatpush1.bf16.msra.mxu0 %v2149
  %3074 = vmatprep.mubr.bf16.mxu0 %v815
  %3075 = vmatmul.mubr.bf16.gmra.mrb[0].mxu0 %v814
  %v3076 = vpop.f32.mrb[0].mxu0
  %v3077 = vadd.f32 %v3028, %v3076
  %v3078 = vpop.f32.mrb[0].mxu0
  %v3079 = vpop.f32.mrb[0].mxu0
  %v3080 = vadd.f32 %v3031, %v3079
  %v3081 = vpop.f32.mrb[0].mxu0
  %3082 = vmatprep.mubr.bf16.mxu0 %v847
  %3083 = vmatmul.mubr.bf16.gmra.mrb[0].mxu0 %v846
  %v3084 = vpop.f32.mrb[0].mxu0
  %v3085 = vadd.f32 %v3036, %v3084
  %v3086 = vpop.f32.mrb[0].mxu0
  %v3087 = vpop.f32.mrb[0].mxu0
  %v3088 = vadd.f32 %v3039, %v3087
  %v3089 = vpop.f32.mrb[0].mxu0
  %3090 = vdwg.mxu0
  %3091 = vmatprep.subr.bf16.mxu0 0
  %3092 = vmatpush1.bf16.msra.mxu0 %v2150
  %3093 = vmatprep.subr.bf16.mxu0 0
  %3094 = vmatpush1.bf16.msra.mxu0 %v2151
  %3095 = vmatprep.subr.bf16.mxu0 0
  %3096 = vmatpush1.bf16.msra.mxu0 %v2152
  %3097 = vmatprep.subr.bf16.mxu0 0
  %3098 = vmatpush1.bf16.msra.mxu0 %v2153
  %3099 = vmatprep.subr.bf16.mxu0 0
  %3100 = vmatpush1.bf16.msra.mxu0 %v2154
  %3101 = vmatprep.subr.bf16.mxu0 0
  %3102 = vmatpush1.bf16.msra.mxu0 %v2155
  %3103 = vmatprep.subr.bf16.mxu0 0
  %3104 = vmatpush1.bf16.msra.mxu0 %v2156
  %3105 = vmatprep.subr.bf16.mxu0 0
  %3106 = vmatpush1.bf16.msra.mxu0 %v2157
  %3107 = vmatprep.subr.bf16.mxu0 0
  %3108 = vmatpush1.bf16.msra.mxu0 %v2158
  %3109 = vmatprep.subr.bf16.mxu0 0
  %3110 = vmatpush1.bf16.msra.mxu0 %v2159
  %3111 = vmatprep.subr.bf16.mxu0 0
  %3112 = vmatpush1.bf16.msra.mxu0 %v2160
  %3113 = vmatprep.subr.bf16.mxu0 0
  %3114 = vmatpush1.bf16.msra.mxu0 %v2161
  %3115 = vmatprep.subr.bf16.mxu0 0
  %3116 = vmatpush1.bf16.msra.mxu0 %v2162
  %3117 = vmatprep.subr.bf16.mxu0 0
  %3118 = vmatpush1.bf16.msra.mxu0 %v2163
  %3119 = vmatprep.subr.bf16.mxu0 0
  %3120 = vmatpush1.bf16.msra.mxu0 %v2164
  %3121 = vmatprep.subr.bf16.mxu0 0
  %3122 = vmatpush1.bf16.msra.mxu0 %v2165
  %3123 = vmatprep.mubr.bf16.mxu0 %v817
  %3124 = vmatmul.mubr.bf16.gmra.mrb[0].mxu0 %v816
  %v3125 = vpop.f32.mrb[0].mxu0
  %v3126 = vadd.f32 %v3077, %v3125
  %v3127 = vpop.f32.mrb[0].mxu0
  %v3128 = vpop.f32.mrb[0].mxu0
  %v3129 = vadd.f32 %v3080, %v3128
  %v3130 = vpop.f32.mrb[0].mxu0
  %3131 = vmatprep.mubr.bf16.mxu0 %v849
  %3132 = vmatmul.mubr.bf16.gmra.mrb[0].mxu0 %v848
  %v3133 = vpop.f32.mrb[0].mxu0
  %v3134 = vadd.f32 %v3085, %v3133
  %v3135 = vpop.f32.mrb[0].mxu0
  %v3136 = vpop.f32.mrb[0].mxu0
  %v3137 = vadd.f32 %v3088, %v3136
  %v3138 = vpop.f32.mrb[0].mxu0
  %3139 = vdwg.mxu0
  %3140 = vmatprep.subr.bf16.mxu0 0
  %3141 = vmatpush1.bf16.msra.mxu0 %v2166
  %3142 = vmatprep.subr.bf16.mxu0 0
  %3143 = vmatpush1.bf16.msra.mxu0 %v2167
  %3144 = vmatprep.subr.bf16.mxu0 0
  %3145 = vmatpush1.bf16.msra.mxu0 %v2168
  %3146 = vmatprep.subr.bf16.mxu0 0
  %3147 = vmatpush1.bf16.msra.mxu0 %v2169
  %3148 = vmatprep.subr.bf16.mxu0 0
  %3149 = vmatpush1.bf16.msra.mxu0 %v2170
  %3150 = vmatprep.subr.bf16.mxu0 0
  %3151 = vmatpush1.bf16.msra.mxu0 %v2171
  %3152 = vmatprep.subr.bf16.mxu0 0
  %3153 = vmatpush1.bf16.msra.mxu0 %v2172
  %3154 = vmatprep.subr.bf16.mxu0 0
  %3155 = vmatpush1.bf16.msra.mxu0 %v2173
  %3156 = vmatprep.subr.bf16.mxu0 0
  %3157 = vmatpush1.bf16.msra.mxu0 %v2174
  %3158 = vmatprep.subr.bf16.mxu0 0
  %3159 = vmatpush1.bf16.msra.mxu0 %v2175
  %3160 = vmatprep.subr.bf16.mxu0 0
  %3161 = vmatpush1.bf16.msra.mxu0 %v2176
  %3162 = vmatprep.subr.bf16.mxu0 0
  %3163 = vmatpush1.bf16.msra.mxu0 %v2177
  %3164 = vmatprep.subr.bf16.mxu0 0
  %3165 = vmatpush1.bf16.msra.mxu0 %v2178
  %3166 = vmatprep.subr.bf16.mxu0 0
  %3167 = vmatpush1.bf16.msra.mxu0 %v2179
  %3168 = vmatprep.subr.bf16.mxu0 0
  %3169 = vmatpush1.bf16.msra.mxu0 %v2180
  %3170 = vmatprep.subr.bf16.mxu0 0
  %3171 = vmatpush1.bf16.msra.mxu0 %v2181
  %3172 = vmatprep.mubr.bf16.mxu0 %v819
  %3173 = vmatmul.mubr.bf16.gmra.mrb[0].mxu0 %v818
  %v3174 = vpop.f32.mrb[0].mxu0
  %v3175 = vadd.f32 %v3126, %v3174
  %v3176 = vpop.f32.mrb[0].mxu0
  %v3177 = vpop.f32.mrb[0].mxu0
  %v3178 = vadd.f32 %v3129, %v3177
  %v3179 = vpop.f32.mrb[0].mxu0
  %3180 = vmatprep.mubr.bf16.mxu0 %v851
  %3181 = vmatmul.mubr.bf16.gmra.mrb[0].mxu0 %v850
  %v3182 = vpop.f32.mrb[0].mxu0
  %v3183 = vadd.f32 %v3134, %v3182
  %v3184 = vpop.f32.mrb[0].mxu0
  %v3185 = vpop.f32.mrb[0].mxu0
  %v3186 = vadd.f32 %v3137, %v3185
  %v3187 = vpop.f32.mrb[0].mxu0
  %3188 = vdwg.mxu0
  %3189 = vmatprep.subr.bf16.mxu0 0
  %3190 = vmatpush1.bf16.msra.mxu0 %v2182
  %3191 = vmatprep.subr.bf16.mxu0 0
  %3192 = vmatpush1.bf16.msra.mxu0 %v2183
  %3193 = vmatprep.subr.bf16.mxu0 0
  %3194 = vmatpush1.bf16.msra.mxu0 %v2184
  %3195 = vmatprep.subr.bf16.mxu0 0
  %3196 = vmatpush1.bf16.msra.mxu0 %v2185
  %3197 = vmatprep.subr.bf16.mxu0 0
  %3198 = vmatpush1.bf16.msra.mxu0 %v2186
  %3199 = vmatprep.subr.bf16.mxu0 0
  %3200 = vmatpush1.bf16.msra.mxu0 %v2187
  %3201 = vmatprep.subr.bf16.mxu0 0
  %3202 = vmatpush1.bf16.msra.mxu0 %v2188
  %3203 = vmatprep.subr.bf16.mxu0 0
  %3204 = vmatpush1.bf16.msra.mxu0 %v2189
  %3205 = vmatprep.subr.bf16.mxu0 0
  %3206 = vmatpush1.bf16.msra.mxu0 %v2190
  %3207 = vmatprep.subr.bf16.mxu0 0
  %3208 = vmatpush1.bf16.msra.mxu0 %v2191
  %3209 = vmatprep.subr.bf16.mxu0 0
  %3210 = vmatpush1.bf16.msra.mxu0 %v2192
  %3211 = vmatprep.subr.bf16.mxu0 0
  %3212 = vmatpush1.bf16.msra.mxu0 %v2193
  %3213 = vmatprep.subr.bf16.mxu0 0
  %3214 = vmatpush1.bf16.msra.mxu0 %v2194
  %3215 = vmatprep.subr.bf16.mxu0 0
  %3216 = vmatpush1.bf16.msra.mxu0 %v2195
  %3217 = vmatprep.subr.bf16.mxu0 0
  %3218 = vmatpush1.bf16.msra.mxu0 %v2196
  %3219 = vmatprep.subr.bf16.mxu0 0
  %3220 = vmatpush1.bf16.msra.mxu0 %v2197
  %3221 = vmatprep.mubr.bf16.mxu0 %v821
  %3222 = vmatmul.mubr.bf16.gmra.mrb[0].mxu0 %v820
  %v3223 = vpop.f32.mrb[0].mxu0
  %v3224 = vadd.f32 %v3175, %v3223
  %v3225 = vpop.f32.mrb[0].mxu0
  %v3226 = vpop.f32.mrb[0].mxu0
  %v3227 = vadd.f32 %v3178, %v3226
  %v3228 = vpop.f32.mrb[0].mxu0
  %3229 = vmatprep.mubr.bf16.mxu0 %v853
  %3230 = vmatmul.mubr.bf16.gmra.mrb[0].mxu0 %v852
  %v3231 = vpop.f32.mrb[0].mxu0
  %v3232 = vadd.f32 %v3183, %v3231
  %v3233 = vpop.f32.mrb[0].mxu0
  %v3234 = vpop.f32.mrb[0].mxu0
  %v3235 = vadd.f32 %v3186, %v3234
  %v3236 = vpop.f32.mrb[0].mxu0
  %3237 = vdwg.mxu0
  %v3238 = vmax.f32 %v3224, 0.0
  %v3239 = vmax.f32 %v3227, 0.0
  %v3240 = vmax.f32 %v3232, 0.0
  %v3241 = vmax.f32 %v3235, 0.0
  %v3242 = vpack.c.bf16 %v3239, %v3238
  %v3243 = vpack.c.bf16 %v3241, %v3240
  %v3246 = vunpack.c.l.b16 %v3242
  %v3247 = vunpack.c.h.b16 %v3242
  %v3248 = vunpack.c.l.b16 %v3243
  %v3249 = vunpack.c.h.b16 %v3243
  %v3250 = vpack.c.b16 %v3246, %v3246
  %v3251 = vpack.c.b16 %v3247, %v3247
  %v3252 = vpack.c.b16 %v3248, %v3248
  %v3253 = vpack.c.b16 %v3249, %v3249
  %vm3258 = vcmask 519168
  %3259 = vst.msk [vmem:[%s3] sm:$0xf] %vm3258, %v3250
  %3260 = vst.msk [vmem:[%s3 + $0x4] sm:$0xf] %vm3258, %v3251
  %3261 = vst.msk [vmem:[%s3 + $0x8] sm:$0xf] %vm3258, %v3252
  %3262 = vst.msk [vmem:[%s3 + $0xc] sm:$0xf] %vm3258, %v3253
  // Predicated region
  $region14: #{encoder_forward.8} parent=0 // pred_check
    _
  $region15: #{encoder_forward.8} parent=0 // pred_check_branch
    %3264 = sbr.rel (0) target = $region17
  $region16: #{encoder_forward.8} parent=0 // pred_region
    _
  $region17: #{encoder_forward.8} parent=0 // pred_fallthru
    _
  // Predicated region
  $region18: #{encoder_forward.8} parent=0 // pred_check
    _
  $region19: #{encoder_forward.8} parent=0 // pred_check_branch
    %3266 = sbr.rel (0) target = $region21
  $region20: #{encoder_forward.8} parent=0 // pred_region
    _
  $region21: #{encoder_forward.8} parent=0 // pred_fallthru
    _

</llo_original>
